<compile_context>
chip_gen: v7x
topology: tpu7x:2x2x1
jax: 0.10.0
libtpu: 0.0.40
codegen_flags: <defaults>
</compile_context>

<pallas_src>
import jax
import jax.numpy as jnp
from jax.experimental import pallas as pl
from jax.experimental.pallas import tpu as pltpu

SEQ = 16       # temporal length (forced by Linear(8192, 512): 16 * 512 = 8192)
DIM = 512      # block embedding width (forced by Linear(1024, 64))
INP = 32       # per-frame input feature width ("inp_size", free choice)

R_PER_STEP = 8                   # embed rows (== 4096 contraction elems) per grid step
N_K = SEQ // R_PER_STEP          # 2 grid steps over the linear1 contraction

# Column layout of the packed (1024, 128) "big" slab (rows 0:512 = "a" half
# applied to the first concat operand, rows 512:1024 = "b" half).
_C_NGW3 = (0, 64)      # NetGated.layer3   (1024 -> 64)
_C_W2 = (64, 80)       # Attention.linear2 (1024 -> 16)
_C_W3 = (80, 87)       # Attention.linear3 (1024 -> 7)
# Row layout of the packed (72, 128) "small" slab.
_R_NGW4 = (0, 64)      # NetGated.layer4 weight (64 -> 2), cols 0:2
_R_NGB3 = 64           # NetGated.layer3 bias, cols 0:64
_R_NGB4 = 65           # NetGated.layer4 bias, cols 0:2
_R_B2 = 66             # linear2 bias, cols 0:16
_R_B3 = 67             # linear3 bias, cols 0:7


# ------------------------------ fused kernel --------------------------------
def attention_fused_kernel(rgb_ref, depth_ref, ngw12_ref, bvec_ref,
                           big_ref, small_ref, w1_ref,
                           out_ref, embed_ref, acc_ref):
    k = pl.program_id(0)

    # ---- step 0: NetGated forward -> resident embed output; init accumulator.
    @pl.when(k == 0)
    def _():
        x_rgb = (jnp.dot(rgb_ref[...], ngw12_ref[0:INP, :],
                         preferred_element_type=jnp.float32)
                 + bvec_ref[0:1, :])
        x_depth = (jnp.dot(depth_ref[...], ngw12_ref[INP:2 * INP, :],
                           preferred_element_type=jnp.float32)
                   + bvec_ref[1:2, :])
        # layer3(cat([x_rgb, x_depth], 1)) == x_rgb @ W3[:DIM] + x_depth @ W3[DIM:]
        x3 = (jnp.dot(x_rgb, big_ref[0:DIM, _C_NGW3[0]:_C_NGW3[1]],
                      preferred_element_type=jnp.float32)
              + jnp.dot(x_depth, big_ref[DIM:2 * DIM, _C_NGW3[0]:_C_NGW3[1]],
                        preferred_element_type=jnp.float32)
              + small_ref[_R_NGB3:_R_NGB3 + 1, 0:64])
        x4 = (jnp.dot(x3, small_ref[_R_NGW4[0]:_R_NGW4[1], 0:2],
                      preferred_element_type=jnp.float32)
              + small_ref[_R_NGB4:_R_NGB4 + 1, 0:2])
        embed_ref[...] = x4[:, 0:1] * x_rgb + x4[:, 1:2] * x_depth
        acc_ref[...] = jnp.zeros_like(acc_ref)
        # NetGated.layer5 output is discarded by Attention.forward -> not computed.

    # ---- every step: partial linear1.  flat(embed) @ W1 decomposes into
    #      sum_i embed[i, :] @ W1[i*DIM:(i+1)*DIM, :]; this step handles rows
    #      [k*R, k*R+R) against the streamed bf16 (R*DIM, DIM) W1 slab.
    base = pl.multiple_of(k * R_PER_STEP, R_PER_STEP)
    chunk = embed_ref[pl.ds(base, R_PER_STEP), :]            # (R, DIM) f32, one read
    part = jnp.zeros((1, DIM), jnp.float32)
    for r in range(R_PER_STEP):                              # static unroll, R = 8
        row = chunk[r:r + 1, :].astype(jnp.bfloat16)         # (1, DIM) bf16
        part += jnp.dot(row, w1_ref[pl.ds(r * DIM, DIM), :],  # bf16 x bf16, f32 acc
                        preferred_element_type=jnp.float32)
    acc_ref[...] += part

    # ---- last step: tail (linear2 / matmul with embed / linear3).
    @pl.when(k == pl.num_programs(0) - 1)
    def _():
        x1 = acc_ref[...] + bvec_ref[2:3, :]                 # linear1 out  (1, DIM)
        curr = embed_ref[pl.ds(SEQ - 1, 1), :]               # embed[-1]    (1, DIM)
        # linear2(cat([x1, curr], 1))
        x2 = (jnp.dot(x1, big_ref[0:DIM, _C_W2[0]:_C_W2[1]],
                      preferred_element_type=jnp.float32)
              + jnp.dot(curr, big_ref[DIM:2 * DIM, _C_W2[0]:_C_W2[1]],
                        preferred_element_type=jnp.float32)
              + small_ref[_R_B2:_R_B2 + 1, 0:16])            #              (1, 16)
        attn = jnp.dot(x2, embed_ref[...],
                       preferred_element_type=jnp.float32)   # x @ embed    (1, DIM)
        # linear3(cat([attn, curr], 1))
        out_ref[...] = (jnp.dot(attn, big_ref[0:DIM, _C_W3[0]:_C_W3[1]],
                                preferred_element_type=jnp.float32)
                        + jnp.dot(curr, big_ref[DIM:2 * DIM, _C_W3[0]:_C_W3[1]],
                                  preferred_element_type=jnp.float32)
                        + small_ref[_R_B3:_R_B3 + 1, 0:7])   #              (1, 7)


# --------------------------- host-side weight packing ------------------------
def pack_params(p):
    """Pack narrow weights into lane-dense slabs (done once, outside the kernel)."""
    ngw12 = jnp.concatenate([p["ng_w1"], p["ng_w2"]], axis=0)            # (64, 512)

    bvec = jnp.zeros((8, DIM), jnp.float32)                              # (8, 512)
    bvec = bvec.at[0:1].set(p["ng_b1"]).at[1:2].set(p["ng_b2"]).at[2:3].set(p["b1"])

    ng_w3 = jnp.concatenate([p["ng_w3a"], p["ng_w3b"]], axis=0)          # (1024, 64)
    w2 = jnp.concatenate([p["w2a"], p["w2b"]], axis=0)                   # (1024, 16)
    w3 = jnp.concatenate([p["w3a"], p["w3b"]], axis=0)                   # (1024, 7)
    big = jnp.zeros((2 * DIM, 128), jnp.float32)                         # (1024, 128)
    big = big.at[:, _C_NGW3[0]:_C_NGW3[1]].set(ng_w3)
    big = big.at[:, _C_W2[0]:_C_W2[1]].set(w2)
    big = big.at[:, _C_W3[0]:_C_W3[1]].set(w3)

    small = jnp.zeros((72, 128), jnp.float32)                            # (72, 128)
    small = small.at[_R_NGW4[0]:_R_NGW4[1], 0:2].set(p["ng_w4"])
    small = small.at[_R_NGB3:_R_NGB3 + 1, 0:64].set(p["ng_b3"])
    small = small.at[_R_NGB4:_R_NGB4 + 1, 0:2].set(p["ng_b4"])
    small = small.at[_R_B2:_R_B2 + 1, 0:16].set(p["b2"])
    small = small.at[_R_B3:_R_B3 + 1, 0:7].set(p["b3"])

    return {"ngw12": ngw12, "bvec": bvec, "big": big, "small": small,
            "w1": p["w1"]}                                               # (8192,512) bf16


# ------------------------------- wrapper -------------------------------------
def attention_forward(rgb, depth, pk):
    assert R_PER_STEP * N_K == SEQ

    def const(shape):
        return pl.BlockSpec(shape, lambda k: (0,) * len(shape))

    in_specs = [
        const(rgb.shape), const(depth.shape),
        const(pk["ngw12"].shape), const(pk["bvec"].shape),
        const(pk["big"].shape), const(pk["small"].shape),
        pl.BlockSpec((R_PER_STEP * DIM, DIM), lambda k: (k, 0)),   # W1, K-tiled
    ]

    out, embed = pl.pallas_call(
        attention_fused_kernel,
        out_shape=(jax.ShapeDtypeStruct((1, 7), jnp.float32),
                   jax.ShapeDtypeStruct((SEQ, DIM), jnp.float32)),
        grid_spec=pltpu.PrefetchScalarGridSpec(
            num_scalar_prefetch=0,
            grid=(N_K,),
            in_specs=in_specs,
            out_specs=(pl.BlockSpec((1, 7), lambda k: (0, 0)),
                       pl.BlockSpec((SEQ, DIM), lambda k: (0, 0))),
            scratch_shapes=[pltpu.VMEM((1, DIM), jnp.float32)]),
        compiler_params=pltpu.CompilerParams(
            dimension_semantics=("arbitrary",)),
        cost_estimate=pl.CostEstimate(flops=11_600_000,
                                      transcendentals=0,
                                      bytes_accessed=9_200_000),
    )(rgb, depth, pk["ngw12"], pk["bvec"], pk["big"], pk["small"], pk["w1"])
    return out, embed


# ----------------------- deterministic parameter init ------------------------
def init_params(key):
    ks = jax.random.split(key, 14)
    w = lambda k, s: jax.random.normal(k, s, jnp.float32) * 0.05
    p = {}
    # NetGated: block = Linear(INP, DIM) for each branch
    p["ng_w1"], p["ng_b1"] = w(ks[0], (INP, DIM)), w(ks[1], (1, DIM))
    p["ng_w2"], p["ng_b2"] = w(ks[2], (INP, DIM)), w(ks[3], (1, DIM))
    ng_w3 = w(ks[4], (2 * DIM, 64))                           # layer3: 1024 -> 64
    p["ng_w3a"], p["ng_w3b"], p["ng_b3"] = ng_w3[:DIM], ng_w3[DIM:], w(ks[5], (1, 64))
    p["ng_w4"], p["ng_b4"] = w(ks[6], (64, 2)), w(ks[7], (1, 2))   # layer4: 64 -> 2
    # Attention.  linear1 weight stored bf16: halves the dominant HBM stream;
    # the kernel accumulates in f32 on the MXU.
    p["w1"] = w(ks[8], (SEQ * DIM, DIM)).astype(jnp.bfloat16)      # 8192 -> 512
    p["b1"] = w(ks[9], (1, DIM))
    w2 = w(ks[10], (2 * DIM, 16))                                  # 1024 -> 16
    p["w2a"], p["w2b"], p["b2"] = w2[:DIM], w2[DIM:], w(ks[11], (1, 16))
    w3 = w(ks[12], (2 * DIM, 7))                                   # 1024 -> 7
    p["w3a"], p["w3b"], p["b3"] = w3[:DIM], w3[DIM:], w(ks[13], (1, 7))
    return p


# ----------------------------- pure-JAX reference ----------------------------
def reference(rgb, depth, p):
    x_rgb = rgb @ p["ng_w1"] + p["ng_b1"]
    x_depth = depth @ p["ng_w2"] + p["ng_b2"]
    xc = jnp.concatenate([x_rgb, x_depth], axis=1)
    x = xc @ jnp.concatenate([p["ng_w3a"], p["ng_w3b"]], axis=0) + p["ng_b3"]
    x = x @ p["ng_w4"] + p["ng_b4"]
    embed = x[:, 0:1] * x_rgb + x[:, 1:2] * x_depth
    curr = embed[-1][None, :]
    flat = embed.reshape(1, -1)
    y = flat @ p["w1"].astype(jnp.float32) + p["b1"]
    y = jnp.concatenate([y, curr], axis=1)
    y = y @ jnp.concatenate([p["w2a"], p["w2b"]], axis=0) + p["b2"]
    y = y @ embed
    y = jnp.concatenate([y, curr], axis=1)
    y = y @ jnp.concatenate([p["w3a"], p["w3b"]], axis=0) + p["b3"]
    return y, embed


if __name__ == "__main__":
    key = jax.random.PRNGKey(0)
    kp, kr, kd = jax.random.split(key, 3)
    params = init_params(kp)
    packed = pack_params(params)          # one-time host-side lane-dense packing
    rgb = jax.random.normal(kr, (SEQ, INP), jnp.float32)
    depth = jax.random.normal(kd, (SEQ, INP), jnp.float32)

    out, embed = attention_forward(rgb, depth, packed)
    out = jax.block_until_ready(out)

    ref_out, ref_embed = reference(rgb, depth, params)
    assert out.shape == (1, 7) and out.dtype == jnp.float32
    # embed path is all-f32 -> tight tolerance.
    assert jnp.allclose(embed, ref_embed, atol=1e-3, rtol=1e-3)
    # linear1 runs with bf16 operands (f32 accumulation) vs the f32 reference
    # -> slightly looser tolerance on the final head output.
    assert jnp.allclose(out, ref_out, atol=5e-3, rtol=5e-3)
    print("KERNEL_OK")
</pallas_src>

<mosaic_0001>
module attributes {stable_mosaic.version = 11 : i64} {
  func.func @attention_fused_kernel(%arg0: i32, %arg1: memref<16x32xf32, #tpu.memory_space<vmem>>, %arg2: memref<16x32xf32, #tpu.memory_space<vmem>>, %arg3: memref<64x512xf32, #tpu.memory_space<vmem>>, %arg4: memref<8x512xf32, #tpu.memory_space<vmem>>, %arg5: memref<1024x128xf32, #tpu.memory_space<vmem>>, %arg6: memref<72x128xf32, #tpu.memory_space<vmem>>, %arg7: memref<4096x512xbf16, #tpu.memory_space<vmem>>, %arg8: memref<1x7xf32, #tpu.memory_space<vmem>>, %arg9: memref<16x512xf32, #tpu.memory_space<vmem>>, %arg10: memref<1x512xf32, #tpu.memory_space<vmem>>) attributes {dimension_semantics = [#tpu.dimension_semantics<arbitrary>], iteration_bounds = array<i64: 2>, scalar_prefetch = 0 : i64, scratch_operands = 1 : i64, tpu.core_type = #tpu.core_type<tc>, window_params = [{pipeline_mode = #tpu.pipeline_mode<synchronous>, transform_indices = @transform_0, window_bounds = array<i64: 16, 32>}, {pipeline_mode = #tpu.pipeline_mode<synchronous>, transform_indices = @transform_1, window_bounds = array<i64: 16, 32>}, {pipeline_mode = #tpu.pipeline_mode<synchronous>, transform_indices = @transform_2, window_bounds = array<i64: 64, 512>}, {pipeline_mode = #tpu.pipeline_mode<synchronous>, transform_indices = @transform_3, window_bounds = array<i64: 8, 512>}, {pipeline_mode = #tpu.pipeline_mode<synchronous>, transform_indices = @transform_4, window_bounds = array<i64: 1024, 128>}, {pipeline_mode = #tpu.pipeline_mode<synchronous>, transform_indices = @transform_5, window_bounds = array<i64: 72, 128>}, {transform_indices = @transform_6, window_bounds = array<i64: 4096, 512>}, {pipeline_mode = #tpu.pipeline_mode<synchronous>, transform_indices = @transform_7, window_bounds = array<i64: 1, 7>}, {pipeline_mode = #tpu.pipeline_mode<synchronous>, transform_indices = @transform_8, window_bounds = array<i64: 16, 512>}]} {
    %c0_i32 = arith.constant 0 : i32
    %0 = arith.cmpi eq, %arg0, %c0_i32 : i32
    %1 = arith.extui %0 : i1 to i32
    %c0_i32_0 = arith.constant 0 : i32
    %2 = arith.cmpi ne, %1, %c0_i32_0 : i32
    scf.if %2 {
      %c0_23 = arith.constant 0 : index
      %c0_24 = arith.constant 0 : index
      %54 = vector.load %arg1[%c0_23, %c0_24] : memref<16x32xf32, #tpu.memory_space<vmem>>, vector<16x32xf32>
      %c0_25 = arith.constant 0 : index
      %c0_26 = arith.constant 0 : index
      %55 = vector.load %arg3[%c0_25, %c0_26] : memref<64x512xf32, #tpu.memory_space<vmem>>, vector<32x512xf32>
      %cst_27 = arith.constant dense<0.000000e+00> : vector<16x512xf32>
      %56 = tpu.matmul %54, %55, %cst_27 {dimension_numbers = #tpu.dot_dimension_numbers<[1], [0], [0], [1], [0, 0, 1, 1], [], []>} : vector<16x32xf32>, vector<32x512xf32>, vector<16x512xf32> -> vector<16x512xf32>
      %c0_28 = arith.constant 0 : index
      %c0_29 = arith.constant 0 : index
      %57 = vector.load %arg4[%c0_28, %c0_29] : memref<8x512xf32, #tpu.memory_space<vmem>>, vector<1x512xf32>
      %58 = vector.broadcast %57 : vector<1x512xf32> to vector<16x512xf32>
      %59 = arith.addf %56, %58 : vector<16x512xf32>
      %c0_30 = arith.constant 0 : index
      %c0_31 = arith.constant 0 : index
      %60 = vector.load %arg2[%c0_30, %c0_31] : memref<16x32xf32, #tpu.memory_space<vmem>>, vector<16x32xf32>
      %c32 = arith.constant 32 : index
      %c0_32 = arith.constant 0 : index
      %61 = vector.load %arg3[%c32, %c0_32] : memref<64x512xf32, #tpu.memory_space<vmem>>, vector<32x512xf32>
      %cst_33 = arith.constant dense<0.000000e+00> : vector<16x512xf32>
      %62 = tpu.matmul %60, %61, %cst_33 {dimension_numbers = #tpu.dot_dimension_numbers<[1], [0], [0], [1], [0, 0, 1, 1], [], []>} : vector<16x32xf32>, vector<32x512xf32>, vector<16x512xf32> -> vector<16x512xf32>
      %c1 = arith.constant 1 : index
      %c0_34 = arith.constant 0 : index
      %63 = vector.load %arg4[%c1, %c0_34] : memref<8x512xf32, #tpu.memory_space<vmem>>, vector<1x512xf32>
      %64 = vector.broadcast %63 : vector<1x512xf32> to vector<16x512xf32>
      %65 = arith.addf %62, %64 : vector<16x512xf32>
      %c0_35 = arith.constant 0 : index
      %c0_36 = arith.constant 0 : index
      %66 = vector.load %arg5[%c0_35, %c0_36] : memref<1024x128xf32, #tpu.memory_space<vmem>>, vector<512x64xf32>
      %cst_37 = arith.constant dense<0.000000e+00> : vector<16x64xf32>
      %67 = tpu.matmul %59, %66, %cst_37 {dimension_numbers = #tpu.dot_dimension_numbers<[1], [0], [0], [1], [0, 0, 1, 1], [], []>} : vector<16x512xf32>, vector<512x64xf32>, vector<16x64xf32> -> vector<16x64xf32>
      %c512_38 = arith.constant 512 : index
      %c0_39 = arith.constant 0 : index
      %68 = vector.load %arg5[%c512_38, %c0_39] : memref<1024x128xf32, #tpu.memory_space<vmem>>, vector<512x64xf32>
      %cst_40 = arith.constant dense<0.000000e+00> : vector<16x64xf32>
      %69 = tpu.matmul %65, %68, %cst_40 {dimension_numbers = #tpu.dot_dimension_numbers<[1], [0], [0], [1], [0, 0, 1, 1], [], []>} : vector<16x512xf32>, vector<512x64xf32>, vector<16x64xf32> -> vector<16x64xf32>
      %70 = arith.addf %67, %69 : vector<16x64xf32>
      %c64 = arith.constant 64 : index
      %c0_41 = arith.constant 0 : index
      %71 = vector.load %arg6[%c64, %c0_41] : memref<72x128xf32, #tpu.memory_space<vmem>>, vector<1x64xf32>
      %72 = vector.broadcast %71 : vector<1x64xf32> to vector<16x64xf32>
      %73 = arith.addf %70, %72 : vector<16x64xf32>
      %c0_42 = arith.constant 0 : index
      %c0_43 = arith.constant 0 : index
      %74 = vector.load %arg6[%c0_42, %c0_43] : memref<72x128xf32, #tpu.memory_space<vmem>>, vector<64x2xf32>
      %cst_44 = arith.constant dense<0.000000e+00> : vector<16x2xf32>
      %75 = tpu.matmul %73, %74, %cst_44 {dimension_numbers = #tpu.dot_dimension_numbers<[1], [0], [0], [1], [0, 0, 1, 1], [], []>} : vector<16x64xf32>, vector<64x2xf32>, vector<16x2xf32> -> vector<16x2xf32>
      %c65 = arith.constant 65 : index
      %c0_45 = arith.constant 0 : index
      %76 = vector.load %arg6[%c65, %c0_45] : memref<72x128xf32, #tpu.memory_space<vmem>>, vector<1x2xf32>
      %77 = vector.broadcast %76 : vector<1x2xf32> to vector<16x2xf32>
      %78 = arith.addf %75, %77 : vector<16x2xf32>
      %79 = vector.extract_strided_slice %78 {offsets = [0, 0], sizes = [16, 1], strides = [1, 1]} : vector<16x2xf32> to vector<16x1xf32>
      %80 = vector.broadcast %79 : vector<16x1xf32> to vector<16x512xf32>
      %81 = arith.mulf %80, %59 : vector<16x512xf32>
      %82 = vector.extract_strided_slice %78 {offsets = [0, 1], sizes = [16, 1], strides = [1, 1]} : vector<16x2xf32> to vector<16x1xf32>
      %83 = vector.broadcast %82 : vector<16x1xf32> to vector<16x512xf32>
      %84 = arith.mulf %83, %65 : vector<16x512xf32>
      %85 = arith.addf %81, %84 : vector<16x512xf32>
      %c0_46 = arith.constant 0 : index
      %c0_47 = arith.constant 0 : index
      %86 = vector.load %arg9[%c0_46, %c0_47] : memref<16x512xf32, #tpu.memory_space<vmem>>, vector<16x512xf32>
      tpu.vector_store %arg9[%c0_46, %c0_47], %85 {strides = array<i32>} : memref<16x512xf32, #tpu.memory_space<vmem>>, vector<16x512xf32>,
      %cst_48 = arith.constant 0.000000e+00 : f32
      %87 = vector.broadcast %cst_48 : f32 to vector<1x512xf32>
      %c0_49 = arith.constant 0 : index
      %c0_50 = arith.constant 0 : index
      %88 = vector.load %arg10[%c0_49, %c0_50] : memref<1x512xf32, #tpu.memory_space<vmem>>, vector<1x512xf32>
      tpu.vector_store %arg10[%c0_49, %c0_50], %87 {strides = array<i32>} : memref<1x512xf32, #tpu.memory_space<vmem>>, vector<1x512xf32>,
    } else {
    }
    %c8_i32 = arith.constant 8 : i32
    %3 = arith.muli %arg0, %c8_i32 : i32
    %4 = tpu.assume_multiple %3, 8 : i32
    %5 = arith.index_cast %4 : i32 to index
    %c0 = arith.constant 0 : index
    %6 = vector.load %arg9[%5, %c0] : memref<16x512xf32, #tpu.memory_space<vmem>>, vector<8x512xf32>
    %cst = arith.constant 0.000000e+00 : f32
    %7 = vector.broadcast %cst : f32 to vector<1x512xf32>
    %8 = vector.extract_strided_slice %6 {offsets = [0, 0], sizes = [1, 512], strides = [1, 1]} : vector<8x512xf32> to vector<1x512xf32>
    %9 = arith.truncf %8 : vector<1x512xf32> to vector<1x512xbf16>
    %c0_1 = arith.constant 0 : index
    %c0_2 = arith.constant 0 : index
    %10 = vector.load %arg7[%c0_1, %c0_2] : memref<4096x512xbf16, #tpu.memory_space<vmem>>, vector<512x512xbf16>
    %cst_3 = arith.constant dense<0.000000e+00> : vector<1x512xf32>
    %11 = tpu.matmul %9, %10, %cst_3 {dimension_numbers = #tpu.dot_dimension_numbers<[1], [0], [0], [1], [0, 0, 1, 1], [], []>} : vector<1x512xbf16>, vector<512x512xbf16>, vector<1x512xf32> -> vector<1x512xf32>
    %12 = arith.addf %7, %11 : vector<1x512xf32>
    %13 = vector.extract_strided_slice %6 {offsets = [1, 0], sizes = [1, 512], strides = [1, 1]} : vector<8x512xf32> to vector<1x512xf32>
    %14 = arith.truncf %13 : vector<1x512xf32> to vector<1x512xbf16>
    %c512 = arith.constant 512 : index
    %c0_4 = arith.constant 0 : index
    %15 = vector.load %arg7[%c512, %c0_4] : memref<4096x512xbf16, #tpu.memory_space<vmem>>, vector<512x512xbf16>
    %cst_5 = arith.constant dense<0.000000e+00> : vector<1x512xf32>
    %16 = tpu.matmul %14, %15, %cst_5 {dimension_numbers = #tpu.dot_dimension_numbers<[1], [0], [0], [1], [0, 0, 1, 1], [], []>} : vector<1x512xbf16>, vector<512x512xbf16>, vector<1x512xf32> -> vector<1x512xf32>
    %17 = arith.addf %12, %16 : vector<1x512xf32>
    %18 = vector.extract_strided_slice %6 {offsets = [2, 0], sizes = [1, 512], strides = [1, 1]} : vector<8x512xf32> to vector<1x512xf32>
    %19 = arith.truncf %18 : vector<1x512xf32> to vector<1x512xbf16>
    %c1024 = arith.constant 1024 : index
    %c0_6 = arith.constant 0 : index
    %20 = vector.load %arg7[%c1024, %c0_6] : memref<4096x512xbf16, #tpu.memory_space<vmem>>, vector<512x512xbf16>
    %cst_7 = arith.constant dense<0.000000e+00> : vector<1x512xf32>
    %21 = tpu.matmul %19, %20, %cst_7 {dimension_numbers = #tpu.dot_dimension_numbers<[1], [0], [0], [1], [0, 0, 1, 1], [], []>} : vector<1x512xbf16>, vector<512x512xbf16>, vector<1x512xf32> -> vector<1x512xf32>
    %22 = arith.addf %17, %21 : vector<1x512xf32>
    %23 = vector.extract_strided_slice %6 {offsets = [3, 0], sizes = [1, 512], strides = [1, 1]} : vector<8x512xf32> to vector<1x512xf32>
    %24 = arith.truncf %23 : vector<1x512xf32> to vector<1x512xbf16>
    %c1536 = arith.constant 1536 : index
    %c0_8 = arith.constant 0 : index
    %25 = vector.load %arg7[%c1536, %c0_8] : memref<4096x512xbf16, #tpu.memory_space<vmem>>, vector<512x512xbf16>
    %cst_9 = arith.constant dense<0.000000e+00> : vector<1x512xf32>
    %26 = tpu.matmul %24, %25, %cst_9 {dimension_numbers = #tpu.dot_dimension_numbers<[1], [0], [0], [1], [0, 0, 1, 1], [], []>} : vector<1x512xbf16>, vector<512x512xbf16>, vector<1x512xf32> -> vector<1x512xf32>
    %27 = arith.addf %22, %26 : vector<1x512xf32>
    %28 = vector.extract_strided_slice %6 {offsets = [4, 0], sizes = [1, 512], strides = [1, 1]} : vector<8x512xf32> to vector<1x512xf32>
    %29 = arith.truncf %28 : vector<1x512xf32> to vector<1x512xbf16>
    %c2048 = arith.constant 2048 : index
    %c0_10 = arith.constant 0 : index
    %30 = vector.load %arg7[%c2048, %c0_10] : memref<4096x512xbf16, #tpu.memory_space<vmem>>, vector<512x512xbf16>
    %cst_11 = arith.constant dense<0.000000e+00> : vector<1x512xf32>
    %31 = tpu.matmul %29, %30, %cst_11 {dimension_numbers = #tpu.dot_dimension_numbers<[1], [0], [0], [1], [0, 0, 1, 1], [], []>} : vector<1x512xbf16>, vector<512x512xbf16>, vector<1x512xf32> -> vector<1x512xf32>
    %32 = arith.addf %27, %31 : vector<1x512xf32>
    %33 = vector.extract_strided_slice %6 {offsets = [5, 0], sizes = [1, 512], strides = [1, 1]} : vector<8x512xf32> to vector<1x512xf32>
    %34 = arith.truncf %33 : vector<1x512xf32> to vector<1x512xbf16>
    %c2560 = arith.constant 2560 : index
    %c0_12 = arith.constant 0 : index
    %35 = vector.load %arg7[%c2560, %c0_12] : memref<4096x512xbf16, #tpu.memory_space<vmem>>, vector<512x512xbf16>
    %cst_13 = arith.constant dense<0.000000e+00> : vector<1x512xf32>
    %36 = tpu.matmul %34, %35, %cst_13 {dimension_numbers = #tpu.dot_dimension_numbers<[1], [0], [0], [1], [0, 0, 1, 1], [], []>} : vector<1x512xbf16>, vector<512x512xbf16>, vector<1x512xf32> -> vector<1x512xf32>
    %37 = arith.addf %32, %36 : vector<1x512xf32>
    %38 = vector.extract_strided_slice %6 {offsets = [6, 0], sizes = [1, 512], strides = [1, 1]} : vector<8x512xf32> to vector<1x512xf32>
    %39 = arith.truncf %38 : vector<1x512xf32> to vector<1x512xbf16>
    %c3072 = arith.constant 3072 : index
    %c0_14 = arith.constant 0 : index
    %40 = vector.load %arg7[%c3072, %c0_14] : memref<4096x512xbf16, #tpu.memory_space<vmem>>, vector<512x512xbf16>
    %cst_15 = arith.constant dense<0.000000e+00> : vector<1x512xf32>
    %41 = tpu.matmul %39, %40, %cst_15 {dimension_numbers = #tpu.dot_dimension_numbers<[1], [0], [0], [1], [0, 0, 1, 1], [], []>} : vector<1x512xbf16>, vector<512x512xbf16>, vector<1x512xf32> -> vector<1x512xf32>
    %42 = arith.addf %37, %41 : vector<1x512xf32>
    %43 = vector.extract_strided_slice %6 {offsets = [7, 0], sizes = [1, 512], strides = [1, 1]} : vector<8x512xf32> to vector<1x512xf32>
    %44 = arith.truncf %43 : vector<1x512xf32> to vector<1x512xbf16>
    %c3584 = arith.constant 3584 : index
    %c0_16 = arith.constant 0 : index
    %45 = vector.load %arg7[%c3584, %c0_16] : memref<4096x512xbf16, #tpu.memory_space<vmem>>, vector<512x512xbf16>
    %cst_17 = arith.constant dense<0.000000e+00> : vector<1x512xf32>
    %46 = tpu.matmul %44, %45, %cst_17 {dimension_numbers = #tpu.dot_dimension_numbers<[1], [0], [0], [1], [0, 0, 1, 1], [], []>} : vector<1x512xbf16>, vector<512x512xbf16>, vector<1x512xf32> -> vector<1x512xf32>
    %47 = arith.addf %42, %46 : vector<1x512xf32>
    %c0_18 = arith.constant 0 : index
    %c0_19 = arith.constant 0 : index
    %48 = vector.load %arg10[%c0_18, %c0_19] : memref<1x512xf32, #tpu.memory_space<vmem>>, vector<1x512xf32>
    %49 = arith.addf %48, %47 : vector<1x512xf32>
    %c0_20 = arith.constant 0 : index
    %c0_21 = arith.constant 0 : index
    %50 = vector.load %arg10[%c0_20, %c0_21] : memref<1x512xf32, #tpu.memory_space<vmem>>, vector<1x512xf32>
    tpu.vector_store %arg10[%c0_20, %c0_21], %49 {strides = array<i32>} : memref<1x512xf32, #tpu.memory_space<vmem>>, vector<1x512xf32>,
    %c1_i32 = arith.constant 1 : i32
    %51 = arith.cmpi eq, %arg0, %c1_i32 : i32
    %52 = arith.extui %51 : i1 to i32
    %c0_i32_22 = arith.constant 0 : i32
    %53 = arith.cmpi ne, %52, %c0_i32_22 : i32
    scf.if %53 {
      %c0_23 = arith.constant 0 : index
      %c0_24 = arith.constant 0 : index
      %54 = vector.load %arg10[%c0_23, %c0_24] : memref<1x512xf32, #tpu.memory_space<vmem>>, vector<1x512xf32>
      %c2 = arith.constant 2 : index
      %c0_25 = arith.constant 0 : index
      %55 = vector.load %arg4[%c2, %c0_25] : memref<8x512xf32, #tpu.memory_space<vmem>>, vector<1x512xf32>
      %56 = arith.addf %54, %55 : vector<1x512xf32>
      %c15 = arith.constant 15 : index
      %c0_26 = arith.constant 0 : index
      %57 = vector.load %arg9[%c15, %c0_26] : memref<16x512xf32, #tpu.memory_space<vmem>>, vector<1x512xf32>
      %c0_27 = arith.constant 0 : index
      %c64 = arith.constant 64 : index
      %58 = vector.load %arg5[%c0_27, %c64] : memref<1024x128xf32, #tpu.memory_space<vmem>>, vector<512x16xf32>
      %cst_28 = arith.constant dense<0.000000e+00> : vector<1x16xf32>
      %59 = tpu.matmul %56, %58, %cst_28 {dimension_numbers = #tpu.dot_dimension_numbers<[1], [0], [0], [1], [0, 0, 1, 1], [], []>} : vector<1x512xf32>, vector<512x16xf32>, vector<1x16xf32> -> vector<1x16xf32>
      %c512_29 = arith.constant 512 : index
      %c64_30 = arith.constant 64 : index
      %60 = vector.load %arg5[%c512_29, %c64_30] : memref<1024x128xf32, #tpu.memory_space<vmem>>, vector<512x16xf32>
      %cst_31 = arith.constant dense<0.000000e+00> : vector<1x16xf32>
      %61 = tpu.matmul %57, %60, %cst_31 {dimension_numbers = #tpu.dot_dimension_numbers<[1], [0], [0], [1], [0, 0, 1, 1], [], []>} : vector<1x512xf32>, vector<512x16xf32>, vector<1x16xf32> -> vector<1x16xf32>
      %62 = arith.addf %59, %61 : vector<1x16xf32>
      %c66 = arith.constant 66 : index
      %c0_32 = arith.constant 0 : index
      %63 = vector.load %arg6[%c66, %c0_32] : memref<72x128xf32, #tpu.memory_space<vmem>>, vector<1x16xf32>
      %64 = arith.addf %62, %63 : vector<1x16xf32>
      %c0_33 = arith.constant 0 : index
      %c0_34 = arith.constant 0 : index
      %65 = vector.load %arg9[%c0_33, %c0_34] : memref<16x512xf32, #tpu.memory_space<vmem>>, vector<16x512xf32>
      %cst_35 = arith.constant dense<0.000000e+00> : vector<1x512xf32>
      %66 = tpu.matmul %64, %65, %cst_35 {dimension_numbers = #tpu.dot_dimension_numbers<[1], [0], [0], [1], [0, 0, 1, 1], [], []>} : vector<1x16xf32>, vector<16x512xf32>, vector<1x512xf32> -> vector<1x512xf32>
      %c0_36 = arith.constant 0 : index
      %c80 = arith.constant 80 : index
      %67 = vector.load %arg5[%c0_36, %c80] : memref<1024x128xf32, #tpu.memory_space<vmem>>, vector<512x7xf32>
      %cst_37 = arith.constant dense<0.000000e+00> : vector<1x7xf32>
      %68 = tpu.matmul %66, %67, %cst_37 {dimension_numbers = #tpu.dot_dimension_numbers<[1], [0], [0], [1], [0, 0, 1, 1], [], []>} : vector<1x512xf32>, vector<512x7xf32>, vector<1x7xf32> -> vector<1x7xf32>
      %c512_38 = arith.constant 512 : index
      %c80_39 = arith.constant 80 : index
      %69 = vector.load %arg5[%c512_38, %c80_39] : memref<1024x128xf32, #tpu.memory_space<vmem>>, vector<512x7xf32>
      %cst_40 = arith.constant dense<0.000000e+00> : vector<1x7xf32>
      %70 = tpu.matmul %57, %69, %cst_40 {dimension_numbers = #tpu.dot_dimension_numbers<[1], [0], [0], [1], [0, 0, 1, 1], [], []>} : vector<1x512xf32>, vector<512x7xf32>, vector<1x7xf32> -> vector<1x7xf32>
      %71 = arith.addf %68, %70 : vector<1x7xf32>
      %c67 = arith.constant 67 : index
      %c0_41 = arith.constant 0 : index
      %72 = vector.load %arg6[%c67, %c0_41] : memref<72x128xf32, #tpu.memory_space<vmem>>, vector<1x7xf32>
      %73 = arith.addf %71, %72 : vector<1x7xf32>
      %c0_42 = arith.constant 0 : index
      %c0_43 = arith.constant 0 : index
      %74 = vector.load %arg8[%c0_42, %c0_43] : memref<1x7xf32, #tpu.memory_space<vmem>>, vector<1x7xf32>
      tpu.vector_store %arg8[%c0_42, %c0_43], %73 {strides = array<i32>} : memref<1x7xf32, #tpu.memory_space<vmem>>, vector<1x7xf32>,
    } else {
    }
    return
  }
  func.func @transform_0(%arg0: i32) -> (i32, i32) {
    %c0_i32 = arith.constant 0 : i32
    %c0_i32_0 = arith.constant 0 : i32
    %c0_i32_1 = arith.constant 0 : i32
    return %c0_i32, %c0_i32_0 : i32, i32
  }
  func.func @transform_1(%arg0: i32) -> (i32, i32) {
    %c0_i32 = arith.constant 0 : i32
    %c0_i32_0 = arith.constant 0 : i32
    %c0_i32_1 = arith.constant 0 : i32
    return %c0_i32, %c0_i32_0 : i32, i32
  }
  func.func @transform_2(%arg0: i32) -> (i32, i32) {
    %c0_i32 = arith.constant 0 : i32
    %c0_i32_0 = arith.constant 0 : i32
    %c0_i32_1 = arith.constant 0 : i32
    return %c0_i32, %c0_i32_0 : i32, i32
  }
  func.func @transform_3(%arg0: i32) -> (i32, i32) {
    %c0_i32 = arith.constant 0 : i32
    %c0_i32_0 = arith.constant 0 : i32
    %c0_i32_1 = arith.constant 0 : i32
    return %c0_i32, %c0_i32_0 : i32, i32
  }
  func.func @transform_4(%arg0: i32) -> (i32, i32) {
    %c0_i32 = arith.constant 0 : i32
    %c0_i32_0 = arith.constant 0 : i32
    %c0_i32_1 = arith.constant 0 : i32
    return %c0_i32, %c0_i32_0 : i32, i32
  }
  func.func @transform_5(%arg0: i32) -> (i32, i32) {
    %c0_i32 = arith.constant 0 : i32
    %c0_i32_0 = arith.constant 0 : i32
    %c0_i32_1 = arith.constant 0 : i32
    return %c0_i32, %c0_i32_0 : i32, i32
  }
  func.func @transform_6(%arg0: i32) -> (i32, i32) {
    %c0_i32 = arith.constant 0 : i32
    %c0_i32_0 = arith.constant 0 : i32
    return %arg0, %c0_i32 : i32, i32
  }
  func.func @transform_7(%arg0: i32) -> (i32, i32) {
    %c0_i32 = arith.constant 0 : i32
    %c0_i32_0 = arith.constant 0 : i32
    %c0_i32_1 = arith.constant 0 : i32
    return %c0_i32, %c0_i32_0 : i32, i32
  }
  func.func @transform_8(%arg0: i32) -> (i32, i32) {
    %c0_i32 = arith.constant 0 : i32
    %c0_i32_0 = arith.constant 0 : i32
    %c0_i32_1 = arith.constant 0 : i32
    return %c0_i32, %c0_i32_0 : i32, i32
  }
}

</mosaic_0001>

<llo_original>
// kernel: tpu_custom_call.1
$region0: #{tpu_custom_call.1}
  #allocation0 [shape = 'u32[]', space=smem, size = 0x4, offset = 0x4, fixed_abs, tag = 'smem constant byte address 0x4 - core index']
  #allocation1 [shape = 'u32[144,128]{1,0:T(1,128)}', space=vmem, size = 0x12000, scoped, tag = 'internal scratch']
  #allocation2 [shape = 'f32[1,512]{1,0:T(1,128)}', space=vmem, size = 0x800, scoped, tag = 'scratch operand']
  %s0 = inlined_call_operand.hbm [shape: f32[16,32], index: 0, kind: input, shape index: {}]
  %s1 = inlined_call_operand.hbm [shape: f32[16,32], index: 1, kind: input, shape index: {}]
  %s2 = inlined_call_operand.hbm [shape: f32[64,512], index: 2, kind: input, shape index: {}]
  %s3 = inlined_call_operand.hbm [shape: f32[8,512], index: 3, kind: input, shape index: {}]
  %s4 = inlined_call_operand.hbm [shape: f32[1024,128], index: 4, kind: input, shape index: {}]
  %s5 = inlined_call_operand.hbm [shape: f32[72,128], index: 5, kind: input, shape index: {}]
  %s6 = inlined_call_operand.hbm [shape: bf16[8192,512], index: 6, kind: input, shape index: {}]
  %s7 = inlined_call_operand.hbm [shape: f32[1,7], index: 7, kind: output, shape index: {0}]
  %s8 = inlined_call_operand.hbm [shape: f32[16,512], index: 8, kind: output, shape index: {1}]
  %9 = xla_tuple %s7, %s8
  %s10 = sld [smem:[#allocation0]]
  $region105: #{tpu_custom_call.1} parent=0
    _
  %s12 = ssub.s32 1, %s10
  %s13 = scalar_select 0, %s12, %s10
  $region1: #{tpu_custom_call.1} parent=0
    #allocation3 [shape = 'u8[8192]{0}', space=vmem, size = 0x2000, scoped, tag = 'input window, operand 0, single buffered']
    #allocation4 [shape = 's32[2]{0}', space=sflag, size = 0x8, scoped, tag = 'scoped memory for tpu_custom_call.1']
    #allocation5 [shape = 's32[2]{0}', space=sflag, size = 0x8, scoped, tag = 'scoped memory for tpu_custom_call.1']
    #allocation6 [shape = 'u8[8192]{0}', space=vmem, size = 0x2000, scoped, tag = 'input window, operand 1, single buffered']
    #allocation7 [shape = 's32[1]{0}', space=sflag, size = 0x4, scoped, tag = 'scoped memory for tpu_custom_call.1']
    #allocation8 [shape = 'u8[131072]{0}', space=vmem, size = 0x20000, scoped, tag = 'input window, operand 2, single buffered']
    #allocation9 [shape = 'u8[16384]{0}', space=vmem, size = 0x4000, scoped, tag = 'input window, operand 3, single buffered']
    #allocation10 [shape = 's32[1]{0}', space=sflag, size = 0x4, scoped, tag = 'scoped memory for tpu_custom_call.1']
    #allocation11 [shape = 'u8[524288]{0}', space=vmem, size = 0x80000, scoped, tag = 'input window, operand 4, single buffered']
    #allocation12 [shape = 'u8[36864]{0}', space=vmem, size = 0x9000, scoped, tag = 'input window, operand 5, single buffered']
    #allocation13 [shape = 's32[1]{0}', space=sflag, size = 0x4, scoped, tag = 'scoped memory for tpu_custom_call.1']
    #allocation14 [shape = 'u8[8388608]{0}', space=vmem, size = 0x800000, scoped, tag = 'input window, operand 6']
    #allocation15 [shape = 'u8[512]{0}', space=vmem, size = 0x400, scoped, tag = 'output window, operand 0, single buffered']
    #allocation16 [shape = 'u8[32768]{0}', space=vmem, size = 0x8000, scoped, tag = 'output window, operand 1, single buffered']
    #allocation17 [shape = 's32[1]{0}', space=sflag, size = 0x4, scoped, tag = 'scoped memory for tpu_custom_call.1']
    %14 = vsyncpa [#allocation4], 0
    %15 = vsyncpa [#allocation7], 0
    %16 = vsyncpa [#allocation10], 0
    %17 = vsyncpa [#allocation13], 0
    %18 = vsyncpa [#allocation5], 0
    %19 = vsyncpa [#allocation17], 0
    loop: start=0, step=1, limit=4
    $region2: #{tpu_custom_call.1} parent=1 // loop_pre_header
      _
    $region3: #{tpu_custom_call.1} parent=1 // loop_header
      %s21 = sphi 0, %s25
      %p22 = scmp.ge.s32.totalorder %s21, 4
      %s29 = sphi 0, %s29
      %s31 = sphi 0, %s29
      %s32 = sphi 0, %s31
      %s46 = sphi 0, %s32
      %s50 = sphi 0, %s50
      %s52 = sphi 0, %s50
      %s53 = sphi 0, %s52
      %s67 = sphi 0, %s53
      %s71 = sphi 0, %s71
      %s73 = sphi 0, %s71
      %s74 = sphi 0, %s73
      %s88 = sphi 0, %s74
      %s92 = sphi 0, %s92
      %s94 = sphi 0, %s92
      %s95 = sphi 0, %s94
      %s109 = sphi 0, %s95
      %s113 = sphi 0, %s113
      %s115 = sphi 0, %s113
      %s116 = sphi 0, %s115
      %s130 = sphi 0, %s116
      %s134 = sphi 0, %s134
      %s136 = sphi 0, %s134
      %s137 = sphi 0, %s136
      %s151 = sphi 0, %s137
      %s157 = sphi 0, %s159
      %s160 = sphi 0, %s157
      %s161 = sphi 0, %s160
      %s177 = sphi 0, %s161
      %s181 = sphi 0, %s181
      %s183 = sphi 0, %s181
      %s184 = sphi 0, %s183
      %s198 = sphi 0, %s184
      %s202 = sphi 0, %s202
      %s204 = sphi 0, %s202
      %s205 = sphi 0, %s204
      %s219 = sphi 0, %s205
    $region4: #{tpu_custom_call.1} parent=1 // loop_header_branch
      %24 = sbr.rel (%p22) target = $region8
    $region5: #{tpu_custom_call.1} parent=1 // loop_body
      %s26 = ssub.s32 %s21, 1
      %s27 = ssub.s32 %s21, 2
      %s28 = sadd.s32 %s21, 1
      %s30 = sadd.s32 %s29, 1
      %p33 = scmp.eq.s32.totalorder %s21, 1
      %p34 = scmp.ne.s32.totalorder %s29, %s31
      %p35 = scmp.eq.s32.totalorder %s21, 0
      %p36 = por %p34, %p35
      %p37 = scmp.ne.s32.totalorder %s29, %s31
      %p38 = scmp.eq.s32.totalorder %s26, 1
      %p39 = por %p37, %p38
      %p40 = scmp.ne.s32.totalorder %s31, %s32
      %p41 = scmp.eq.s32.totalorder %s26, 0
      %p42 = por %p40, %p41
      %p43 = scmp.ne.s32.totalorder %s31, %s32
      %p44 = scmp.eq.s32.totalorder %s27, 1
      %p45 = por %p43, %p44
      %p47 = scmp.ne.s32.totalorder %s32, %s46
      %p48 = scmp.eq.s32.totalorder %s27, 0
      %p49 = por %p47, %p48
      %s51 = sadd.s32 %s50, 1
      %p54 = scmp.eq.s32.totalorder %s21, 1
      %p55 = scmp.ne.s32.totalorder %s50, %s52
      %p56 = scmp.eq.s32.totalorder %s21, 0
      %p57 = por %p55, %p56
      %p58 = scmp.ne.s32.totalorder %s50, %s52
      %p59 = scmp.eq.s32.totalorder %s26, 1
      %p60 = por %p58, %p59
      %p61 = scmp.ne.s32.totalorder %s52, %s53
      %p62 = scmp.eq.s32.totalorder %s26, 0
      %p63 = por %p61, %p62
      %p64 = scmp.ne.s32.totalorder %s52, %s53
      %p65 = scmp.eq.s32.totalorder %s27, 1
      %p66 = por %p64, %p65
      %p68 = scmp.ne.s32.totalorder %s53, %s67
      %p69 = scmp.eq.s32.totalorder %s27, 0
      %p70 = por %p68, %p69
      %s72 = sadd.s32 %s71, 1
      %p75 = scmp.eq.s32.totalorder %s21, 1
      %p76 = scmp.ne.s32.totalorder %s71, %s73
      %p77 = scmp.eq.s32.totalorder %s21, 0
      %p78 = por %p76, %p77
      %p79 = scmp.ne.s32.totalorder %s71, %s73
      %p80 = scmp.eq.s32.totalorder %s26, 1
      %p81 = por %p79, %p80
      %p82 = scmp.ne.s32.totalorder %s73, %s74
      %p83 = scmp.eq.s32.totalorder %s26, 0
      %p84 = por %p82, %p83
      %p85 = scmp.ne.s32.totalorder %s73, %s74
      %p86 = scmp.eq.s32.totalorder %s27, 1
      %p87 = por %p85, %p86
      %p89 = scmp.ne.s32.totalorder %s74, %s88
      %p90 = scmp.eq.s32.totalorder %s27, 0
      %p91 = por %p89, %p90
      %s93 = sadd.s32 %s92, 1
      %p96 = scmp.eq.s32.totalorder %s21, 1
      %p97 = scmp.ne.s32.totalorder %s92, %s94
      %p98 = scmp.eq.s32.totalorder %s21, 0
      %p99 = por %p97, %p98
      %p100 = scmp.ne.s32.totalorder %s92, %s94
      %p101 = scmp.eq.s32.totalorder %s26, 1
      %p102 = por %p100, %p101
      %p103 = scmp.ne.s32.totalorder %s94, %s95
      %p104 = scmp.eq.s32.totalorder %s26, 0
      %p105 = por %p103, %p104
      %p106 = scmp.ne.s32.totalorder %s94, %s95
      %p107 = scmp.eq.s32.totalorder %s27, 1
      %p108 = por %p106, %p107
      %p110 = scmp.ne.s32.totalorder %s95, %s109
      %p111 = scmp.eq.s32.totalorder %s27, 0
      %p112 = por %p110, %p111
      %s114 = sadd.s32 %s113, 1
      %p117 = scmp.eq.s32.totalorder %s21, 1
      %p118 = scmp.ne.s32.totalorder %s113, %s115
      %p119 = scmp.eq.s32.totalorder %s21, 0
      %p120 = por %p118, %p119
      %p121 = scmp.ne.s32.totalorder %s113, %s115
      %p122 = scmp.eq.s32.totalorder %s26, 1
      %p123 = por %p121, %p122
      %p124 = scmp.ne.s32.totalorder %s115, %s116
      %p125 = scmp.eq.s32.totalorder %s26, 0
      %p126 = por %p124, %p125
      %p127 = scmp.ne.s32.totalorder %s115, %s116
      %p128 = scmp.eq.s32.totalorder %s27, 1
      %p129 = por %p127, %p128
      %p131 = scmp.ne.s32.totalorder %s116, %s130
      %p132 = scmp.eq.s32.totalorder %s27, 0
      %p133 = por %p131, %p132
      %s135 = sadd.s32 %s134, 1
      %p138 = scmp.eq.s32.totalorder %s21, 1
      %p139 = scmp.ne.s32.totalorder %s134, %s136
      %p140 = scmp.eq.s32.totalorder %s21, 0
      %p141 = por %p139, %p140
      %p142 = scmp.ne.s32.totalorder %s134, %s136
      %p143 = scmp.eq.s32.totalorder %s26, 1
      %p144 = por %p142, %p143
      %p145 = scmp.ne.s32.totalorder %s136, %s137
      %p146 = scmp.eq.s32.totalorder %s26, 0
      %p147 = por %p145, %p146
      %p148 = scmp.ne.s32.totalorder %s136, %s137
      %p149 = scmp.eq.s32.totalorder %s27, 1
      %p150 = por %p148, %p149
      %p152 = scmp.ne.s32.totalorder %s137, %s151
      %p153 = scmp.eq.s32.totalorder %s27, 0
      %p154 = por %p152, %p153
      %s155 = ssub.s32 %s21, %s28
      %p156 = scmp.eq.s32.totalorder %s155, 0
      %s158 = sadd.s32 %s157, 1
      %s159 = scalar_select %p156, %s157, %s158
      %p162 = pneg %p156
      %p163 = scmp.eq.s32.totalorder %s21, 1
      %p164 = por %p162, %p163
      %p165 = scmp.ne.s32.totalorder %s157, %s160
      %p166 = scmp.eq.s32.totalorder %s21, 0
      %p167 = por %p165, %p166
      %p168 = scmp.ne.s32.totalorder %s157, %s160
      %p169 = scmp.eq.s32.totalorder %s26, 1
      %p170 = por %p168, %p169
      %p171 = scmp.ne.s32.totalorder %s160, %s161
      %p172 = scmp.eq.s32.totalorder %s26, 0
      %p173 = por %p171, %p172
      %p174 = scmp.ne.s32.totalorder %s160, %s161
      %p175 = scmp.eq.s32.totalorder %s27, 1
      %p176 = por %p174, %p175
      %p178 = scmp.ne.s32.totalorder %s161, %s177
      %p179 = scmp.eq.s32.totalorder %s27, 0
      %p180 = por %p178, %p179
      %s182 = sadd.s32 %s181, 1
      %p185 = scmp.eq.s32.totalorder %s21, 1
      %p186 = scmp.ne.s32.totalorder %s181, %s183
      %p187 = scmp.eq.s32.totalorder %s21, 0
      %p188 = por %p186, %p187
      %p189 = scmp.ne.s32.totalorder %s181, %s183
      %p190 = scmp.eq.s32.totalorder %s26, 1
      %p191 = por %p189, %p190
      %p192 = scmp.ne.s32.totalorder %s183, %s184
      %p193 = scmp.eq.s32.totalorder %s26, 0
      %p194 = por %p192, %p193
      %p195 = scmp.ne.s32.totalorder %s183, %s184
      %p196 = scmp.eq.s32.totalorder %s27, 1
      %p197 = por %p195, %p196
      %p199 = scmp.ne.s32.totalorder %s184, %s198
      %p200 = scmp.eq.s32.totalorder %s27, 0
      %p201 = por %p199, %p200
      %s203 = sadd.s32 %s202, 1
      %p206 = scmp.eq.s32.totalorder %s21, 1
      %p207 = scmp.ne.s32.totalorder %s202, %s204
      %p208 = scmp.eq.s32.totalorder %s21, 0
      %p209 = por %p207, %p208
      %p210 = scmp.ne.s32.totalorder %s202, %s204
      %p211 = scmp.eq.s32.totalorder %s26, 1
      %p212 = por %p210, %p211
      %p213 = scmp.ne.s32.totalorder %s204, %s205
      %p214 = scmp.eq.s32.totalorder %s26, 0
      %p215 = por %p213, %p214
      %p216 = scmp.ne.s32.totalorder %s204, %s205
      %p217 = scmp.eq.s32.totalorder %s27, 1
      %p218 = por %p216, %p217
      %p220 = scmp.ne.s32.totalorder %s205, %s219
      %p221 = scmp.eq.s32.totalorder %s27, 0
      %p222 = por %p220, %p221
      %p223 = scmp.le.s32.totalorder 1, %s21
      %p224 = scmp.lt.s32.totalorder %s21, 3
      %p225 = pnand %p223, %p224
      %p226 = pneg %p225
      // Predicated region
      $region9: #{tpu_custom_call.1} parent=5 // pred_check
        _
      $region10: #{tpu_custom_call.1} parent=5 // pred_check_branch
        %228 = sbr.rel (%p225) target = $region12
      $region11: #{tpu_custom_call.1} parent=5 // pred_region
        %s229 = ssub.s32 %s21, 1
        // Predicated region
        $region13: #{tpu_custom_call.1} parent=11 // pred_check
          %p230 = pneg %p42
        $region14: #{tpu_custom_call.1} parent=11 // pred_check_branch
          %232 = sbr.rel (%p230) target = $region16
        $region15: #{tpu_custom_call.1} parent=11 // pred_region
          %s234 = ssub.s32 256, 256
          %235 = vsyncadd [#allocation4], %s234
          %s236 = sshll.u32 [#allocation3], 4
          %s237 = int_to_ptr.vmem [resolvable:$true] %s236
          %242 = dma.hbm_to_vmem [thread:$0]  %s0, 256, %s237, [#allocation4], 128, 128, 8
        $region16: #{tpu_custom_call.1} parent=11 // pred_fallthru
          _
        // Predicated region
        $region17: #{tpu_custom_call.1} parent=11 // pred_check
          %p243 = pneg %p63
        $region18: #{tpu_custom_call.1} parent=11 // pred_check_branch
          %245 = sbr.rel (%p243) target = $region20
        $region19: #{tpu_custom_call.1} parent=11 // pred_region
          %s247 = ssub.s32 256, 256
          %248 = vsyncadd [#allocation7], %s247
          %s249 = sshll.u32 [#allocation6], 4
          %s250 = int_to_ptr.vmem [resolvable:$true] %s249
          %255 = dma.hbm_to_vmem [thread:$0]  %s1, 256, %s250, [#allocation7], 128, 128, 8
        $region20: #{tpu_custom_call.1} parent=11 // pred_fallthru
          _
        // Predicated region
        $region21: #{tpu_custom_call.1} parent=11 // pred_check
          %p256 = pneg %p84
        $region22: #{tpu_custom_call.1} parent=11 // pred_check_branch
          %258 = sbr.rel (%p256) target = $region24
        $region23: #{tpu_custom_call.1} parent=11 // pred_region
          %s260 = ssub.s32 4096, 4096
          %261 = vsyncadd [#allocation7], %s260
          %s262 = sshll.u32 [#allocation8], 4
          %s263 = int_to_ptr.vmem [resolvable:$true] %s262
          %268 = dma.hbm_to_vmem [thread:$0]  %s2, 4096, %s263, [#allocation7], 512, 512, 32
        $region24: #{tpu_custom_call.1} parent=11 // pred_fallthru
          _
        // Predicated region
        $region25: #{tpu_custom_call.1} parent=11 // pred_check
          %p269 = pneg %p105
        $region26: #{tpu_custom_call.1} parent=11 // pred_check_branch
          %271 = sbr.rel (%p269) target = $region28
        $region27: #{tpu_custom_call.1} parent=11 // pred_region
          %s273 = ssub.s32 512, 512
          %274 = vsyncadd [#allocation10], %s273
          %s276 = sshll.u32 [#allocation9], 4
          %s277 = int_to_ptr.vmem [resolvable:$true] %s276
          %279 = dma.hbm_to_vmem [thread:$0]  %s3, 512, %s277, [#allocation10]
        $region28: #{tpu_custom_call.1} parent=11 // pred_fallthru
          _
        // Predicated region
        $region29: #{tpu_custom_call.1} parent=11 // pred_check
          %p280 = pneg %p126
        $region30: #{tpu_custom_call.1} parent=11 // pred_check_branch
          %282 = sbr.rel (%p280) target = $region32
        $region31: #{tpu_custom_call.1} parent=11 // pred_region
          %s284 = ssub.s32 16384, 16384
          %285 = vsyncadd [#allocation10], %s284
          %s286 = sshll.u32 [#allocation11], 4
          %s287 = int_to_ptr.vmem [resolvable:$true] %s286
          %292 = dma.hbm_to_vmem [thread:$0]  %s4, 16384, %s287, [#allocation10], 128, 128, 8
        $region32: #{tpu_custom_call.1} parent=11 // pred_fallthru
          _
        // Predicated region
        $region33: #{tpu_custom_call.1} parent=11 // pred_check
          %p293 = pneg %p147
        $region34: #{tpu_custom_call.1} parent=11 // pred_check_branch
          %295 = sbr.rel (%p293) target = $region36
        $region35: #{tpu_custom_call.1} parent=11 // pred_region
          %s297 = ssub.s32 1152, 1152
          %298 = vsyncadd [#allocation13], %s297
          %s299 = sshll.u32 [#allocation12], 4
          %s300 = int_to_ptr.vmem [resolvable:$true] %s299
          %305 = dma.hbm_to_vmem [thread:$0]  %s5, 1152, %s300, [#allocation13], 128, 128, 8
        $region36: #{tpu_custom_call.1} parent=11 // pred_fallthru
          _
      $region12: #{tpu_custom_call.1} parent=5 // pred_fallthru
        _
      %p306 = scmp.lt.s32.totalorder %s21, 2
      // Predicated region
      $region37: #{tpu_custom_call.1} parent=5 // pred_check
        %p307 = pneg %p306
      $region38: #{tpu_custom_call.1} parent=5 // pred_check_branch
        %309 = sbr.rel (%p307) target = $region40
      $region39: #{tpu_custom_call.1} parent=5 // pred_region
        // Predicated region
        $region41: #{tpu_custom_call.1} parent=39 // pred_check
          %p310 = pneg %p167
        $region42: #{tpu_custom_call.1} parent=39 // pred_check_branch
          %312 = sbr.rel (%p310) target = $region44
        $region43: #{tpu_custom_call.1} parent=39 // pred_region
          %s313 = sand.u32 %s21, 1
          %s314 = scalar_lea.sflag [#allocation4], %s313
          %s315 = sand.u32 %s157, 1
          %s316 = smul.addr %s315, 8192
          %s317 = scalar_lea.vmem [#allocation14], %s316
          %s318 = smul.u32 512, %s21
          %s320 = ssub.s32 131072, 131072
          %321 = vsyncadd %s314, %s320
          %s322 = smul.addr %s318, 4
          %s323 = smul.addr %s322, 64
          %s324 = scalar_lea.hbm %s6, %s323
          %s325 = sshll.u32 %s317, 4
          %s326 = int_to_ptr.vmem [resolvable:$true] %s325
          %331 = dma.hbm_to_vmem [thread:$0]  %s324, 131072, %s326, %s314, 256, 256, 16
        $region44: #{tpu_custom_call.1} parent=39 // pred_fallthru
          _
      $region40: #{tpu_custom_call.1} parent=5 // pred_fallthru
        _
      %p332 = scmp.le.s32.totalorder 1, %s21
      %p333 = scmp.lt.s32.totalorder %s21, 3
      %p334 = pnand %p332, %p333
      %p335 = pneg %p334
      // Predicated region
      $region45: #{tpu_custom_call.1} parent=5 // pred_check
        _
      $region46: #{tpu_custom_call.1} parent=5 // pred_check_branch
        %337 = sbr.rel (%p334) target = $region48
      $region47: #{tpu_custom_call.1} parent=5 // pred_region
        %s338 = ssub.s32 %s21, 1
        // Predicated region
        $region49: #{tpu_custom_call.1} parent=47 // pred_check
          %p339 = pneg %p42
        $region50: #{tpu_custom_call.1} parent=47 // pred_check_branch
          %341 = sbr.rel (%p339) target = $region52
        $region51: #{tpu_custom_call.1} parent=47 // pred_region
          %342 = dma.done [#allocation4], 256
        $region52: #{tpu_custom_call.1} parent=47 // pred_fallthru
          _
        // Predicated region
        $region53: #{tpu_custom_call.1} parent=47 // pred_check
          %p343 = pneg %p63
        $region54: #{tpu_custom_call.1} parent=47 // pred_check_branch
          %345 = sbr.rel (%p343) target = $region56
        $region55: #{tpu_custom_call.1} parent=47 // pred_region
          %346 = dma.done [#allocation7], 256
        $region56: #{tpu_custom_call.1} parent=47 // pred_fallthru
          _
        // Predicated region
        $region57: #{tpu_custom_call.1} parent=47 // pred_check
          %p347 = pneg %p84
        $region58: #{tpu_custom_call.1} parent=47 // pred_check_branch
          %349 = sbr.rel (%p347) target = $region60
        $region59: #{tpu_custom_call.1} parent=47 // pred_region
          %350 = dma.done [#allocation7], 4096
        $region60: #{tpu_custom_call.1} parent=47 // pred_fallthru
          _
        // Predicated region
        $region61: #{tpu_custom_call.1} parent=47 // pred_check
          %p351 = pneg %p105
        $region62: #{tpu_custom_call.1} parent=47 // pred_check_branch
          %353 = sbr.rel (%p351) target = $region64
        $region63: #{tpu_custom_call.1} parent=47 // pred_region
          %354 = dma.done [#allocation10], 512
        $region64: #{tpu_custom_call.1} parent=47 // pred_fallthru
          _
        // Predicated region
        $region65: #{tpu_custom_call.1} parent=47 // pred_check
          %p355 = pneg %p126
        $region66: #{tpu_custom_call.1} parent=47 // pred_check_branch
          %357 = sbr.rel (%p355) target = $region68
        $region67: #{tpu_custom_call.1} parent=47 // pred_region
          %358 = dma.done [#allocation10], 16384
        $region68: #{tpu_custom_call.1} parent=47 // pred_fallthru
          _
        // Predicated region
        $region69: #{tpu_custom_call.1} parent=47 // pred_check
          %p359 = pneg %p147
        $region70: #{tpu_custom_call.1} parent=47 // pred_check_branch
          %361 = sbr.rel (%p359) target = $region72
        $region71: #{tpu_custom_call.1} parent=47 // pred_region
          %362 = dma.done [#allocation13], 1152
        $region72: #{tpu_custom_call.1} parent=47 // pred_fallthru
          _
        %s363 = sand.u32 %s26, 1
        %s364 = scalar_lea.sflag [#allocation4], %s363
        %s365 = sand.u32 %s160, 1
        %s366 = smul.addr %s365, 8192
        %s367 = scalar_lea.vmem [#allocation14], %s366
        // Predicated region
        $region73: #{tpu_custom_call.1} parent=47 // pred_check
          %p368 = pneg %p173
        $region74: #{tpu_custom_call.1} parent=47 // pred_check_branch
          %370 = sbr.rel (%p368) target = $region76
        $region75: #{tpu_custom_call.1} parent=47 // pred_region
          %371 = dma.done %s364, 131072
        $region76: #{tpu_custom_call.1} parent=47 // pred_fallthru
          _
        %p372 = pneg %p42
        %p373 = pneg %p39
        %p374 = pneg %p63
        %p375 = pneg %p60
        %p376 = pneg %p84
        %p377 = pneg %p81
        %p378 = pneg %p105
        %p379 = pneg %p102
        %p380 = pneg %p126
        %p381 = pneg %p123
        %p382 = pneg %p147
        %p383 = pneg %p144
        %s384 = sand.u32 %s26, 1
        %s385 = scalar_lea.sflag [#allocation4], %s384
        %s386 = sand.u32 %s160, 1
        %s387 = smul.addr %s386, 8192
        %s388 = scalar_lea.vmem [#allocation14], %s387
        %p389 = pneg %p173
        %p390 = pneg %p170
        %p391 = pneg %p194
        %p392 = pneg %p191
        %p393 = pneg %p215
        %p394 = pneg %p212
        %s395 = smul.u32 512, %s26
        %p396 = scmp.eq.s32.totalorder %s26, 0
        // Predicated region
        $region77: #{tpu_custom_call.1} parent=47 // pred_check
          %p397 = pneg %p396
        $region78: #{tpu_custom_call.1} parent=47 // pred_check_branch
          %399 = sbr.rel (%p397) target = $region80
        $region79: #{tpu_custom_call.1} parent=47 // pred_region
          %v400 = vld [vmem:[#allocation3] sm:$0xff]
          %v401 = vld [vmem:[#allocation3 + $0x8] sm:$0xff]
          %v402 = vld [vmem:[#allocation8] sm:$0xff]
          %v403 = vld [vmem:[#allocation8 + $0x8] sm:$0xff]
          %v404 = vld [vmem:[#allocation8 + $0x10] sm:$0xff]
          %v405 = vld [vmem:[#allocation8 + $0x18] sm:$0xff]
          %v406 = vld [vmem:[#allocation8 + $0x20] sm:$0xff]
          %v407 = vld [vmem:[#allocation8 + $0x28] sm:$0xff]
          %v408 = vld [vmem:[#allocation8 + $0x30] sm:$0xff]
          %v409 = vld [vmem:[#allocation8 + $0x38] sm:$0xff]
          %v410 = vld [vmem:[#allocation8 + $0x40] sm:$0xff]
          %v411 = vld [vmem:[#allocation8 + $0x48] sm:$0xff]
          %v412 = vld [vmem:[#allocation8 + $0x50] sm:$0xff]
          %v413 = vld [vmem:[#allocation8 + $0x58] sm:$0xff]
          %v414 = vld [vmem:[#allocation8 + $0x60] sm:$0xff]
          %v415 = vld [vmem:[#allocation8 + $0x68] sm:$0xff]
          %v416 = vld [vmem:[#allocation8 + $0x70] sm:$0xff]
          %v417 = vld [vmem:[#allocation8 + $0x78] sm:$0xff]
          %v418 = vld [vmem:[#allocation9] ss:$8 sm:$0xf]
          %v420 = vlaneseq
          %v421 = vshrl.u32 %v420, 7
          %v422 = vsub.s32 0, %v421
          %v423 = vrot.slane %v418, %v422
          %v424 = vlaneseq
          %v425 = vshrl.u32 %v424, 7
          %v426 = vsub.s32 1, %v425
          %v427 = vrot.slane %v418, %v426
          %v428 = vlaneseq
          %v429 = vshrl.u32 %v428, 7
          %v430 = vsub.s32 2, %v429
          %v431 = vrot.slane %v418, %v430
          %v432 = vlaneseq
          %v433 = vshrl.u32 %v432, 7
          %v434 = vsub.s32 3, %v433
          %v435 = vrot.slane %v418, %v434
          %vm440 = vcmask 261120
          %v442 = vsel %vm440, %v400, 0
          %v445 = vsel %vm440, %v401, 0
          %447 = vmatprep.subr.mxu0 %v403
          %448 = vmatpush1.msra.mxu0 %v402
          %449 = vmatprep.subr.mxu0 %v407
          %450 = vmatpush1.msra.mxu0 %v406
          %451 = vmatprep.subr.mxu0 %v411
          %452 = vmatpush1.msra.mxu0 %v410
          %453 = vmatprep.subr.mxu0 %v415
          %454 = vmatpush1.msra.mxu0 %v414
          %455 = vmatprep.subr.mxu0 0.0
          %456 = vmatpush1.msra.mxu0 0.0
          %457 = vmatprep.subr.mxu0 0.0
          %458 = vmatpush1.msra.mxu0 0.0
          %459 = vmatprep.subr.mxu0 0.0
          %460 = vmatpush1.msra.mxu0 0.0
          %461 = vmatprep.subr.mxu0 0.0
          %462 = vmatpush1.msra.mxu0 0.0
          %463 = vmatprep.subr.mxu0 0.0
          %464 = vmatpush1.msra.mxu0 0.0
          %465 = vmatprep.subr.mxu0 0.0
          %466 = vmatpush1.msra.mxu0 0.0
          %467 = vmatprep.subr.mxu0 0.0
          %468 = vmatpush1.msra.mxu0 0.0
          %469 = vmatprep.subr.mxu0 0.0
          %470 = vmatpush1.msra.mxu0 0.0
          %471 = vmatprep.subr.mxu0 0.0
          %472 = vmatpush1.msra.mxu0 0.0
          %473 = vmatprep.subr.mxu0 0.0
          %474 = vmatpush1.msra.mxu0 0.0
          %475 = vmatprep.subr.mxu0 0.0
          %476 = vmatpush1.msra.mxu0 0.0
          %477 = vmatprep.subr.mxu0 0.0
          %478 = vmatpush1.msra.mxu0 0.0
          %479 = vmatprep.subr.mxu0 0.0
          %480 = vmatpush1.msra.mxu0 0.0
          %481 = vmatprep.subr.mxu0 0.0
          %482 = vmatpush1.msra.mxu0 0.0
          %483 = vmatprep.subr.mxu0 0.0
          %484 = vmatpush1.msra.mxu0 0.0
          %485 = vmatprep.subr.mxu0 0.0
          %486 = vmatpush1.msra.mxu0 0.0
          %487 = vmatprep.subr.mxu0 0.0
          %488 = vmatpush1.msra.mxu0 0.0
          %489 = vmatprep.subr.mxu0 0.0
          %490 = vmatpush1.msra.mxu0 0.0
          %491 = vmatprep.subr.mxu0 0.0
          %492 = vmatpush1.msra.mxu0 0.0
          %493 = vmatprep.subr.mxu0 0.0
          %494 = vmatpush1.msra.mxu0 0.0
          %495 = vmatprep.subr.mxu0 0.0
          %496 = vmatpush1.msra.mxu0 0.0
          %497 = vmatprep.subr.mxu0 0.0
          %498 = vmatpush1.msra.mxu0 0.0
          %499 = vmatprep.subr.mxu0 0.0
          %500 = vmatpush1.msra.mxu0 0.0
          %501 = vmatprep.subr.mxu0 0.0
          %502 = vmatpush1.msra.mxu0 0.0
          %503 = vmatprep.subr.mxu0 0.0
          %504 = vmatpush1.msra.mxu0 0.0
          %505 = vmatprep.subr.mxu0 0.0
          %506 = vmatpush1.msra.mxu0 0.0
          %507 = vmatprep.subr.mxu0 0.0
          %508 = vmatpush1.msra.mxu0 0.0
          %509 = vmatprep.subr.mxu0 0.0
          %510 = vmatpush1.msra.mxu0 0.0
          %511 = vmatprep.mubr.f32.mxu0 0.0
          %512 = vmatmul.mubr.f32.gmra.mrb[0].mxu0 %v442
          %v513 = vpop.f32.mrb[0].mxu0
          %v514 = vadd.f32 %v423, %v513
          %v515 = vpop.f32.mrb[0].mxu0
          %v516 = vadd.f32 %v427, %v515
          %517 = vmatprep.mubr.f32.mxu0 0.0
          %518 = vmatmul.mubr.f32.gmra.mrb[0].mxu0 %v445
          %v519 = vpop.f32.mrb[0].mxu0
          %v520 = vadd.f32 %v423, %v519
          %v521 = vpop.f32.mrb[0].mxu0
          %v522 = vadd.f32 %v427, %v521
          %523 = vdwg.mxu0
          %524 = vmatprep.subr.mxu0 %v405
          %525 = vmatpush1.msra.mxu0 %v404
          %526 = vmatprep.subr.mxu0 %v409
          %527 = vmatpush1.msra.mxu0 %v408
          %528 = vmatprep.subr.mxu0 %v413
          %529 = vmatpush1.msra.mxu0 %v412
          %530 = vmatprep.subr.mxu0 %v417
          %531 = vmatpush1.msra.mxu0 %v416
          %532 = vmatprep.subr.mxu0 0.0
          %533 = vmatpush1.msra.mxu0 0.0
          %534 = vmatprep.subr.mxu0 0.0
          %535 = vmatpush1.msra.mxu0 0.0
          %536 = vmatprep.subr.mxu0 0.0
          %537 = vmatpush1.msra.mxu0 0.0
          %538 = vmatprep.subr.mxu0 0.0
          %539 = vmatpush1.msra.mxu0 0.0
          %540 = vmatprep.subr.mxu0 0.0
          %541 = vmatpush1.msra.mxu0 0.0
          %542 = vmatprep.subr.mxu0 0.0
          %543 = vmatpush1.msra.mxu0 0.0
          %544 = vmatprep.subr.mxu0 0.0
          %545 = vmatpush1.msra.mxu0 0.0
          %546 = vmatprep.subr.mxu0 0.0
          %547 = vmatpush1.msra.mxu0 0.0
          %548 = vmatprep.subr.mxu0 0.0
          %549 = vmatpush1.msra.mxu0 0.0
          %550 = vmatprep.subr.mxu0 0.0
          %551 = vmatpush1.msra.mxu0 0.0
          %552 = vmatprep.subr.mxu0 0.0
          %553 = vmatpush1.msra.mxu0 0.0
          %554 = vmatprep.subr.mxu0 0.0
          %555 = vmatpush1.msra.mxu0 0.0
          %556 = vmatprep.subr.mxu0 0.0
          %557 = vmatpush1.msra.mxu0 0.0
          %558 = vmatprep.subr.mxu0 0.0
          %559 = vmatpush1.msra.mxu0 0.0
          %560 = vmatprep.subr.mxu0 0.0
          %561 = vmatpush1.msra.mxu0 0.0
          %562 = vmatprep.subr.mxu0 0.0
          %563 = vmatpush1.msra.mxu0 0.0
          %564 = vmatprep.subr.mxu0 0.0
          %565 = vmatpush1.msra.mxu0 0.0
          %566 = vmatprep.subr.mxu0 0.0
          %567 = vmatpush1.msra.mxu0 0.0
          %568 = vmatprep.subr.mxu0 0.0
          %569 = vmatpush1.msra.mxu0 0.0
          %570 = vmatprep.subr.mxu0 0.0
          %571 = vmatpush1.msra.mxu0 0.0
          %572 = vmatprep.subr.mxu0 0.0
          %573 = vmatpush1.msra.mxu0 0.0
          %574 = vmatprep.subr.mxu0 0.0
          %575 = vmatpush1.msra.mxu0 0.0
          %576 = vmatprep.subr.mxu0 0.0
          %577 = vmatpush1.msra.mxu0 0.0
          %578 = vmatprep.subr.mxu0 0.0
          %579 = vmatpush1.msra.mxu0 0.0
          %580 = vmatprep.subr.mxu0 0.0
          %581 = vmatpush1.msra.mxu0 0.0
          %582 = vmatprep.subr.mxu0 0.0
          %583 = vmatpush1.msra.mxu0 0.0
          %584 = vmatprep.subr.mxu0 0.0
          %585 = vmatpush1.msra.mxu0 0.0
          %586 = vmatprep.subr.mxu0 0.0
          %587 = vmatpush1.msra.mxu0 0.0
          %588 = vmatprep.mubr.f32.mxu0 0.0
          %589 = vmatmul.mubr.f32.gmra.mrb[0].mxu0 %v442
          %v590 = vpop.f32.mrb[0].mxu0
          %v591 = vadd.f32 %v431, %v590
          %v592 = vpop.f32.mrb[0].mxu0
          %v593 = vadd.f32 %v435, %v592
          %594 = vmatprep.mubr.f32.mxu0 0.0
          %595 = vmatmul.mubr.f32.gmra.mrb[0].mxu0 %v445
          %v596 = vpop.f32.mrb[0].mxu0
          %v597 = vadd.f32 %v431, %v596
          %v598 = vpop.f32.mrb[0].mxu0
          %v599 = vadd.f32 %v435, %v598
          %600 = vdwg.mxu0
          %v601 = vld [vmem:[#allocation6] sm:$0xff]
          %v602 = vld [vmem:[#allocation6 + $0x8] sm:$0xff]
          %v603 = vld [vmem:[#allocation8 + $0x80] sm:$0xff]
          %v604 = vld [vmem:[#allocation8 + $0x88] sm:$0xff]
          %v605 = vld [vmem:[#allocation8 + $0x90] sm:$0xff]
          %v606 = vld [vmem:[#allocation8 + $0x98] sm:$0xff]
          %v607 = vld [vmem:[#allocation8 + $0xa0] sm:$0xff]
          %v608 = vld [vmem:[#allocation8 + $0xa8] sm:$0xff]
          %v609 = vld [vmem:[#allocation8 + $0xb0] sm:$0xff]
          %v610 = vld [vmem:[#allocation8 + $0xb8] sm:$0xff]
          %v611 = vld [vmem:[#allocation8 + $0xc0] sm:$0xff]
          %v612 = vld [vmem:[#allocation8 + $0xc8] sm:$0xff]
          %v613 = vld [vmem:[#allocation8 + $0xd0] sm:$0xff]
          %v614 = vld [vmem:[#allocation8 + $0xd8] sm:$0xff]
          %v615 = vld [vmem:[#allocation8 + $0xe0] sm:$0xff]
          %v616 = vld [vmem:[#allocation8 + $0xe8] sm:$0xff]
          %v617 = vld [vmem:[#allocation8 + $0xf0] sm:$0xff]
          %v618 = vld [vmem:[#allocation8 + $0xf8] sm:$0xff]
          %s619 = scalar_lea.vmem [#allocation9], 1
          %v620 = vld [vmem:[%s619] ss:$8 sm:$0xf]
          %v622 = vlaneseq
          %v623 = vshrl.u32 %v622, 7
          %v624 = vsub.s32 0, %v623
          %v625 = vrot.slane %v620, %v624
          %v626 = vlaneseq
          %v627 = vshrl.u32 %v626, 7
          %v628 = vsub.s32 1, %v627
          %v629 = vrot.slane %v620, %v628
          %v630 = vlaneseq
          %v631 = vshrl.u32 %v630, 7
          %v632 = vsub.s32 2, %v631
          %v633 = vrot.slane %v620, %v632
          %v634 = vlaneseq
          %v635 = vshrl.u32 %v634, 7
          %v636 = vsub.s32 3, %v635
          %v637 = vrot.slane %v620, %v636
          %v643 = vsel %vm440, %v601, 0
          %v646 = vsel %vm440, %v602, 0
          %648 = vmatprep.subr.mxu0 %v604
          %649 = vmatpush1.msra.mxu0 %v603
          %650 = vmatprep.subr.mxu0 %v608
          %651 = vmatpush1.msra.mxu0 %v607
          %652 = vmatprep.subr.mxu0 %v612
          %653 = vmatpush1.msra.mxu0 %v611
          %654 = vmatprep.subr.mxu0 %v616
          %655 = vmatpush1.msra.mxu0 %v615
          %656 = vmatprep.subr.mxu0 0.0
          %657 = vmatpush1.msra.mxu0 0.0
          %658 = vmatprep.subr.mxu0 0.0
          %659 = vmatpush1.msra.mxu0 0.0
          %660 = vmatprep.subr.mxu0 0.0
          %661 = vmatpush1.msra.mxu0 0.0
          %662 = vmatprep.subr.mxu0 0.0
          %663 = vmatpush1.msra.mxu0 0.0
          %664 = vmatprep.subr.mxu0 0.0
          %665 = vmatpush1.msra.mxu0 0.0
          %666 = vmatprep.subr.mxu0 0.0
          %667 = vmatpush1.msra.mxu0 0.0
          %668 = vmatprep.subr.mxu0 0.0
          %669 = vmatpush1.msra.mxu0 0.0
          %670 = vmatprep.subr.mxu0 0.0
          %671 = vmatpush1.msra.mxu0 0.0
          %672 = vmatprep.subr.mxu0 0.0
          %673 = vmatpush1.msra.mxu0 0.0
          %674 = vmatprep.subr.mxu0 0.0
          %675 = vmatpush1.msra.mxu0 0.0
          %676 = vmatprep.subr.mxu0 0.0
          %677 = vmatpush1.msra.mxu0 0.0
          %678 = vmatprep.subr.mxu0 0.0
          %679 = vmatpush1.msra.mxu0 0.0
          %680 = vmatprep.subr.mxu0 0.0
          %681 = vmatpush1.msra.mxu0 0.0
          %682 = vmatprep.subr.mxu0 0.0
          %683 = vmatpush1.msra.mxu0 0.0
          %684 = vmatprep.subr.mxu0 0.0
          %685 = vmatpush1.msra.mxu0 0.0
          %686 = vmatprep.subr.mxu0 0.0
          %687 = vmatpush1.msra.mxu0 0.0
          %688 = vmatprep.subr.mxu0 0.0
          %689 = vmatpush1.msra.mxu0 0.0
          %690 = vmatprep.subr.mxu0 0.0
          %691 = vmatpush1.msra.mxu0 0.0
          %692 = vmatprep.subr.mxu0 0.0
          %693 = vmatpush1.msra.mxu0 0.0
          %694 = vmatprep.subr.mxu0 0.0
          %695 = vmatpush1.msra.mxu0 0.0
          %696 = vmatprep.subr.mxu0 0.0
          %697 = vmatpush1.msra.mxu0 0.0
          %698 = vmatprep.subr.mxu0 0.0
          %699 = vmatpush1.msra.mxu0 0.0
          %700 = vmatprep.subr.mxu0 0.0
          %701 = vmatpush1.msra.mxu0 0.0
          %702 = vmatprep.subr.mxu0 0.0
          %703 = vmatpush1.msra.mxu0 0.0
          %704 = vmatprep.subr.mxu0 0.0
          %705 = vmatpush1.msra.mxu0 0.0
          %706 = vmatprep.subr.mxu0 0.0
          %707 = vmatpush1.msra.mxu0 0.0
          %708 = vmatprep.subr.mxu0 0.0
          %709 = vmatpush1.msra.mxu0 0.0
          %710 = vmatprep.subr.mxu0 0.0
          %711 = vmatpush1.msra.mxu0 0.0
          %712 = vmatprep.mubr.f32.mxu0 0.0
          %713 = vmatmul.mubr.f32.gmra.mrb[0].mxu0 %v643
          %v714 = vpop.f32.mrb[0].mxu0
          %v715 = vadd.f32 %v625, %v714
          %v716 = vpop.f32.mrb[0].mxu0
          %v717 = vadd.f32 %v629, %v716
          %718 = vmatprep.mubr.f32.mxu0 0.0
          %719 = vmatmul.mubr.f32.gmra.mrb[0].mxu0 %v646
          %v720 = vpop.f32.mrb[0].mxu0
          %v721 = vadd.f32 %v625, %v720
          %v722 = vpop.f32.mrb[0].mxu0
          %v723 = vadd.f32 %v629, %v722
          %724 = vdwg.mxu0
          %725 = vmatprep.subr.mxu0 %v606
          %726 = vmatpush1.msra.mxu0 %v605
          %727 = vmatprep.subr.mxu0 %v610
          %728 = vmatpush1.msra.mxu0 %v609
          %729 = vmatprep.subr.mxu0 %v614
          %730 = vmatpush1.msra.mxu0 %v613
          %731 = vmatprep.subr.mxu0 %v618
          %732 = vmatpush1.msra.mxu0 %v617
          %733 = vmatprep.subr.mxu0 0.0
          %734 = vmatpush1.msra.mxu0 0.0
          %735 = vmatprep.subr.mxu0 0.0
          %736 = vmatpush1.msra.mxu0 0.0
          %737 = vmatprep.subr.mxu0 0.0
          %738 = vmatpush1.msra.mxu0 0.0
          %739 = vmatprep.subr.mxu0 0.0
          %740 = vmatpush1.msra.mxu0 0.0
          %741 = vmatprep.subr.mxu0 0.0
          %742 = vmatpush1.msra.mxu0 0.0
          %743 = vmatprep.subr.mxu0 0.0
          %744 = vmatpush1.msra.mxu0 0.0
          %745 = vmatprep.subr.mxu0 0.0
          %746 = vmatpush1.msra.mxu0 0.0
          %747 = vmatprep.subr.mxu0 0.0
          %748 = vmatpush1.msra.mxu0 0.0
          %749 = vmatprep.subr.mxu0 0.0
          %750 = vmatpush1.msra.mxu0 0.0
          %751 = vmatprep.subr.mxu0 0.0
          %752 = vmatpush1.msra.mxu0 0.0
          %753 = vmatprep.subr.mxu0 0.0
          %754 = vmatpush1.msra.mxu0 0.0
          %755 = vmatprep.subr.mxu0 0.0
          %756 = vmatpush1.msra.mxu0 0.0
          %757 = vmatprep.subr.mxu0 0.0
          %758 = vmatpush1.msra.mxu0 0.0
          %759 = vmatprep.subr.mxu0 0.0
          %760 = vmatpush1.msra.mxu0 0.0
          %761 = vmatprep.subr.mxu0 0.0
          %762 = vmatpush1.msra.mxu0 0.0
          %763 = vmatprep.subr.mxu0 0.0
          %764 = vmatpush1.msra.mxu0 0.0
          %765 = vmatprep.subr.mxu0 0.0
          %766 = vmatpush1.msra.mxu0 0.0
          %767 = vmatprep.subr.mxu0 0.0
          %768 = vmatpush1.msra.mxu0 0.0
          %769 = vmatprep.subr.mxu0 0.0
          %770 = vmatpush1.msra.mxu0 0.0
          %771 = vmatprep.subr.mxu0 0.0
          %772 = vmatpush1.msra.mxu0 0.0
          %773 = vmatprep.subr.mxu0 0.0
          %774 = vmatpush1.msra.mxu0 0.0
          %775 = vmatprep.subr.mxu0 0.0
          %776 = vmatpush1.msra.mxu0 0.0
          %777 = vmatprep.subr.mxu0 0.0
          %778 = vmatpush1.msra.mxu0 0.0
          %779 = vmatprep.subr.mxu0 0.0
          %780 = vmatpush1.msra.mxu0 0.0
          %781 = vmatprep.subr.mxu0 0.0
          %782 = vmatpush1.msra.mxu0 0.0
          %783 = vmatprep.subr.mxu0 0.0
          %784 = vmatpush1.msra.mxu0 0.0
          %785 = vmatprep.subr.mxu0 0.0
          %786 = vmatpush1.msra.mxu0 0.0
          %787 = vmatprep.subr.mxu0 0.0
          %788 = vmatpush1.msra.mxu0 0.0
          %789 = vmatprep.mubr.f32.mxu0 0.0
          %790 = vmatmul.mubr.f32.gmra.mrb[0].mxu0 %v643
          %v791 = vpop.f32.mrb[0].mxu0
          %v792 = vadd.f32 %v633, %v791
          %v793 = vpop.f32.mrb[0].mxu0
          %v794 = vadd.f32 %v637, %v793
          %795 = vmatprep.mubr.f32.mxu0 0.0
          %796 = vmatmul.mubr.f32.gmra.mrb[0].mxu0 %v646
          %v797 = vpop.f32.mrb[0].mxu0
          %v798 = vadd.f32 %v633, %v797
          %v799 = vpop.f32.mrb[0].mxu0
          %v800 = vadd.f32 %v637, %v799
          %801 = vdwg.mxu0
          %v802 = vld [vmem:[#allocation11] sm:$0xff]
          %v803 = vld [vmem:[#allocation11 + $0x8] sm:$0xff]
          %v804 = vld [vmem:[#allocation11 + $0x10] sm:$0xff]
          %v805 = vld [vmem:[#allocation11 + $0x18] sm:$0xff]
          %v806 = vld [vmem:[#allocation11 + $0x20] sm:$0xff]
          %v807 = vld [vmem:[#allocation11 + $0x28] sm:$0xff]
          %v808 = vld [vmem:[#allocation11 + $0x30] sm:$0xff]
          %v809 = vld [vmem:[#allocation11 + $0x38] sm:$0xff]
          %v810 = vld [vmem:[#allocation11 + $0x40] sm:$0xff]
          %v811 = vld [vmem:[#allocation11 + $0x48] sm:$0xff]
          %v812 = vld [vmem:[#allocation11 + $0x50] sm:$0xff]
          %v813 = vld [vmem:[#allocation11 + $0x58] sm:$0xff]
          %v814 = vld [vmem:[#allocation11 + $0x60] sm:$0xff]
          %v815 = vld [vmem:[#allocation11 + $0x68] sm:$0xff]
          %v816 = vld [vmem:[#allocation11 + $0x70] sm:$0xff]
          %v817 = vld [vmem:[#allocation11 + $0x78] sm:$0xff]
          %v818 = vld [vmem:[#allocation11 + $0x80] sm:$0xff]
          %v819 = vld [vmem:[#allocation11 + $0x88] sm:$0xff]
          %v820 = vld [vmem:[#allocation11 + $0x90] sm:$0xff]
          %v821 = vld [vmem:[#allocation11 + $0x98] sm:$0xff]
          %v822 = vld [vmem:[#allocation11 + $0xa0] sm:$0xff]
          %v823 = vld [vmem:[#allocation11 + $0xa8] sm:$0xff]
          %v824 = vld [vmem:[#allocation11 + $0xb0] sm:$0xff]
          %v825 = vld [vmem:[#allocation11 + $0xb8] sm:$0xff]
          %v826 = vld [vmem:[#allocation11 + $0xc0] sm:$0xff]
          %v827 = vld [vmem:[#allocation11 + $0xc8] sm:$0xff]
          %v828 = vld [vmem:[#allocation11 + $0xd0] sm:$0xff]
          %v829 = vld [vmem:[#allocation11 + $0xd8] sm:$0xff]
          %v830 = vld [vmem:[#allocation11 + $0xe0] sm:$0xff]
          %v831 = vld [vmem:[#allocation11 + $0xe8] sm:$0xff]
          %v832 = vld [vmem:[#allocation11 + $0xf0] sm:$0xff]
          %v833 = vld [vmem:[#allocation11 + $0xf8] sm:$0xff]
          %v834 = vld [vmem:[#allocation11 + $0x100] sm:$0xff]
          %v835 = vld [vmem:[#allocation11 + $0x108] sm:$0xff]
          %v836 = vld [vmem:[#allocation11 + $0x110] sm:$0xff]
          %v837 = vld [vmem:[#allocation11 + $0x118] sm:$0xff]
          %v838 = vld [vmem:[#allocation11 + $0x120] sm:$0xff]
          %v839 = vld [vmem:[#allocation11 + $0x128] sm:$0xff]
          %v840 = vld [vmem:[#allocation11 + $0x130] sm:$0xff]
          %v841 = vld [vmem:[#allocation11 + $0x138] sm:$0xff]
          %v842 = vld [vmem:[#allocation11 + $0x140] sm:$0xff]
          %v843 = vld [vmem:[#allocation11 + $0x148] sm:$0xff]
          %v844 = vld [vmem:[#allocation11 + $0x150] sm:$0xff]
          %v845 = vld [vmem:[#allocation11 + $0x158] sm:$0xff]
          %v846 = vld [vmem:[#allocation11 + $0x160] sm:$0xff]
          %v847 = vld [vmem:[#allocation11 + $0x168] sm:$0xff]
          %v848 = vld [vmem:[#allocation11 + $0x170] sm:$0xff]
          %v849 = vld [vmem:[#allocation11 + $0x178] sm:$0xff]
          %v850 = vld [vmem:[#allocation11 + $0x180] sm:$0xff]
          %v851 = vld [vmem:[#allocation11 + $0x188] sm:$0xff]
          %v852 = vld [vmem:[#allocation11 + $0x190] sm:$0xff]
          %v853 = vld [vmem:[#allocation11 + $0x198] sm:$0xff]
          %v854 = vld [vmem:[#allocation11 + $0x1a0] sm:$0xff]
          %v855 = vld [vmem:[#allocation11 + $0x1a8] sm:$0xff]
          %v856 = vld [vmem:[#allocation11 + $0x1b0] sm:$0xff]
          %v857 = vld [vmem:[#allocation11 + $0x1b8] sm:$0xff]
          %v858 = vld [vmem:[#allocation11 + $0x1c0] sm:$0xff]
          %v859 = vld [vmem:[#allocation11 + $0x1c8] sm:$0xff]
          %v860 = vld [vmem:[#allocation11 + $0x1d0] sm:$0xff]
          %v861 = vld [vmem:[#allocation11 + $0x1d8] sm:$0xff]
          %v862 = vld [vmem:[#allocation11 + $0x1e0] sm:$0xff]
          %v863 = vld [vmem:[#allocation11 + $0x1e8] sm:$0xff]
          %v864 = vld [vmem:[#allocation11 + $0x1f0] sm:$0xff]
          %v865 = vld [vmem:[#allocation11 + $0x1f8] sm:$0xff]
          %v866 = vld [vmem:[#allocation11 + $0x200] sm:$0xff]
          %v867 = vld [vmem:[#allocation11 + $0x208] sm:$0xff]
          %v868 = vld [vmem:[#allocation11 + $0x210] sm:$0xff]
          %v869 = vld [vmem:[#allocation11 + $0x218] sm:$0xff]
          %v870 = vld [vmem:[#allocation11 + $0x220] sm:$0xff]
          %v871 = vld [vmem:[#allocation11 + $0x228] sm:$0xff]
          %v872 = vld [vmem:[#allocation11 + $0x230] sm:$0xff]
          %v873 = vld [vmem:[#allocation11 + $0x238] sm:$0xff]
          %v874 = vld [vmem:[#allocation11 + $0x240] sm:$0xff]
          %v875 = vld [vmem:[#allocation11 + $0x248] sm:$0xff]
          %v876 = vld [vmem:[#allocation11 + $0x250] sm:$0xff]
          %v877 = vld [vmem:[#allocation11 + $0x258] sm:$0xff]
          %v878 = vld [vmem:[#allocation11 + $0x260] sm:$0xff]
          %v879 = vld [vmem:[#allocation11 + $0x268] sm:$0xff]
          %v880 = vld [vmem:[#allocation11 + $0x270] sm:$0xff]
          %v881 = vld [vmem:[#allocation11 + $0x278] sm:$0xff]
          %v882 = vld [vmem:[#allocation11 + $0x280] sm:$0xff]
          %v883 = vld [vmem:[#allocation11 + $0x288] sm:$0xff]
          %v884 = vld [vmem:[#allocation11 + $0x290] sm:$0xff]
          %v885 = vld [vmem:[#allocation11 + $0x298] sm:$0xff]
          %v886 = vld [vmem:[#allocation11 + $0x2a0] sm:$0xff]
          %v887 = vld [vmem:[#allocation11 + $0x2a8] sm:$0xff]
          %v888 = vld [vmem:[#allocation11 + $0x2b0] sm:$0xff]
          %v889 = vld [vmem:[#allocation11 + $0x2b8] sm:$0xff]
          %v890 = vld [vmem:[#allocation11 + $0x2c0] sm:$0xff]
          %v891 = vld [vmem:[#allocation11 + $0x2c8] sm:$0xff]
          %v892 = vld [vmem:[#allocation11 + $0x2d0] sm:$0xff]
          %v893 = vld [vmem:[#allocation11 + $0x2d8] sm:$0xff]
          %v894 = vld [vmem:[#allocation11 + $0x2e0] sm:$0xff]
          %v895 = vld [vmem:[#allocation11 + $0x2e8] sm:$0xff]
          %v896 = vld [vmem:[#allocation11 + $0x2f0] sm:$0xff]
          %v897 = vld [vmem:[#allocation11 + $0x2f8] sm:$0xff]
          %v898 = vld [vmem:[#allocation11 + $0x300] sm:$0xff]
          %v899 = vld [vmem:[#allocation11 + $0x308] sm:$0xff]
          %v900 = vld [vmem:[#allocation11 + $0x310] sm:$0xff]
          %v901 = vld [vmem:[#allocation11 + $0x318] sm:$0xff]
          %v902 = vld [vmem:[#allocation11 + $0x320] sm:$0xff]
          %v903 = vld [vmem:[#allocation11 + $0x328] sm:$0xff]
          %v904 = vld [vmem:[#allocation11 + $0x330] sm:$0xff]
          %v905 = vld [vmem:[#allocation11 + $0x338] sm:$0xff]
          %v906 = vld [vmem:[#allocation11 + $0x340] sm:$0xff]
          %v907 = vld [vmem:[#allocation11 + $0x348] sm:$0xff]
          %v908 = vld [vmem:[#allocation11 + $0x350] sm:$0xff]
          %v909 = vld [vmem:[#allocation11 + $0x358] sm:$0xff]
          %v910 = vld [vmem:[#allocation11 + $0x360] sm:$0xff]
          %v911 = vld [vmem:[#allocation11 + $0x368] sm:$0xff]
          %v912 = vld [vmem:[#allocation11 + $0x370] sm:$0xff]
          %v913 = vld [vmem:[#allocation11 + $0x378] sm:$0xff]
          %v914 = vld [vmem:[#allocation11 + $0x380] sm:$0xff]
          %v915 = vld [vmem:[#allocation11 + $0x388] sm:$0xff]
          %v916 = vld [vmem:[#allocation11 + $0x390] sm:$0xff]
          %v917 = vld [vmem:[#allocation11 + $0x398] sm:$0xff]
          %v918 = vld [vmem:[#allocation11 + $0x3a0] sm:$0xff]
          %v919 = vld [vmem:[#allocation11 + $0x3a8] sm:$0xff]
          %v920 = vld [vmem:[#allocation11 + $0x3b0] sm:$0xff]
          %v921 = vld [vmem:[#allocation11 + $0x3b8] sm:$0xff]
          %v922 = vld [vmem:[#allocation11 + $0x3c0] sm:$0xff]
          %v923 = vld [vmem:[#allocation11 + $0x3c8] sm:$0xff]
          %v924 = vld [vmem:[#allocation11 + $0x3d0] sm:$0xff]
          %v925 = vld [vmem:[#allocation11 + $0x3d8] sm:$0xff]
          %v926 = vld [vmem:[#allocation11 + $0x3e0] sm:$0xff]
          %v927 = vld [vmem:[#allocation11 + $0x3e8] sm:$0xff]
          %v928 = vld [vmem:[#allocation11 + $0x3f0] sm:$0xff]
          %v929 = vld [vmem:[#allocation11 + $0x3f8] sm:$0xff]
          %930 = vmatprep.subr.mxu0 0.0
          %931 = vmatpush1.msra.mxu0 %v866
          %932 = vmatprep.subr.mxu0 0.0
          %933 = vmatpush1.msra.mxu0 %v867
          %934 = vmatprep.subr.mxu0 0.0
          %935 = vmatpush1.msra.mxu0 %v868
          %936 = vmatprep.subr.mxu0 0.0
          %937 = vmatpush1.msra.mxu0 %v869
          %938 = vmatprep.subr.mxu0 0.0
          %939 = vmatpush1.msra.mxu0 %v870
          %940 = vmatprep.subr.mxu0 0.0
          %941 = vmatpush1.msra.mxu0 %v871
          %942 = vmatprep.subr.mxu0 0.0
          %943 = vmatpush1.msra.mxu0 %v872
          %944 = vmatprep.subr.mxu0 0.0
          %945 = vmatpush1.msra.mxu0 %v873
          %946 = vmatprep.subr.mxu0 0.0
          %947 = vmatpush1.msra.mxu0 %v874
          %948 = vmatprep.subr.mxu0 0.0
          %949 = vmatpush1.msra.mxu0 %v875
          %950 = vmatprep.subr.mxu0 0.0
          %951 = vmatpush1.msra.mxu0 %v876
          %952 = vmatprep.subr.mxu0 0.0
          %953 = vmatpush1.msra.mxu0 %v877
          %954 = vmatprep.subr.mxu0 0.0
          %955 = vmatpush1.msra.mxu0 %v878
          %956 = vmatprep.subr.mxu0 0.0
          %957 = vmatpush1.msra.mxu0 %v879
          %958 = vmatprep.subr.mxu0 0.0
          %959 = vmatpush1.msra.mxu0 %v880
          %960 = vmatprep.subr.mxu0 0.0
          %961 = vmatpush1.msra.mxu0 %v881
          %962 = vmatprep.subr.mxu0 0.0
          %963 = vmatpush1.msra.mxu0 %v882
          %964 = vmatprep.subr.mxu0 0.0
          %965 = vmatpush1.msra.mxu0 %v883
          %966 = vmatprep.subr.mxu0 0.0
          %967 = vmatpush1.msra.mxu0 %v884
          %968 = vmatprep.subr.mxu0 0.0
          %969 = vmatpush1.msra.mxu0 %v885
          %970 = vmatprep.subr.mxu0 0.0
          %971 = vmatpush1.msra.mxu0 %v886
          %972 = vmatprep.subr.mxu0 0.0
          %973 = vmatpush1.msra.mxu0 %v887
          %974 = vmatprep.subr.mxu0 0.0
          %975 = vmatpush1.msra.mxu0 %v888
          %976 = vmatprep.subr.mxu0 0.0
          %977 = vmatpush1.msra.mxu0 %v889
          %978 = vmatprep.subr.mxu0 0.0
          %979 = vmatpush1.msra.mxu0 %v890
          %980 = vmatprep.subr.mxu0 0.0
          %981 = vmatpush1.msra.mxu0 %v891
          %982 = vmatprep.subr.mxu0 0.0
          %983 = vmatpush1.msra.mxu0 %v892
          %984 = vmatprep.subr.mxu0 0.0
          %985 = vmatpush1.msra.mxu0 %v893
          %986 = vmatprep.subr.mxu0 0.0
          %987 = vmatpush1.msra.mxu0 %v894
          %988 = vmatprep.subr.mxu0 0.0
          %989 = vmatpush1.msra.mxu0 %v895
          %990 = vmatprep.subr.mxu0 0.0
          %991 = vmatpush1.msra.mxu0 %v896
          %992 = vmatprep.subr.mxu0 0.0
          %993 = vmatpush1.msra.mxu0 %v897
          %994 = vmatprep.mubr.f32.mxu0 %v717
          %995 = vmatmul.mubr.f32.gmra.mrb[0].mxu0 %v715
          %v996 = vpop.f32.mrb[0].mxu0
          %v997 = vadd.f32 0.0, %v996
          %v998 = vpop.f32.mrb[0].mxu0
          %999 = vmatprep.mubr.f32.mxu0 %v723
          %1000 = vmatmul.mubr.f32.gmra.mrb[0].mxu0 %v721
          %v1001 = vpop.f32.mrb[0].mxu0
          %v1002 = vadd.f32 0.0, %v1001
          %v1003 = vpop.f32.mrb[0].mxu0
          %1004 = vdwg.mxu0
          %1005 = vmatprep.subr.mxu0 0.0
          %1006 = vmatpush1.msra.mxu0 %v898
          %1007 = vmatprep.subr.mxu0 0.0
          %1008 = vmatpush1.msra.mxu0 %v899
          %1009 = vmatprep.subr.mxu0 0.0
          %1010 = vmatpush1.msra.mxu0 %v900
          %1011 = vmatprep.subr.mxu0 0.0
          %1012 = vmatpush1.msra.mxu0 %v901
          %1013 = vmatprep.subr.mxu0 0.0
          %1014 = vmatpush1.msra.mxu0 %v902
          %1015 = vmatprep.subr.mxu0 0.0
          %1016 = vmatpush1.msra.mxu0 %v903
          %1017 = vmatprep.subr.mxu0 0.0
          %1018 = vmatpush1.msra.mxu0 %v904
          %1019 = vmatprep.subr.mxu0 0.0
          %1020 = vmatpush1.msra.mxu0 %v905
          %1021 = vmatprep.subr.mxu0 0.0
          %1022 = vmatpush1.msra.mxu0 %v906
          %1023 = vmatprep.subr.mxu0 0.0
          %1024 = vmatpush1.msra.mxu0 %v907
          %1025 = vmatprep.subr.mxu0 0.0
          %1026 = vmatpush1.msra.mxu0 %v908
          %1027 = vmatprep.subr.mxu0 0.0
          %1028 = vmatpush1.msra.mxu0 %v909
          %1029 = vmatprep.subr.mxu0 0.0
          %1030 = vmatpush1.msra.mxu0 %v910
          %1031 = vmatprep.subr.mxu0 0.0
          %1032 = vmatpush1.msra.mxu0 %v911
          %1033 = vmatprep.subr.mxu0 0.0
          %1034 = vmatpush1.msra.mxu0 %v912
          %1035 = vmatprep.subr.mxu0 0.0
          %1036 = vmatpush1.msra.mxu0 %v913
          %1037 = vmatprep.subr.mxu0 0.0
          %1038 = vmatpush1.msra.mxu0 %v914
          %1039 = vmatprep.subr.mxu0 0.0
          %1040 = vmatpush1.msra.mxu0 %v915
          %1041 = vmatprep.subr.mxu0 0.0
          %1042 = vmatpush1.msra.mxu0 %v916
          %1043 = vmatprep.subr.mxu0 0.0
          %1044 = vmatpush1.msra.mxu0 %v917
          %1045 = vmatprep.subr.mxu0 0.0
          %1046 = vmatpush1.msra.mxu0 %v918
          %1047 = vmatprep.subr.mxu0 0.0
          %1048 = vmatpush1.msra.mxu0 %v919
          %1049 = vmatprep.subr.mxu0 0.0
          %1050 = vmatpush1.msra.mxu0 %v920
          %1051 = vmatprep.subr.mxu0 0.0
          %1052 = vmatpush1.msra.mxu0 %v921
          %1053 = vmatprep.subr.mxu0 0.0
          %1054 = vmatpush1.msra.mxu0 %v922
          %1055 = vmatprep.subr.mxu0 0.0
          %1056 = vmatpush1.msra.mxu0 %v923
          %1057 = vmatprep.subr.mxu0 0.0
          %1058 = vmatpush1.msra.mxu0 %v924
          %1059 = vmatprep.subr.mxu0 0.0
          %1060 = vmatpush1.msra.mxu0 %v925
          %1061 = vmatprep.subr.mxu0 0.0
          %1062 = vmatpush1.msra.mxu0 %v926
          %1063 = vmatprep.subr.mxu0 0.0
          %1064 = vmatpush1.msra.mxu0 %v927
          %1065 = vmatprep.subr.mxu0 0.0
          %1066 = vmatpush1.msra.mxu0 %v928
          %1067 = vmatprep.subr.mxu0 0.0
          %1068 = vmatpush1.msra.mxu0 %v929
          %1069 = vmatprep.mubr.f32.mxu0 %v794
          %1070 = vmatmul.mubr.f32.gmra.mrb[0].mxu0 %v792
          %v1071 = vpop.f32.mrb[0].mxu0
          %v1072 = vadd.f32 %v997, %v1071
          %v1073 = vpop.f32.mrb[0].mxu0
          %1074 = vmatprep.mubr.f32.mxu0 %v800
          %1075 = vmatmul.mubr.f32.gmra.mrb[0].mxu0 %v798
          %v1076 = vpop.f32.mrb[0].mxu0
          %v1077 = vadd.f32 %v1002, %v1076
          %v1078 = vpop.f32.mrb[0].mxu0
          %1079 = vdwg.mxu0
          %1080 = vmatprep.subr.mxu0 0.0
          %1081 = vmatpush1.msra.mxu0 %v802
          %1082 = vmatprep.subr.mxu0 0.0
          %1083 = vmatpush1.msra.mxu0 %v803
          %1084 = vmatprep.subr.mxu0 0.0
          %1085 = vmatpush1.msra.mxu0 %v804
          %1086 = vmatprep.subr.mxu0 0.0
          %1087 = vmatpush1.msra.mxu0 %v805
          %1088 = vmatprep.subr.mxu0 0.0
          %1089 = vmatpush1.msra.mxu0 %v806
          %1090 = vmatprep.subr.mxu0 0.0
          %1091 = vmatpush1.msra.mxu0 %v807
          %1092 = vmatprep.subr.mxu0 0.0
          %1093 = vmatpush1.msra.mxu0 %v808
          %1094 = vmatprep.subr.mxu0 0.0
          %1095 = vmatpush1.msra.mxu0 %v809
          %1096 = vmatprep.subr.mxu0 0.0
          %1097 = vmatpush1.msra.mxu0 %v810
          %1098 = vmatprep.subr.mxu0 0.0
          %1099 = vmatpush1.msra.mxu0 %v811
          %1100 = vmatprep.subr.mxu0 0.0
          %1101 = vmatpush1.msra.mxu0 %v812
          %1102 = vmatprep.subr.mxu0 0.0
          %1103 = vmatpush1.msra.mxu0 %v813
          %1104 = vmatprep.subr.mxu0 0.0
          %1105 = vmatpush1.msra.mxu0 %v814
          %1106 = vmatprep.subr.mxu0 0.0
          %1107 = vmatpush1.msra.mxu0 %v815
          %1108 = vmatprep.subr.mxu0 0.0
          %1109 = vmatpush1.msra.mxu0 %v816
          %1110 = vmatprep.subr.mxu0 0.0
          %1111 = vmatpush1.msra.mxu0 %v817
          %1112 = vmatprep.subr.mxu0 0.0
          %1113 = vmatpush1.msra.mxu0 %v818
          %1114 = vmatprep.subr.mxu0 0.0
          %1115 = vmatpush1.msra.mxu0 %v819
          %1116 = vmatprep.subr.mxu0 0.0
          %1117 = vmatpush1.msra.mxu0 %v820
          %1118 = vmatprep.subr.mxu0 0.0
          %1119 = vmatpush1.msra.mxu0 %v821
          %1120 = vmatprep.subr.mxu0 0.0
          %1121 = vmatpush1.msra.mxu0 %v822
          %1122 = vmatprep.subr.mxu0 0.0
          %1123 = vmatpush1.msra.mxu0 %v823
          %1124 = vmatprep.subr.mxu0 0.0
          %1125 = vmatpush1.msra.mxu0 %v824
          %1126 = vmatprep.subr.mxu0 0.0
          %1127 = vmatpush1.msra.mxu0 %v825
          %1128 = vmatprep.subr.mxu0 0.0
          %1129 = vmatpush1.msra.mxu0 %v826
          %1130 = vmatprep.subr.mxu0 0.0
          %1131 = vmatpush1.msra.mxu0 %v827
          %1132 = vmatprep.subr.mxu0 0.0
          %1133 = vmatpush1.msra.mxu0 %v828
          %1134 = vmatprep.subr.mxu0 0.0
          %1135 = vmatpush1.msra.mxu0 %v829
          %1136 = vmatprep.subr.mxu0 0.0
          %1137 = vmatpush1.msra.mxu0 %v830
          %1138 = vmatprep.subr.mxu0 0.0
          %1139 = vmatpush1.msra.mxu0 %v831
          %1140 = vmatprep.subr.mxu0 0.0
          %1141 = vmatpush1.msra.mxu0 %v832
          %1142 = vmatprep.subr.mxu0 0.0
          %1143 = vmatpush1.msra.mxu0 %v833
          %1144 = vmatprep.mubr.f32.mxu0 %v516
          %1145 = vmatmul.mubr.f32.gmra.mrb[0].mxu0 %v514
          %v1146 = vpop.f32.mrb[0].mxu0
          %v1147 = vadd.f32 %v1072, %v1146
          %v1148 = vpop.f32.mrb[0].mxu0
          %1149 = vmatprep.mubr.f32.mxu0 %v522
          %1150 = vmatmul.mubr.f32.gmra.mrb[0].mxu0 %v520
          %v1151 = vpop.f32.mrb[0].mxu0
          %v1152 = vadd.f32 %v1077, %v1151
          %v1153 = vpop.f32.mrb[0].mxu0
          %1154 = vdwg.mxu0
          %1155 = vmatprep.subr.mxu0 0.0
          %1156 = vmatpush1.msra.mxu0 %v834
          %1157 = vmatprep.subr.mxu0 0.0
          %1158 = vmatpush1.msra.mxu0 %v835
          %1159 = vmatprep.subr.mxu0 0.0
          %1160 = vmatpush1.msra.mxu0 %v836
          %1161 = vmatprep.subr.mxu0 0.0
          %1162 = vmatpush1.msra.mxu0 %v837
          %1163 = vmatprep.subr.mxu0 0.0
          %1164 = vmatpush1.msra.mxu0 %v838
          %1165 = vmatprep.subr.mxu0 0.0
          %1166 = vmatpush1.msra.mxu0 %v839
          %1167 = vmatprep.subr.mxu0 0.0
          %1168 = vmatpush1.msra.mxu0 %v840
          %1169 = vmatprep.subr.mxu0 0.0
          %1170 = vmatpush1.msra.mxu0 %v841
          %1171 = vmatprep.subr.mxu0 0.0
          %1172 = vmatpush1.msra.mxu0 %v842
          %1173 = vmatprep.subr.mxu0 0.0
          %1174 = vmatpush1.msra.mxu0 %v843
          %1175 = vmatprep.subr.mxu0 0.0
          %1176 = vmatpush1.msra.mxu0 %v844
          %1177 = vmatprep.subr.mxu0 0.0
          %1178 = vmatpush1.msra.mxu0 %v845
          %1179 = vmatprep.subr.mxu0 0.0
          %1180 = vmatpush1.msra.mxu0 %v846
          %1181 = vmatprep.subr.mxu0 0.0
          %1182 = vmatpush1.msra.mxu0 %v847
          %1183 = vmatprep.subr.mxu0 0.0
          %1184 = vmatpush1.msra.mxu0 %v848
          %1185 = vmatprep.subr.mxu0 0.0
          %1186 = vmatpush1.msra.mxu0 %v849
          %1187 = vmatprep.subr.mxu0 0.0
          %1188 = vmatpush1.msra.mxu0 %v850
          %1189 = vmatprep.subr.mxu0 0.0
          %1190 = vmatpush1.msra.mxu0 %v851
          %1191 = vmatprep.subr.mxu0 0.0
          %1192 = vmatpush1.msra.mxu0 %v852
          %1193 = vmatprep.subr.mxu0 0.0
          %1194 = vmatpush1.msra.mxu0 %v853
          %1195 = vmatprep.subr.mxu0 0.0
          %1196 = vmatpush1.msra.mxu0 %v854
          %1197 = vmatprep.subr.mxu0 0.0
          %1198 = vmatpush1.msra.mxu0 %v855
          %1199 = vmatprep.subr.mxu0 0.0
          %1200 = vmatpush1.msra.mxu0 %v856
          %1201 = vmatprep.subr.mxu0 0.0
          %1202 = vmatpush1.msra.mxu0 %v857
          %1203 = vmatprep.subr.mxu0 0.0
          %1204 = vmatpush1.msra.mxu0 %v858
          %1205 = vmatprep.subr.mxu0 0.0
          %1206 = vmatpush1.msra.mxu0 %v859
          %1207 = vmatprep.subr.mxu0 0.0
          %1208 = vmatpush1.msra.mxu0 %v860
          %1209 = vmatprep.subr.mxu0 0.0
          %1210 = vmatpush1.msra.mxu0 %v861
          %1211 = vmatprep.subr.mxu0 0.0
          %1212 = vmatpush1.msra.mxu0 %v862
          %1213 = vmatprep.subr.mxu0 0.0
          %1214 = vmatpush1.msra.mxu0 %v863
          %1215 = vmatprep.subr.mxu0 0.0
          %1216 = vmatpush1.msra.mxu0 %v864
          %1217 = vmatprep.subr.mxu0 0.0
          %1218 = vmatpush1.msra.mxu0 %v865
          %1219 = vmatprep.mubr.f32.mxu0 %v593
          %1220 = vmatmul.mubr.f32.gmra.mrb[0].mxu0 %v591
          %v1221 = vpop.f32.mrb[0].mxu0
          %v1222 = vadd.f32 %v1147, %v1221
          %v1223 = vpop.f32.mrb[0].mxu0
          %1224 = vmatprep.mubr.f32.mxu0 %v599
          %1225 = vmatmul.mubr.f32.gmra.mrb[0].mxu0 %v597
          %v1226 = vpop.f32.mrb[0].mxu0
          %v1227 = vadd.f32 %v1152, %v1226
          %v1228 = vpop.f32.mrb[0].mxu0
          %1229 = vdwg.mxu0
          %v1230 = vld [vmem:[#allocation12 + $0x40] sm:$0x1]
          %v1231 = vlaneseq
          %v1232 = vshrl.u32 %v1231, 7
          %v1233 = vsub.s32 0, %v1232
          %v1234 = vrot.slane %v1230, %v1233
          %v1235 = vadd.f32 %v1222, %v1234
          %v1236 = vadd.f32 %v1227, %v1234
          %v1237 = vld [vmem:[#allocation12] sm:$0xff]
          %v1238 = vld [vmem:[#allocation12 + $0x8] sm:$0xff]
          %v1239 = vld [vmem:[#allocation12 + $0x10] sm:$0xff]
          %v1240 = vld [vmem:[#allocation12 + $0x18] sm:$0xff]
          %v1241 = vld [vmem:[#allocation12 + $0x20] sm:$0xff]
          %v1242 = vld [vmem:[#allocation12 + $0x28] sm:$0xff]
          %v1243 = vld [vmem:[#allocation12 + $0x30] sm:$0xff]
          %v1244 = vld [vmem:[#allocation12 + $0x38] sm:$0xff]
          %v1245 = vld [vmem:[#allocation12 + $0x41] sm:$0x1]
          %v1246 = vlaneseq
          %v1247 = vshrl.u32 %v1246, 7
          %v1248 = vsub.s32 0, %v1247
          %v1249 = vrot.slane %v1245, %v1248
          %vm1250 = vcmask 523264
          %v1252 = vsel %vm1250, %v1235, 0
          %v1255 = vsel %vm1250, %v1236, 0
          %1257 = vmatprep.subr.mxu0 0.0
          %1258 = vmatpush1.msra.mxu0 %v1237
          %1259 = vmatprep.subr.mxu0 0.0
          %1260 = vmatpush1.msra.mxu0 %v1238
          %1261 = vmatprep.subr.mxu0 0.0
          %1262 = vmatpush1.msra.mxu0 %v1239
          %1263 = vmatprep.subr.mxu0 0.0
          %1264 = vmatpush1.msra.mxu0 %v1240
          %1265 = vmatprep.subr.mxu0 0.0
          %1266 = vmatpush1.msra.mxu0 %v1241
          %1267 = vmatprep.subr.mxu0 0.0
          %1268 = vmatpush1.msra.mxu0 %v1242
          %1269 = vmatprep.subr.mxu0 0.0
          %1270 = vmatpush1.msra.mxu0 %v1243
          %1271 = vmatprep.subr.mxu0 0.0
          %1272 = vmatpush1.msra.mxu0 %v1244
          %1273 = vmatprep.subr.mxu0 0.0
          %1274 = vmatpush1.msra.mxu0 0.0
          %1275 = vmatprep.subr.mxu0 0.0
          %1276 = vmatpush1.msra.mxu0 0.0
          %1277 = vmatprep.subr.mxu0 0.0
          %1278 = vmatpush1.msra.mxu0 0.0
          %1279 = vmatprep.subr.mxu0 0.0
          %1280 = vmatpush1.msra.mxu0 0.0
          %1281 = vmatprep.subr.mxu0 0.0
          %1282 = vmatpush1.msra.mxu0 0.0
          %1283 = vmatprep.subr.mxu0 0.0
          %1284 = vmatpush1.msra.mxu0 0.0
          %1285 = vmatprep.subr.mxu0 0.0
          %1286 = vmatpush1.msra.mxu0 0.0
          %1287 = vmatprep.subr.mxu0 0.0
          %1288 = vmatpush1.msra.mxu0 0.0
          %1289 = vmatprep.subr.mxu0 0.0
          %1290 = vmatpush1.msra.mxu0 0.0
          %1291 = vmatprep.subr.mxu0 0.0
          %1292 = vmatpush1.msra.mxu0 0.0
          %1293 = vmatprep.subr.mxu0 0.0
          %1294 = vmatpush1.msra.mxu0 0.0
          %1295 = vmatprep.subr.mxu0 0.0
          %1296 = vmatpush1.msra.mxu0 0.0
          %1297 = vmatprep.subr.mxu0 0.0
          %1298 = vmatpush1.msra.mxu0 0.0
          %1299 = vmatprep.subr.mxu0 0.0
          %1300 = vmatpush1.msra.mxu0 0.0
          %1301 = vmatprep.subr.mxu0 0.0
          %1302 = vmatpush1.msra.mxu0 0.0
          %1303 = vmatprep.subr.mxu0 0.0
          %1304 = vmatpush1.msra.mxu0 0.0
          %1305 = vmatprep.subr.mxu0 0.0
          %1306 = vmatpush1.msra.mxu0 0.0
          %1307 = vmatprep.subr.mxu0 0.0
          %1308 = vmatpush1.msra.mxu0 0.0
          %1309 = vmatprep.subr.mxu0 0.0
          %1310 = vmatpush1.msra.mxu0 0.0
          %1311 = vmatprep.subr.mxu0 0.0
          %1312 = vmatpush1.msra.mxu0 0.0
          %1313 = vmatprep.subr.mxu0 0.0
          %1314 = vmatpush1.msra.mxu0 0.0
          %1315 = vmatprep.subr.mxu0 0.0
          %1316 = vmatpush1.msra.mxu0 0.0
          %1317 = vmatprep.subr.mxu0 0.0
          %1318 = vmatpush1.msra.mxu0 0.0
          %1319 = vmatprep.subr.mxu0 0.0
          %1320 = vmatpush1.msra.mxu0 0.0
          %1321 = vmatprep.mubr.f32.mxu0 0.0
          %1322 = vmatmul.mubr.f32.gmra.mrb[0].mxu0 %v1252
          %v1323 = vpop.f32.mrb[0].mxu0
          %v1324 = vadd.f32 %v1249, %v1323
          %v1325 = vpop.f32.mrb[0].mxu0
          %1326 = vmatprep.mubr.f32.mxu0 0.0
          %1327 = vmatmul.mubr.f32.gmra.mrb[0].mxu0 %v1255
          %v1328 = vpop.f32.mrb[0].mxu0
          %v1329 = vadd.f32 %v1249, %v1328
          %v1330 = vpop.f32.mrb[0].mxu0
          %1331 = vdwg.mxu0
          %1333 = vset.pattern.permute.xlu0 0
          %1334 = vperm.xlu0 %1333, %v1324
          %v1335 = vpop.permute.xlu0 %1334
          %1338 = vset.pattern.permute.xlu0 0
          %1339 = vperm.xlu0 %1338, %v1329
          %v1340 = vpop.permute.xlu0 %1339
          %v1342 = vmul.f32 %v1335, %v514
          %v1343 = vmul.f32 %v1335, %v516
          %v1344 = vmul.f32 %v1335, %v591
          %v1345 = vmul.f32 %v1335, %v593
          %v1346 = vmul.f32 %v1340, %v520
          %v1347 = vmul.f32 %v1340, %v522
          %v1348 = vmul.f32 %v1340, %v597
          %v1349 = vmul.f32 %v1340, %v599
          %1350 = vset.pattern.permute.xlu0 1
          %1351 = vperm.xlu0 %1350, %v1324
          %v1352 = vpop.permute.xlu0 %1351
          %1354 = vset.pattern.permute.xlu0 1
          %1355 = vperm.xlu0 %1354, %v1329
          %v1356 = vpop.permute.xlu0 %1355
          %v1358 = vmul.f32 %v1352, %v715
          %v1359 = vmul.f32 %v1352, %v717
          %v1360 = vmul.f32 %v1352, %v792
          %v1361 = vmul.f32 %v1352, %v794
          %v1362 = vmul.f32 %v1356, %v721
          %v1363 = vmul.f32 %v1356, %v723
          %v1364 = vmul.f32 %v1356, %v798
          %v1365 = vmul.f32 %v1356, %v800
          %v1366 = vadd.f32 %v1342, %v1358
          %v1367 = vadd.f32 %v1343, %v1359
          %v1368 = vadd.f32 %v1344, %v1360
          %v1369 = vadd.f32 %v1345, %v1361
          %v1370 = vadd.f32 %v1346, %v1362
          %v1371 = vadd.f32 %v1347, %v1363
          %v1372 = vadd.f32 %v1348, %v1364
          %v1373 = vadd.f32 %v1349, %v1365
          %1374 = vst [vmem:[#allocation16] sm:$0xff] %v1366
          %1375 = vst [vmem:[#allocation16 + $0x8] sm:$0xff] %v1367
          %1376 = vst [vmem:[#allocation16 + $0x10] sm:$0xff] %v1368
          %1377 = vst [vmem:[#allocation16 + $0x18] sm:$0xff] %v1369
          %1378 = vst [vmem:[#allocation16 + $0x20] sm:$0xff] %v1370
          %1379 = vst [vmem:[#allocation16 + $0x28] sm:$0xff] %v1371
          %1380 = vst [vmem:[#allocation16 + $0x30] sm:$0xff] %v1372
          %1381 = vst [vmem:[#allocation16 + $0x38] sm:$0xff] %v1373
          %v1382 = vlaneseq
          %vm1383 = vcmp.ge.s32.totalorder %v1382, 0
          %vm1384 = vcmp.lt.s32.totalorder %v1382, 512
          %vm1385 = vmand %vm1383, %vm1384
          %1386 = vst.msk [vmem:[#allocation2] sm:$0xf] %vm1385, 0.0
        $region80: #{tpu_custom_call.1} parent=47 // pred_fallthru
          _
        %s1387 = smul.u32 %s26, 8
        %s1388 = sshra.s32 %s1387, 3
        %s1389 = sand.u32 %s1387, 7
        %s1390 = smul.u32 %s1388, 4
        %s1391 = smul.addr %s1390, 8
        %s1392 = scalar_lea.vmem [#allocation16], %s1391
        %v1393 = vld [vmem:[%s1392] sm:$0xff]
        %v1394 = vld [vmem:[%s1392 + $0x8] sm:$0xff]
        %v1395 = vld [vmem:[%s1392 + $0x10] sm:$0xff]
        %v1396 = vld [vmem:[%s1392 + $0x18] sm:$0xff]
        %v1397 = vpack.c.bf16 %v1393, %v1393
        %v1398 = vpack.c.bf16 %v1394, %v1394
        %v1399 = vpack.c.bf16 %v1395, %v1395
        %v1400 = vpack.c.bf16 %v1396, %v1396
        %v1401 = vld [vmem:[%s367] sm:$0xff]
        %v1402 = vld [vmem:[%s367 + $0x8] sm:$0xff]
        %v1403 = vld [vmem:[%s367 + $0x10] sm:$0xff]
        %v1404 = vld [vmem:[%s367 + $0x18] sm:$0xff]
        %v1405 = vld [vmem:[%s367 + $0x20] sm:$0xff]
        %v1406 = vld [vmem:[%s367 + $0x28] sm:$0xff]
        %v1407 = vld [vmem:[%s367 + $0x30] sm:$0xff]
        %v1408 = vld [vmem:[%s367 + $0x38] sm:$0xff]
        %v1409 = vld [vmem:[%s367 + $0x40] sm:$0xff]
        %v1410 = vld [vmem:[%s367 + $0x48] sm:$0xff]
        %v1411 = vld [vmem:[%s367 + $0x50] sm:$0xff]
        %v1412 = vld [vmem:[%s367 + $0x58] sm:$0xff]
        %v1413 = vld [vmem:[%s367 + $0x60] sm:$0xff]
        %v1414 = vld [vmem:[%s367 + $0x68] sm:$0xff]
        %v1415 = vld [vmem:[%s367 + $0x70] sm:$0xff]
        %v1416 = vld [vmem:[%s367 + $0x78] sm:$0xff]
        %v1417 = vld [vmem:[%s367 + $0x80] sm:$0xff]
        %v1418 = vld [vmem:[%s367 + $0x88] sm:$0xff]
        %v1419 = vld [vmem:[%s367 + $0x90] sm:$0xff]
        %v1420 = vld [vmem:[%s367 + $0x98] sm:$0xff]
        %v1421 = vld [vmem:[%s367 + $0xa0] sm:$0xff]
        %v1422 = vld [vmem:[%s367 + $0xa8] sm:$0xff]
        %v1423 = vld [vmem:[%s367 + $0xb0] sm:$0xff]
        %v1424 = vld [vmem:[%s367 + $0xb8] sm:$0xff]
        %v1425 = vld [vmem:[%s367 + $0xc0] sm:$0xff]
        %v1426 = vld [vmem:[%s367 + $0xc8] sm:$0xff]
        %v1427 = vld [vmem:[%s367 + $0xd0] sm:$0xff]
        %v1428 = vld [vmem:[%s367 + $0xd8] sm:$0xff]
        %v1429 = vld [vmem:[%s367 + $0xe0] sm:$0xff]
        %v1430 = vld [vmem:[%s367 + $0xe8] sm:$0xff]
        %v1431 = vld [vmem:[%s367 + $0xf0] sm:$0xff]
        %v1432 = vld [vmem:[%s367 + $0xf8] sm:$0xff]
        %v1433 = vld [vmem:[%s367 + $0x100] sm:$0xff]
        %v1434 = vld [vmem:[%s367 + $0x108] sm:$0xff]
        %v1435 = vld [vmem:[%s367 + $0x110] sm:$0xff]
        %v1436 = vld [vmem:[%s367 + $0x118] sm:$0xff]
        %v1437 = vld [vmem:[%s367 + $0x120] sm:$0xff]
        %v1438 = vld [vmem:[%s367 + $0x128] sm:$0xff]
        %v1439 = vld [vmem:[%s367 + $0x130] sm:$0xff]
        %v1440 = vld [vmem:[%s367 + $0x138] sm:$0xff]
        %v1441 = vld [vmem:[%s367 + $0x140] sm:$0xff]
        %v1442 = vld [vmem:[%s367 + $0x148] sm:$0xff]
        %v1443 = vld [vmem:[%s367 + $0x150] sm:$0xff]
        %v1444 = vld [vmem:[%s367 + $0x158] sm:$0xff]
        %v1445 = vld [vmem:[%s367 + $0x160] sm:$0xff]
        %v1446 = vld [vmem:[%s367 + $0x168] sm:$0xff]
        %v1447 = vld [vmem:[%s367 + $0x170] sm:$0xff]
        %v1448 = vld [vmem:[%s367 + $0x178] sm:$0xff]
        %v1449 = vld [vmem:[%s367 + $0x180] sm:$0xff]
        %v1450 = vld [vmem:[%s367 + $0x188] sm:$0xff]
        %v1451 = vld [vmem:[%s367 + $0x190] sm:$0xff]
        %v1452 = vld [vmem:[%s367 + $0x198] sm:$0xff]
        %v1453 = vld [vmem:[%s367 + $0x1a0] sm:$0xff]
        %v1454 = vld [vmem:[%s367 + $0x1a8] sm:$0xff]
        %v1455 = vld [vmem:[%s367 + $0x1b0] sm:$0xff]
        %v1456 = vld [vmem:[%s367 + $0x1b8] sm:$0xff]
        %v1457 = vld [vmem:[%s367 + $0x1c0] sm:$0xff]
        %v1458 = vld [vmem:[%s367 + $0x1c8] sm:$0xff]
        %v1459 = vld [vmem:[%s367 + $0x1d0] sm:$0xff]
        %v1460 = vld [vmem:[%s367 + $0x1d8] sm:$0xff]
        %v1461 = vld [vmem:[%s367 + $0x1e0] sm:$0xff]
        %v1462 = vld [vmem:[%s367 + $0x1e8] sm:$0xff]
        %v1463 = vld [vmem:[%s367 + $0x1f0] sm:$0xff]
        %v1464 = vld [vmem:[%s367 + $0x1f8] sm:$0xff]
        %v1465 = vld [vmem:[%s367 + $0x200] sm:$0xff]
        %v1466 = vld [vmem:[%s367 + $0x208] sm:$0xff]
        %v1467 = vld [vmem:[%s367 + $0x210] sm:$0xff]
        %v1468 = vld [vmem:[%s367 + $0x218] sm:$0xff]
        %v1469 = vld [vmem:[%s367 + $0x220] sm:$0xff]
        %v1470 = vld [vmem:[%s367 + $0x228] sm:$0xff]
        %v1471 = vld [vmem:[%s367 + $0x230] sm:$0xff]
        %v1472 = vld [vmem:[%s367 + $0x238] sm:$0xff]
        %v1473 = vld [vmem:[%s367 + $0x240] sm:$0xff]
        %v1474 = vld [vmem:[%s367 + $0x248] sm:$0xff]
        %v1475 = vld [vmem:[%s367 + $0x250] sm:$0xff]
        %v1476 = vld [vmem:[%s367 + $0x258] sm:$0xff]
        %v1477 = vld [vmem:[%s367 + $0x260] sm:$0xff]
        %v1478 = vld [vmem:[%s367 + $0x268] sm:$0xff]
        %v1479 = vld [vmem:[%s367 + $0x270] sm:$0xff]
        %v1480 = vld [vmem:[%s367 + $0x278] sm:$0xff]
        %v1481 = vld [vmem:[%s367 + $0x280] sm:$0xff]
        %v1482 = vld [vmem:[%s367 + $0x288] sm:$0xff]
        %v1483 = vld [vmem:[%s367 + $0x290] sm:$0xff]
        %v1484 = vld [vmem:[%s367 + $0x298] sm:$0xff]
        %v1485 = vld [vmem:[%s367 + $0x2a0] sm:$0xff]
        %v1486 = vld [vmem:[%s367 + $0x2a8] sm:$0xff]
        %v1487 = vld [vmem:[%s367 + $0x2b0] sm:$0xff]
        %v1488 = vld [vmem:[%s367 + $0x2b8] sm:$0xff]
        %v1489 = vld [vmem:[%s367 + $0x2c0] sm:$0xff]
        %v1490 = vld [vmem:[%s367 + $0x2c8] sm:$0xff]
        %v1491 = vld [vmem:[%s367 + $0x2d0] sm:$0xff]
        %v1492 = vld [vmem:[%s367 + $0x2d8] sm:$0xff]
        %v1493 = vld [vmem:[%s367 + $0x2e0] sm:$0xff]
        %v1494 = vld [vmem:[%s367 + $0x2e8] sm:$0xff]
        %v1495 = vld [vmem:[%s367 + $0x2f0] sm:$0xff]
        %v1496 = vld [vmem:[%s367 + $0x2f8] sm:$0xff]
        %v1497 = vld [vmem:[%s367 + $0x300] sm:$0xff]
        %v1498 = vld [vmem:[%s367 + $0x308] sm:$0xff]
        %v1499 = vld [vmem:[%s367 + $0x310] sm:$0xff]
        %v1500 = vld [vmem:[%s367 + $0x318] sm:$0xff]
        %v1501 = vld [vmem:[%s367 + $0x320] sm:$0xff]
        %v1502 = vld [vmem:[%s367 + $0x328] sm:$0xff]
        %v1503 = vld [vmem:[%s367 + $0x330] sm:$0xff]
        %v1504 = vld [vmem:[%s367 + $0x338] sm:$0xff]
        %v1505 = vld [vmem:[%s367 + $0x340] sm:$0xff]
        %v1506 = vld [vmem:[%s367 + $0x348] sm:$0xff]
        %v1507 = vld [vmem:[%s367 + $0x350] sm:$0xff]
        %v1508 = vld [vmem:[%s367 + $0x358] sm:$0xff]
        %v1509 = vld [vmem:[%s367 + $0x360] sm:$0xff]
        %v1510 = vld [vmem:[%s367 + $0x368] sm:$0xff]
        %v1511 = vld [vmem:[%s367 + $0x370] sm:$0xff]
        %v1512 = vld [vmem:[%s367 + $0x378] sm:$0xff]
        %v1513 = vld [vmem:[%s367 + $0x380] sm:$0xff]
        %v1514 = vld [vmem:[%s367 + $0x388] sm:$0xff]
        %v1515 = vld [vmem:[%s367 + $0x390] sm:$0xff]
        %v1516 = vld [vmem:[%s367 + $0x398] sm:$0xff]
        %v1517 = vld [vmem:[%s367 + $0x3a0] sm:$0xff]
        %v1518 = vld [vmem:[%s367 + $0x3a8] sm:$0xff]
        %v1519 = vld [vmem:[%s367 + $0x3b0] sm:$0xff]
        %v1520 = vld [vmem:[%s367 + $0x3b8] sm:$0xff]
        %v1521 = vld [vmem:[%s367 + $0x3c0] sm:$0xff]
        %v1522 = vld [vmem:[%s367 + $0x3c8] sm:$0xff]
        %v1523 = vld [vmem:[%s367 + $0x3d0] sm:$0xff]
        %v1524 = vld [vmem:[%s367 + $0x3d8] sm:$0xff]
        %v1525 = vld [vmem:[%s367 + $0x3e0] sm:$0xff]
        %v1526 = vld [vmem:[%s367 + $0x3e8] sm:$0xff]
        %v1527 = vld [vmem:[%s367 + $0x3f0] sm:$0xff]
        %v1528 = vld [vmem:[%s367 + $0x3f8] sm:$0xff]
        %v1529 = vld [vmem:[%s367 + $0x400] sm:$0xff]
        %v1530 = vld [vmem:[%s367 + $0x408] sm:$0xff]
        %v1531 = vld [vmem:[%s367 + $0x410] sm:$0xff]
        %v1532 = vld [vmem:[%s367 + $0x418] sm:$0xff]
        %v1533 = vld [vmem:[%s367 + $0x420] sm:$0xff]
        %v1534 = vld [vmem:[%s367 + $0x428] sm:$0xff]
        %v1535 = vld [vmem:[%s367 + $0x430] sm:$0xff]
        %v1536 = vld [vmem:[%s367 + $0x438] sm:$0xff]
        %v1537 = vld [vmem:[%s367 + $0x440] sm:$0xff]
        %v1538 = vld [vmem:[%s367 + $0x448] sm:$0xff]
        %v1539 = vld [vmem:[%s367 + $0x450] sm:$0xff]
        %v1540 = vld [vmem:[%s367 + $0x458] sm:$0xff]
        %v1541 = vld [vmem:[%s367 + $0x460] sm:$0xff]
        %v1542 = vld [vmem:[%s367 + $0x468] sm:$0xff]
        %v1543 = vld [vmem:[%s367 + $0x470] sm:$0xff]
        %v1544 = vld [vmem:[%s367 + $0x478] sm:$0xff]
        %v1545 = vld [vmem:[%s367 + $0x480] sm:$0xff]
        %v1546 = vld [vmem:[%s367 + $0x488] sm:$0xff]
        %v1547 = vld [vmem:[%s367 + $0x490] sm:$0xff]
        %v1548 = vld [vmem:[%s367 + $0x498] sm:$0xff]
        %v1549 = vld [vmem:[%s367 + $0x4a0] sm:$0xff]
        %v1550 = vld [vmem:[%s367 + $0x4a8] sm:$0xff]
        %v1551 = vld [vmem:[%s367 + $0x4b0] sm:$0xff]
        %v1552 = vld [vmem:[%s367 + $0x4b8] sm:$0xff]
        %v1553 = vld [vmem:[%s367 + $0x4c0] sm:$0xff]
        %v1554 = vld [vmem:[%s367 + $0x4c8] sm:$0xff]
        %v1555 = vld [vmem:[%s367 + $0x4d0] sm:$0xff]
        %v1556 = vld [vmem:[%s367 + $0x4d8] sm:$0xff]
        %v1557 = vld [vmem:[%s367 + $0x4e0] sm:$0xff]
        %v1558 = vld [vmem:[%s367 + $0x4e8] sm:$0xff]
        %v1559 = vld [vmem:[%s367 + $0x4f0] sm:$0xff]
        %v1560 = vld [vmem:[%s367 + $0x4f8] sm:$0xff]
        %v1561 = vld [vmem:[%s367 + $0x500] sm:$0xff]
        %v1562 = vld [vmem:[%s367 + $0x508] sm:$0xff]
        %v1563 = vld [vmem:[%s367 + $0x510] sm:$0xff]
        %v1564 = vld [vmem:[%s367 + $0x518] sm:$0xff]
        %v1565 = vld [vmem:[%s367 + $0x520] sm:$0xff]
        %v1566 = vld [vmem:[%s367 + $0x528] sm:$0xff]
        %v1567 = vld [vmem:[%s367 + $0x530] sm:$0xff]
        %v1568 = vld [vmem:[%s367 + $0x538] sm:$0xff]
        %v1569 = vld [vmem:[%s367 + $0x540] sm:$0xff]
        %v1570 = vld [vmem:[%s367 + $0x548] sm:$0xff]
        %v1571 = vld [vmem:[%s367 + $0x550] sm:$0xff]
        %v1572 = vld [vmem:[%s367 + $0x558] sm:$0xff]
        %v1573 = vld [vmem:[%s367 + $0x560] sm:$0xff]
        %v1574 = vld [vmem:[%s367 + $0x568] sm:$0xff]
        %v1575 = vld [vmem:[%s367 + $0x570] sm:$0xff]
        %v1576 = vld [vmem:[%s367 + $0x578] sm:$0xff]
        %v1577 = vld [vmem:[%s367 + $0x580] sm:$0xff]
        %v1578 = vld [vmem:[%s367 + $0x588] sm:$0xff]
        %v1579 = vld [vmem:[%s367 + $0x590] sm:$0xff]
        %v1580 = vld [vmem:[%s367 + $0x598] sm:$0xff]
        %v1581 = vld [vmem:[%s367 + $0x5a0] sm:$0xff]
        %v1582 = vld [vmem:[%s367 + $0x5a8] sm:$0xff]
        %v1583 = vld [vmem:[%s367 + $0x5b0] sm:$0xff]
        %v1584 = vld [vmem:[%s367 + $0x5b8] sm:$0xff]
        %v1585 = vld [vmem:[%s367 + $0x5c0] sm:$0xff]
        %v1586 = vld [vmem:[%s367 + $0x5c8] sm:$0xff]
        %v1587 = vld [vmem:[%s367 + $0x5d0] sm:$0xff]
        %v1588 = vld [vmem:[%s367 + $0x5d8] sm:$0xff]
        %v1589 = vld [vmem:[%s367 + $0x5e0] sm:$0xff]
        %v1590 = vld [vmem:[%s367 + $0x5e8] sm:$0xff]
        %v1591 = vld [vmem:[%s367 + $0x5f0] sm:$0xff]
        %v1592 = vld [vmem:[%s367 + $0x5f8] sm:$0xff]
        %v1593 = vld [vmem:[%s367 + $0x600] sm:$0xff]
        %v1594 = vld [vmem:[%s367 + $0x608] sm:$0xff]
        %v1595 = vld [vmem:[%s367 + $0x610] sm:$0xff]
        %v1596 = vld [vmem:[%s367 + $0x618] sm:$0xff]
        %v1597 = vld [vmem:[%s367 + $0x620] sm:$0xff]
        %v1598 = vld [vmem:[%s367 + $0x628] sm:$0xff]
        %v1599 = vld [vmem:[%s367 + $0x630] sm:$0xff]
        %v1600 = vld [vmem:[%s367 + $0x638] sm:$0xff]
        %v1601 = vld [vmem:[%s367 + $0x640] sm:$0xff]
        %v1602 = vld [vmem:[%s367 + $0x648] sm:$0xff]
        %v1603 = vld [vmem:[%s367 + $0x650] sm:$0xff]
        %v1604 = vld [vmem:[%s367 + $0x658] sm:$0xff]
        %v1605 = vld [vmem:[%s367 + $0x660] sm:$0xff]
        %v1606 = vld [vmem:[%s367 + $0x668] sm:$0xff]
        %v1607 = vld [vmem:[%s367 + $0x670] sm:$0xff]
        %v1608 = vld [vmem:[%s367 + $0x678] sm:$0xff]
        %v1609 = vld [vmem:[%s367 + $0x680] sm:$0xff]
        %v1610 = vld [vmem:[%s367 + $0x688] sm:$0xff]
        %v1611 = vld [vmem:[%s367 + $0x690] sm:$0xff]
        %v1612 = vld [vmem:[%s367 + $0x698] sm:$0xff]
        %v1613 = vld [vmem:[%s367 + $0x6a0] sm:$0xff]
        %v1614 = vld [vmem:[%s367 + $0x6a8] sm:$0xff]
        %v1615 = vld [vmem:[%s367 + $0x6b0] sm:$0xff]
        %v1616 = vld [vmem:[%s367 + $0x6b8] sm:$0xff]
        %v1617 = vld [vmem:[%s367 + $0x6c0] sm:$0xff]
        %v1618 = vld [vmem:[%s367 + $0x6c8] sm:$0xff]
        %v1619 = vld [vmem:[%s367 + $0x6d0] sm:$0xff]
        %v1620 = vld [vmem:[%s367 + $0x6d8] sm:$0xff]
        %v1621 = vld [vmem:[%s367 + $0x6e0] sm:$0xff]
        %v1622 = vld [vmem:[%s367 + $0x6e8] sm:$0xff]
        %v1623 = vld [vmem:[%s367 + $0x6f0] sm:$0xff]
        %v1624 = vld [vmem:[%s367 + $0x6f8] sm:$0xff]
        %v1625 = vld [vmem:[%s367 + $0x700] sm:$0xff]
        %v1626 = vld [vmem:[%s367 + $0x708] sm:$0xff]
        %v1627 = vld [vmem:[%s367 + $0x710] sm:$0xff]
        %v1628 = vld [vmem:[%s367 + $0x718] sm:$0xff]
        %v1629 = vld [vmem:[%s367 + $0x720] sm:$0xff]
        %v1630 = vld [vmem:[%s367 + $0x728] sm:$0xff]
        %v1631 = vld [vmem:[%s367 + $0x730] sm:$0xff]
        %v1632 = vld [vmem:[%s367 + $0x738] sm:$0xff]
        %v1633 = vld [vmem:[%s367 + $0x740] sm:$0xff]
        %v1634 = vld [vmem:[%s367 + $0x748] sm:$0xff]
        %v1635 = vld [vmem:[%s367 + $0x750] sm:$0xff]
        %v1636 = vld [vmem:[%s367 + $0x758] sm:$0xff]
        %v1637 = vld [vmem:[%s367 + $0x760] sm:$0xff]
        %v1638 = vld [vmem:[%s367 + $0x768] sm:$0xff]
        %v1639 = vld [vmem:[%s367 + $0x770] sm:$0xff]
        %v1640 = vld [vmem:[%s367 + $0x778] sm:$0xff]
        %v1641 = vld [vmem:[%s367 + $0x780] sm:$0xff]
        %v1642 = vld [vmem:[%s367 + $0x788] sm:$0xff]
        %v1643 = vld [vmem:[%s367 + $0x790] sm:$0xff]
        %v1644 = vld [vmem:[%s367 + $0x798] sm:$0xff]
        %v1645 = vld [vmem:[%s367 + $0x7a0] sm:$0xff]
        %v1646 = vld [vmem:[%s367 + $0x7a8] sm:$0xff]
        %v1647 = vld [vmem:[%s367 + $0x7b0] sm:$0xff]
        %v1648 = vld [vmem:[%s367 + $0x7b8] sm:$0xff]
        %v1649 = vld [vmem:[%s367 + $0x7c0] sm:$0xff]
        %v1650 = vld [vmem:[%s367 + $0x7c8] sm:$0xff]
        %v1651 = vld [vmem:[%s367 + $0x7d0] sm:$0xff]
        %v1652 = vld [vmem:[%s367 + $0x7d8] sm:$0xff]
        %v1653 = vld [vmem:[%s367 + $0x7e0] sm:$0xff]
        %v1654 = vld [vmem:[%s367 + $0x7e8] sm:$0xff]
        %v1655 = vld [vmem:[%s367 + $0x7f0] sm:$0xff]
        %v1656 = vld [vmem:[%s367 + $0x7f8] sm:$0xff]
        %v1658 = vshrl.u32 %v1397, 16
        %v1661 = vshrl.u32 %v1398, 16
        %v1664 = vshrl.u32 %v1399, 16
        %v1667 = vshrl.u32 %v1400, 16
        %v1801 = vunpack.c.l.b16 %v1529
        %v1802 = vunpack.c.h.b16 %v1529
        %v1803 = vunpack.c.l.b16 %v1530
        %v1804 = vunpack.c.h.b16 %v1530
        %v1805 = vunpack.c.l.b16 %v1531
        %v1806 = vunpack.c.h.b16 %v1531
        %v1807 = vunpack.c.l.b16 %v1532
        %v1808 = vunpack.c.h.b16 %v1532
        %v1809 = vunpack.c.l.b16 %v1533
        %v1810 = vunpack.c.h.b16 %v1533
        %v1811 = vunpack.c.l.b16 %v1534
        %v1812 = vunpack.c.h.b16 %v1534
        %v1813 = vunpack.c.l.b16 %v1535
        %v1814 = vunpack.c.h.b16 %v1535
        %v1815 = vunpack.c.l.b16 %v1536
        %v1816 = vunpack.c.h.b16 %v1536
        %v1817 = vunpack.c.l.b16 %v1537
        %v1818 = vunpack.c.h.b16 %v1537
        %v1819 = vunpack.c.l.b16 %v1538
        %v1820 = vunpack.c.h.b16 %v1538
        %v1821 = vunpack.c.l.b16 %v1539
        %v1822 = vunpack.c.h.b16 %v1539
        %v1823 = vunpack.c.l.b16 %v1540
        %v1824 = vunpack.c.h.b16 %v1540
        %v1825 = vunpack.c.l.b16 %v1541
        %v1826 = vunpack.c.h.b16 %v1541
        %v1827 = vunpack.c.l.b16 %v1542
        %v1828 = vunpack.c.h.b16 %v1542
        %v1829 = vunpack.c.l.b16 %v1543
        %v1830 = vunpack.c.h.b16 %v1543
        %v1831 = vunpack.c.l.b16 %v1544
        %v1832 = vunpack.c.h.b16 %v1544
        %v1833 = vunpack.c.l.b16 %v1545
        %v1834 = vunpack.c.h.b16 %v1545
        %v1835 = vunpack.c.l.b16 %v1546
        %v1836 = vunpack.c.h.b16 %v1546
        %v1837 = vunpack.c.l.b16 %v1547
        %v1838 = vunpack.c.h.b16 %v1547
        %v1839 = vunpack.c.l.b16 %v1548
        %v1840 = vunpack.c.h.b16 %v1548
        %v1841 = vunpack.c.l.b16 %v1549
        %v1842 = vunpack.c.h.b16 %v1549
        %v1843 = vunpack.c.l.b16 %v1550
        %v1844 = vunpack.c.h.b16 %v1550
        %v1845 = vunpack.c.l.b16 %v1551
        %v1846 = vunpack.c.h.b16 %v1551
        %v1847 = vunpack.c.l.b16 %v1552
        %v1848 = vunpack.c.h.b16 %v1552
        %v1849 = vunpack.c.l.b16 %v1553
        %v1850 = vunpack.c.h.b16 %v1553
        %v1851 = vunpack.c.l.b16 %v1554
        %v1852 = vunpack.c.h.b16 %v1554
        %v1853 = vunpack.c.l.b16 %v1555
        %v1854 = vunpack.c.h.b16 %v1555
        %v1855 = vunpack.c.l.b16 %v1556
        %v1856 = vunpack.c.h.b16 %v1556
        %v1857 = vunpack.c.l.b16 %v1557
        %v1858 = vunpack.c.h.b16 %v1557
        %v1859 = vunpack.c.l.b16 %v1558
        %v1860 = vunpack.c.h.b16 %v1558
        %v1861 = vunpack.c.l.b16 %v1559
        %v1862 = vunpack.c.h.b16 %v1559
        %v1863 = vunpack.c.l.b16 %v1560
        %v1864 = vunpack.c.h.b16 %v1560
        %v1865 = vunpack.c.l.b16 %v1561
        %v1866 = vunpack.c.h.b16 %v1561
        %v1867 = vunpack.c.l.b16 %v1562
        %v1868 = vunpack.c.h.b16 %v1562
        %v1869 = vunpack.c.l.b16 %v1563
        %v1870 = vunpack.c.h.b16 %v1563
        %v1871 = vunpack.c.l.b16 %v1564
        %v1872 = vunpack.c.h.b16 %v1564
        %v1873 = vunpack.c.l.b16 %v1565
        %v1874 = vunpack.c.h.b16 %v1565
        %v1875 = vunpack.c.l.b16 %v1566
        %v1876 = vunpack.c.h.b16 %v1566
        %v1877 = vunpack.c.l.b16 %v1567
        %v1878 = vunpack.c.h.b16 %v1567
        %v1879 = vunpack.c.l.b16 %v1568
        %v1880 = vunpack.c.h.b16 %v1568
        %v1881 = vunpack.c.l.b16 %v1569
        %v1882 = vunpack.c.h.b16 %v1569
        %v1883 = vunpack.c.l.b16 %v1570
        %v1884 = vunpack.c.h.b16 %v1570
        %v1885 = vunpack.c.l.b16 %v1571
        %v1886 = vunpack.c.h.b16 %v1571
        %v1887 = vunpack.c.l.b16 %v1572
        %v1888 = vunpack.c.h.b16 %v1572
        %v1889 = vunpack.c.l.b16 %v1573
        %v1890 = vunpack.c.h.b16 %v1573
        %v1891 = vunpack.c.l.b16 %v1574
        %v1892 = vunpack.c.h.b16 %v1574
        %v1893 = vunpack.c.l.b16 %v1575
        %v1894 = vunpack.c.h.b16 %v1575
        %v1895 = vunpack.c.l.b16 %v1576
        %v1896 = vunpack.c.h.b16 %v1576
        %v1897 = vunpack.c.l.b16 %v1577
        %v1898 = vunpack.c.h.b16 %v1577
        %v1899 = vunpack.c.l.b16 %v1578
        %v1900 = vunpack.c.h.b16 %v1578
        %v1901 = vunpack.c.l.b16 %v1579
        %v1902 = vunpack.c.h.b16 %v1579
        %v1903 = vunpack.c.l.b16 %v1580
        %v1904 = vunpack.c.h.b16 %v1580
        %v1905 = vunpack.c.l.b16 %v1581
        %v1906 = vunpack.c.h.b16 %v1581
        %v1907 = vunpack.c.l.b16 %v1582
        %v1908 = vunpack.c.h.b16 %v1582
        %v1909 = vunpack.c.l.b16 %v1583
        %v1910 = vunpack.c.h.b16 %v1583
        %v1911 = vunpack.c.l.b16 %v1584
        %v1912 = vunpack.c.h.b16 %v1584
        %v1913 = vunpack.c.l.b16 %v1585
        %v1914 = vunpack.c.h.b16 %v1585
        %v1915 = vunpack.c.l.b16 %v1586
        %v1916 = vunpack.c.h.b16 %v1586
        %v1917 = vunpack.c.l.b16 %v1587
        %v1918 = vunpack.c.h.b16 %v1587
        %v1919 = vunpack.c.l.b16 %v1588
        %v1920 = vunpack.c.h.b16 %v1588
        %v1921 = vunpack.c.l.b16 %v1589
        %v1922 = vunpack.c.h.b16 %v1589
        %v1923 = vunpack.c.l.b16 %v1590
        %v1924 = vunpack.c.h.b16 %v1590
        %v1925 = vunpack.c.l.b16 %v1591
        %v1926 = vunpack.c.h.b16 %v1591
        %v1927 = vunpack.c.l.b16 %v1592
        %v1928 = vunpack.c.h.b16 %v1592
        %v1929 = vunpack.c.l.b16 %v1593
        %v1930 = vunpack.c.h.b16 %v1593
        %v1931 = vunpack.c.l.b16 %v1594
        %v1932 = vunpack.c.h.b16 %v1594
        %v1933 = vunpack.c.l.b16 %v1595
        %v1934 = vunpack.c.h.b16 %v1595
        %v1935 = vunpack.c.l.b16 %v1596
        %v1936 = vunpack.c.h.b16 %v1596
        %v1937 = vunpack.c.l.b16 %v1597
        %v1938 = vunpack.c.h.b16 %v1597
        %v1939 = vunpack.c.l.b16 %v1598
        %v1940 = vunpack.c.h.b16 %v1598
        %v1941 = vunpack.c.l.b16 %v1599
        %v1942 = vunpack.c.h.b16 %v1599
        %v1943 = vunpack.c.l.b16 %v1600
        %v1944 = vunpack.c.h.b16 %v1600
        %v1945 = vunpack.c.l.b16 %v1601
        %v1946 = vunpack.c.h.b16 %v1601
        %v1947 = vunpack.c.l.b16 %v1602
        %v1948 = vunpack.c.h.b16 %v1602
        %v1949 = vunpack.c.l.b16 %v1603
        %v1950 = vunpack.c.h.b16 %v1603
        %v1951 = vunpack.c.l.b16 %v1604
        %v1952 = vunpack.c.h.b16 %v1604
        %v1953 = vunpack.c.l.b16 %v1605
        %v1954 = vunpack.c.h.b16 %v1605
        %v1955 = vunpack.c.l.b16 %v1606
        %v1956 = vunpack.c.h.b16 %v1606
        %v1957 = vunpack.c.l.b16 %v1607
        %v1958 = vunpack.c.h.b16 %v1607
        %v1959 = vunpack.c.l.b16 %v1608
        %v1960 = vunpack.c.h.b16 %v1608
        %v1961 = vunpack.c.l.b16 %v1609
        %v1962 = vunpack.c.h.b16 %v1609
        %v1963 = vunpack.c.l.b16 %v1610
        %v1964 = vunpack.c.h.b16 %v1610
        %v1965 = vunpack.c.l.b16 %v1611
        %v1966 = vunpack.c.h.b16 %v1611
        %v1967 = vunpack.c.l.b16 %v1612
        %v1968 = vunpack.c.h.b16 %v1612
        %v1969 = vunpack.c.l.b16 %v1613
        %v1970 = vunpack.c.h.b16 %v1613
        %v1971 = vunpack.c.l.b16 %v1614
        %v1972 = vunpack.c.h.b16 %v1614
        %v1973 = vunpack.c.l.b16 %v1615
        %v1974 = vunpack.c.h.b16 %v1615
        %v1975 = vunpack.c.l.b16 %v1616
        %v1976 = vunpack.c.h.b16 %v1616
        %v1977 = vunpack.c.l.b16 %v1617
        %v1978 = vunpack.c.h.b16 %v1617
        %v1979 = vunpack.c.l.b16 %v1618
        %v1980 = vunpack.c.h.b16 %v1618
        %v1981 = vunpack.c.l.b16 %v1619
        %v1982 = vunpack.c.h.b16 %v1619
        %v1983 = vunpack.c.l.b16 %v1620
        %v1984 = vunpack.c.h.b16 %v1620
        %v1985 = vunpack.c.l.b16 %v1621
        %v1986 = vunpack.c.h.b16 %v1621
        %v1987 = vunpack.c.l.b16 %v1622
        %v1988 = vunpack.c.h.b16 %v1622
        %v1989 = vunpack.c.l.b16 %v1623
        %v1990 = vunpack.c.h.b16 %v1623
        %v1991 = vunpack.c.l.b16 %v1624
        %v1992 = vunpack.c.h.b16 %v1624
        %v1993 = vunpack.c.l.b16 %v1625
        %v1994 = vunpack.c.h.b16 %v1625
        %v1995 = vunpack.c.l.b16 %v1626
        %v1996 = vunpack.c.h.b16 %v1626
        %v1997 = vunpack.c.l.b16 %v1627
        %v1998 = vunpack.c.h.b16 %v1627
        %v1999 = vunpack.c.l.b16 %v1628
        %v2000 = vunpack.c.h.b16 %v1628
        %v2001 = vunpack.c.l.b16 %v1629
        %v2002 = vunpack.c.h.b16 %v1629
        %v2003 = vunpack.c.l.b16 %v1630
        %v2004 = vunpack.c.h.b16 %v1630
        %v2005 = vunpack.c.l.b16 %v1631
        %v2006 = vunpack.c.h.b16 %v1631
        %v2007 = vunpack.c.l.b16 %v1632
        %v2008 = vunpack.c.h.b16 %v1632
        %v2009 = vunpack.c.l.b16 %v1633
        %v2010 = vunpack.c.h.b16 %v1633
        %v2011 = vunpack.c.l.b16 %v1634
        %v2012 = vunpack.c.h.b16 %v1634
        %v2013 = vunpack.c.l.b16 %v1635
        %v2014 = vunpack.c.h.b16 %v1635
        %v2015 = vunpack.c.l.b16 %v1636
        %v2016 = vunpack.c.h.b16 %v1636
        %v2017 = vunpack.c.l.b16 %v1637
        %v2018 = vunpack.c.h.b16 %v1637
        %v2019 = vunpack.c.l.b16 %v1638
        %v2020 = vunpack.c.h.b16 %v1638
        %v2021 = vunpack.c.l.b16 %v1639
        %v2022 = vunpack.c.h.b16 %v1639
        %v2023 = vunpack.c.l.b16 %v1640
        %v2024 = vunpack.c.h.b16 %v1640
        %v2025 = vunpack.c.l.b16 %v1641
        %v2026 = vunpack.c.h.b16 %v1641
        %v2027 = vunpack.c.l.b16 %v1642
        %v2028 = vunpack.c.h.b16 %v1642
        %v2029 = vunpack.c.l.b16 %v1643
        %v2030 = vunpack.c.h.b16 %v1643
        %v2031 = vunpack.c.l.b16 %v1644
        %v2032 = vunpack.c.h.b16 %v1644
        %v2033 = vunpack.c.l.b16 %v1645
        %v2034 = vunpack.c.h.b16 %v1645
        %v2035 = vunpack.c.l.b16 %v1646
        %v2036 = vunpack.c.h.b16 %v1646
        %v2037 = vunpack.c.l.b16 %v1647
        %v2038 = vunpack.c.h.b16 %v1647
        %v2039 = vunpack.c.l.b16 %v1648
        %v2040 = vunpack.c.h.b16 %v1648
        %v2041 = vunpack.c.l.b16 %v1649
        %v2042 = vunpack.c.h.b16 %v1649
        %v2043 = vunpack.c.l.b16 %v1650
        %v2044 = vunpack.c.h.b16 %v1650
        %v2045 = vunpack.c.l.b16 %v1651
        %v2046 = vunpack.c.h.b16 %v1651
        %v2047 = vunpack.c.l.b16 %v1652
        %v2048 = vunpack.c.h.b16 %v1652
        %v2049 = vunpack.c.l.b16 %v1653
        %v2050 = vunpack.c.h.b16 %v1653
        %v2051 = vunpack.c.l.b16 %v1654
        %v2052 = vunpack.c.h.b16 %v1654
        %v2053 = vunpack.c.l.b16 %v1655
        %v2054 = vunpack.c.h.b16 %v1655
        %v2055 = vunpack.c.l.b16 %v1656
        %v2056 = vunpack.c.h.b16 %v1656
        %v2057 = vpack.c.b16 %v1805, %v1801
        %v2058 = vpack.c.b16 %v1806, %v1802
        %v2059 = vpack.c.b16 %v1807, %v1803
        %v2060 = vpack.c.b16 %v1808, %v1804
        %v2061 = vpack.c.b16 %v1813, %v1809
        %v2062 = vpack.c.b16 %v1814, %v1810
        %v2063 = vpack.c.b16 %v1815, %v1811
        %v2064 = vpack.c.b16 %v1816, %v1812
        %v2065 = vpack.c.b16 %v1821, %v1817
        %v2066 = vpack.c.b16 %v1822, %v1818
        %v2067 = vpack.c.b16 %v1823, %v1819
        %v2068 = vpack.c.b16 %v1824, %v1820
        %v2069 = vpack.c.b16 %v1829, %v1825
        %v2070 = vpack.c.b16 %v1830, %v1826
        %v2071 = vpack.c.b16 %v1831, %v1827
        %v2072 = vpack.c.b16 %v1832, %v1828
        %v2073 = vpack.c.b16 %v1837, %v1833
        %v2074 = vpack.c.b16 %v1838, %v1834
        %v2075 = vpack.c.b16 %v1839, %v1835
        %v2076 = vpack.c.b16 %v1840, %v1836
        %v2077 = vpack.c.b16 %v1845, %v1841
        %v2078 = vpack.c.b16 %v1846, %v1842
        %v2079 = vpack.c.b16 %v1847, %v1843
        %v2080 = vpack.c.b16 %v1848, %v1844
        %v2081 = vpack.c.b16 %v1853, %v1849
        %v2082 = vpack.c.b16 %v1854, %v1850
        %v2083 = vpack.c.b16 %v1855, %v1851
        %v2084 = vpack.c.b16 %v1856, %v1852
        %v2085 = vpack.c.b16 %v1861, %v1857
        %v2086 = vpack.c.b16 %v1862, %v1858
        %v2087 = vpack.c.b16 %v1863, %v1859
        %v2088 = vpack.c.b16 %v1864, %v1860
        %v2089 = vpack.c.b16 %v1869, %v1865
        %v2090 = vpack.c.b16 %v1870, %v1866
        %v2091 = vpack.c.b16 %v1871, %v1867
        %v2092 = vpack.c.b16 %v1872, %v1868
        %v2093 = vpack.c.b16 %v1877, %v1873
        %v2094 = vpack.c.b16 %v1878, %v1874
        %v2095 = vpack.c.b16 %v1879, %v1875
        %v2096 = vpack.c.b16 %v1880, %v1876
        %v2097 = vpack.c.b16 %v1885, %v1881
        %v2098 = vpack.c.b16 %v1886, %v1882
        %v2099 = vpack.c.b16 %v1887, %v1883
        %v2100 = vpack.c.b16 %v1888, %v1884
        %v2101 = vpack.c.b16 %v1893, %v1889
        %v2102 = vpack.c.b16 %v1894, %v1890
        %v2103 = vpack.c.b16 %v1895, %v1891
        %v2104 = vpack.c.b16 %v1896, %v1892
        %v2105 = vpack.c.b16 %v1901, %v1897
        %v2106 = vpack.c.b16 %v1902, %v1898
        %v2107 = vpack.c.b16 %v1903, %v1899
        %v2108 = vpack.c.b16 %v1904, %v1900
        %v2109 = vpack.c.b16 %v1909, %v1905
        %v2110 = vpack.c.b16 %v1910, %v1906
        %v2111 = vpack.c.b16 %v1911, %v1907
        %v2112 = vpack.c.b16 %v1912, %v1908
        %v2113 = vpack.c.b16 %v1917, %v1913
        %v2114 = vpack.c.b16 %v1918, %v1914
        %v2115 = vpack.c.b16 %v1919, %v1915
        %v2116 = vpack.c.b16 %v1920, %v1916
        %v2117 = vpack.c.b16 %v1925, %v1921
        %v2118 = vpack.c.b16 %v1926, %v1922
        %v2119 = vpack.c.b16 %v1927, %v1923
        %v2120 = vpack.c.b16 %v1928, %v1924
        %v2121 = vpack.c.b16 %v1933, %v1929
        %v2122 = vpack.c.b16 %v1934, %v1930
        %v2123 = vpack.c.b16 %v1935, %v1931
        %v2124 = vpack.c.b16 %v1936, %v1932
        %v2125 = vpack.c.b16 %v1941, %v1937
        %v2126 = vpack.c.b16 %v1942, %v1938
        %v2127 = vpack.c.b16 %v1943, %v1939
        %v2128 = vpack.c.b16 %v1944, %v1940
        %v2129 = vpack.c.b16 %v1949, %v1945
        %v2130 = vpack.c.b16 %v1950, %v1946
        %v2131 = vpack.c.b16 %v1951, %v1947
        %v2132 = vpack.c.b16 %v1952, %v1948
        %v2133 = vpack.c.b16 %v1957, %v1953
        %v2134 = vpack.c.b16 %v1958, %v1954
        %v2135 = vpack.c.b16 %v1959, %v1955
        %v2136 = vpack.c.b16 %v1960, %v1956
        %v2137 = vpack.c.b16 %v1965, %v1961
        %v2138 = vpack.c.b16 %v1966, %v1962
        %v2139 = vpack.c.b16 %v1967, %v1963
        %v2140 = vpack.c.b16 %v1968, %v1964
        %v2141 = vpack.c.b16 %v1973, %v1969
        %v2142 = vpack.c.b16 %v1974, %v1970
        %v2143 = vpack.c.b16 %v1975, %v1971
        %v2144 = vpack.c.b16 %v1976, %v1972
        %v2145 = vpack.c.b16 %v1981, %v1977
        %v2146 = vpack.c.b16 %v1982, %v1978
        %v2147 = vpack.c.b16 %v1983, %v1979
        %v2148 = vpack.c.b16 %v1984, %v1980
        %v2149 = vpack.c.b16 %v1989, %v1985
        %v2150 = vpack.c.b16 %v1990, %v1986
        %v2151 = vpack.c.b16 %v1991, %v1987
        %v2152 = vpack.c.b16 %v1992, %v1988
        %v2153 = vpack.c.b16 %v1997, %v1993
        %v2154 = vpack.c.b16 %v1998, %v1994
        %v2155 = vpack.c.b16 %v1999, %v1995
        %v2156 = vpack.c.b16 %v2000, %v1996
        %v2157 = vpack.c.b16 %v2005, %v2001
        %v2158 = vpack.c.b16 %v2006, %v2002
        %v2159 = vpack.c.b16 %v2007, %v2003
        %v2160 = vpack.c.b16 %v2008, %v2004
        %v2161 = vpack.c.b16 %v2013, %v2009
        %v2162 = vpack.c.b16 %v2014, %v2010
        %v2163 = vpack.c.b16 %v2015, %v2011
        %v2164 = vpack.c.b16 %v2016, %v2012
        %v2165 = vpack.c.b16 %v2021, %v2017
        %v2166 = vpack.c.b16 %v2022, %v2018
        %v2167 = vpack.c.b16 %v2023, %v2019
        %v2168 = vpack.c.b16 %v2024, %v2020
        %v2169 = vpack.c.b16 %v2029, %v2025
        %v2170 = vpack.c.b16 %v2030, %v2026
        %v2171 = vpack.c.b16 %v2031, %v2027
        %v2172 = vpack.c.b16 %v2032, %v2028
        %v2173 = vpack.c.b16 %v2037, %v2033
        %v2174 = vpack.c.b16 %v2038, %v2034
        %v2175 = vpack.c.b16 %v2039, %v2035
        %v2176 = vpack.c.b16 %v2040, %v2036
        %v2177 = vpack.c.b16 %v2045, %v2041
        %v2178 = vpack.c.b16 %v2046, %v2042
        %v2179 = vpack.c.b16 %v2047, %v2043
        %v2180 = vpack.c.b16 %v2048, %v2044
        %v2181 = vpack.c.b16 %v2053, %v2049
        %v2182 = vpack.c.b16 %v2054, %v2050
        %v2183 = vpack.c.b16 %v2055, %v2051
        %v2184 = vpack.c.b16 %v2056, %v2052
        %2313 = vmatprep.subr.bf16.mxu0 %v2058
        %2314 = vmatpush1.bf16.msra.mxu0 %v2057
        %2315 = vmatprep.subr.bf16.mxu0 %v2062
        %2316 = vmatpush1.bf16.msra.mxu0 %v2061
        %2317 = vmatprep.subr.bf16.mxu0 %v2066
        %2318 = vmatpush1.bf16.msra.mxu0 %v2065
        %2319 = vmatprep.subr.bf16.mxu0 %v2070
        %2320 = vmatpush1.bf16.msra.mxu0 %v2069
        %2321 = vmatprep.subr.bf16.mxu0 %v2074
        %2322 = vmatpush1.bf16.msra.mxu0 %v2073
        %2323 = vmatprep.subr.bf16.mxu0 %v2078
        %2324 = vmatpush1.bf16.msra.mxu0 %v2077
        %2325 = vmatprep.subr.bf16.mxu0 %v2082
        %2326 = vmatpush1.bf16.msra.mxu0 %v2081
        %2327 = vmatprep.subr.bf16.mxu0 %v2086
        %2328 = vmatpush1.bf16.msra.mxu0 %v2085
        %2329 = vmatprep.subr.bf16.mxu0 %v2090
        %2330 = vmatpush1.bf16.msra.mxu0 %v2089
        %2331 = vmatprep.subr.bf16.mxu0 %v2094
        %2332 = vmatpush1.bf16.msra.mxu0 %v2093
        %2333 = vmatprep.subr.bf16.mxu0 %v2098
        %2334 = vmatpush1.bf16.msra.mxu0 %v2097
        %2335 = vmatprep.subr.bf16.mxu0 %v2102
        %2336 = vmatpush1.bf16.msra.mxu0 %v2101
        %2337 = vmatprep.subr.bf16.mxu0 %v2106
        %2338 = vmatpush1.bf16.msra.mxu0 %v2105
        %2339 = vmatprep.subr.bf16.mxu0 %v2110
        %2340 = vmatpush1.bf16.msra.mxu0 %v2109
        %2341 = vmatprep.subr.bf16.mxu0 %v2114
        %2342 = vmatpush1.bf16.msra.mxu0 %v2113
        %2343 = vmatprep.subr.bf16.mxu0 %v2118
        %2344 = vmatpush1.bf16.msra.mxu0 %v2117
        %2345 = vmatprep.mubr.bf16.mxu0 %v1661
        %2346 = vmatmul.mubr.bf16.gmra.mrb[0].mxu0 %v1658
        %v2347 = vpop.f32.mrb[0].mxu0
        %v2348 = vadd.f32 0.0, %v2347
        %v2349 = vpop.f32.mrb[0].mxu0
        %v2350 = vadd.f32 0.0, %v2349
        %v2351 = vpop.f32.mrb[0].mxu0
        %v2352 = vpop.f32.mrb[0].mxu0
        %2353 = vdwg.mxu0
        %2354 = vmatprep.subr.bf16.mxu0 %v2122
        %2355 = vmatpush1.bf16.msra.mxu0 %v2121
        %2356 = vmatprep.subr.bf16.mxu0 %v2126
        %2357 = vmatpush1.bf16.msra.mxu0 %v2125
        %2358 = vmatprep.subr.bf16.mxu0 %v2130
        %2359 = vmatpush1.bf16.msra.mxu0 %v2129
        %2360 = vmatprep.subr.bf16.mxu0 %v2134
        %2361 = vmatpush1.bf16.msra.mxu0 %v2133
        %2362 = vmatprep.subr.bf16.mxu0 %v2138
        %2363 = vmatpush1.bf16.msra.mxu0 %v2137
        %2364 = vmatprep.subr.bf16.mxu0 %v2142
        %2365 = vmatpush1.bf16.msra.mxu0 %v2141
        %2366 = vmatprep.subr.bf16.mxu0 %v2146
        %2367 = vmatpush1.bf16.msra.mxu0 %v2145
        %2368 = vmatprep.subr.bf16.mxu0 %v2150
        %2369 = vmatpush1.bf16.msra.mxu0 %v2149
        %2370 = vmatprep.subr.bf16.mxu0 %v2154
        %2371 = vmatpush1.bf16.msra.mxu0 %v2153
        %2372 = vmatprep.subr.bf16.mxu0 %v2158
        %2373 = vmatpush1.bf16.msra.mxu0 %v2157
        %2374 = vmatprep.subr.bf16.mxu0 %v2162
        %2375 = vmatpush1.bf16.msra.mxu0 %v2161
        %2376 = vmatprep.subr.bf16.mxu0 %v2166
        %2377 = vmatpush1.bf16.msra.mxu0 %v2165
        %2378 = vmatprep.subr.bf16.mxu0 %v2170
        %2379 = vmatpush1.bf16.msra.mxu0 %v2169
        %2380 = vmatprep.subr.bf16.mxu0 %v2174
        %2381 = vmatpush1.bf16.msra.mxu0 %v2173
        %2382 = vmatprep.subr.bf16.mxu0 %v2178
        %2383 = vmatpush1.bf16.msra.mxu0 %v2177
        %2384 = vmatprep.subr.bf16.mxu0 %v2182
        %2385 = vmatpush1.bf16.msra.mxu0 %v2181
        %2386 = vmatprep.mubr.bf16.mxu0 %v1667
        %2387 = vmatmul.mubr.bf16.gmra.mrb[0].mxu0 %v1664
        %v2388 = vpop.f32.mrb[0].mxu0
        %v2389 = vadd.f32 %v2348, %v2388
        %v2390 = vpop.f32.mrb[0].mxu0
        %v2391 = vadd.f32 %v2350, %v2390
        %v2392 = vpop.f32.mrb[0].mxu0
        %v2393 = vpop.f32.mrb[0].mxu0
        %2394 = vdwg.mxu0
        %2395 = vmatprep.subr.bf16.mxu0 %v2060
        %2396 = vmatpush1.bf16.msra.mxu0 %v2059
        %2397 = vmatprep.subr.bf16.mxu0 %v2064
        %2398 = vmatpush1.bf16.msra.mxu0 %v2063
        %2399 = vmatprep.subr.bf16.mxu0 %v2068
        %2400 = vmatpush1.bf16.msra.mxu0 %v2067
        %2401 = vmatprep.subr.bf16.mxu0 %v2072
        %2402 = vmatpush1.bf16.msra.mxu0 %v2071
        %2403 = vmatprep.subr.bf16.mxu0 %v2076
        %2404 = vmatpush1.bf16.msra.mxu0 %v2075
        %2405 = vmatprep.subr.bf16.mxu0 %v2080
        %2406 = vmatpush1.bf16.msra.mxu0 %v2079
        %2407 = vmatprep.subr.bf16.mxu0 %v2084
        %2408 = vmatpush1.bf16.msra.mxu0 %v2083
        %2409 = vmatprep.subr.bf16.mxu0 %v2088
        %2410 = vmatpush1.bf16.msra.mxu0 %v2087
        %2411 = vmatprep.subr.bf16.mxu0 %v2092
        %2412 = vmatpush1.bf16.msra.mxu0 %v2091
        %2413 = vmatprep.subr.bf16.mxu0 %v2096
        %2414 = vmatpush1.bf16.msra.mxu0 %v2095
        %2415 = vmatprep.subr.bf16.mxu0 %v2100
        %2416 = vmatpush1.bf16.msra.mxu0 %v2099
        %2417 = vmatprep.subr.bf16.mxu0 %v2104
        %2418 = vmatpush1.bf16.msra.mxu0 %v2103
        %2419 = vmatprep.subr.bf16.mxu0 %v2108
        %2420 = vmatpush1.bf16.msra.mxu0 %v2107
        %2421 = vmatprep.subr.bf16.mxu0 %v2112
        %2422 = vmatpush1.bf16.msra.mxu0 %v2111
        %2423 = vmatprep.subr.bf16.mxu0 %v2116
        %2424 = vmatpush1.bf16.msra.mxu0 %v2115
        %2425 = vmatprep.subr.bf16.mxu0 %v2120
        %2426 = vmatpush1.bf16.msra.mxu0 %v2119
        %2427 = vmatprep.mubr.bf16.mxu0 %v1661
        %2428 = vmatmul.mubr.bf16.gmra.mrb[0].mxu0 %v1658
        %v2429 = vpop.f32.mrb[0].mxu0
        %v2430 = vadd.f32 0.0, %v2429
        %v2431 = vpop.f32.mrb[0].mxu0
        %v2432 = vadd.f32 0.0, %v2431
        %v2433 = vpop.f32.mrb[0].mxu0
        %v2434 = vpop.f32.mrb[0].mxu0
        %2435 = vdwg.mxu0
        %2436 = vmatprep.subr.bf16.mxu0 %v2124
        %2437 = vmatpush1.bf16.msra.mxu0 %v2123
        %2438 = vmatprep.subr.bf16.mxu0 %v2128
        %2439 = vmatpush1.bf16.msra.mxu0 %v2127
        %2440 = vmatprep.subr.bf16.mxu0 %v2132
        %2441 = vmatpush1.bf16.msra.mxu0 %v2131
        %2442 = vmatprep.subr.bf16.mxu0 %v2136
        %2443 = vmatpush1.bf16.msra.mxu0 %v2135
        %2444 = vmatprep.subr.bf16.mxu0 %v2140
        %2445 = vmatpush1.bf16.msra.mxu0 %v2139
        %2446 = vmatprep.subr.bf16.mxu0 %v2144
        %2447 = vmatpush1.bf16.msra.mxu0 %v2143
        %2448 = vmatprep.subr.bf16.mxu0 %v2148
        %2449 = vmatpush1.bf16.msra.mxu0 %v2147
        %2450 = vmatprep.subr.bf16.mxu0 %v2152
        %2451 = vmatpush1.bf16.msra.mxu0 %v2151
        %2452 = vmatprep.subr.bf16.mxu0 %v2156
        %2453 = vmatpush1.bf16.msra.mxu0 %v2155
        %2454 = vmatprep.subr.bf16.mxu0 %v2160
        %2455 = vmatpush1.bf16.msra.mxu0 %v2159
        %2456 = vmatprep.subr.bf16.mxu0 %v2164
        %2457 = vmatpush1.bf16.msra.mxu0 %v2163
        %2458 = vmatprep.subr.bf16.mxu0 %v2168
        %2459 = vmatpush1.bf16.msra.mxu0 %v2167
        %2460 = vmatprep.subr.bf16.mxu0 %v2172
        %2461 = vmatpush1.bf16.msra.mxu0 %v2171
        %2462 = vmatprep.subr.bf16.mxu0 %v2176
        %2463 = vmatpush1.bf16.msra.mxu0 %v2175
        %2464 = vmatprep.subr.bf16.mxu0 %v2180
        %2465 = vmatpush1.bf16.msra.mxu0 %v2179
        %2466 = vmatprep.subr.bf16.mxu0 %v2184
        %2467 = vmatpush1.bf16.msra.mxu0 %v2183
        %2468 = vmatprep.mubr.bf16.mxu0 %v1667
        %2469 = vmatmul.mubr.bf16.gmra.mrb[0].mxu0 %v1664
        %v2470 = vpop.f32.mrb[0].mxu0
        %v2471 = vadd.f32 %v2430, %v2470
        %v2472 = vpop.f32.mrb[0].mxu0
        %v2473 = vadd.f32 %v2432, %v2472
        %v2474 = vpop.f32.mrb[0].mxu0
        %v2475 = vpop.f32.mrb[0].mxu0
        %2476 = vdwg.mxu0
        %v2605 = vunpack.c.l.b16 %v1401
        %v2606 = vunpack.c.h.b16 %v1401
        %v2607 = vunpack.c.l.b16 %v1402
        %v2608 = vunpack.c.h.b16 %v1402
        %v2609 = vunpack.c.l.b16 %v1403
        %v2610 = vunpack.c.h.b16 %v1403
        %v2611 = vunpack.c.l.b16 %v1404
        %v2612 = vunpack.c.h.b16 %v1404
        %v2613 = vunpack.c.l.b16 %v1405
        %v2614 = vunpack.c.h.b16 %v1405
        %v2615 = vunpack.c.l.b16 %v1406
        %v2616 = vunpack.c.h.b16 %v1406
        %v2617 = vunpack.c.l.b16 %v1407
        %v2618 = vunpack.c.h.b16 %v1407
        %v2619 = vunpack.c.l.b16 %v1408
        %v2620 = vunpack.c.h.b16 %v1408
        %v2621 = vunpack.c.l.b16 %v1409
        %v2622 = vunpack.c.h.b16 %v1409
        %v2623 = vunpack.c.l.b16 %v1410
        %v2624 = vunpack.c.h.b16 %v1410
        %v2625 = vunpack.c.l.b16 %v1411
        %v2626 = vunpack.c.h.b16 %v1411
        %v2627 = vunpack.c.l.b16 %v1412
        %v2628 = vunpack.c.h.b16 %v1412
        %v2629 = vunpack.c.l.b16 %v1413
        %v2630 = vunpack.c.h.b16 %v1413
        %v2631 = vunpack.c.l.b16 %v1414
        %v2632 = vunpack.c.h.b16 %v1414
        %v2633 = vunpack.c.l.b16 %v1415
        %v2634 = vunpack.c.h.b16 %v1415
        %v2635 = vunpack.c.l.b16 %v1416
        %v2636 = vunpack.c.h.b16 %v1416
        %v2637 = vunpack.c.l.b16 %v1417
        %v2638 = vunpack.c.h.b16 %v1417
        %v2639 = vunpack.c.l.b16 %v1418
        %v2640 = vunpack.c.h.b16 %v1418
        %v2641 = vunpack.c.l.b16 %v1419
        %v2642 = vunpack.c.h.b16 %v1419
        %v2643 = vunpack.c.l.b16 %v1420
        %v2644 = vunpack.c.h.b16 %v1420
        %v2645 = vunpack.c.l.b16 %v1421
        %v2646 = vunpack.c.h.b16 %v1421
        %v2647 = vunpack.c.l.b16 %v1422
        %v2648 = vunpack.c.h.b16 %v1422
        %v2649 = vunpack.c.l.b16 %v1423
        %v2650 = vunpack.c.h.b16 %v1423
        %v2651 = vunpack.c.l.b16 %v1424
        %v2652 = vunpack.c.h.b16 %v1424
        %v2653 = vunpack.c.l.b16 %v1425
        %v2654 = vunpack.c.h.b16 %v1425
        %v2655 = vunpack.c.l.b16 %v1426
        %v2656 = vunpack.c.h.b16 %v1426
        %v2657 = vunpack.c.l.b16 %v1427
        %v2658 = vunpack.c.h.b16 %v1427
        %v2659 = vunpack.c.l.b16 %v1428
        %v2660 = vunpack.c.h.b16 %v1428
        %v2661 = vunpack.c.l.b16 %v1429
        %v2662 = vunpack.c.h.b16 %v1429
        %v2663 = vunpack.c.l.b16 %v1430
        %v2664 = vunpack.c.h.b16 %v1430
        %v2665 = vunpack.c.l.b16 %v1431
        %v2666 = vunpack.c.h.b16 %v1431
        %v2667 = vunpack.c.l.b16 %v1432
        %v2668 = vunpack.c.h.b16 %v1432
        %v2669 = vunpack.c.l.b16 %v1433
        %v2670 = vunpack.c.h.b16 %v1433
        %v2671 = vunpack.c.l.b16 %v1434
        %v2672 = vunpack.c.h.b16 %v1434
        %v2673 = vunpack.c.l.b16 %v1435
        %v2674 = vunpack.c.h.b16 %v1435
        %v2675 = vunpack.c.l.b16 %v1436
        %v2676 = vunpack.c.h.b16 %v1436
        %v2677 = vunpack.c.l.b16 %v1437
        %v2678 = vunpack.c.h.b16 %v1437
        %v2679 = vunpack.c.l.b16 %v1438
        %v2680 = vunpack.c.h.b16 %v1438
        %v2681 = vunpack.c.l.b16 %v1439
        %v2682 = vunpack.c.h.b16 %v1439
        %v2683 = vunpack.c.l.b16 %v1440
        %v2684 = vunpack.c.h.b16 %v1440
        %v2685 = vunpack.c.l.b16 %v1441
        %v2686 = vunpack.c.h.b16 %v1441
        %v2687 = vunpack.c.l.b16 %v1442
        %v2688 = vunpack.c.h.b16 %v1442
        %v2689 = vunpack.c.l.b16 %v1443
        %v2690 = vunpack.c.h.b16 %v1443
        %v2691 = vunpack.c.l.b16 %v1444
        %v2692 = vunpack.c.h.b16 %v1444
        %v2693 = vunpack.c.l.b16 %v1445
        %v2694 = vunpack.c.h.b16 %v1445
        %v2695 = vunpack.c.l.b16 %v1446
        %v2696 = vunpack.c.h.b16 %v1446
        %v2697 = vunpack.c.l.b16 %v1447
        %v2698 = vunpack.c.h.b16 %v1447
        %v2699 = vunpack.c.l.b16 %v1448
        %v2700 = vunpack.c.h.b16 %v1448
        %v2701 = vunpack.c.l.b16 %v1449
        %v2702 = vunpack.c.h.b16 %v1449
        %v2703 = vunpack.c.l.b16 %v1450
        %v2704 = vunpack.c.h.b16 %v1450
        %v2705 = vunpack.c.l.b16 %v1451
        %v2706 = vunpack.c.h.b16 %v1451
        %v2707 = vunpack.c.l.b16 %v1452
        %v2708 = vunpack.c.h.b16 %v1452
        %v2709 = vunpack.c.l.b16 %v1453
        %v2710 = vunpack.c.h.b16 %v1453
        %v2711 = vunpack.c.l.b16 %v1454
        %v2712 = vunpack.c.h.b16 %v1454
        %v2713 = vunpack.c.l.b16 %v1455
        %v2714 = vunpack.c.h.b16 %v1455
        %v2715 = vunpack.c.l.b16 %v1456
        %v2716 = vunpack.c.h.b16 %v1456
        %v2717 = vunpack.c.l.b16 %v1457
        %v2718 = vunpack.c.h.b16 %v1457
        %v2719 = vunpack.c.l.b16 %v1458
        %v2720 = vunpack.c.h.b16 %v1458
        %v2721 = vunpack.c.l.b16 %v1459
        %v2722 = vunpack.c.h.b16 %v1459
        %v2723 = vunpack.c.l.b16 %v1460
        %v2724 = vunpack.c.h.b16 %v1460
        %v2725 = vunpack.c.l.b16 %v1461
        %v2726 = vunpack.c.h.b16 %v1461
        %v2727 = vunpack.c.l.b16 %v1462
        %v2728 = vunpack.c.h.b16 %v1462
        %v2729 = vunpack.c.l.b16 %v1463
        %v2730 = vunpack.c.h.b16 %v1463
        %v2731 = vunpack.c.l.b16 %v1464
        %v2732 = vunpack.c.h.b16 %v1464
        %v2733 = vunpack.c.l.b16 %v1465
        %v2734 = vunpack.c.h.b16 %v1465
        %v2735 = vunpack.c.l.b16 %v1466
        %v2736 = vunpack.c.h.b16 %v1466
        %v2737 = vunpack.c.l.b16 %v1467
        %v2738 = vunpack.c.h.b16 %v1467
        %v2739 = vunpack.c.l.b16 %v1468
        %v2740 = vunpack.c.h.b16 %v1468
        %v2741 = vunpack.c.l.b16 %v1469
        %v2742 = vunpack.c.h.b16 %v1469
        %v2743 = vunpack.c.l.b16 %v1470
        %v2744 = vunpack.c.h.b16 %v1470
        %v2745 = vunpack.c.l.b16 %v1471
        %v2746 = vunpack.c.h.b16 %v1471
        %v2747 = vunpack.c.l.b16 %v1472
        %v2748 = vunpack.c.h.b16 %v1472
        %v2749 = vunpack.c.l.b16 %v1473
        %v2750 = vunpack.c.h.b16 %v1473
        %v2751 = vunpack.c.l.b16 %v1474
        %v2752 = vunpack.c.h.b16 %v1474
        %v2753 = vunpack.c.l.b16 %v1475
        %v2754 = vunpack.c.h.b16 %v1475
        %v2755 = vunpack.c.l.b16 %v1476
        %v2756 = vunpack.c.h.b16 %v1476
        %v2757 = vunpack.c.l.b16 %v1477
        %v2758 = vunpack.c.h.b16 %v1477
        %v2759 = vunpack.c.l.b16 %v1478
        %v2760 = vunpack.c.h.b16 %v1478
        %v2761 = vunpack.c.l.b16 %v1479
        %v2762 = vunpack.c.h.b16 %v1479
        %v2763 = vunpack.c.l.b16 %v1480
        %v2764 = vunpack.c.h.b16 %v1480
        %v2765 = vunpack.c.l.b16 %v1481
        %v2766 = vunpack.c.h.b16 %v1481
        %v2767 = vunpack.c.l.b16 %v1482
        %v2768 = vunpack.c.h.b16 %v1482
        %v2769 = vunpack.c.l.b16 %v1483
        %v2770 = vunpack.c.h.b16 %v1483
        %v2771 = vunpack.c.l.b16 %v1484
        %v2772 = vunpack.c.h.b16 %v1484
        %v2773 = vunpack.c.l.b16 %v1485
        %v2774 = vunpack.c.h.b16 %v1485
        %v2775 = vunpack.c.l.b16 %v1486
        %v2776 = vunpack.c.h.b16 %v1486
        %v2777 = vunpack.c.l.b16 %v1487
        %v2778 = vunpack.c.h.b16 %v1487
        %v2779 = vunpack.c.l.b16 %v1488
        %v2780 = vunpack.c.h.b16 %v1488
        %v2781 = vunpack.c.l.b16 %v1489
        %v2782 = vunpack.c.h.b16 %v1489
        %v2783 = vunpack.c.l.b16 %v1490
        %v2784 = vunpack.c.h.b16 %v1490
        %v2785 = vunpack.c.l.b16 %v1491
        %v2786 = vunpack.c.h.b16 %v1491
        %v2787 = vunpack.c.l.b16 %v1492
        %v2788 = vunpack.c.h.b16 %v1492
        %v2789 = vunpack.c.l.b16 %v1493
        %v2790 = vunpack.c.h.b16 %v1493
        %v2791 = vunpack.c.l.b16 %v1494
        %v2792 = vunpack.c.h.b16 %v1494
        %v2793 = vunpack.c.l.b16 %v1495
        %v2794 = vunpack.c.h.b16 %v1495
        %v2795 = vunpack.c.l.b16 %v1496
        %v2796 = vunpack.c.h.b16 %v1496
        %v2797 = vunpack.c.l.b16 %v1497
        %v2798 = vunpack.c.h.b16 %v1497
        %v2799 = vunpack.c.l.b16 %v1498
        %v2800 = vunpack.c.h.b16 %v1498
        %v2801 = vunpack.c.l.b16 %v1499
        %v2802 = vunpack.c.h.b16 %v1499
        %v2803 = vunpack.c.l.b16 %v1500
        %v2804 = vunpack.c.h.b16 %v1500
        %v2805 = vunpack.c.l.b16 %v1501
        %v2806 = vunpack.c.h.b16 %v1501
        %v2807 = vunpack.c.l.b16 %v1502
        %v2808 = vunpack.c.h.b16 %v1502
        %v2809 = vunpack.c.l.b16 %v1503
        %v2810 = vunpack.c.h.b16 %v1503
        %v2811 = vunpack.c.l.b16 %v1504
        %v2812 = vunpack.c.h.b16 %v1504
        %v2813 = vunpack.c.l.b16 %v1505
        %v2814 = vunpack.c.h.b16 %v1505
        %v2815 = vunpack.c.l.b16 %v1506
        %v2816 = vunpack.c.h.b16 %v1506
        %v2817 = vunpack.c.l.b16 %v1507
        %v2818 = vunpack.c.h.b16 %v1507
        %v2819 = vunpack.c.l.b16 %v1508
        %v2820 = vunpack.c.h.b16 %v1508
        %v2821 = vunpack.c.l.b16 %v1509
        %v2822 = vunpack.c.h.b16 %v1509
        %v2823 = vunpack.c.l.b16 %v1510
        %v2824 = vunpack.c.h.b16 %v1510
        %v2825 = vunpack.c.l.b16 %v1511
        %v2826 = vunpack.c.h.b16 %v1511
        %v2827 = vunpack.c.l.b16 %v1512
        %v2828 = vunpack.c.h.b16 %v1512
        %v2829 = vunpack.c.l.b16 %v1513
        %v2830 = vunpack.c.h.b16 %v1513
        %v2831 = vunpack.c.l.b16 %v1514
        %v2832 = vunpack.c.h.b16 %v1514
        %v2833 = vunpack.c.l.b16 %v1515
        %v2834 = vunpack.c.h.b16 %v1515
        %v2835 = vunpack.c.l.b16 %v1516
        %v2836 = vunpack.c.h.b16 %v1516
        %v2837 = vunpack.c.l.b16 %v1517
        %v2838 = vunpack.c.h.b16 %v1517
        %v2839 = vunpack.c.l.b16 %v1518
        %v2840 = vunpack.c.h.b16 %v1518
        %v2841 = vunpack.c.l.b16 %v1519
        %v2842 = vunpack.c.h.b16 %v1519
        %v2843 = vunpack.c.l.b16 %v1520
        %v2844 = vunpack.c.h.b16 %v1520
        %v2845 = vunpack.c.l.b16 %v1521
        %v2846 = vunpack.c.h.b16 %v1521
        %v2847 = vunpack.c.l.b16 %v1522
        %v2848 = vunpack.c.h.b16 %v1522
        %v2849 = vunpack.c.l.b16 %v1523
        %v2850 = vunpack.c.h.b16 %v1523
        %v2851 = vunpack.c.l.b16 %v1524
        %v2852 = vunpack.c.h.b16 %v1524
        %v2853 = vunpack.c.l.b16 %v1525
        %v2854 = vunpack.c.h.b16 %v1525
        %v2855 = vunpack.c.l.b16 %v1526
        %v2856 = vunpack.c.h.b16 %v1526
        %v2857 = vunpack.c.l.b16 %v1527
        %v2858 = vunpack.c.h.b16 %v1527
        %v2859 = vunpack.c.l.b16 %v1528
        %v2860 = vunpack.c.h.b16 %v1528
        %v2861 = vpack.c.b16 %v2609, %v2605
        %v2862 = vpack.c.b16 %v2610, %v2606
        %v2863 = vpack.c.b16 %v2611, %v2607
        %v2864 = vpack.c.b16 %v2612, %v2608
        %v2865 = vpack.c.b16 %v2617, %v2613
        %v2866 = vpack.c.b16 %v2618, %v2614
        %v2867 = vpack.c.b16 %v2619, %v2615
        %v2868 = vpack.c.b16 %v2620, %v2616
        %v2869 = vpack.c.b16 %v2625, %v2621
        %v2870 = vpack.c.b16 %v2626, %v2622
        %v2871 = vpack.c.b16 %v2627, %v2623
        %v2872 = vpack.c.b16 %v2628, %v2624
        %v2873 = vpack.c.b16 %v2633, %v2629
        %v2874 = vpack.c.b16 %v2634, %v2630
        %v2875 = vpack.c.b16 %v2635, %v2631
        %v2876 = vpack.c.b16 %v2636, %v2632
        %v2877 = vpack.c.b16 %v2641, %v2637
        %v2878 = vpack.c.b16 %v2642, %v2638
        %v2879 = vpack.c.b16 %v2643, %v2639
        %v2880 = vpack.c.b16 %v2644, %v2640
        %v2881 = vpack.c.b16 %v2649, %v2645
        %v2882 = vpack.c.b16 %v2650, %v2646
        %v2883 = vpack.c.b16 %v2651, %v2647
        %v2884 = vpack.c.b16 %v2652, %v2648
        %v2885 = vpack.c.b16 %v2657, %v2653
        %v2886 = vpack.c.b16 %v2658, %v2654
        %v2887 = vpack.c.b16 %v2659, %v2655
        %v2888 = vpack.c.b16 %v2660, %v2656
        %v2889 = vpack.c.b16 %v2665, %v2661
        %v2890 = vpack.c.b16 %v2666, %v2662
        %v2891 = vpack.c.b16 %v2667, %v2663
        %v2892 = vpack.c.b16 %v2668, %v2664
        %v2893 = vpack.c.b16 %v2673, %v2669
        %v2894 = vpack.c.b16 %v2674, %v2670
        %v2895 = vpack.c.b16 %v2675, %v2671
        %v2896 = vpack.c.b16 %v2676, %v2672
        %v2897 = vpack.c.b16 %v2681, %v2677
        %v2898 = vpack.c.b16 %v2682, %v2678
        %v2899 = vpack.c.b16 %v2683, %v2679
        %v2900 = vpack.c.b16 %v2684, %v2680
        %v2901 = vpack.c.b16 %v2689, %v2685
        %v2902 = vpack.c.b16 %v2690, %v2686
        %v2903 = vpack.c.b16 %v2691, %v2687
        %v2904 = vpack.c.b16 %v2692, %v2688
        %v2905 = vpack.c.b16 %v2697, %v2693
        %v2906 = vpack.c.b16 %v2698, %v2694
        %v2907 = vpack.c.b16 %v2699, %v2695
        %v2908 = vpack.c.b16 %v2700, %v2696
        %v2909 = vpack.c.b16 %v2705, %v2701
        %v2910 = vpack.c.b16 %v2706, %v2702
        %v2911 = vpack.c.b16 %v2707, %v2703
        %v2912 = vpack.c.b16 %v2708, %v2704
        %v2913 = vpack.c.b16 %v2713, %v2709
        %v2914 = vpack.c.b16 %v2714, %v2710
        %v2915 = vpack.c.b16 %v2715, %v2711
        %v2916 = vpack.c.b16 %v2716, %v2712
        %v2917 = vpack.c.b16 %v2721, %v2717
        %v2918 = vpack.c.b16 %v2722, %v2718
        %v2919 = vpack.c.b16 %v2723, %v2719
        %v2920 = vpack.c.b16 %v2724, %v2720
        %v2921 = vpack.c.b16 %v2729, %v2725
        %v2922 = vpack.c.b16 %v2730, %v2726
        %v2923 = vpack.c.b16 %v2731, %v2727
        %v2924 = vpack.c.b16 %v2732, %v2728
        %v2925 = vpack.c.b16 %v2737, %v2733
        %v2926 = vpack.c.b16 %v2738, %v2734
        %v2927 = vpack.c.b16 %v2739, %v2735
        %v2928 = vpack.c.b16 %v2740, %v2736
        %v2929 = vpack.c.b16 %v2745, %v2741
        %v2930 = vpack.c.b16 %v2746, %v2742
        %v2931 = vpack.c.b16 %v2747, %v2743
        %v2932 = vpack.c.b16 %v2748, %v2744
        %v2933 = vpack.c.b16 %v2753, %v2749
        %v2934 = vpack.c.b16 %v2754, %v2750
        %v2935 = vpack.c.b16 %v2755, %v2751
        %v2936 = vpack.c.b16 %v2756, %v2752
        %v2937 = vpack.c.b16 %v2761, %v2757
        %v2938 = vpack.c.b16 %v2762, %v2758
        %v2939 = vpack.c.b16 %v2763, %v2759
        %v2940 = vpack.c.b16 %v2764, %v2760
        %v2941 = vpack.c.b16 %v2769, %v2765
        %v2942 = vpack.c.b16 %v2770, %v2766
        %v2943 = vpack.c.b16 %v2771, %v2767
        %v2944 = vpack.c.b16 %v2772, %v2768
        %v2945 = vpack.c.b16 %v2777, %v2773
        %v2946 = vpack.c.b16 %v2778, %v2774
        %v2947 = vpack.c.b16 %v2779, %v2775
        %v2948 = vpack.c.b16 %v2780, %v2776
        %v2949 = vpack.c.b16 %v2785, %v2781
        %v2950 = vpack.c.b16 %v2786, %v2782
        %v2951 = vpack.c.b16 %v2787, %v2783
        %v2952 = vpack.c.b16 %v2788, %v2784
        %v2953 = vpack.c.b16 %v2793, %v2789
        %v2954 = vpack.c.b16 %v2794, %v2790
        %v2955 = vpack.c.b16 %v2795, %v2791
        %v2956 = vpack.c.b16 %v2796, %v2792
        %v2957 = vpack.c.b16 %v2801, %v2797
        %v2958 = vpack.c.b16 %v2802, %v2798
        %v2959 = vpack.c.b16 %v2803, %v2799
        %v2960 = vpack.c.b16 %v2804, %v2800
        %v2961 = vpack.c.b16 %v2809, %v2805
        %v2962 = vpack.c.b16 %v2810, %v2806
        %v2963 = vpack.c.b16 %v2811, %v2807
        %v2964 = vpack.c.b16 %v2812, %v2808
        %v2965 = vpack.c.b16 %v2817, %v2813
        %v2966 = vpack.c.b16 %v2818, %v2814
        %v2967 = vpack.c.b16 %v2819, %v2815
        %v2968 = vpack.c.b16 %v2820, %v2816
        %v2969 = vpack.c.b16 %v2825, %v2821
        %v2970 = vpack.c.b16 %v2826, %v2822
        %v2971 = vpack.c.b16 %v2827, %v2823
        %v2972 = vpack.c.b16 %v2828, %v2824
        %v2973 = vpack.c.b16 %v2833, %v2829
        %v2974 = vpack.c.b16 %v2834, %v2830
        %v2975 = vpack.c.b16 %v2835, %v2831
        %v2976 = vpack.c.b16 %v2836, %v2832
        %v2977 = vpack.c.b16 %v2841, %v2837
        %v2978 = vpack.c.b16 %v2842, %v2838
        %v2979 = vpack.c.b16 %v2843, %v2839
        %v2980 = vpack.c.b16 %v2844, %v2840
        %v2981 = vpack.c.b16 %v2849, %v2845
        %v2982 = vpack.c.b16 %v2850, %v2846
        %v2983 = vpack.c.b16 %v2851, %v2847
        %v2984 = vpack.c.b16 %v2852, %v2848
        %v2985 = vpack.c.b16 %v2857, %v2853
        %v2986 = vpack.c.b16 %v2858, %v2854
        %v2987 = vpack.c.b16 %v2859, %v2855
        %v2988 = vpack.c.b16 %v2860, %v2856
        %3117 = vmatprep.subr.bf16.mxu0 %v2862
        %3118 = vmatpush1.bf16.msra.mxu0 %v2861
        %3119 = vmatprep.subr.bf16.mxu0 %v2866
        %3120 = vmatpush1.bf16.msra.mxu0 %v2865
        %3121 = vmatprep.subr.bf16.mxu0 %v2870
        %3122 = vmatpush1.bf16.msra.mxu0 %v2869
        %3123 = vmatprep.subr.bf16.mxu0 %v2874
        %3124 = vmatpush1.bf16.msra.mxu0 %v2873
        %3125 = vmatprep.subr.bf16.mxu0 %v2878
        %3126 = vmatpush1.bf16.msra.mxu0 %v2877
        %3127 = vmatprep.subr.bf16.mxu0 %v2882
        %3128 = vmatpush1.bf16.msra.mxu0 %v2881
        %3129 = vmatprep.subr.bf16.mxu0 %v2886
        %3130 = vmatpush1.bf16.msra.mxu0 %v2885
        %3131 = vmatprep.subr.bf16.mxu0 %v2890
        %3132 = vmatpush1.bf16.msra.mxu0 %v2889
        %3133 = vmatprep.subr.bf16.mxu0 %v2894
        %3134 = vmatpush1.bf16.msra.mxu0 %v2893
        %3135 = vmatprep.subr.bf16.mxu0 %v2898
        %3136 = vmatpush1.bf16.msra.mxu0 %v2897
        %3137 = vmatprep.subr.bf16.mxu0 %v2902
        %3138 = vmatpush1.bf16.msra.mxu0 %v2901
        %3139 = vmatprep.subr.bf16.mxu0 %v2906
        %3140 = vmatpush1.bf16.msra.mxu0 %v2905
        %3141 = vmatprep.subr.bf16.mxu0 %v2910
        %3142 = vmatpush1.bf16.msra.mxu0 %v2909
        %3143 = vmatprep.subr.bf16.mxu0 %v2914
        %3144 = vmatpush1.bf16.msra.mxu0 %v2913
        %3145 = vmatprep.subr.bf16.mxu0 %v2918
        %3146 = vmatpush1.bf16.msra.mxu0 %v2917
        %3147 = vmatprep.subr.bf16.mxu0 %v2922
        %3148 = vmatpush1.bf16.msra.mxu0 %v2921
        %3149 = vmatprep.mubr.bf16.mxu0 %v1398
        %3150 = vmatmul.mubr.bf16.gmra.mrb[0].mxu0 %v1397
        %v3151 = vpop.f32.mrb[0].mxu0
        %v3152 = vadd.f32 %v2389, %v3151
        %v3153 = vpop.f32.mrb[0].mxu0
        %v3154 = vadd.f32 %v2391, %v3153
        %v3155 = vpop.f32.mrb[0].mxu0
        %v3156 = vpop.f32.mrb[0].mxu0
        %3157 = vdwg.mxu0
        %3158 = vmatprep.subr.bf16.mxu0 %v2926
        %3159 = vmatpush1.bf16.msra.mxu0 %v2925
        %3160 = vmatprep.subr.bf16.mxu0 %v2930
        %3161 = vmatpush1.bf16.msra.mxu0 %v2929
        %3162 = vmatprep.subr.bf16.mxu0 %v2934
        %3163 = vmatpush1.bf16.msra.mxu0 %v2933
        %3164 = vmatprep.subr.bf16.mxu0 %v2938
        %3165 = vmatpush1.bf16.msra.mxu0 %v2937
        %3166 = vmatprep.subr.bf16.mxu0 %v2942
        %3167 = vmatpush1.bf16.msra.mxu0 %v2941
        %3168 = vmatprep.subr.bf16.mxu0 %v2946
        %3169 = vmatpush1.bf16.msra.mxu0 %v2945
        %3170 = vmatprep.subr.bf16.mxu0 %v2950
        %3171 = vmatpush1.bf16.msra.mxu0 %v2949
        %3172 = vmatprep.subr.bf16.mxu0 %v2954
        %3173 = vmatpush1.bf16.msra.mxu0 %v2953
        %3174 = vmatprep.subr.bf16.mxu0 %v2958
        %3175 = vmatpush1.bf16.msra.mxu0 %v2957
        %3176 = vmatprep.subr.bf16.mxu0 %v2962
        %3177 = vmatpush1.bf16.msra.mxu0 %v2961
        %3178 = vmatprep.subr.bf16.mxu0 %v2966
        %3179 = vmatpush1.bf16.msra.mxu0 %v2965
        %3180 = vmatprep.subr.bf16.mxu0 %v2970
        %3181 = vmatpush1.bf16.msra.mxu0 %v2969
        %3182 = vmatprep.subr.bf16.mxu0 %v2974
        %3183 = vmatpush1.bf16.msra.mxu0 %v2973
        %3184 = vmatprep.subr.bf16.mxu0 %v2978
        %3185 = vmatpush1.bf16.msra.mxu0 %v2977
        %3186 = vmatprep.subr.bf16.mxu0 %v2982
        %3187 = vmatpush1.bf16.msra.mxu0 %v2981
        %3188 = vmatprep.subr.bf16.mxu0 %v2986
        %3189 = vmatpush1.bf16.msra.mxu0 %v2985
        %3190 = vmatprep.mubr.bf16.mxu0 %v1400
        %3191 = vmatmul.mubr.bf16.gmra.mrb[0].mxu0 %v1399
        %v3192 = vpop.f32.mrb[0].mxu0
        %v3193 = vadd.f32 %v3152, %v3192
        %v3194 = vpop.f32.mrb[0].mxu0
        %v3195 = vadd.f32 %v3154, %v3194
        %v3196 = vpop.f32.mrb[0].mxu0
        %v3197 = vpop.f32.mrb[0].mxu0
        %3198 = vdwg.mxu0
        %3199 = vmatprep.subr.bf16.mxu0 %v2864
        %3200 = vmatpush1.bf16.msra.mxu0 %v2863
        %3201 = vmatprep.subr.bf16.mxu0 %v2868
        %3202 = vmatpush1.bf16.msra.mxu0 %v2867
        %3203 = vmatprep.subr.bf16.mxu0 %v2872
        %3204 = vmatpush1.bf16.msra.mxu0 %v2871
        %3205 = vmatprep.subr.bf16.mxu0 %v2876
        %3206 = vmatpush1.bf16.msra.mxu0 %v2875
        %3207 = vmatprep.subr.bf16.mxu0 %v2880
        %3208 = vmatpush1.bf16.msra.mxu0 %v2879
        %3209 = vmatprep.subr.bf16.mxu0 %v2884
        %3210 = vmatpush1.bf16.msra.mxu0 %v2883
        %3211 = vmatprep.subr.bf16.mxu0 %v2888
        %3212 = vmatpush1.bf16.msra.mxu0 %v2887
        %3213 = vmatprep.subr.bf16.mxu0 %v2892
        %3214 = vmatpush1.bf16.msra.mxu0 %v2891
        %3215 = vmatprep.subr.bf16.mxu0 %v2896
        %3216 = vmatpush1.bf16.msra.mxu0 %v2895
        %3217 = vmatprep.subr.bf16.mxu0 %v2900
        %3218 = vmatpush1.bf16.msra.mxu0 %v2899
        %3219 = vmatprep.subr.bf16.mxu0 %v2904
        %3220 = vmatpush1.bf16.msra.mxu0 %v2903
        %3221 = vmatprep.subr.bf16.mxu0 %v2908
        %3222 = vmatpush1.bf16.msra.mxu0 %v2907
        %3223 = vmatprep.subr.bf16.mxu0 %v2912
        %3224 = vmatpush1.bf16.msra.mxu0 %v2911
        %3225 = vmatprep.subr.bf16.mxu0 %v2916
        %3226 = vmatpush1.bf16.msra.mxu0 %v2915
        %3227 = vmatprep.subr.bf16.mxu0 %v2920
        %3228 = vmatpush1.bf16.msra.mxu0 %v2919
        %3229 = vmatprep.subr.bf16.mxu0 %v2924
        %3230 = vmatpush1.bf16.msra.mxu0 %v2923
        %3231 = vmatprep.mubr.bf16.mxu0 %v1398
        %3232 = vmatmul.mubr.bf16.gmra.mrb[0].mxu0 %v1397
        %v3233 = vpop.f32.mrb[0].mxu0
        %v3234 = vadd.f32 %v2471, %v3233
        %v3235 = vpop.f32.mrb[0].mxu0
        %v3236 = vadd.f32 %v2473, %v3235
        %v3237 = vpop.f32.mrb[0].mxu0
        %v3238 = vpop.f32.mrb[0].mxu0
        %3239 = vdwg.mxu0
        %3240 = vmatprep.subr.bf16.mxu0 %v2928
        %3241 = vmatpush1.bf16.msra.mxu0 %v2927
        %3242 = vmatprep.subr.bf16.mxu0 %v2932
        %3243 = vmatpush1.bf16.msra.mxu0 %v2931
        %3244 = vmatprep.subr.bf16.mxu0 %v2936
        %3245 = vmatpush1.bf16.msra.mxu0 %v2935
        %3246 = vmatprep.subr.bf16.mxu0 %v2940
        %3247 = vmatpush1.bf16.msra.mxu0 %v2939
        %3248 = vmatprep.subr.bf16.mxu0 %v2944
        %3249 = vmatpush1.bf16.msra.mxu0 %v2943
        %3250 = vmatprep.subr.bf16.mxu0 %v2948
        %3251 = vmatpush1.bf16.msra.mxu0 %v2947
        %3252 = vmatprep.subr.bf16.mxu0 %v2952
        %3253 = vmatpush1.bf16.msra.mxu0 %v2951
        %3254 = vmatprep.subr.bf16.mxu0 %v2956
        %3255 = vmatpush1.bf16.msra.mxu0 %v2955
        %3256 = vmatprep.subr.bf16.mxu0 %v2960
        %3257 = vmatpush1.bf16.msra.mxu0 %v2959
        %3258 = vmatprep.subr.bf16.mxu0 %v2964
        %3259 = vmatpush1.bf16.msra.mxu0 %v2963
        %3260 = vmatprep.subr.bf16.mxu0 %v2968
        %3261 = vmatpush1.bf16.msra.mxu0 %v2967
        %3262 = vmatprep.subr.bf16.mxu0 %v2972
        %3263 = vmatpush1.bf16.msra.mxu0 %v2971
        %3264 = vmatprep.subr.bf16.mxu0 %v2976
        %3265 = vmatpush1.bf16.msra.mxu0 %v2975
        %3266 = vmatprep.subr.bf16.mxu0 %v2980
        %3267 = vmatpush1.bf16.msra.mxu0 %v2979
        %3268 = vmatprep.subr.bf16.mxu0 %v2984
        %3269 = vmatpush1.bf16.msra.mxu0 %v2983
        %3270 = vmatprep.subr.bf16.mxu0 %v2988
        %3271 = vmatpush1.bf16.msra.mxu0 %v2987
        %3272 = vmatprep.mubr.bf16.mxu0 %v1400
        %3273 = vmatmul.mubr.bf16.gmra.mrb[0].mxu0 %v1399
        %v3274 = vpop.f32.mrb[0].mxu0
        %v3275 = vadd.f32 %v3234, %v3274
        %v3276 = vpop.f32.mrb[0].mxu0
        %v3277 = vadd.f32 %v3236, %v3276
        %v3278 = vpop.f32.mrb[0].mxu0
        %v3279 = vpop.f32.mrb[0].mxu0
        %3280 = vdwg.mxu0
        %v3281 = vld [vmem:[%s367 + $0x800] sm:$0xff]
        %v3282 = vld [vmem:[%s367 + $0x808] sm:$0xff]
        %v3283 = vld [vmem:[%s367 + $0x810] sm:$0xff]
        %v3284 = vld [vmem:[%s367 + $0x818] sm:$0xff]
        %v3285 = vld [vmem:[%s367 + $0x820] sm:$0xff]
        %v3286 = vld [vmem:[%s367 + $0x828] sm:$0xff]
        %v3287 = vld [vmem:[%s367 + $0x830] sm:$0xff]
        %v3288 = vld [vmem:[%s367 + $0x838] sm:$0xff]
        %v3289 = vld [vmem:[%s367 + $0x840] sm:$0xff]
        %v3290 = vld [vmem:[%s367 + $0x848] sm:$0xff]
        %v3291 = vld [vmem:[%s367 + $0x850] sm:$0xff]
        %v3292 = vld [vmem:[%s367 + $0x858] sm:$0xff]
        %v3293 = vld [vmem:[%s367 + $0x860] sm:$0xff]
        %v3294 = vld [vmem:[%s367 + $0x868] sm:$0xff]
        %v3295 = vld [vmem:[%s367 + $0x870] sm:$0xff]
        %v3296 = vld [vmem:[%s367 + $0x878] sm:$0xff]
        %v3297 = vld [vmem:[%s367 + $0x880] sm:$0xff]
        %v3298 = vld [vmem:[%s367 + $0x888] sm:$0xff]
        %v3299 = vld [vmem:[%s367 + $0x890] sm:$0xff]
        %v3300 = vld [vmem:[%s367 + $0x898] sm:$0xff]
        %v3301 = vld [vmem:[%s367 + $0x8a0] sm:$0xff]
        %v3302 = vld [vmem:[%s367 + $0x8a8] sm:$0xff]
        %v3303 = vld [vmem:[%s367 + $0x8b0] sm:$0xff]
        %v3304 = vld [vmem:[%s367 + $0x8b8] sm:$0xff]
        %v3305 = vld [vmem:[%s367 + $0x8c0] sm:$0xff]
        %v3306 = vld [vmem:[%s367 + $0x8c8] sm:$0xff]
        %v3307 = vld [vmem:[%s367 + $0x8d0] sm:$0xff]
        %v3308 = vld [vmem:[%s367 + $0x8d8] sm:$0xff]
        %v3309 = vld [vmem:[%s367 + $0x8e0] sm:$0xff]
        %v3310 = vld [vmem:[%s367 + $0x8e8] sm:$0xff]
        %v3311 = vld [vmem:[%s367 + $0x8f0] sm:$0xff]
        %v3312 = vld [vmem:[%s367 + $0x8f8] sm:$0xff]
        %v3313 = vld [vmem:[%s367 + $0x900] sm:$0xff]
        %v3314 = vld [vmem:[%s367 + $0x908] sm:$0xff]
        %v3315 = vld [vmem:[%s367 + $0x910] sm:$0xff]
        %v3316 = vld [vmem:[%s367 + $0x918] sm:$0xff]
        %v3317 = vld [vmem:[%s367 + $0x920] sm:$0xff]
        %v3318 = vld [vmem:[%s367 + $0x928] sm:$0xff]
        %v3319 = vld [vmem:[%s367 + $0x930] sm:$0xff]
        %v3320 = vld [vmem:[%s367 + $0x938] sm:$0xff]
        %v3321 = vld [vmem:[%s367 + $0x940] sm:$0xff]
        %v3322 = vld [vmem:[%s367 + $0x948] sm:$0xff]
        %v3323 = vld [vmem:[%s367 + $0x950] sm:$0xff]
        %v3324 = vld [vmem:[%s367 + $0x958] sm:$0xff]
        %v3325 = vld [vmem:[%s367 + $0x960] sm:$0xff]
        %v3326 = vld [vmem:[%s367 + $0x968] sm:$0xff]
        %v3327 = vld [vmem:[%s367 + $0x970] sm:$0xff]
        %v3328 = vld [vmem:[%s367 + $0x978] sm:$0xff]
        %v3329 = vld [vmem:[%s367 + $0x980] sm:$0xff]
        %v3330 = vld [vmem:[%s367 + $0x988] sm:$0xff]
        %v3331 = vld [vmem:[%s367 + $0x990] sm:$0xff]
        %v3332 = vld [vmem:[%s367 + $0x998] sm:$0xff]
        %v3333 = vld [vmem:[%s367 + $0x9a0] sm:$0xff]
        %v3334 = vld [vmem:[%s367 + $0x9a8] sm:$0xff]
        %v3335 = vld [vmem:[%s367 + $0x9b0] sm:$0xff]
        %v3336 = vld [vmem:[%s367 + $0x9b8] sm:$0xff]
        %v3337 = vld [vmem:[%s367 + $0x9c0] sm:$0xff]
        %v3338 = vld [vmem:[%s367 + $0x9c8] sm:$0xff]
        %v3339 = vld [vmem:[%s367 + $0x9d0] sm:$0xff]
        %v3340 = vld [vmem:[%s367 + $0x9d8] sm:$0xff]
        %v3341 = vld [vmem:[%s367 + $0x9e0] sm:$0xff]
        %v3342 = vld [vmem:[%s367 + $0x9e8] sm:$0xff]
        %v3343 = vld [vmem:[%s367 + $0x9f0] sm:$0xff]
        %v3344 = vld [vmem:[%s367 + $0x9f8] sm:$0xff]
        %v3345 = vld [vmem:[%s367 + $0xa00] sm:$0xff]
        %v3346 = vld [vmem:[%s367 + $0xa08] sm:$0xff]
        %v3347 = vld [vmem:[%s367 + $0xa10] sm:$0xff]
        %v3348 = vld [vmem:[%s367 + $0xa18] sm:$0xff]
        %v3349 = vld [vmem:[%s367 + $0xa20] sm:$0xff]
        %v3350 = vld [vmem:[%s367 + $0xa28] sm:$0xff]
        %v3351 = vld [vmem:[%s367 + $0xa30] sm:$0xff]
        %v3352 = vld [vmem:[%s367 + $0xa38] sm:$0xff]
        %v3353 = vld [vmem:[%s367 + $0xa40] sm:$0xff]
        %v3354 = vld [vmem:[%s367 + $0xa48] sm:$0xff]
        %v3355 = vld [vmem:[%s367 + $0xa50] sm:$0xff]
        %v3356 = vld [vmem:[%s367 + $0xa58] sm:$0xff]
        %v3357 = vld [vmem:[%s367 + $0xa60] sm:$0xff]
        %v3358 = vld [vmem:[%s367 + $0xa68] sm:$0xff]
        %v3359 = vld [vmem:[%s367 + $0xa70] sm:$0xff]
        %v3360 = vld [vmem:[%s367 + $0xa78] sm:$0xff]
        %v3361 = vld [vmem:[%s367 + $0xa80] sm:$0xff]
        %v3362 = vld [vmem:[%s367 + $0xa88] sm:$0xff]
        %v3363 = vld [vmem:[%s367 + $0xa90] sm:$0xff]
        %v3364 = vld [vmem:[%s367 + $0xa98] sm:$0xff]
        %v3365 = vld [vmem:[%s367 + $0xaa0] sm:$0xff]
        %v3366 = vld [vmem:[%s367 + $0xaa8] sm:$0xff]
        %v3367 = vld [vmem:[%s367 + $0xab0] sm:$0xff]
        %v3368 = vld [vmem:[%s367 + $0xab8] sm:$0xff]
        %v3369 = vld [vmem:[%s367 + $0xac0] sm:$0xff]
        %v3370 = vld [vmem:[%s367 + $0xac8] sm:$0xff]
        %v3371 = vld [vmem:[%s367 + $0xad0] sm:$0xff]
        %v3372 = vld [vmem:[%s367 + $0xad8] sm:$0xff]
        %v3373 = vld [vmem:[%s367 + $0xae0] sm:$0xff]
        %v3374 = vld [vmem:[%s367 + $0xae8] sm:$0xff]
        %v3375 = vld [vmem:[%s367 + $0xaf0] sm:$0xff]
        %v3376 = vld [vmem:[%s367 + $0xaf8] sm:$0xff]
        %v3377 = vld [vmem:[%s367 + $0xb00] sm:$0xff]
        %v3378 = vld [vmem:[%s367 + $0xb08] sm:$0xff]
        %v3379 = vld [vmem:[%s367 + $0xb10] sm:$0xff]
        %v3380 = vld [vmem:[%s367 + $0xb18] sm:$0xff]
        %v3381 = vld [vmem:[%s367 + $0xb20] sm:$0xff]
        %v3382 = vld [vmem:[%s367 + $0xb28] sm:$0xff]
        %v3383 = vld [vmem:[%s367 + $0xb30] sm:$0xff]
        %v3384 = vld [vmem:[%s367 + $0xb38] sm:$0xff]
        %v3385 = vld [vmem:[%s367 + $0xb40] sm:$0xff]
        %v3386 = vld [vmem:[%s367 + $0xb48] sm:$0xff]
        %v3387 = vld [vmem:[%s367 + $0xb50] sm:$0xff]
        %v3388 = vld [vmem:[%s367 + $0xb58] sm:$0xff]
        %v3389 = vld [vmem:[%s367 + $0xb60] sm:$0xff]
        %v3390 = vld [vmem:[%s367 + $0xb68] sm:$0xff]
        %v3391 = vld [vmem:[%s367 + $0xb70] sm:$0xff]
        %v3392 = vld [vmem:[%s367 + $0xb78] sm:$0xff]
        %v3393 = vld [vmem:[%s367 + $0xb80] sm:$0xff]
        %v3394 = vld [vmem:[%s367 + $0xb88] sm:$0xff]
        %v3395 = vld [vmem:[%s367 + $0xb90] sm:$0xff]
        %v3396 = vld [vmem:[%s367 + $0xb98] sm:$0xff]
        %v3397 = vld [vmem:[%s367 + $0xba0] sm:$0xff]
        %v3398 = vld [vmem:[%s367 + $0xba8] sm:$0xff]
        %v3399 = vld [vmem:[%s367 + $0xbb0] sm:$0xff]
        %v3400 = vld [vmem:[%s367 + $0xbb8] sm:$0xff]
        %v3401 = vld [vmem:[%s367 + $0xbc0] sm:$0xff]
        %v3402 = vld [vmem:[%s367 + $0xbc8] sm:$0xff]
        %v3403 = vld [vmem:[%s367 + $0xbd0] sm:$0xff]
        %v3404 = vld [vmem:[%s367 + $0xbd8] sm:$0xff]
        %v3405 = vld [vmem:[%s367 + $0xbe0] sm:$0xff]
        %v3406 = vld [vmem:[%s367 + $0xbe8] sm:$0xff]
        %v3407 = vld [vmem:[%s367 + $0xbf0] sm:$0xff]
        %v3408 = vld [vmem:[%s367 + $0xbf8] sm:$0xff]
        %v3413 = vrot.slane %v1397, 1
        %v3414 = vrot.slane %v1398, 1
        %v3415 = vrot.slane %v1399, 1
        %v3416 = vrot.slane %v1400, 1
        %v3549 = vunpack.c.l.b16 %v3281
        %v3550 = vunpack.c.h.b16 %v3281
        %v3551 = vunpack.c.l.b16 %v3282
        %v3552 = vunpack.c.h.b16 %v3282
        %v3553 = vunpack.c.l.b16 %v3283
        %v3554 = vunpack.c.h.b16 %v3283
        %v3555 = vunpack.c.l.b16 %v3284
        %v3556 = vunpack.c.h.b16 %v3284
        %v3557 = vunpack.c.l.b16 %v3285
        %v3558 = vunpack.c.h.b16 %v3285
        %v3559 = vunpack.c.l.b16 %v3286
        %v3560 = vunpack.c.h.b16 %v3286
        %v3561 = vunpack.c.l.b16 %v3287
        %v3562 = vunpack.c.h.b16 %v3287
        %v3563 = vunpack.c.l.b16 %v3288
        %v3564 = vunpack.c.h.b16 %v3288
        %v3565 = vunpack.c.l.b16 %v3289
        %v3566 = vunpack.c.h.b16 %v3289
        %v3567 = vunpack.c.l.b16 %v3290
        %v3568 = vunpack.c.h.b16 %v3290
        %v3569 = vunpack.c.l.b16 %v3291
        %v3570 = vunpack.c.h.b16 %v3291
        %v3571 = vunpack.c.l.b16 %v3292
        %v3572 = vunpack.c.h.b16 %v3292
        %v3573 = vunpack.c.l.b16 %v3293
        %v3574 = vunpack.c.h.b16 %v3293
        %v3575 = vunpack.c.l.b16 %v3294
        %v3576 = vunpack.c.h.b16 %v3294
        %v3577 = vunpack.c.l.b16 %v3295
        %v3578 = vunpack.c.h.b16 %v3295
        %v3579 = vunpack.c.l.b16 %v3296
        %v3580 = vunpack.c.h.b16 %v3296
        %v3581 = vunpack.c.l.b16 %v3297
        %v3582 = vunpack.c.h.b16 %v3297
        %v3583 = vunpack.c.l.b16 %v3298
        %v3584 = vunpack.c.h.b16 %v3298
        %v3585 = vunpack.c.l.b16 %v3299
        %v3586 = vunpack.c.h.b16 %v3299
        %v3587 = vunpack.c.l.b16 %v3300
        %v3588 = vunpack.c.h.b16 %v3300
        %v3589 = vunpack.c.l.b16 %v3301
        %v3590 = vunpack.c.h.b16 %v3301
        %v3591 = vunpack.c.l.b16 %v3302
        %v3592 = vunpack.c.h.b16 %v3302
        %v3593 = vunpack.c.l.b16 %v3303
        %v3594 = vunpack.c.h.b16 %v3303
        %v3595 = vunpack.c.l.b16 %v3304
        %v3596 = vunpack.c.h.b16 %v3304
        %v3597 = vunpack.c.l.b16 %v3305
        %v3598 = vunpack.c.h.b16 %v3305
        %v3599 = vunpack.c.l.b16 %v3306
        %v3600 = vunpack.c.h.b16 %v3306
        %v3601 = vunpack.c.l.b16 %v3307
        %v3602 = vunpack.c.h.b16 %v3307
        %v3603 = vunpack.c.l.b16 %v3308
        %v3604 = vunpack.c.h.b16 %v3308
        %v3605 = vunpack.c.l.b16 %v3309
        %v3606 = vunpack.c.h.b16 %v3309
        %v3607 = vunpack.c.l.b16 %v3310
        %v3608 = vunpack.c.h.b16 %v3310
        %v3609 = vunpack.c.l.b16 %v3311
        %v3610 = vunpack.c.h.b16 %v3311
        %v3611 = vunpack.c.l.b16 %v3312
        %v3612 = vunpack.c.h.b16 %v3312
        %v3613 = vunpack.c.l.b16 %v3313
        %v3614 = vunpack.c.h.b16 %v3313
        %v3615 = vunpack.c.l.b16 %v3314
        %v3616 = vunpack.c.h.b16 %v3314
        %v3617 = vunpack.c.l.b16 %v3315
        %v3618 = vunpack.c.h.b16 %v3315
        %v3619 = vunpack.c.l.b16 %v3316
        %v3620 = vunpack.c.h.b16 %v3316
        %v3621 = vunpack.c.l.b16 %v3317
        %v3622 = vunpack.c.h.b16 %v3317
        %v3623 = vunpack.c.l.b16 %v3318
        %v3624 = vunpack.c.h.b16 %v3318
        %v3625 = vunpack.c.l.b16 %v3319
        %v3626 = vunpack.c.h.b16 %v3319
        %v3627 = vunpack.c.l.b16 %v3320
        %v3628 = vunpack.c.h.b16 %v3320
        %v3629 = vunpack.c.l.b16 %v3321
        %v3630 = vunpack.c.h.b16 %v3321
        %v3631 = vunpack.c.l.b16 %v3322
        %v3632 = vunpack.c.h.b16 %v3322
        %v3633 = vunpack.c.l.b16 %v3323
        %v3634 = vunpack.c.h.b16 %v3323
        %v3635 = vunpack.c.l.b16 %v3324
        %v3636 = vunpack.c.h.b16 %v3324
        %v3637 = vunpack.c.l.b16 %v3325
        %v3638 = vunpack.c.h.b16 %v3325
        %v3639 = vunpack.c.l.b16 %v3326
        %v3640 = vunpack.c.h.b16 %v3326
        %v3641 = vunpack.c.l.b16 %v3327
        %v3642 = vunpack.c.h.b16 %v3327
        %v3643 = vunpack.c.l.b16 %v3328
        %v3644 = vunpack.c.h.b16 %v3328
        %v3645 = vunpack.c.l.b16 %v3329
        %v3646 = vunpack.c.h.b16 %v3329
        %v3647 = vunpack.c.l.b16 %v3330
        %v3648 = vunpack.c.h.b16 %v3330
        %v3649 = vunpack.c.l.b16 %v3331
        %v3650 = vunpack.c.h.b16 %v3331
        %v3651 = vunpack.c.l.b16 %v3332
        %v3652 = vunpack.c.h.b16 %v3332
        %v3653 = vunpack.c.l.b16 %v3333
        %v3654 = vunpack.c.h.b16 %v3333
        %v3655 = vunpack.c.l.b16 %v3334
        %v3656 = vunpack.c.h.b16 %v3334
        %v3657 = vunpack.c.l.b16 %v3335
        %v3658 = vunpack.c.h.b16 %v3335
        %v3659 = vunpack.c.l.b16 %v3336
        %v3660 = vunpack.c.h.b16 %v3336
        %v3661 = vunpack.c.l.b16 %v3337
        %v3662 = vunpack.c.h.b16 %v3337
        %v3663 = vunpack.c.l.b16 %v3338
        %v3664 = vunpack.c.h.b16 %v3338
        %v3665 = vunpack.c.l.b16 %v3339
        %v3666 = vunpack.c.h.b16 %v3339
        %v3667 = vunpack.c.l.b16 %v3340
        %v3668 = vunpack.c.h.b16 %v3340
        %v3669 = vunpack.c.l.b16 %v3341
        %v3670 = vunpack.c.h.b16 %v3341
        %v3671 = vunpack.c.l.b16 %v3342
        %v3672 = vunpack.c.h.b16 %v3342
        %v3673 = vunpack.c.l.b16 %v3343
        %v3674 = vunpack.c.h.b16 %v3343
        %v3675 = vunpack.c.l.b16 %v3344
        %v3676 = vunpack.c.h.b16 %v3344
        %v3677 = vunpack.c.l.b16 %v3345
        %v3678 = vunpack.c.h.b16 %v3345
        %v3679 = vunpack.c.l.b16 %v3346
        %v3680 = vunpack.c.h.b16 %v3346
        %v3681 = vunpack.c.l.b16 %v3347
        %v3682 = vunpack.c.h.b16 %v3347
        %v3683 = vunpack.c.l.b16 %v3348
        %v3684 = vunpack.c.h.b16 %v3348
        %v3685 = vunpack.c.l.b16 %v3349
        %v3686 = vunpack.c.h.b16 %v3349
        %v3687 = vunpack.c.l.b16 %v3350
        %v3688 = vunpack.c.h.b16 %v3350
        %v3689 = vunpack.c.l.b16 %v3351
        %v3690 = vunpack.c.h.b16 %v3351
        %v3691 = vunpack.c.l.b16 %v3352
        %v3692 = vunpack.c.h.b16 %v3352
        %v3693 = vunpack.c.l.b16 %v3353
        %v3694 = vunpack.c.h.b16 %v3353
        %v3695 = vunpack.c.l.b16 %v3354
        %v3696 = vunpack.c.h.b16 %v3354
        %v3697 = vunpack.c.l.b16 %v3355
        %v3698 = vunpack.c.h.b16 %v3355
        %v3699 = vunpack.c.l.b16 %v3356
        %v3700 = vunpack.c.h.b16 %v3356
        %v3701 = vunpack.c.l.b16 %v3357
        %v3702 = vunpack.c.h.b16 %v3357
        %v3703 = vunpack.c.l.b16 %v3358
        %v3704 = vunpack.c.h.b16 %v3358
        %v3705 = vunpack.c.l.b16 %v3359
        %v3706 = vunpack.c.h.b16 %v3359
        %v3707 = vunpack.c.l.b16 %v3360
        %v3708 = vunpack.c.h.b16 %v3360
        %v3709 = vunpack.c.l.b16 %v3361
        %v3710 = vunpack.c.h.b16 %v3361
        %v3711 = vunpack.c.l.b16 %v3362
        %v3712 = vunpack.c.h.b16 %v3362
        %v3713 = vunpack.c.l.b16 %v3363
        %v3714 = vunpack.c.h.b16 %v3363
        %v3715 = vunpack.c.l.b16 %v3364
        %v3716 = vunpack.c.h.b16 %v3364
        %v3717 = vunpack.c.l.b16 %v3365
        %v3718 = vunpack.c.h.b16 %v3365
        %v3719 = vunpack.c.l.b16 %v3366
        %v3720 = vunpack.c.h.b16 %v3366
        %v3721 = vunpack.c.l.b16 %v3367
        %v3722 = vunpack.c.h.b16 %v3367
        %v3723 = vunpack.c.l.b16 %v3368
        %v3724 = vunpack.c.h.b16 %v3368
        %v3725 = vunpack.c.l.b16 %v3369
        %v3726 = vunpack.c.h.b16 %v3369
        %v3727 = vunpack.c.l.b16 %v3370
        %v3728 = vunpack.c.h.b16 %v3370
        %v3729 = vunpack.c.l.b16 %v3371
        %v3730 = vunpack.c.h.b16 %v3371
        %v3731 = vunpack.c.l.b16 %v3372
        %v3732 = vunpack.c.h.b16 %v3372
        %v3733 = vunpack.c.l.b16 %v3373
        %v3734 = vunpack.c.h.b16 %v3373
        %v3735 = vunpack.c.l.b16 %v3374
        %v3736 = vunpack.c.h.b16 %v3374
        %v3737 = vunpack.c.l.b16 %v3375
        %v3738 = vunpack.c.h.b16 %v3375
        %v3739 = vunpack.c.l.b16 %v3376
        %v3740 = vunpack.c.h.b16 %v3376
        %v3741 = vunpack.c.l.b16 %v3377
        %v3742 = vunpack.c.h.b16 %v3377
        %v3743 = vunpack.c.l.b16 %v3378
        %v3744 = vunpack.c.h.b16 %v3378
        %v3745 = vunpack.c.l.b16 %v3379
        %v3746 = vunpack.c.h.b16 %v3379
        %v3747 = vunpack.c.l.b16 %v3380
        %v3748 = vunpack.c.h.b16 %v3380
        %v3749 = vunpack.c.l.b16 %v3381
        %v3750 = vunpack.c.h.b16 %v3381
        %v3751 = vunpack.c.l.b16 %v3382
        %v3752 = vunpack.c.h.b16 %v3382
        %v3753 = vunpack.c.l.b16 %v3383
        %v3754 = vunpack.c.h.b16 %v3383
        %v3755 = vunpack.c.l.b16 %v3384
        %v3756 = vunpack.c.h.b16 %v3384
        %v3757 = vunpack.c.l.b16 %v3385
        %v3758 = vunpack.c.h.b16 %v3385
        %v3759 = vunpack.c.l.b16 %v3386
        %v3760 = vunpack.c.h.b16 %v3386
        %v3761 = vunpack.c.l.b16 %v3387
        %v3762 = vunpack.c.h.b16 %v3387
        %v3763 = vunpack.c.l.b16 %v3388
        %v3764 = vunpack.c.h.b16 %v3388
        %v3765 = vunpack.c.l.b16 %v3389
        %v3766 = vunpack.c.h.b16 %v3389
        %v3767 = vunpack.c.l.b16 %v3390
        %v3768 = vunpack.c.h.b16 %v3390
        %v3769 = vunpack.c.l.b16 %v3391
        %v3770 = vunpack.c.h.b16 %v3391
        %v3771 = vunpack.c.l.b16 %v3392
        %v3772 = vunpack.c.h.b16 %v3392
        %v3773 = vunpack.c.l.b16 %v3393
        %v3774 = vunpack.c.h.b16 %v3393
        %v3775 = vunpack.c.l.b16 %v3394
        %v3776 = vunpack.c.h.b16 %v3394
        %v3777 = vunpack.c.l.b16 %v3395
        %v3778 = vunpack.c.h.b16 %v3395
        %v3779 = vunpack.c.l.b16 %v3396
        %v3780 = vunpack.c.h.b16 %v3396
        %v3781 = vunpack.c.l.b16 %v3397
        %v3782 = vunpack.c.h.b16 %v3397
        %v3783 = vunpack.c.l.b16 %v3398
        %v3784 = vunpack.c.h.b16 %v3398
        %v3785 = vunpack.c.l.b16 %v3399
        %v3786 = vunpack.c.h.b16 %v3399
        %v3787 = vunpack.c.l.b16 %v3400
        %v3788 = vunpack.c.h.b16 %v3400
        %v3789 = vunpack.c.l.b16 %v3401
        %v3790 = vunpack.c.h.b16 %v3401
        %v3791 = vunpack.c.l.b16 %v3402
        %v3792 = vunpack.c.h.b16 %v3402
        %v3793 = vunpack.c.l.b16 %v3403
        %v3794 = vunpack.c.h.b16 %v3403
        %v3795 = vunpack.c.l.b16 %v3404
        %v3796 = vunpack.c.h.b16 %v3404
        %v3797 = vunpack.c.l.b16 %v3405
        %v3798 = vunpack.c.h.b16 %v3405
        %v3799 = vunpack.c.l.b16 %v3406
        %v3800 = vunpack.c.h.b16 %v3406
        %v3801 = vunpack.c.l.b16 %v3407
        %v3802 = vunpack.c.h.b16 %v3407
        %v3803 = vunpack.c.l.b16 %v3408
        %v3804 = vunpack.c.h.b16 %v3408
        %v3805 = vpack.c.b16 %v3553, %v3549
        %v3806 = vpack.c.b16 %v3554, %v3550
        %v3807 = vpack.c.b16 %v3555, %v3551
        %v3808 = vpack.c.b16 %v3556, %v3552
        %v3809 = vpack.c.b16 %v3561, %v3557
        %v3810 = vpack.c.b16 %v3562, %v3558
        %v3811 = vpack.c.b16 %v3563, %v3559
        %v3812 = vpack.c.b16 %v3564, %v3560
        %v3813 = vpack.c.b16 %v3569, %v3565
        %v3814 = vpack.c.b16 %v3570, %v3566
        %v3815 = vpack.c.b16 %v3571, %v3567
        %v3816 = vpack.c.b16 %v3572, %v3568
        %v3817 = vpack.c.b16 %v3577, %v3573
        %v3818 = vpack.c.b16 %v3578, %v3574
        %v3819 = vpack.c.b16 %v3579, %v3575
        %v3820 = vpack.c.b16 %v3580, %v3576
        %v3821 = vpack.c.b16 %v3585, %v3581
        %v3822 = vpack.c.b16 %v3586, %v3582
        %v3823 = vpack.c.b16 %v3587, %v3583
        %v3824 = vpack.c.b16 %v3588, %v3584
        %v3825 = vpack.c.b16 %v3593, %v3589
        %v3826 = vpack.c.b16 %v3594, %v3590
        %v3827 = vpack.c.b16 %v3595, %v3591
        %v3828 = vpack.c.b16 %v3596, %v3592
        %v3829 = vpack.c.b16 %v3601, %v3597
        %v3830 = vpack.c.b16 %v3602, %v3598
        %v3831 = vpack.c.b16 %v3603, %v3599
        %v3832 = vpack.c.b16 %v3604, %v3600
        %v3833 = vpack.c.b16 %v3609, %v3605
        %v3834 = vpack.c.b16 %v3610, %v3606
        %v3835 = vpack.c.b16 %v3611, %v3607
        %v3836 = vpack.c.b16 %v3612, %v3608
        %v3837 = vpack.c.b16 %v3617, %v3613
        %v3838 = vpack.c.b16 %v3618, %v3614
        %v3839 = vpack.c.b16 %v3619, %v3615
        %v3840 = vpack.c.b16 %v3620, %v3616
        %v3841 = vpack.c.b16 %v3625, %v3621
        %v3842 = vpack.c.b16 %v3626, %v3622
        %v3843 = vpack.c.b16 %v3627, %v3623
        %v3844 = vpack.c.b16 %v3628, %v3624
        %v3845 = vpack.c.b16 %v3633, %v3629
        %v3846 = vpack.c.b16 %v3634, %v3630
        %v3847 = vpack.c.b16 %v3635, %v3631
        %v3848 = vpack.c.b16 %v3636, %v3632
        %v3849 = vpack.c.b16 %v3641, %v3637
        %v3850 = vpack.c.b16 %v3642, %v3638
        %v3851 = vpack.c.b16 %v3643, %v3639
        %v3852 = vpack.c.b16 %v3644, %v3640
        %v3853 = vpack.c.b16 %v3649, %v3645
        %v3854 = vpack.c.b16 %v3650, %v3646
        %v3855 = vpack.c.b16 %v3651, %v3647
        %v3856 = vpack.c.b16 %v3652, %v3648
        %v3857 = vpack.c.b16 %v3657, %v3653
        %v3858 = vpack.c.b16 %v3658, %v3654
        %v3859 = vpack.c.b16 %v3659, %v3655
        %v3860 = vpack.c.b16 %v3660, %v3656
        %v3861 = vpack.c.b16 %v3665, %v3661
        %v3862 = vpack.c.b16 %v3666, %v3662
        %v3863 = vpack.c.b16 %v3667, %v3663
        %v3864 = vpack.c.b16 %v3668, %v3664
        %v3865 = vpack.c.b16 %v3673, %v3669
        %v3866 = vpack.c.b16 %v3674, %v3670
        %v3867 = vpack.c.b16 %v3675, %v3671
        %v3868 = vpack.c.b16 %v3676, %v3672
        %v3869 = vpack.c.b16 %v3681, %v3677
        %v3870 = vpack.c.b16 %v3682, %v3678
        %v3871 = vpack.c.b16 %v3683, %v3679
        %v3872 = vpack.c.b16 %v3684, %v3680
        %v3873 = vpack.c.b16 %v3689, %v3685
        %v3874 = vpack.c.b16 %v3690, %v3686
        %v3875 = vpack.c.b16 %v3691, %v3687
        %v3876 = vpack.c.b16 %v3692, %v3688
        %v3877 = vpack.c.b16 %v3697, %v3693
        %v3878 = vpack.c.b16 %v3698, %v3694
        %v3879 = vpack.c.b16 %v3699, %v3695
        %v3880 = vpack.c.b16 %v3700, %v3696
        %v3881 = vpack.c.b16 %v3705, %v3701
        %v3882 = vpack.c.b16 %v3706, %v3702
        %v3883 = vpack.c.b16 %v3707, %v3703
        %v3884 = vpack.c.b16 %v3708, %v3704
        %v3885 = vpack.c.b16 %v3713, %v3709
        %v3886 = vpack.c.b16 %v3714, %v3710
        %v3887 = vpack.c.b16 %v3715, %v3711
        %v3888 = vpack.c.b16 %v3716, %v3712
        %v3889 = vpack.c.b16 %v3721, %v3717
        %v3890 = vpack.c.b16 %v3722, %v3718
        %v3891 = vpack.c.b16 %v3723, %v3719
        %v3892 = vpack.c.b16 %v3724, %v3720
        %v3893 = vpack.c.b16 %v3729, %v3725
        %v3894 = vpack.c.b16 %v3730, %v3726
        %v3895 = vpack.c.b16 %v3731, %v3727
        %v3896 = vpack.c.b16 %v3732, %v3728
        %v3897 = vpack.c.b16 %v3737, %v3733
        %v3898 = vpack.c.b16 %v3738, %v3734
        %v3899 = vpack.c.b16 %v3739, %v3735
        %v3900 = vpack.c.b16 %v3740, %v3736
        %v3901 = vpack.c.b16 %v3745, %v3741
        %v3902 = vpack.c.b16 %v3746, %v3742
        %v3903 = vpack.c.b16 %v3747, %v3743
        %v3904 = vpack.c.b16 %v3748, %v3744
        %v3905 = vpack.c.b16 %v3753, %v3749
        %v3906 = vpack.c.b16 %v3754, %v3750
        %v3907 = vpack.c.b16 %v3755, %v3751
        %v3908 = vpack.c.b16 %v3756, %v3752
        %v3909 = vpack.c.b16 %v3761, %v3757
        %v3910 = vpack.c.b16 %v3762, %v3758
        %v3911 = vpack.c.b16 %v3763, %v3759
        %v3912 = vpack.c.b16 %v3764, %v3760
        %v3913 = vpack.c.b16 %v3769, %v3765
        %v3914 = vpack.c.b16 %v3770, %v3766
        %v3915 = vpack.c.b16 %v3771, %v3767
        %v3916 = vpack.c.b16 %v3772, %v3768
        %v3917 = vpack.c.b16 %v3777, %v3773
        %v3918 = vpack.c.b16 %v3778, %v3774
        %v3919 = vpack.c.b16 %v3779, %v3775
        %v3920 = vpack.c.b16 %v3780, %v3776
        %v3921 = vpack.c.b16 %v3785, %v3781
        %v3922 = vpack.c.b16 %v3786, %v3782
        %v3923 = vpack.c.b16 %v3787, %v3783
        %v3924 = vpack.c.b16 %v3788, %v3784
        %v3925 = vpack.c.b16 %v3793, %v3789
        %v3926 = vpack.c.b16 %v3794, %v3790
        %v3927 = vpack.c.b16 %v3795, %v3791
        %v3928 = vpack.c.b16 %v3796, %v3792
        %v3929 = vpack.c.b16 %v3801, %v3797
        %v3930 = vpack.c.b16 %v3802, %v3798
        %v3931 = vpack.c.b16 %v3803, %v3799
        %v3932 = vpack.c.b16 %v3804, %v3800
        %4061 = vmatprep.subr.bf16.mxu0 %v3806
        %4062 = vmatpush1.bf16.msra.mxu0 %v3805
        %4063 = vmatprep.subr.bf16.mxu0 %v3810
        %4064 = vmatpush1.bf16.msra.mxu0 %v3809
        %4065 = vmatprep.subr.bf16.mxu0 %v3814
        %4066 = vmatpush1.bf16.msra.mxu0 %v3813
        %4067 = vmatprep.subr.bf16.mxu0 %v3818
        %4068 = vmatpush1.bf16.msra.mxu0 %v3817
        %4069 = vmatprep.subr.bf16.mxu0 %v3822
        %4070 = vmatpush1.bf16.msra.mxu0 %v3821
        %4071 = vmatprep.subr.bf16.mxu0 %v3826
        %4072 = vmatpush1.bf16.msra.mxu0 %v3825
        %4073 = vmatprep.subr.bf16.mxu0 %v3830
        %4074 = vmatpush1.bf16.msra.mxu0 %v3829
        %4075 = vmatprep.subr.bf16.mxu0 %v3834
        %4076 = vmatpush1.bf16.msra.mxu0 %v3833
        %4077 = vmatprep.subr.bf16.mxu0 %v3838
        %4078 = vmatpush1.bf16.msra.mxu0 %v3837
        %4079 = vmatprep.subr.bf16.mxu0 %v3842
        %4080 = vmatpush1.bf16.msra.mxu0 %v3841
        %4081 = vmatprep.subr.bf16.mxu0 %v3846
        %4082 = vmatpush1.bf16.msra.mxu0 %v3845
        %4083 = vmatprep.subr.bf16.mxu0 %v3850
        %4084 = vmatpush1.bf16.msra.mxu0 %v3849
        %4085 = vmatprep.subr.bf16.mxu0 %v3854
        %4086 = vmatpush1.bf16.msra.mxu0 %v3853
        %4087 = vmatprep.subr.bf16.mxu0 %v3858
        %4088 = vmatpush1.bf16.msra.mxu0 %v3857
        %4089 = vmatprep.subr.bf16.mxu0 %v3862
        %4090 = vmatpush1.bf16.msra.mxu0 %v3861
        %4091 = vmatprep.subr.bf16.mxu0 %v3866
        %4092 = vmatpush1.bf16.msra.mxu0 %v3865
        %4093 = vmatprep.mubr.bf16.mxu0 %v3414
        %4094 = vmatmul.mubr.bf16.gmra.mrb[0].mxu0 %v3413
        %v4095 = vpop.f32.mrb[0].mxu0
        %v4096 = vadd.f32 0.0, %v4095
        %v4097 = vpop.f32.mrb[0].mxu0
        %v4098 = vadd.f32 0.0, %v4097
        %v4099 = vpop.f32.mrb[0].mxu0
        %v4100 = vpop.f32.mrb[0].mxu0
        %4101 = vdwg.mxu0
        %4102 = vmatprep.subr.bf16.mxu0 %v3870
        %4103 = vmatpush1.bf16.msra.mxu0 %v3869
        %4104 = vmatprep.subr.bf16.mxu0 %v3874
        %4105 = vmatpush1.bf16.msra.mxu0 %v3873
        %4106 = vmatprep.subr.bf16.mxu0 %v3878
        %4107 = vmatpush1.bf16.msra.mxu0 %v3877
        %4108 = vmatprep.subr.bf16.mxu0 %v3882
        %4109 = vmatpush1.bf16.msra.mxu0 %v3881
        %4110 = vmatprep.subr.bf16.mxu0 %v3886
        %4111 = vmatpush1.bf16.msra.mxu0 %v3885
        %4112 = vmatprep.subr.bf16.mxu0 %v3890
        %4113 = vmatpush1.bf16.msra.mxu0 %v3889
        %4114 = vmatprep.subr.bf16.mxu0 %v3894
        %4115 = vmatpush1.bf16.msra.mxu0 %v3893
        %4116 = vmatprep.subr.bf16.mxu0 %v3898
        %4117 = vmatpush1.bf16.msra.mxu0 %v3897
        %4118 = vmatprep.subr.bf16.mxu0 %v3902
        %4119 = vmatpush1.bf16.msra.mxu0 %v3901
        %4120 = vmatprep.subr.bf16.mxu0 %v3906
        %4121 = vmatpush1.bf16.msra.mxu0 %v3905
        %4122 = vmatprep.subr.bf16.mxu0 %v3910
        %4123 = vmatpush1.bf16.msra.mxu0 %v3909
        %4124 = vmatprep.subr.bf16.mxu0 %v3914
        %4125 = vmatpush1.bf16.msra.mxu0 %v3913
        %4126 = vmatprep.subr.bf16.mxu0 %v3918
        %4127 = vmatpush1.bf16.msra.mxu0 %v3917
        %4128 = vmatprep.subr.bf16.mxu0 %v3922
        %4129 = vmatpush1.bf16.msra.mxu0 %v3921
        %4130 = vmatprep.subr.bf16.mxu0 %v3926
        %4131 = vmatpush1.bf16.msra.mxu0 %v3925
        %4132 = vmatprep.subr.bf16.mxu0 %v3930
        %4133 = vmatpush1.bf16.msra.mxu0 %v3929
        %4134 = vmatprep.mubr.bf16.mxu0 %v3416
        %4135 = vmatmul.mubr.bf16.gmra.mrb[0].mxu0 %v3415
        %v4136 = vpop.f32.mrb[0].mxu0
        %v4137 = vadd.f32 %v4096, %v4136
        %v4138 = vpop.f32.mrb[0].mxu0
        %v4139 = vadd.f32 %v4098, %v4138
        %v4140 = vpop.f32.mrb[0].mxu0
        %v4141 = vpop.f32.mrb[0].mxu0
        %4142 = vdwg.mxu0
        %4143 = vmatprep.subr.bf16.mxu0 %v3808
        %4144 = vmatpush1.bf16.msra.mxu0 %v3807
        %4145 = vmatprep.subr.bf16.mxu0 %v3812
        %4146 = vmatpush1.bf16.msra.mxu0 %v3811
        %4147 = vmatprep.subr.bf16.mxu0 %v3816
        %4148 = vmatpush1.bf16.msra.mxu0 %v3815
        %4149 = vmatprep.subr.bf16.mxu0 %v3820
        %4150 = vmatpush1.bf16.msra.mxu0 %v3819
        %4151 = vmatprep.subr.bf16.mxu0 %v3824
        %4152 = vmatpush1.bf16.msra.mxu0 %v3823
        %4153 = vmatprep.subr.bf16.mxu0 %v3828
        %4154 = vmatpush1.bf16.msra.mxu0 %v3827
        %4155 = vmatprep.subr.bf16.mxu0 %v3832
        %4156 = vmatpush1.bf16.msra.mxu0 %v3831
        %4157 = vmatprep.subr.bf16.mxu0 %v3836
        %4158 = vmatpush1.bf16.msra.mxu0 %v3835
        %4159 = vmatprep.subr.bf16.mxu0 %v3840
        %4160 = vmatpush1.bf16.msra.mxu0 %v3839
        %4161 = vmatprep.subr.bf16.mxu0 %v3844
        %4162 = vmatpush1.bf16.msra.mxu0 %v3843
        %4163 = vmatprep.subr.bf16.mxu0 %v3848
        %4164 = vmatpush1.bf16.msra.mxu0 %v3847
        %4165 = vmatprep.subr.bf16.mxu0 %v3852
        %4166 = vmatpush1.bf16.msra.mxu0 %v3851
        %4167 = vmatprep.subr.bf16.mxu0 %v3856
        %4168 = vmatpush1.bf16.msra.mxu0 %v3855
        %4169 = vmatprep.subr.bf16.mxu0 %v3860
        %4170 = vmatpush1.bf16.msra.mxu0 %v3859
        %4171 = vmatprep.subr.bf16.mxu0 %v3864
        %4172 = vmatpush1.bf16.msra.mxu0 %v3863
        %4173 = vmatprep.subr.bf16.mxu0 %v3868
        %4174 = vmatpush1.bf16.msra.mxu0 %v3867
        %4175 = vmatprep.mubr.bf16.mxu0 %v3414
        %4176 = vmatmul.mubr.bf16.gmra.mrb[0].mxu0 %v3413
        %v4177 = vpop.f32.mrb[0].mxu0
        %v4178 = vadd.f32 0.0, %v4177
        %v4179 = vpop.f32.mrb[0].mxu0
        %v4180 = vadd.f32 0.0, %v4179
        %v4181 = vpop.f32.mrb[0].mxu0
        %v4182 = vpop.f32.mrb[0].mxu0
        %4183 = vdwg.mxu0
        %4184 = vmatprep.subr.bf16.mxu0 %v3872
        %4185 = vmatpush1.bf16.msra.mxu0 %v3871
        %4186 = vmatprep.subr.bf16.mxu0 %v3876
        %4187 = vmatpush1.bf16.msra.mxu0 %v3875
        %4188 = vmatprep.subr.bf16.mxu0 %v3880
        %4189 = vmatpush1.bf16.msra.mxu0 %v3879
        %4190 = vmatprep.subr.bf16.mxu0 %v3884
        %4191 = vmatpush1.bf16.msra.mxu0 %v3883
        %4192 = vmatprep.subr.bf16.mxu0 %v3888
        %4193 = vmatpush1.bf16.msra.mxu0 %v3887
        %4194 = vmatprep.subr.bf16.mxu0 %v3892
        %4195 = vmatpush1.bf16.msra.mxu0 %v3891
        %4196 = vmatprep.subr.bf16.mxu0 %v3896
        %4197 = vmatpush1.bf16.msra.mxu0 %v3895
        %4198 = vmatprep.subr.bf16.mxu0 %v3900
        %4199 = vmatpush1.bf16.msra.mxu0 %v3899
        %4200 = vmatprep.subr.bf16.mxu0 %v3904
        %4201 = vmatpush1.bf16.msra.mxu0 %v3903
        %4202 = vmatprep.subr.bf16.mxu0 %v3908
        %4203 = vmatpush1.bf16.msra.mxu0 %v3907
        %4204 = vmatprep.subr.bf16.mxu0 %v3912
        %4205 = vmatpush1.bf16.msra.mxu0 %v3911
        %4206 = vmatprep.subr.bf16.mxu0 %v3916
        %4207 = vmatpush1.bf16.msra.mxu0 %v3915
        %4208 = vmatprep.subr.bf16.mxu0 %v3920
        %4209 = vmatpush1.bf16.msra.mxu0 %v3919
        %4210 = vmatprep.subr.bf16.mxu0 %v3924
        %4211 = vmatpush1.bf16.msra.mxu0 %v3923
        %4212 = vmatprep.subr.bf16.mxu0 %v3928
        %4213 = vmatpush1.bf16.msra.mxu0 %v3927
        %4214 = vmatprep.subr.bf16.mxu0 %v3932
        %4215 = vmatpush1.bf16.msra.mxu0 %v3931
        %4216 = vmatprep.mubr.bf16.mxu0 %v3416
        %4217 = vmatmul.mubr.bf16.gmra.mrb[0].mxu0 %v3415
        %v4218 = vpop.f32.mrb[0].mxu0
        %v4219 = vadd.f32 %v4178, %v4218
        %v4220 = vpop.f32.mrb[0].mxu0
        %v4221 = vadd.f32 %v4180, %v4220
        %v4222 = vpop.f32.mrb[0].mxu0
        %v4223 = vpop.f32.mrb[0].mxu0
        %4224 = vdwg.mxu0
        %v4225 = vadd.f32 %v3193, %v4137
        %v4226 = vadd.f32 %v3195, %v4139
        %v4227 = vadd.f32 %v3275, %v4219
        %v4228 = vadd.f32 %v3277, %v4221
        %v4229 = vld [vmem:[%s367 + $0xc00] sm:$0xff]
        %v4230 = vld [vmem:[%s367 + $0xc08] sm:$0xff]
        %v4231 = vld [vmem:[%s367 + $0xc10] sm:$0xff]
        %v4232 = vld [vmem:[%s367 + $0xc18] sm:$0xff]
        %v4233 = vld [vmem:[%s367 + $0xc20] sm:$0xff]
        %v4234 = vld [vmem:[%s367 + $0xc28] sm:$0xff]
        %v4235 = vld [vmem:[%s367 + $0xc30] sm:$0xff]
        %v4236 = vld [vmem:[%s367 + $0xc38] sm:$0xff]
        %v4237 = vld [vmem:[%s367 + $0xc40] sm:$0xff]
        %v4238 = vld [vmem:[%s367 + $0xc48] sm:$0xff]
        %v4239 = vld [vmem:[%s367 + $0xc50] sm:$0xff]
        %v4240 = vld [vmem:[%s367 + $0xc58] sm:$0xff]
        %v4241 = vld [vmem:[%s367 + $0xc60] sm:$0xff]
        %v4242 = vld [vmem:[%s367 + $0xc68] sm:$0xff]
        %v4243 = vld [vmem:[%s367 + $0xc70] sm:$0xff]
        %v4244 = vld [vmem:[%s367 + $0xc78] sm:$0xff]
        %v4245 = vld [vmem:[%s367 + $0xc80] sm:$0xff]
        %v4246 = vld [vmem:[%s367 + $0xc88] sm:$0xff]
        %v4247 = vld [vmem:[%s367 + $0xc90] sm:$0xff]
        %v4248 = vld [vmem:[%s367 + $0xc98] sm:$0xff]
        %v4249 = vld [vmem:[%s367 + $0xca0] sm:$0xff]
        %v4250 = vld [vmem:[%s367 + $0xca8] sm:$0xff]
        %v4251 = vld [vmem:[%s367 + $0xcb0] sm:$0xff]
        %v4252 = vld [vmem:[%s367 + $0xcb8] sm:$0xff]
        %v4253 = vld [vmem:[%s367 + $0xcc0] sm:$0xff]
        %v4254 = vld [vmem:[%s367 + $0xcc8] sm:$0xff]
        %v4255 = vld [vmem:[%s367 + $0xcd0] sm:$0xff]
        %v4256 = vld [vmem:[%s367 + $0xcd8] sm:$0xff]
        %v4257 = vld [vmem:[%s367 + $0xce0] sm:$0xff]
        %v4258 = vld [vmem:[%s367 + $0xce8] sm:$0xff]
        %v4259 = vld [vmem:[%s367 + $0xcf0] sm:$0xff]
        %v4260 = vld [vmem:[%s367 + $0xcf8] sm:$0xff]
        %v4261 = vld [vmem:[%s367 + $0xd00] sm:$0xff]
        %v4262 = vld [vmem:[%s367 + $0xd08] sm:$0xff]
        %v4263 = vld [vmem:[%s367 + $0xd10] sm:$0xff]
        %v4264 = vld [vmem:[%s367 + $0xd18] sm:$0xff]
        %v4265 = vld [vmem:[%s367 + $0xd20] sm:$0xff]
        %v4266 = vld [vmem:[%s367 + $0xd28] sm:$0xff]
        %v4267 = vld [vmem:[%s367 + $0xd30] sm:$0xff]
        %v4268 = vld [vmem:[%s367 + $0xd38] sm:$0xff]
        %v4269 = vld [vmem:[%s367 + $0xd40] sm:$0xff]
        %v4270 = vld [vmem:[%s367 + $0xd48] sm:$0xff]
        %v4271 = vld [vmem:[%s367 + $0xd50] sm:$0xff]
        %v4272 = vld [vmem:[%s367 + $0xd58] sm:$0xff]
        %v4273 = vld [vmem:[%s367 + $0xd60] sm:$0xff]
        %v4274 = vld [vmem:[%s367 + $0xd68] sm:$0xff]
        %v4275 = vld [vmem:[%s367 + $0xd70] sm:$0xff]
        %v4276 = vld [vmem:[%s367 + $0xd78] sm:$0xff]
        %v4277 = vld [vmem:[%s367 + $0xd80] sm:$0xff]
        %v4278 = vld [vmem:[%s367 + $0xd88] sm:$0xff]
        %v4279 = vld [vmem:[%s367 + $0xd90] sm:$0xff]
        %v4280 = vld [vmem:[%s367 + $0xd98] sm:$0xff]
        %v4281 = vld [vmem:[%s367 + $0xda0] sm:$0xff]
        %v4282 = vld [vmem:[%s367 + $0xda8] sm:$0xff]
        %v4283 = vld [vmem:[%s367 + $0xdb0] sm:$0xff]
        %v4284 = vld [vmem:[%s367 + $0xdb8] sm:$0xff]
        %v4285 = vld [vmem:[%s367 + $0xdc0] sm:$0xff]
        %v4286 = vld [vmem:[%s367 + $0xdc8] sm:$0xff]
        %v4287 = vld [vmem:[%s367 + $0xdd0] sm:$0xff]
        %v4288 = vld [vmem:[%s367 + $0xdd8] sm:$0xff]
        %v4289 = vld [vmem:[%s367 + $0xde0] sm:$0xff]
        %v4290 = vld [vmem:[%s367 + $0xde8] sm:$0xff]
        %v4291 = vld [vmem:[%s367 + $0xdf0] sm:$0xff]
        %v4292 = vld [vmem:[%s367 + $0xdf8] sm:$0xff]
        %v4293 = vld [vmem:[%s367 + $0xe00] sm:$0xff]
        %v4294 = vld [vmem:[%s367 + $0xe08] sm:$0xff]
        %v4295 = vld [vmem:[%s367 + $0xe10] sm:$0xff]
        %v4296 = vld [vmem:[%s367 + $0xe18] sm:$0xff]
        %v4297 = vld [vmem:[%s367 + $0xe20] sm:$0xff]
        %v4298 = vld [vmem:[%s367 + $0xe28] sm:$0xff]
        %v4299 = vld [vmem:[%s367 + $0xe30] sm:$0xff]
        %v4300 = vld [vmem:[%s367 + $0xe38] sm:$0xff]
        %v4301 = vld [vmem:[%s367 + $0xe40] sm:$0xff]
        %v4302 = vld [vmem:[%s367 + $0xe48] sm:$0xff]
        %v4303 = vld [vmem:[%s367 + $0xe50] sm:$0xff]
        %v4304 = vld [vmem:[%s367 + $0xe58] sm:$0xff]
        %v4305 = vld [vmem:[%s367 + $0xe60] sm:$0xff]
        %v4306 = vld [vmem:[%s367 + $0xe68] sm:$0xff]
        %v4307 = vld [vmem:[%s367 + $0xe70] sm:$0xff]
        %v4308 = vld [vmem:[%s367 + $0xe78] sm:$0xff]
        %v4309 = vld [vmem:[%s367 + $0xe80] sm:$0xff]
        %v4310 = vld [vmem:[%s367 + $0xe88] sm:$0xff]
        %v4311 = vld [vmem:[%s367 + $0xe90] sm:$0xff]
        %v4312 = vld [vmem:[%s367 + $0xe98] sm:$0xff]
        %v4313 = vld [vmem:[%s367 + $0xea0] sm:$0xff]
        %v4314 = vld [vmem:[%s367 + $0xea8] sm:$0xff]
        %v4315 = vld [vmem:[%s367 + $0xeb0] sm:$0xff]
        %v4316 = vld [vmem:[%s367 + $0xeb8] sm:$0xff]
        %v4317 = vld [vmem:[%s367 + $0xec0] sm:$0xff]
        %v4318 = vld [vmem:[%s367 + $0xec8] sm:$0xff]
        %v4319 = vld [vmem:[%s367 + $0xed0] sm:$0xff]
        %v4320 = vld [vmem:[%s367 + $0xed8] sm:$0xff]
        %v4321 = vld [vmem:[%s367 + $0xee0] sm:$0xff]
        %v4322 = vld [vmem:[%s367 + $0xee8] sm:$0xff]
        %v4323 = vld [vmem:[%s367 + $0xef0] sm:$0xff]
        %v4324 = vld [vmem:[%s367 + $0xef8] sm:$0xff]
        %v4325 = vld [vmem:[%s367 + $0xf00] sm:$0xff]
        %v4326 = vld [vmem:[%s367 + $0xf08] sm:$0xff]
        %v4327 = vld [vmem:[%s367 + $0xf10] sm:$0xff]
        %v4328 = vld [vmem:[%s367 + $0xf18] sm:$0xff]
        %v4329 = vld [vmem:[%s367 + $0xf20] sm:$0xff]
        %v4330 = vld [vmem:[%s367 + $0xf28] sm:$0xff]
        %v4331 = vld [vmem:[%s367 + $0xf30] sm:$0xff]
        %v4332 = vld [vmem:[%s367 + $0xf38] sm:$0xff]
        %v4333 = vld [vmem:[%s367 + $0xf40] sm:$0xff]
        %v4334 = vld [vmem:[%s367 + $0xf48] sm:$0xff]
        %v4335 = vld [vmem:[%s367 + $0xf50] sm:$0xff]
        %v4336 = vld [vmem:[%s367 + $0xf58] sm:$0xff]
        %v4337 = vld [vmem:[%s367 + $0xf60] sm:$0xff]
        %v4338 = vld [vmem:[%s367 + $0xf68] sm:$0xff]
        %v4339 = vld [vmem:[%s367 + $0xf70] sm:$0xff]
        %v4340 = vld [vmem:[%s367 + $0xf78] sm:$0xff]
        %v4341 = vld [vmem:[%s367 + $0xf80] sm:$0xff]
        %v4342 = vld [vmem:[%s367 + $0xf88] sm:$0xff]
        %v4343 = vld [vmem:[%s367 + $0xf90] sm:$0xff]
        %v4344 = vld [vmem:[%s367 + $0xf98] sm:$0xff]
        %v4345 = vld [vmem:[%s367 + $0xfa0] sm:$0xff]
        %v4346 = vld [vmem:[%s367 + $0xfa8] sm:$0xff]
        %v4347 = vld [vmem:[%s367 + $0xfb0] sm:$0xff]
        %v4348 = vld [vmem:[%s367 + $0xfb8] sm:$0xff]
        %v4349 = vld [vmem:[%s367 + $0xfc0] sm:$0xff]
        %v4350 = vld [vmem:[%s367 + $0xfc8] sm:$0xff]
        %v4351 = vld [vmem:[%s367 + $0xfd0] sm:$0xff]
        %v4352 = vld [vmem:[%s367 + $0xfd8] sm:$0xff]
        %v4353 = vld [vmem:[%s367 + $0xfe0] sm:$0xff]
        %v4354 = vld [vmem:[%s367 + $0xfe8] sm:$0xff]
        %v4355 = vld [vmem:[%s367 + $0xff0] sm:$0xff]
        %v4356 = vld [vmem:[%s367 + $0xff8] sm:$0xff]
        %v4357 = vrot.slane %v1658, 1
        %v4358 = vrot.slane %v1661, 1
        %v4359 = vrot.slane %v1664, 1
        %v4360 = vrot.slane %v1667, 1
        %v4493 = vunpack.c.l.b16 %v4229
        %v4494 = vunpack.c.h.b16 %v4229
        %v4495 = vunpack.c.l.b16 %v4230
        %v4496 = vunpack.c.h.b16 %v4230
        %v4497 = vunpack.c.l.b16 %v4231
        %v4498 = vunpack.c.h.b16 %v4231
        %v4499 = vunpack.c.l.b16 %v4232
        %v4500 = vunpack.c.h.b16 %v4232
        %v4501 = vunpack.c.l.b16 %v4233
        %v4502 = vunpack.c.h.b16 %v4233
        %v4503 = vunpack.c.l.b16 %v4234
        %v4504 = vunpack.c.h.b16 %v4234
        %v4505 = vunpack.c.l.b16 %v4235
        %v4506 = vunpack.c.h.b16 %v4235
        %v4507 = vunpack.c.l.b16 %v4236
        %v4508 = vunpack.c.h.b16 %v4236
        %v4509 = vunpack.c.l.b16 %v4237
        %v4510 = vunpack.c.h.b16 %v4237
        %v4511 = vunpack.c.l.b16 %v4238
        %v4512 = vunpack.c.h.b16 %v4238
        %v4513 = vunpack.c.l.b16 %v4239
        %v4514 = vunpack.c.h.b16 %v4239
        %v4515 = vunpack.c.l.b16 %v4240
        %v4516 = vunpack.c.h.b16 %v4240
        %v4517 = vunpack.c.l.b16 %v4241
        %v4518 = vunpack.c.h.b16 %v4241
        %v4519 = vunpack.c.l.b16 %v4242
        %v4520 = vunpack.c.h.b16 %v4242
        %v4521 = vunpack.c.l.b16 %v4243
        %v4522 = vunpack.c.h.b16 %v4243
        %v4523 = vunpack.c.l.b16 %v4244
        %v4524 = vunpack.c.h.b16 %v4244
        %v4525 = vunpack.c.l.b16 %v4245
        %v4526 = vunpack.c.h.b16 %v4245
        %v4527 = vunpack.c.l.b16 %v4246
        %v4528 = vunpack.c.h.b16 %v4246
        %v4529 = vunpack.c.l.b16 %v4247
        %v4530 = vunpack.c.h.b16 %v4247
        %v4531 = vunpack.c.l.b16 %v4248
        %v4532 = vunpack.c.h.b16 %v4248
        %v4533 = vunpack.c.l.b16 %v4249
        %v4534 = vunpack.c.h.b16 %v4249
        %v4535 = vunpack.c.l.b16 %v4250
        %v4536 = vunpack.c.h.b16 %v4250
        %v4537 = vunpack.c.l.b16 %v4251
        %v4538 = vunpack.c.h.b16 %v4251
        %v4539 = vunpack.c.l.b16 %v4252
        %v4540 = vunpack.c.h.b16 %v4252
        %v4541 = vunpack.c.l.b16 %v4253
        %v4542 = vunpack.c.h.b16 %v4253
        %v4543 = vunpack.c.l.b16 %v4254
        %v4544 = vunpack.c.h.b16 %v4254
        %v4545 = vunpack.c.l.b16 %v4255
        %v4546 = vunpack.c.h.b16 %v4255
        %v4547 = vunpack.c.l.b16 %v4256
        %v4548 = vunpack.c.h.b16 %v4256
        %v4549 = vunpack.c.l.b16 %v4257
        %v4550 = vunpack.c.h.b16 %v4257
        %v4551 = vunpack.c.l.b16 %v4258
        %v4552 = vunpack.c.h.b16 %v4258
        %v4553 = vunpack.c.l.b16 %v4259
        %v4554 = vunpack.c.h.b16 %v4259
        %v4555 = vunpack.c.l.b16 %v4260
        %v4556 = vunpack.c.h.b16 %v4260
        %v4557 = vunpack.c.l.b16 %v4261
        %v4558 = vunpack.c.h.b16 %v4261
        %v4559 = vunpack.c.l.b16 %v4262
        %v4560 = vunpack.c.h.b16 %v4262
        %v4561 = vunpack.c.l.b16 %v4263
        %v4562 = vunpack.c.h.b16 %v4263
        %v4563 = vunpack.c.l.b16 %v4264
        %v4564 = vunpack.c.h.b16 %v4264
        %v4565 = vunpack.c.l.b16 %v4265
        %v4566 = vunpack.c.h.b16 %v4265
        %v4567 = vunpack.c.l.b16 %v4266
        %v4568 = vunpack.c.h.b16 %v4266
        %v4569 = vunpack.c.l.b16 %v4267
        %v4570 = vunpack.c.h.b16 %v4267
        %v4571 = vunpack.c.l.b16 %v4268
        %v4572 = vunpack.c.h.b16 %v4268
        %v4573 = vunpack.c.l.b16 %v4269
        %v4574 = vunpack.c.h.b16 %v4269
        %v4575 = vunpack.c.l.b16 %v4270
        %v4576 = vunpack.c.h.b16 %v4270
        %v4577 = vunpack.c.l.b16 %v4271
        %v4578 = vunpack.c.h.b16 %v4271
        %v4579 = vunpack.c.l.b16 %v4272
        %v4580 = vunpack.c.h.b16 %v4272
        %v4581 = vunpack.c.l.b16 %v4273
        %v4582 = vunpack.c.h.b16 %v4273
        %v4583 = vunpack.c.l.b16 %v4274
        %v4584 = vunpack.c.h.b16 %v4274
        %v4585 = vunpack.c.l.b16 %v4275
        %v4586 = vunpack.c.h.b16 %v4275
        %v4587 = vunpack.c.l.b16 %v4276
        %v4588 = vunpack.c.h.b16 %v4276
        %v4589 = vunpack.c.l.b16 %v4277
        %v4590 = vunpack.c.h.b16 %v4277
        %v4591 = vunpack.c.l.b16 %v4278
        %v4592 = vunpack.c.h.b16 %v4278
        %v4593 = vunpack.c.l.b16 %v4279
        %v4594 = vunpack.c.h.b16 %v4279
        %v4595 = vunpack.c.l.b16 %v4280
        %v4596 = vunpack.c.h.b16 %v4280
        %v4597 = vunpack.c.l.b16 %v4281
        %v4598 = vunpack.c.h.b16 %v4281
        %v4599 = vunpack.c.l.b16 %v4282
        %v4600 = vunpack.c.h.b16 %v4282
        %v4601 = vunpack.c.l.b16 %v4283
        %v4602 = vunpack.c.h.b16 %v4283
        %v4603 = vunpack.c.l.b16 %v4284
        %v4604 = vunpack.c.h.b16 %v4284
        %v4605 = vunpack.c.l.b16 %v4285
        %v4606 = vunpack.c.h.b16 %v4285
        %v4607 = vunpack.c.l.b16 %v4286
        %v4608 = vunpack.c.h.b16 %v4286
        %v4609 = vunpack.c.l.b16 %v4287
        %v4610 = vunpack.c.h.b16 %v4287
        %v4611 = vunpack.c.l.b16 %v4288
        %v4612 = vunpack.c.h.b16 %v4288
        %v4613 = vunpack.c.l.b16 %v4289
        %v4614 = vunpack.c.h.b16 %v4289
        %v4615 = vunpack.c.l.b16 %v4290
        %v4616 = vunpack.c.h.b16 %v4290
        %v4617 = vunpack.c.l.b16 %v4291
        %v4618 = vunpack.c.h.b16 %v4291
        %v4619 = vunpack.c.l.b16 %v4292
        %v4620 = vunpack.c.h.b16 %v4292
        %v4621 = vunpack.c.l.b16 %v4293
        %v4622 = vunpack.c.h.b16 %v4293
        %v4623 = vunpack.c.l.b16 %v4294
        %v4624 = vunpack.c.h.b16 %v4294
        %v4625 = vunpack.c.l.b16 %v4295
        %v4626 = vunpack.c.h.b16 %v4295
        %v4627 = vunpack.c.l.b16 %v4296
        %v4628 = vunpack.c.h.b16 %v4296
        %v4629 = vunpack.c.l.b16 %v4297
        %v4630 = vunpack.c.h.b16 %v4297
        %v4631 = vunpack.c.l.b16 %v4298
        %v4632 = vunpack.c.h.b16 %v4298
        %v4633 = vunpack.c.l.b16 %v4299
        %v4634 = vunpack.c.h.b16 %v4299
        %v4635 = vunpack.c.l.b16 %v4300
        %v4636 = vunpack.c.h.b16 %v4300
        %v4637 = vunpack.c.l.b16 %v4301
        %v4638 = vunpack.c.h.b16 %v4301
        %v4639 = vunpack.c.l.b16 %v4302
        %v4640 = vunpack.c.h.b16 %v4302
        %v4641 = vunpack.c.l.b16 %v4303
        %v4642 = vunpack.c.h.b16 %v4303
        %v4643 = vunpack.c.l.b16 %v4304
        %v4644 = vunpack.c.h.b16 %v4304
        %v4645 = vunpack.c.l.b16 %v4305
        %v4646 = vunpack.c.h.b16 %v4305
        %v4647 = vunpack.c.l.b16 %v4306
        %v4648 = vunpack.c.h.b16 %v4306
        %v4649 = vunpack.c.l.b16 %v4307
        %v4650 = vunpack.c.h.b16 %v4307
        %v4651 = vunpack.c.l.b16 %v4308
        %v4652 = vunpack.c.h.b16 %v4308
        %v4653 = vunpack.c.l.b16 %v4309
        %v4654 = vunpack.c.h.b16 %v4309
        %v4655 = vunpack.c.l.b16 %v4310
        %v4656 = vunpack.c.h.b16 %v4310
        %v4657 = vunpack.c.l.b16 %v4311
        %v4658 = vunpack.c.h.b16 %v4311
        %v4659 = vunpack.c.l.b16 %v4312
        %v4660 = vunpack.c.h.b16 %v4312
        %v4661 = vunpack.c.l.b16 %v4313
        %v4662 = vunpack.c.h.b16 %v4313
        %v4663 = vunpack.c.l.b16 %v4314
        %v4664 = vunpack.c.h.b16 %v4314
        %v4665 = vunpack.c.l.b16 %v4315
        %v4666 = vunpack.c.h.b16 %v4315
        %v4667 = vunpack.c.l.b16 %v4316
        %v4668 = vunpack.c.h.b16 %v4316
        %v4669 = vunpack.c.l.b16 %v4317
        %v4670 = vunpack.c.h.b16 %v4317
        %v4671 = vunpack.c.l.b16 %v4318
        %v4672 = vunpack.c.h.b16 %v4318
        %v4673 = vunpack.c.l.b16 %v4319
        %v4674 = vunpack.c.h.b16 %v4319
        %v4675 = vunpack.c.l.b16 %v4320
        %v4676 = vunpack.c.h.b16 %v4320
        %v4677 = vunpack.c.l.b16 %v4321
        %v4678 = vunpack.c.h.b16 %v4321
        %v4679 = vunpack.c.l.b16 %v4322
        %v4680 = vunpack.c.h.b16 %v4322
        %v4681 = vunpack.c.l.b16 %v4323
        %v4682 = vunpack.c.h.b16 %v4323
        %v4683 = vunpack.c.l.b16 %v4324
        %v4684 = vunpack.c.h.b16 %v4324
        %v4685 = vunpack.c.l.b16 %v4325
        %v4686 = vunpack.c.h.b16 %v4325
        %v4687 = vunpack.c.l.b16 %v4326
        %v4688 = vunpack.c.h.b16 %v4326
        %v4689 = vunpack.c.l.b16 %v4327
        %v4690 = vunpack.c.h.b16 %v4327
        %v4691 = vunpack.c.l.b16 %v4328
        %v4692 = vunpack.c.h.b16 %v4328
        %v4693 = vunpack.c.l.b16 %v4329
        %v4694 = vunpack.c.h.b16 %v4329
        %v4695 = vunpack.c.l.b16 %v4330
        %v4696 = vunpack.c.h.b16 %v4330
        %v4697 = vunpack.c.l.b16 %v4331
        %v4698 = vunpack.c.h.b16 %v4331
        %v4699 = vunpack.c.l.b16 %v4332
        %v4700 = vunpack.c.h.b16 %v4332
        %v4701 = vunpack.c.l.b16 %v4333
        %v4702 = vunpack.c.h.b16 %v4333
        %v4703 = vunpack.c.l.b16 %v4334
        %v4704 = vunpack.c.h.b16 %v4334
        %v4705 = vunpack.c.l.b16 %v4335
        %v4706 = vunpack.c.h.b16 %v4335
        %v4707 = vunpack.c.l.b16 %v4336
        %v4708 = vunpack.c.h.b16 %v4336
        %v4709 = vunpack.c.l.b16 %v4337
        %v4710 = vunpack.c.h.b16 %v4337
        %v4711 = vunpack.c.l.b16 %v4338
        %v4712 = vunpack.c.h.b16 %v4338
        %v4713 = vunpack.c.l.b16 %v4339
        %v4714 = vunpack.c.h.b16 %v4339
        %v4715 = vunpack.c.l.b16 %v4340
        %v4716 = vunpack.c.h.b16 %v4340
        %v4717 = vunpack.c.l.b16 %v4341
        %v4718 = vunpack.c.h.b16 %v4341
        %v4719 = vunpack.c.l.b16 %v4342
        %v4720 = vunpack.c.h.b16 %v4342
        %v4721 = vunpack.c.l.b16 %v4343
        %v4722 = vunpack.c.h.b16 %v4343
        %v4723 = vunpack.c.l.b16 %v4344
        %v4724 = vunpack.c.h.b16 %v4344
        %v4725 = vunpack.c.l.b16 %v4345
        %v4726 = vunpack.c.h.b16 %v4345
        %v4727 = vunpack.c.l.b16 %v4346
        %v4728 = vunpack.c.h.b16 %v4346
        %v4729 = vunpack.c.l.b16 %v4347
        %v4730 = vunpack.c.h.b16 %v4347
        %v4731 = vunpack.c.l.b16 %v4348
        %v4732 = vunpack.c.h.b16 %v4348
        %v4733 = vunpack.c.l.b16 %v4349
        %v4734 = vunpack.c.h.b16 %v4349
        %v4735 = vunpack.c.l.b16 %v4350
        %v4736 = vunpack.c.h.b16 %v4350
        %v4737 = vunpack.c.l.b16 %v4351
        %v4738 = vunpack.c.h.b16 %v4351
        %v4739 = vunpack.c.l.b16 %v4352
        %v4740 = vunpack.c.h.b16 %v4352
        %v4741 = vunpack.c.l.b16 %v4353
        %v4742 = vunpack.c.h.b16 %v4353
        %v4743 = vunpack.c.l.b16 %v4354
        %v4744 = vunpack.c.h.b16 %v4354
        %v4745 = vunpack.c.l.b16 %v4355
        %v4746 = vunpack.c.h.b16 %v4355
        %v4747 = vunpack.c.l.b16 %v4356
        %v4748 = vunpack.c.h.b16 %v4356
        %v4749 = vpack.c.b16 %v4497, %v4493
        %v4750 = vpack.c.b16 %v4498, %v4494
        %v4751 = vpack.c.b16 %v4499, %v4495
        %v4752 = vpack.c.b16 %v4500, %v4496
        %v4753 = vpack.c.b16 %v4505, %v4501
        %v4754 = vpack.c.b16 %v4506, %v4502
        %v4755 = vpack.c.b16 %v4507, %v4503
        %v4756 = vpack.c.b16 %v4508, %v4504
        %v4757 = vpack.c.b16 %v4513, %v4509
        %v4758 = vpack.c.b16 %v4514, %v4510
        %v4759 = vpack.c.b16 %v4515, %v4511
        %v4760 = vpack.c.b16 %v4516, %v4512
        %v4761 = vpack.c.b16 %v4521, %v4517
        %v4762 = vpack.c.b16 %v4522, %v4518
        %v4763 = vpack.c.b16 %v4523, %v4519
        %v4764 = vpack.c.b16 %v4524, %v4520
        %v4765 = vpack.c.b16 %v4529, %v4525
        %v4766 = vpack.c.b16 %v4530, %v4526
        %v4767 = vpack.c.b16 %v4531, %v4527
        %v4768 = vpack.c.b16 %v4532, %v4528
        %v4769 = vpack.c.b16 %v4537, %v4533
        %v4770 = vpack.c.b16 %v4538, %v4534
        %v4771 = vpack.c.b16 %v4539, %v4535
        %v4772 = vpack.c.b16 %v4540, %v4536
        %v4773 = vpack.c.b16 %v4545, %v4541
        %v4774 = vpack.c.b16 %v4546, %v4542
        %v4775 = vpack.c.b16 %v4547, %v4543
        %v4776 = vpack.c.b16 %v4548, %v4544
        %v4777 = vpack.c.b16 %v4553, %v4549
        %v4778 = vpack.c.b16 %v4554, %v4550
        %v4779 = vpack.c.b16 %v4555, %v4551
        %v4780 = vpack.c.b16 %v4556, %v4552
        %v4781 = vpack.c.b16 %v4561, %v4557
        %v4782 = vpack.c.b16 %v4562, %v4558
        %v4783 = vpack.c.b16 %v4563, %v4559
        %v4784 = vpack.c.b16 %v4564, %v4560
        %v4785 = vpack.c.b16 %v4569, %v4565
        %v4786 = vpack.c.b16 %v4570, %v4566
        %v4787 = vpack.c.b16 %v4571, %v4567
        %v4788 = vpack.c.b16 %v4572, %v4568
        %v4789 = vpack.c.b16 %v4577, %v4573
        %v4790 = vpack.c.b16 %v4578, %v4574
        %v4791 = vpack.c.b16 %v4579, %v4575
        %v4792 = vpack.c.b16 %v4580, %v4576
        %v4793 = vpack.c.b16 %v4585, %v4581
        %v4794 = vpack.c.b16 %v4586, %v4582
        %v4795 = vpack.c.b16 %v4587, %v4583
        %v4796 = vpack.c.b16 %v4588, %v4584
        %v4797 = vpack.c.b16 %v4593, %v4589
        %v4798 = vpack.c.b16 %v4594, %v4590
        %v4799 = vpack.c.b16 %v4595, %v4591
        %v4800 = vpack.c.b16 %v4596, %v4592
        %v4801 = vpack.c.b16 %v4601, %v4597
        %v4802 = vpack.c.b16 %v4602, %v4598
        %v4803 = vpack.c.b16 %v4603, %v4599
        %v4804 = vpack.c.b16 %v4604, %v4600
        %v4805 = vpack.c.b16 %v4609, %v4605
        %v4806 = vpack.c.b16 %v4610, %v4606
        %v4807 = vpack.c.b16 %v4611, %v4607
        %v4808 = vpack.c.b16 %v4612, %v4608
        %v4809 = vpack.c.b16 %v4617, %v4613
        %v4810 = vpack.c.b16 %v4618, %v4614
        %v4811 = vpack.c.b16 %v4619, %v4615
        %v4812 = vpack.c.b16 %v4620, %v4616
        %v4813 = vpack.c.b16 %v4625, %v4621
        %v4814 = vpack.c.b16 %v4626, %v4622
        %v4815 = vpack.c.b16 %v4627, %v4623
        %v4816 = vpack.c.b16 %v4628, %v4624
        %v4817 = vpack.c.b16 %v4633, %v4629
        %v4818 = vpack.c.b16 %v4634, %v4630
        %v4819 = vpack.c.b16 %v4635, %v4631
        %v4820 = vpack.c.b16 %v4636, %v4632
        %v4821 = vpack.c.b16 %v4641, %v4637
        %v4822 = vpack.c.b16 %v4642, %v4638
        %v4823 = vpack.c.b16 %v4643, %v4639
        %v4824 = vpack.c.b16 %v4644, %v4640
        %v4825 = vpack.c.b16 %v4649, %v4645
        %v4826 = vpack.c.b16 %v4650, %v4646
        %v4827 = vpack.c.b16 %v4651, %v4647
        %v4828 = vpack.c.b16 %v4652, %v4648
        %v4829 = vpack.c.b16 %v4657, %v4653
        %v4830 = vpack.c.b16 %v4658, %v4654
        %v4831 = vpack.c.b16 %v4659, %v4655
        %v4832 = vpack.c.b16 %v4660, %v4656
        %v4833 = vpack.c.b16 %v4665, %v4661
        %v4834 = vpack.c.b16 %v4666, %v4662
        %v4835 = vpack.c.b16 %v4667, %v4663
        %v4836 = vpack.c.b16 %v4668, %v4664
        %v4837 = vpack.c.b16 %v4673, %v4669
        %v4838 = vpack.c.b16 %v4674, %v4670
        %v4839 = vpack.c.b16 %v4675, %v4671
        %v4840 = vpack.c.b16 %v4676, %v4672
        %v4841 = vpack.c.b16 %v4681, %v4677
        %v4842 = vpack.c.b16 %v4682, %v4678
        %v4843 = vpack.c.b16 %v4683, %v4679
        %v4844 = vpack.c.b16 %v4684, %v4680
        %v4845 = vpack.c.b16 %v4689, %v4685
        %v4846 = vpack.c.b16 %v4690, %v4686
        %v4847 = vpack.c.b16 %v4691, %v4687
        %v4848 = vpack.c.b16 %v4692, %v4688
        %v4849 = vpack.c.b16 %v4697, %v4693
        %v4850 = vpack.c.b16 %v4698, %v4694
        %v4851 = vpack.c.b16 %v4699, %v4695
        %v4852 = vpack.c.b16 %v4700, %v4696
        %v4853 = vpack.c.b16 %v4705, %v4701
        %v4854 = vpack.c.b16 %v4706, %v4702
        %v4855 = vpack.c.b16 %v4707, %v4703
        %v4856 = vpack.c.b16 %v4708, %v4704
        %v4857 = vpack.c.b16 %v4713, %v4709
        %v4858 = vpack.c.b16 %v4714, %v4710
        %v4859 = vpack.c.b16 %v4715, %v4711
        %v4860 = vpack.c.b16 %v4716, %v4712
        %v4861 = vpack.c.b16 %v4721, %v4717
        %v4862 = vpack.c.b16 %v4722, %v4718
        %v4863 = vpack.c.b16 %v4723, %v4719
        %v4864 = vpack.c.b16 %v4724, %v4720
        %v4865 = vpack.c.b16 %v4729, %v4725
        %v4866 = vpack.c.b16 %v4730, %v4726
        %v4867 = vpack.c.b16 %v4731, %v4727
        %v4868 = vpack.c.b16 %v4732, %v4728
        %v4869 = vpack.c.b16 %v4737, %v4733
        %v4870 = vpack.c.b16 %v4738, %v4734
        %v4871 = vpack.c.b16 %v4739, %v4735
        %v4872 = vpack.c.b16 %v4740, %v4736
        %v4873 = vpack.c.b16 %v4745, %v4741
        %v4874 = vpack.c.b16 %v4746, %v4742
        %v4875 = vpack.c.b16 %v4747, %v4743
        %v4876 = vpack.c.b16 %v4748, %v4744
        %5005 = vmatprep.subr.bf16.mxu0 %v4750
        %5006 = vmatpush1.bf16.msra.mxu0 %v4749
        %5007 = vmatprep.subr.bf16.mxu0 %v4754
        %5008 = vmatpush1.bf16.msra.mxu0 %v4753
        %5009 = vmatprep.subr.bf16.mxu0 %v4758
        %5010 = vmatpush1.bf16.msra.mxu0 %v4757
        %5011 = vmatprep.subr.bf16.mxu0 %v4762
        %5012 = vmatpush1.bf16.msra.mxu0 %v4761
        %5013 = vmatprep.subr.bf16.mxu0 %v4766
        %5014 = vmatpush1.bf16.msra.mxu0 %v4765
        %5015 = vmatprep.subr.bf16.mxu0 %v4770
        %5016 = vmatpush1.bf16.msra.mxu0 %v4769
        %5017 = vmatprep.subr.bf16.mxu0 %v4774
        %5018 = vmatpush1.bf16.msra.mxu0 %v4773
        %5019 = vmatprep.subr.bf16.mxu0 %v4778
        %5020 = vmatpush1.bf16.msra.mxu0 %v4777
        %5021 = vmatprep.subr.bf16.mxu0 %v4782
        %5022 = vmatpush1.bf16.msra.mxu0 %v4781
        %5023 = vmatprep.subr.bf16.mxu0 %v4786
        %5024 = vmatpush1.bf16.msra.mxu0 %v4785
        %5025 = vmatprep.subr.bf16.mxu0 %v4790
        %5026 = vmatpush1.bf16.msra.mxu0 %v4789
        %5027 = vmatprep.subr.bf16.mxu0 %v4794
        %5028 = vmatpush1.bf16.msra.mxu0 %v4793
        %5029 = vmatprep.subr.bf16.mxu0 %v4798
        %5030 = vmatpush1.bf16.msra.mxu0 %v4797
        %5031 = vmatprep.subr.bf16.mxu0 %v4802
        %5032 = vmatpush1.bf16.msra.mxu0 %v4801
        %5033 = vmatprep.subr.bf16.mxu0 %v4806
        %5034 = vmatpush1.bf16.msra.mxu0 %v4805
        %5035 = vmatprep.subr.bf16.mxu0 %v4810
        %5036 = vmatpush1.bf16.msra.mxu0 %v4809
        %5037 = vmatprep.mubr.bf16.mxu0 %v4358
        %5038 = vmatmul.mubr.bf16.gmra.mrb[0].mxu0 %v4357
        %v5039 = vpop.f32.mrb[0].mxu0
        %v5040 = vadd.f32 0.0, %v5039
        %v5041 = vpop.f32.mrb[0].mxu0
        %v5042 = vadd.f32 0.0, %v5041
        %v5043 = vpop.f32.mrb[0].mxu0
        %v5044 = vpop.f32.mrb[0].mxu0
        %5045 = vdwg.mxu0
        %5046 = vmatprep.subr.bf16.mxu0 %v4814
        %5047 = vmatpush1.bf16.msra.mxu0 %v4813
        %5048 = vmatprep.subr.bf16.mxu0 %v4818
        %5049 = vmatpush1.bf16.msra.mxu0 %v4817
        %5050 = vmatprep.subr.bf16.mxu0 %v4822
        %5051 = vmatpush1.bf16.msra.mxu0 %v4821
        %5052 = vmatprep.subr.bf16.mxu0 %v4826
        %5053 = vmatpush1.bf16.msra.mxu0 %v4825
        %5054 = vmatprep.subr.bf16.mxu0 %v4830
        %5055 = vmatpush1.bf16.msra.mxu0 %v4829
        %5056 = vmatprep.subr.bf16.mxu0 %v4834
        %5057 = vmatpush1.bf16.msra.mxu0 %v4833
        %5058 = vmatprep.subr.bf16.mxu0 %v4838
        %5059 = vmatpush1.bf16.msra.mxu0 %v4837
        %5060 = vmatprep.subr.bf16.mxu0 %v4842
        %5061 = vmatpush1.bf16.msra.mxu0 %v4841
        %5062 = vmatprep.subr.bf16.mxu0 %v4846
        %5063 = vmatpush1.bf16.msra.mxu0 %v4845
        %5064 = vmatprep.subr.bf16.mxu0 %v4850
        %5065 = vmatpush1.bf16.msra.mxu0 %v4849
        %5066 = vmatprep.subr.bf16.mxu0 %v4854
        %5067 = vmatpush1.bf16.msra.mxu0 %v4853
        %5068 = vmatprep.subr.bf16.mxu0 %v4858
        %5069 = vmatpush1.bf16.msra.mxu0 %v4857
        %5070 = vmatprep.subr.bf16.mxu0 %v4862
        %5071 = vmatpush1.bf16.msra.mxu0 %v4861
        %5072 = vmatprep.subr.bf16.mxu0 %v4866
        %5073 = vmatpush1.bf16.msra.mxu0 %v4865
        %5074 = vmatprep.subr.bf16.mxu0 %v4870
        %5075 = vmatpush1.bf16.msra.mxu0 %v4869
        %5076 = vmatprep.subr.bf16.mxu0 %v4874
        %5077 = vmatpush1.bf16.msra.mxu0 %v4873
        %5078 = vmatprep.mubr.bf16.mxu0 %v4360
        %5079 = vmatmul.mubr.bf16.gmra.mrb[0].mxu0 %v4359
        %v5080 = vpop.f32.mrb[0].mxu0
        %v5081 = vadd.f32 %v5040, %v5080
        %v5082 = vpop.f32.mrb[0].mxu0
        %v5083 = vadd.f32 %v5042, %v5082
        %v5084 = vpop.f32.mrb[0].mxu0
        %v5085 = vpop.f32.mrb[0].mxu0
        %5086 = vdwg.mxu0
        %5087 = vmatprep.subr.bf16.mxu0 %v4752
        %5088 = vmatpush1.bf16.msra.mxu0 %v4751
        %5089 = vmatprep.subr.bf16.mxu0 %v4756
        %5090 = vmatpush1.bf16.msra.mxu0 %v4755
        %5091 = vmatprep.subr.bf16.mxu0 %v4760
        %5092 = vmatpush1.bf16.msra.mxu0 %v4759
        %5093 = vmatprep.subr.bf16.mxu0 %v4764
        %5094 = vmatpush1.bf16.msra.mxu0 %v4763
        %5095 = vmatprep.subr.bf16.mxu0 %v4768
        %5096 = vmatpush1.bf16.msra.mxu0 %v4767
        %5097 = vmatprep.subr.bf16.mxu0 %v4772
        %5098 = vmatpush1.bf16.msra.mxu0 %v4771
        %5099 = vmatprep.subr.bf16.mxu0 %v4776
        %5100 = vmatpush1.bf16.msra.mxu0 %v4775
        %5101 = vmatprep.subr.bf16.mxu0 %v4780
        %5102 = vmatpush1.bf16.msra.mxu0 %v4779
        %5103 = vmatprep.subr.bf16.mxu0 %v4784
        %5104 = vmatpush1.bf16.msra.mxu0 %v4783
        %5105 = vmatprep.subr.bf16.mxu0 %v4788
        %5106 = vmatpush1.bf16.msra.mxu0 %v4787
        %5107 = vmatprep.subr.bf16.mxu0 %v4792
        %5108 = vmatpush1.bf16.msra.mxu0 %v4791
        %5109 = vmatprep.subr.bf16.mxu0 %v4796
        %5110 = vmatpush1.bf16.msra.mxu0 %v4795
        %5111 = vmatprep.subr.bf16.mxu0 %v4800
        %5112 = vmatpush1.bf16.msra.mxu0 %v4799
        %5113 = vmatprep.subr.bf16.mxu0 %v4804
        %5114 = vmatpush1.bf16.msra.mxu0 %v4803
        %5115 = vmatprep.subr.bf16.mxu0 %v4808
        %5116 = vmatpush1.bf16.msra.mxu0 %v4807
        %5117 = vmatprep.subr.bf16.mxu0 %v4812
        %5118 = vmatpush1.bf16.msra.mxu0 %v4811
        %5119 = vmatprep.mubr.bf16.mxu0 %v4358
        %5120 = vmatmul.mubr.bf16.gmra.mrb[0].mxu0 %v4357
        %v5121 = vpop.f32.mrb[0].mxu0
        %v5122 = vadd.f32 0.0, %v5121
        %v5123 = vpop.f32.mrb[0].mxu0
        %v5124 = vadd.f32 0.0, %v5123
        %v5125 = vpop.f32.mrb[0].mxu0
        %v5126 = vpop.f32.mrb[0].mxu0
        %5127 = vdwg.mxu0
        %5128 = vmatprep.subr.bf16.mxu0 %v4816
        %5129 = vmatpush1.bf16.msra.mxu0 %v4815
        %5130 = vmatprep.subr.bf16.mxu0 %v4820
        %5131 = vmatpush1.bf16.msra.mxu0 %v4819
        %5132 = vmatprep.subr.bf16.mxu0 %v4824
        %5133 = vmatpush1.bf16.msra.mxu0 %v4823
        %5134 = vmatprep.subr.bf16.mxu0 %v4828
        %5135 = vmatpush1.bf16.msra.mxu0 %v4827
        %5136 = vmatprep.subr.bf16.mxu0 %v4832
        %5137 = vmatpush1.bf16.msra.mxu0 %v4831
        %5138 = vmatprep.subr.bf16.mxu0 %v4836
        %5139 = vmatpush1.bf16.msra.mxu0 %v4835
        %5140 = vmatprep.subr.bf16.mxu0 %v4840
        %5141 = vmatpush1.bf16.msra.mxu0 %v4839
        %5142 = vmatprep.subr.bf16.mxu0 %v4844
        %5143 = vmatpush1.bf16.msra.mxu0 %v4843
        %5144 = vmatprep.subr.bf16.mxu0 %v4848
        %5145 = vmatpush1.bf16.msra.mxu0 %v4847
        %5146 = vmatprep.subr.bf16.mxu0 %v4852
        %5147 = vmatpush1.bf16.msra.mxu0 %v4851
        %5148 = vmatprep.subr.bf16.mxu0 %v4856
        %5149 = vmatpush1.bf16.msra.mxu0 %v4855
        %5150 = vmatprep.subr.bf16.mxu0 %v4860
        %5151 = vmatpush1.bf16.msra.mxu0 %v4859
        %5152 = vmatprep.subr.bf16.mxu0 %v4864
        %5153 = vmatpush1.bf16.msra.mxu0 %v4863
        %5154 = vmatprep.subr.bf16.mxu0 %v4868
        %5155 = vmatpush1.bf16.msra.mxu0 %v4867
        %5156 = vmatprep.subr.bf16.mxu0 %v4872
        %5157 = vmatpush1.bf16.msra.mxu0 %v4871
        %5158 = vmatprep.subr.bf16.mxu0 %v4876
        %5159 = vmatpush1.bf16.msra.mxu0 %v4875
        %5160 = vmatprep.mubr.bf16.mxu0 %v4360
        %5161 = vmatmul.mubr.bf16.gmra.mrb[0].mxu0 %v4359
        %v5162 = vpop.f32.mrb[0].mxu0
        %v5163 = vadd.f32 %v5122, %v5162
        %v5164 = vpop.f32.mrb[0].mxu0
        %v5165 = vadd.f32 %v5124, %v5164
        %v5166 = vpop.f32.mrb[0].mxu0
        %v5167 = vpop.f32.mrb[0].mxu0
        %5168 = vdwg.mxu0
        %v5169 = vadd.f32 %v4225, %v5081
        %v5170 = vadd.f32 %v4226, %v5083
        %v5171 = vadd.f32 %v4227, %v5163
        %v5172 = vadd.f32 %v4228, %v5165
        %v5173 = vld [vmem:[%s367 + $0x1000] sm:$0xff]
        %v5174 = vld [vmem:[%s367 + $0x1008] sm:$0xff]
        %v5175 = vld [vmem:[%s367 + $0x1010] sm:$0xff]
        %v5176 = vld [vmem:[%s367 + $0x1018] sm:$0xff]
        %v5177 = vld [vmem:[%s367 + $0x1020] sm:$0xff]
        %v5178 = vld [vmem:[%s367 + $0x1028] sm:$0xff]
        %v5179 = vld [vmem:[%s367 + $0x1030] sm:$0xff]
        %v5180 = vld [vmem:[%s367 + $0x1038] sm:$0xff]
        %v5181 = vld [vmem:[%s367 + $0x1040] sm:$0xff]
        %v5182 = vld [vmem:[%s367 + $0x1048] sm:$0xff]
        %v5183 = vld [vmem:[%s367 + $0x1050] sm:$0xff]
        %v5184 = vld [vmem:[%s367 + $0x1058] sm:$0xff]
        %v5185 = vld [vmem:[%s367 + $0x1060] sm:$0xff]
        %v5186 = vld [vmem:[%s367 + $0x1068] sm:$0xff]
        %v5187 = vld [vmem:[%s367 + $0x1070] sm:$0xff]
        %v5188 = vld [vmem:[%s367 + $0x1078] sm:$0xff]
        %v5189 = vld [vmem:[%s367 + $0x1080] sm:$0xff]
        %v5190 = vld [vmem:[%s367 + $0x1088] sm:$0xff]
        %v5191 = vld [vmem:[%s367 + $0x1090] sm:$0xff]
        %v5192 = vld [vmem:[%s367 + $0x1098] sm:$0xff]
        %v5193 = vld [vmem:[%s367 + $0x10a0] sm:$0xff]
        %v5194 = vld [vmem:[%s367 + $0x10a8] sm:$0xff]
        %v5195 = vld [vmem:[%s367 + $0x10b0] sm:$0xff]
        %v5196 = vld [vmem:[%s367 + $0x10b8] sm:$0xff]
        %v5197 = vld [vmem:[%s367 + $0x10c0] sm:$0xff]
        %v5198 = vld [vmem:[%s367 + $0x10c8] sm:$0xff]
        %v5199 = vld [vmem:[%s367 + $0x10d0] sm:$0xff]
        %v5200 = vld [vmem:[%s367 + $0x10d8] sm:$0xff]
        %v5201 = vld [vmem:[%s367 + $0x10e0] sm:$0xff]
        %v5202 = vld [vmem:[%s367 + $0x10e8] sm:$0xff]
        %v5203 = vld [vmem:[%s367 + $0x10f0] sm:$0xff]
        %v5204 = vld [vmem:[%s367 + $0x10f8] sm:$0xff]
        %v5205 = vld [vmem:[%s367 + $0x1100] sm:$0xff]
        %v5206 = vld [vmem:[%s367 + $0x1108] sm:$0xff]
        %v5207 = vld [vmem:[%s367 + $0x1110] sm:$0xff]
        %v5208 = vld [vmem:[%s367 + $0x1118] sm:$0xff]
        %v5209 = vld [vmem:[%s367 + $0x1120] sm:$0xff]
        %v5210 = vld [vmem:[%s367 + $0x1128] sm:$0xff]
        %v5211 = vld [vmem:[%s367 + $0x1130] sm:$0xff]
        %v5212 = vld [vmem:[%s367 + $0x1138] sm:$0xff]
        %v5213 = vld [vmem:[%s367 + $0x1140] sm:$0xff]
        %v5214 = vld [vmem:[%s367 + $0x1148] sm:$0xff]
        %v5215 = vld [vmem:[%s367 + $0x1150] sm:$0xff]
        %v5216 = vld [vmem:[%s367 + $0x1158] sm:$0xff]
        %v5217 = vld [vmem:[%s367 + $0x1160] sm:$0xff]
        %v5218 = vld [vmem:[%s367 + $0x1168] sm:$0xff]
        %v5219 = vld [vmem:[%s367 + $0x1170] sm:$0xff]
        %v5220 = vld [vmem:[%s367 + $0x1178] sm:$0xff]
        %v5221 = vld [vmem:[%s367 + $0x1180] sm:$0xff]
        %v5222 = vld [vmem:[%s367 + $0x1188] sm:$0xff]
        %v5223 = vld [vmem:[%s367 + $0x1190] sm:$0xff]
        %v5224 = vld [vmem:[%s367 + $0x1198] sm:$0xff]
        %v5225 = vld [vmem:[%s367 + $0x11a0] sm:$0xff]
        %v5226 = vld [vmem:[%s367 + $0x11a8] sm:$0xff]
        %v5227 = vld [vmem:[%s367 + $0x11b0] sm:$0xff]
        %v5228 = vld [vmem:[%s367 + $0x11b8] sm:$0xff]
        %v5229 = vld [vmem:[%s367 + $0x11c0] sm:$0xff]
        %v5230 = vld [vmem:[%s367 + $0x11c8] sm:$0xff]
        %v5231 = vld [vmem:[%s367 + $0x11d0] sm:$0xff]
        %v5232 = vld [vmem:[%s367 + $0x11d8] sm:$0xff]
        %v5233 = vld [vmem:[%s367 + $0x11e0] sm:$0xff]
        %v5234 = vld [vmem:[%s367 + $0x11e8] sm:$0xff]
        %v5235 = vld [vmem:[%s367 + $0x11f0] sm:$0xff]
        %v5236 = vld [vmem:[%s367 + $0x11f8] sm:$0xff]
        %v5237 = vld [vmem:[%s367 + $0x1200] sm:$0xff]
        %v5238 = vld [vmem:[%s367 + $0x1208] sm:$0xff]
        %v5239 = vld [vmem:[%s367 + $0x1210] sm:$0xff]
        %v5240 = vld [vmem:[%s367 + $0x1218] sm:$0xff]
        %v5241 = vld [vmem:[%s367 + $0x1220] sm:$0xff]
        %v5242 = vld [vmem:[%s367 + $0x1228] sm:$0xff]
        %v5243 = vld [vmem:[%s367 + $0x1230] sm:$0xff]
        %v5244 = vld [vmem:[%s367 + $0x1238] sm:$0xff]
        %v5245 = vld [vmem:[%s367 + $0x1240] sm:$0xff]
        %v5246 = vld [vmem:[%s367 + $0x1248] sm:$0xff]
        %v5247 = vld [vmem:[%s367 + $0x1250] sm:$0xff]
        %v5248 = vld [vmem:[%s367 + $0x1258] sm:$0xff]
        %v5249 = vld [vmem:[%s367 + $0x1260] sm:$0xff]
        %v5250 = vld [vmem:[%s367 + $0x1268] sm:$0xff]
        %v5251 = vld [vmem:[%s367 + $0x1270] sm:$0xff]
        %v5252 = vld [vmem:[%s367 + $0x1278] sm:$0xff]
        %v5253 = vld [vmem:[%s367 + $0x1280] sm:$0xff]
        %v5254 = vld [vmem:[%s367 + $0x1288] sm:$0xff]
        %v5255 = vld [vmem:[%s367 + $0x1290] sm:$0xff]
        %v5256 = vld [vmem:[%s367 + $0x1298] sm:$0xff]
        %v5257 = vld [vmem:[%s367 + $0x12a0] sm:$0xff]
        %v5258 = vld [vmem:[%s367 + $0x12a8] sm:$0xff]
        %v5259 = vld [vmem:[%s367 + $0x12b0] sm:$0xff]
        %v5260 = vld [vmem:[%s367 + $0x12b8] sm:$0xff]
        %v5261 = vld [vmem:[%s367 + $0x12c0] sm:$0xff]
        %v5262 = vld [vmem:[%s367 + $0x12c8] sm:$0xff]
        %v5263 = vld [vmem:[%s367 + $0x12d0] sm:$0xff]
        %v5264 = vld [vmem:[%s367 + $0x12d8] sm:$0xff]
        %v5265 = vld [vmem:[%s367 + $0x12e0] sm:$0xff]
        %v5266 = vld [vmem:[%s367 + $0x12e8] sm:$0xff]
        %v5267 = vld [vmem:[%s367 + $0x12f0] sm:$0xff]
        %v5268 = vld [vmem:[%s367 + $0x12f8] sm:$0xff]
        %v5269 = vld [vmem:[%s367 + $0x1300] sm:$0xff]
        %v5270 = vld [vmem:[%s367 + $0x1308] sm:$0xff]
        %v5271 = vld [vmem:[%s367 + $0x1310] sm:$0xff]
        %v5272 = vld [vmem:[%s367 + $0x1318] sm:$0xff]
        %v5273 = vld [vmem:[%s367 + $0x1320] sm:$0xff]
        %v5274 = vld [vmem:[%s367 + $0x1328] sm:$0xff]
        %v5275 = vld [vmem:[%s367 + $0x1330] sm:$0xff]
        %v5276 = vld [vmem:[%s367 + $0x1338] sm:$0xff]
        %v5277 = vld [vmem:[%s367 + $0x1340] sm:$0xff]
        %v5278 = vld [vmem:[%s367 + $0x1348] sm:$0xff]
        %v5279 = vld [vmem:[%s367 + $0x1350] sm:$0xff]
        %v5280 = vld [vmem:[%s367 + $0x1358] sm:$0xff]
        %v5281 = vld [vmem:[%s367 + $0x1360] sm:$0xff]
        %v5282 = vld [vmem:[%s367 + $0x1368] sm:$0xff]
        %v5283 = vld [vmem:[%s367 + $0x1370] sm:$0xff]
        %v5284 = vld [vmem:[%s367 + $0x1378] sm:$0xff]
        %v5285 = vld [vmem:[%s367 + $0x1380] sm:$0xff]
        %v5286 = vld [vmem:[%s367 + $0x1388] sm:$0xff]
        %v5287 = vld [vmem:[%s367 + $0x1390] sm:$0xff]
        %v5288 = vld [vmem:[%s367 + $0x1398] sm:$0xff]
        %v5289 = vld [vmem:[%s367 + $0x13a0] sm:$0xff]
        %v5290 = vld [vmem:[%s367 + $0x13a8] sm:$0xff]
        %v5291 = vld [vmem:[%s367 + $0x13b0] sm:$0xff]
        %v5292 = vld [vmem:[%s367 + $0x13b8] sm:$0xff]
        %v5293 = vld [vmem:[%s367 + $0x13c0] sm:$0xff]
        %v5294 = vld [vmem:[%s367 + $0x13c8] sm:$0xff]
        %v5295 = vld [vmem:[%s367 + $0x13d0] sm:$0xff]
        %v5296 = vld [vmem:[%s367 + $0x13d8] sm:$0xff]
        %v5297 = vld [vmem:[%s367 + $0x13e0] sm:$0xff]
        %v5298 = vld [vmem:[%s367 + $0x13e8] sm:$0xff]
        %v5299 = vld [vmem:[%s367 + $0x13f0] sm:$0xff]
        %v5300 = vld [vmem:[%s367 + $0x13f8] sm:$0xff]
        %v5301 = vrot.slane %v1397, 2
        %v5302 = vrot.slane %v1398, 2
        %v5303 = vrot.slane %v1399, 2
        %v5304 = vrot.slane %v1400, 2
        %v5437 = vunpack.c.l.b16 %v5173
        %v5438 = vunpack.c.h.b16 %v5173
        %v5439 = vunpack.c.l.b16 %v5174
        %v5440 = vunpack.c.h.b16 %v5174
        %v5441 = vunpack.c.l.b16 %v5175
        %v5442 = vunpack.c.h.b16 %v5175
        %v5443 = vunpack.c.l.b16 %v5176
        %v5444 = vunpack.c.h.b16 %v5176
        %v5445 = vunpack.c.l.b16 %v5177
        %v5446 = vunpack.c.h.b16 %v5177
        %v5447 = vunpack.c.l.b16 %v5178
        %v5448 = vunpack.c.h.b16 %v5178
        %v5449 = vunpack.c.l.b16 %v5179
        %v5450 = vunpack.c.h.b16 %v5179
        %v5451 = vunpack.c.l.b16 %v5180
        %v5452 = vunpack.c.h.b16 %v5180
        %v5453 = vunpack.c.l.b16 %v5181
        %v5454 = vunpack.c.h.b16 %v5181
        %v5455 = vunpack.c.l.b16 %v5182
        %v5456 = vunpack.c.h.b16 %v5182
        %v5457 = vunpack.c.l.b16 %v5183
        %v5458 = vunpack.c.h.b16 %v5183
        %v5459 = vunpack.c.l.b16 %v5184
        %v5460 = vunpack.c.h.b16 %v5184
        %v5461 = vunpack.c.l.b16 %v5185
        %v5462 = vunpack.c.h.b16 %v5185
        %v5463 = vunpack.c.l.b16 %v5186
        %v5464 = vunpack.c.h.b16 %v5186
        %v5465 = vunpack.c.l.b16 %v5187
        %v5466 = vunpack.c.h.b16 %v5187
        %v5467 = vunpack.c.l.b16 %v5188
        %v5468 = vunpack.c.h.b16 %v5188
        %v5469 = vunpack.c.l.b16 %v5189
        %v5470 = vunpack.c.h.b16 %v5189
        %v5471 = vunpack.c.l.b16 %v5190
        %v5472 = vunpack.c.h.b16 %v5190
        %v5473 = vunpack.c.l.b16 %v5191
        %v5474 = vunpack.c.h.b16 %v5191
        %v5475 = vunpack.c.l.b16 %v5192
        %v5476 = vunpack.c.h.b16 %v5192
        %v5477 = vunpack.c.l.b16 %v5193
        %v5478 = vunpack.c.h.b16 %v5193
        %v5479 = vunpack.c.l.b16 %v5194
        %v5480 = vunpack.c.h.b16 %v5194
        %v5481 = vunpack.c.l.b16 %v5195
        %v5482 = vunpack.c.h.b16 %v5195
        %v5483 = vunpack.c.l.b16 %v5196
        %v5484 = vunpack.c.h.b16 %v5196
        %v5485 = vunpack.c.l.b16 %v5197
        %v5486 = vunpack.c.h.b16 %v5197
        %v5487 = vunpack.c.l.b16 %v5198
        %v5488 = vunpack.c.h.b16 %v5198
        %v5489 = vunpack.c.l.b16 %v5199
        %v5490 = vunpack.c.h.b16 %v5199
        %v5491 = vunpack.c.l.b16 %v5200
        %v5492 = vunpack.c.h.b16 %v5200
        %v5493 = vunpack.c.l.b16 %v5201
        %v5494 = vunpack.c.h.b16 %v5201
        %v5495 = vunpack.c.l.b16 %v5202
        %v5496 = vunpack.c.h.b16 %v5202
        %v5497 = vunpack.c.l.b16 %v5203
        %v5498 = vunpack.c.h.b16 %v5203
        %v5499 = vunpack.c.l.b16 %v5204
        %v5500 = vunpack.c.h.b16 %v5204
        %v5501 = vunpack.c.l.b16 %v5205
        %v5502 = vunpack.c.h.b16 %v5205
        %v5503 = vunpack.c.l.b16 %v5206
        %v5504 = vunpack.c.h.b16 %v5206
        %v5505 = vunpack.c.l.b16 %v5207
        %v5506 = vunpack.c.h.b16 %v5207
        %v5507 = vunpack.c.l.b16 %v5208
        %v5508 = vunpack.c.h.b16 %v5208
        %v5509 = vunpack.c.l.b16 %v5209
        %v5510 = vunpack.c.h.b16 %v5209
        %v5511 = vunpack.c.l.b16 %v5210
        %v5512 = vunpack.c.h.b16 %v5210
        %v5513 = vunpack.c.l.b16 %v5211
        %v5514 = vunpack.c.h.b16 %v5211
        %v5515 = vunpack.c.l.b16 %v5212
        %v5516 = vunpack.c.h.b16 %v5212
        %v5517 = vunpack.c.l.b16 %v5213
        %v5518 = vunpack.c.h.b16 %v5213
        %v5519 = vunpack.c.l.b16 %v5214
        %v5520 = vunpack.c.h.b16 %v5214
        %v5521 = vunpack.c.l.b16 %v5215
        %v5522 = vunpack.c.h.b16 %v5215
        %v5523 = vunpack.c.l.b16 %v5216
        %v5524 = vunpack.c.h.b16 %v5216
        %v5525 = vunpack.c.l.b16 %v5217
        %v5526 = vunpack.c.h.b16 %v5217
        %v5527 = vunpack.c.l.b16 %v5218
        %v5528 = vunpack.c.h.b16 %v5218
        %v5529 = vunpack.c.l.b16 %v5219
        %v5530 = vunpack.c.h.b16 %v5219
        %v5531 = vunpack.c.l.b16 %v5220
        %v5532 = vunpack.c.h.b16 %v5220
        %v5533 = vunpack.c.l.b16 %v5221
        %v5534 = vunpack.c.h.b16 %v5221
        %v5535 = vunpack.c.l.b16 %v5222
        %v5536 = vunpack.c.h.b16 %v5222
        %v5537 = vunpack.c.l.b16 %v5223
        %v5538 = vunpack.c.h.b16 %v5223
        %v5539 = vunpack.c.l.b16 %v5224
        %v5540 = vunpack.c.h.b16 %v5224
        %v5541 = vunpack.c.l.b16 %v5225
        %v5542 = vunpack.c.h.b16 %v5225
        %v5543 = vunpack.c.l.b16 %v5226
        %v5544 = vunpack.c.h.b16 %v5226
        %v5545 = vunpack.c.l.b16 %v5227
        %v5546 = vunpack.c.h.b16 %v5227
        %v5547 = vunpack.c.l.b16 %v5228
        %v5548 = vunpack.c.h.b16 %v5228
        %v5549 = vunpack.c.l.b16 %v5229
        %v5550 = vunpack.c.h.b16 %v5229
        %v5551 = vunpack.c.l.b16 %v5230
        %v5552 = vunpack.c.h.b16 %v5230
        %v5553 = vunpack.c.l.b16 %v5231
        %v5554 = vunpack.c.h.b16 %v5231
        %v5555 = vunpack.c.l.b16 %v5232
        %v5556 = vunpack.c.h.b16 %v5232
        %v5557 = vunpack.c.l.b16 %v5233
        %v5558 = vunpack.c.h.b16 %v5233
        %v5559 = vunpack.c.l.b16 %v5234
        %v5560 = vunpack.c.h.b16 %v5234
        %v5561 = vunpack.c.l.b16 %v5235
        %v5562 = vunpack.c.h.b16 %v5235
        %v5563 = vunpack.c.l.b16 %v5236
        %v5564 = vunpack.c.h.b16 %v5236
        %v5565 = vunpack.c.l.b16 %v5237
        %v5566 = vunpack.c.h.b16 %v5237
        %v5567 = vunpack.c.l.b16 %v5238
        %v5568 = vunpack.c.h.b16 %v5238
        %v5569 = vunpack.c.l.b16 %v5239
        %v5570 = vunpack.c.h.b16 %v5239
        %v5571 = vunpack.c.l.b16 %v5240
        %v5572 = vunpack.c.h.b16 %v5240
        %v5573 = vunpack.c.l.b16 %v5241
        %v5574 = vunpack.c.h.b16 %v5241
        %v5575 = vunpack.c.l.b16 %v5242
        %v5576 = vunpack.c.h.b16 %v5242
        %v5577 = vunpack.c.l.b16 %v5243
        %v5578 = vunpack.c.h.b16 %v5243
        %v5579 = vunpack.c.l.b16 %v5244
        %v5580 = vunpack.c.h.b16 %v5244
        %v5581 = vunpack.c.l.b16 %v5245
        %v5582 = vunpack.c.h.b16 %v5245
        %v5583 = vunpack.c.l.b16 %v5246
        %v5584 = vunpack.c.h.b16 %v5246
        %v5585 = vunpack.c.l.b16 %v5247
        %v5586 = vunpack.c.h.b16 %v5247
        %v5587 = vunpack.c.l.b16 %v5248
        %v5588 = vunpack.c.h.b16 %v5248
        %v5589 = vunpack.c.l.b16 %v5249
        %v5590 = vunpack.c.h.b16 %v5249
        %v5591 = vunpack.c.l.b16 %v5250
        %v5592 = vunpack.c.h.b16 %v5250
        %v5593 = vunpack.c.l.b16 %v5251
        %v5594 = vunpack.c.h.b16 %v5251
        %v5595 = vunpack.c.l.b16 %v5252
        %v5596 = vunpack.c.h.b16 %v5252
        %v5597 = vunpack.c.l.b16 %v5253
        %v5598 = vunpack.c.h.b16 %v5253
        %v5599 = vunpack.c.l.b16 %v5254
        %v5600 = vunpack.c.h.b16 %v5254
        %v5601 = vunpack.c.l.b16 %v5255
        %v5602 = vunpack.c.h.b16 %v5255
        %v5603 = vunpack.c.l.b16 %v5256
        %v5604 = vunpack.c.h.b16 %v5256
        %v5605 = vunpack.c.l.b16 %v5257
        %v5606 = vunpack.c.h.b16 %v5257
        %v5607 = vunpack.c.l.b16 %v5258
        %v5608 = vunpack.c.h.b16 %v5258
        %v5609 = vunpack.c.l.b16 %v5259
        %v5610 = vunpack.c.h.b16 %v5259
        %v5611 = vunpack.c.l.b16 %v5260
        %v5612 = vunpack.c.h.b16 %v5260
        %v5613 = vunpack.c.l.b16 %v5261
        %v5614 = vunpack.c.h.b16 %v5261
        %v5615 = vunpack.c.l.b16 %v5262
        %v5616 = vunpack.c.h.b16 %v5262
        %v5617 = vunpack.c.l.b16 %v5263
        %v5618 = vunpack.c.h.b16 %v5263
        %v5619 = vunpack.c.l.b16 %v5264
        %v5620 = vunpack.c.h.b16 %v5264
        %v5621 = vunpack.c.l.b16 %v5265
        %v5622 = vunpack.c.h.b16 %v5265
        %v5623 = vunpack.c.l.b16 %v5266
        %v5624 = vunpack.c.h.b16 %v5266
        %v5625 = vunpack.c.l.b16 %v5267
        %v5626 = vunpack.c.h.b16 %v5267
        %v5627 = vunpack.c.l.b16 %v5268
        %v5628 = vunpack.c.h.b16 %v5268
        %v5629 = vunpack.c.l.b16 %v5269
        %v5630 = vunpack.c.h.b16 %v5269
        %v5631 = vunpack.c.l.b16 %v5270
        %v5632 = vunpack.c.h.b16 %v5270
        %v5633 = vunpack.c.l.b16 %v5271
        %v5634 = vunpack.c.h.b16 %v5271
        %v5635 = vunpack.c.l.b16 %v5272
        %v5636 = vunpack.c.h.b16 %v5272
        %v5637 = vunpack.c.l.b16 %v5273
        %v5638 = vunpack.c.h.b16 %v5273
        %v5639 = vunpack.c.l.b16 %v5274
        %v5640 = vunpack.c.h.b16 %v5274
        %v5641 = vunpack.c.l.b16 %v5275
        %v5642 = vunpack.c.h.b16 %v5275
        %v5643 = vunpack.c.l.b16 %v5276
        %v5644 = vunpack.c.h.b16 %v5276
        %v5645 = vunpack.c.l.b16 %v5277
        %v5646 = vunpack.c.h.b16 %v5277
        %v5647 = vunpack.c.l.b16 %v5278
        %v5648 = vunpack.c.h.b16 %v5278
        %v5649 = vunpack.c.l.b16 %v5279
        %v5650 = vunpack.c.h.b16 %v5279
        %v5651 = vunpack.c.l.b16 %v5280
        %v5652 = vunpack.c.h.b16 %v5280
        %v5653 = vunpack.c.l.b16 %v5281
        %v5654 = vunpack.c.h.b16 %v5281
        %v5655 = vunpack.c.l.b16 %v5282
        %v5656 = vunpack.c.h.b16 %v5282
        %v5657 = vunpack.c.l.b16 %v5283
        %v5658 = vunpack.c.h.b16 %v5283
        %v5659 = vunpack.c.l.b16 %v5284
        %v5660 = vunpack.c.h.b16 %v5284
        %v5661 = vunpack.c.l.b16 %v5285
        %v5662 = vunpack.c.h.b16 %v5285
        %v5663 = vunpack.c.l.b16 %v5286
        %v5664 = vunpack.c.h.b16 %v5286
        %v5665 = vunpack.c.l.b16 %v5287
        %v5666 = vunpack.c.h.b16 %v5287
        %v5667 = vunpack.c.l.b16 %v5288
        %v5668 = vunpack.c.h.b16 %v5288
        %v5669 = vunpack.c.l.b16 %v5289
        %v5670 = vunpack.c.h.b16 %v5289
        %v5671 = vunpack.c.l.b16 %v5290
        %v5672 = vunpack.c.h.b16 %v5290
        %v5673 = vunpack.c.l.b16 %v5291
        %v5674 = vunpack.c.h.b16 %v5291
        %v5675 = vunpack.c.l.b16 %v5292
        %v5676 = vunpack.c.h.b16 %v5292
        %v5677 = vunpack.c.l.b16 %v5293
        %v5678 = vunpack.c.h.b16 %v5293
        %v5679 = vunpack.c.l.b16 %v5294
        %v5680 = vunpack.c.h.b16 %v5294
        %v5681 = vunpack.c.l.b16 %v5295
        %v5682 = vunpack.c.h.b16 %v5295
        %v5683 = vunpack.c.l.b16 %v5296
        %v5684 = vunpack.c.h.b16 %v5296
        %v5685 = vunpack.c.l.b16 %v5297
        %v5686 = vunpack.c.h.b16 %v5297
        %v5687 = vunpack.c.l.b16 %v5298
        %v5688 = vunpack.c.h.b16 %v5298
        %v5689 = vunpack.c.l.b16 %v5299
        %v5690 = vunpack.c.h.b16 %v5299
        %v5691 = vunpack.c.l.b16 %v5300
        %v5692 = vunpack.c.h.b16 %v5300
        %v5693 = vpack.c.b16 %v5441, %v5437
        %v5694 = vpack.c.b16 %v5442, %v5438
        %v5695 = vpack.c.b16 %v5443, %v5439
        %v5696 = vpack.c.b16 %v5444, %v5440
        %v5697 = vpack.c.b16 %v5449, %v5445
        %v5698 = vpack.c.b16 %v5450, %v5446
        %v5699 = vpack.c.b16 %v5451, %v5447
        %v5700 = vpack.c.b16 %v5452, %v5448
        %v5701 = vpack.c.b16 %v5457, %v5453
        %v5702 = vpack.c.b16 %v5458, %v5454
        %v5703 = vpack.c.b16 %v5459, %v5455
        %v5704 = vpack.c.b16 %v5460, %v5456
        %v5705 = vpack.c.b16 %v5465, %v5461
        %v5706 = vpack.c.b16 %v5466, %v5462
        %v5707 = vpack.c.b16 %v5467, %v5463
        %v5708 = vpack.c.b16 %v5468, %v5464
        %v5709 = vpack.c.b16 %v5473, %v5469
        %v5710 = vpack.c.b16 %v5474, %v5470
        %v5711 = vpack.c.b16 %v5475, %v5471
        %v5712 = vpack.c.b16 %v5476, %v5472
        %v5713 = vpack.c.b16 %v5481, %v5477
        %v5714 = vpack.c.b16 %v5482, %v5478
        %v5715 = vpack.c.b16 %v5483, %v5479
        %v5716 = vpack.c.b16 %v5484, %v5480
        %v5717 = vpack.c.b16 %v5489, %v5485
        %v5718 = vpack.c.b16 %v5490, %v5486
        %v5719 = vpack.c.b16 %v5491, %v5487
        %v5720 = vpack.c.b16 %v5492, %v5488
        %v5721 = vpack.c.b16 %v5497, %v5493
        %v5722 = vpack.c.b16 %v5498, %v5494
        %v5723 = vpack.c.b16 %v5499, %v5495
        %v5724 = vpack.c.b16 %v5500, %v5496
        %v5725 = vpack.c.b16 %v5505, %v5501
        %v5726 = vpack.c.b16 %v5506, %v5502
        %v5727 = vpack.c.b16 %v5507, %v5503
        %v5728 = vpack.c.b16 %v5508, %v5504
        %v5729 = vpack.c.b16 %v5513, %v5509
        %v5730 = vpack.c.b16 %v5514, %v5510
        %v5731 = vpack.c.b16 %v5515, %v5511
        %v5732 = vpack.c.b16 %v5516, %v5512
        %v5733 = vpack.c.b16 %v5521, %v5517
        %v5734 = vpack.c.b16 %v5522, %v5518
        %v5735 = vpack.c.b16 %v5523, %v5519
        %v5736 = vpack.c.b16 %v5524, %v5520
        %v5737 = vpack.c.b16 %v5529, %v5525
        %v5738 = vpack.c.b16 %v5530, %v5526
        %v5739 = vpack.c.b16 %v5531, %v5527
        %v5740 = vpack.c.b16 %v5532, %v5528
        %v5741 = vpack.c.b16 %v5537, %v5533
        %v5742 = vpack.c.b16 %v5538, %v5534
        %v5743 = vpack.c.b16 %v5539, %v5535
        %v5744 = vpack.c.b16 %v5540, %v5536
        %v5745 = vpack.c.b16 %v5545, %v5541
        %v5746 = vpack.c.b16 %v5546, %v5542
        %v5747 = vpack.c.b16 %v5547, %v5543
        %v5748 = vpack.c.b16 %v5548, %v5544
        %v5749 = vpack.c.b16 %v5553, %v5549
        %v5750 = vpack.c.b16 %v5554, %v5550
        %v5751 = vpack.c.b16 %v5555, %v5551
        %v5752 = vpack.c.b16 %v5556, %v5552
        %v5753 = vpack.c.b16 %v5561, %v5557
        %v5754 = vpack.c.b16 %v5562, %v5558
        %v5755 = vpack.c.b16 %v5563, %v5559
        %v5756 = vpack.c.b16 %v5564, %v5560
        %v5757 = vpack.c.b16 %v5569, %v5565
        %v5758 = vpack.c.b16 %v5570, %v5566
        %v5759 = vpack.c.b16 %v5571, %v5567
        %v5760 = vpack.c.b16 %v5572, %v5568
        %v5761 = vpack.c.b16 %v5577, %v5573
        %v5762 = vpack.c.b16 %v5578, %v5574
        %v5763 = vpack.c.b16 %v5579, %v5575
        %v5764 = vpack.c.b16 %v5580, %v5576
        %v5765 = vpack.c.b16 %v5585, %v5581
        %v5766 = vpack.c.b16 %v5586, %v5582
        %v5767 = vpack.c.b16 %v5587, %v5583
        %v5768 = vpack.c.b16 %v5588, %v5584
        %v5769 = vpack.c.b16 %v5593, %v5589
        %v5770 = vpack.c.b16 %v5594, %v5590
        %v5771 = vpack.c.b16 %v5595, %v5591
        %v5772 = vpack.c.b16 %v5596, %v5592
        %v5773 = vpack.c.b16 %v5601, %v5597
        %v5774 = vpack.c.b16 %v5602, %v5598
        %v5775 = vpack.c.b16 %v5603, %v5599
        %v5776 = vpack.c.b16 %v5604, %v5600
        %v5777 = vpack.c.b16 %v5609, %v5605
        %v5778 = vpack.c.b16 %v5610, %v5606
        %v5779 = vpack.c.b16 %v5611, %v5607
        %v5780 = vpack.c.b16 %v5612, %v5608
        %v5781 = vpack.c.b16 %v5617, %v5613
        %v5782 = vpack.c.b16 %v5618, %v5614
        %v5783 = vpack.c.b16 %v5619, %v5615
        %v5784 = vpack.c.b16 %v5620, %v5616
        %v5785 = vpack.c.b16 %v5625, %v5621
        %v5786 = vpack.c.b16 %v5626, %v5622
        %v5787 = vpack.c.b16 %v5627, %v5623
        %v5788 = vpack.c.b16 %v5628, %v5624
        %v5789 = vpack.c.b16 %v5633, %v5629
        %v5790 = vpack.c.b16 %v5634, %v5630
        %v5791 = vpack.c.b16 %v5635, %v5631
        %v5792 = vpack.c.b16 %v5636, %v5632
        %v5793 = vpack.c.b16 %v5641, %v5637
        %v5794 = vpack.c.b16 %v5642, %v5638
        %v5795 = vpack.c.b16 %v5643, %v5639
        %v5796 = vpack.c.b16 %v5644, %v5640
        %v5797 = vpack.c.b16 %v5649, %v5645
        %v5798 = vpack.c.b16 %v5650, %v5646
        %v5799 = vpack.c.b16 %v5651, %v5647
        %v5800 = vpack.c.b16 %v5652, %v5648
        %v5801 = vpack.c.b16 %v5657, %v5653
        %v5802 = vpack.c.b16 %v5658, %v5654
        %v5803 = vpack.c.b16 %v5659, %v5655
        %v5804 = vpack.c.b16 %v5660, %v5656
        %v5805 = vpack.c.b16 %v5665, %v5661
        %v5806 = vpack.c.b16 %v5666, %v5662
        %v5807 = vpack.c.b16 %v5667, %v5663
        %v5808 = vpack.c.b16 %v5668, %v5664
        %v5809 = vpack.c.b16 %v5673, %v5669
        %v5810 = vpack.c.b16 %v5674, %v5670
        %v5811 = vpack.c.b16 %v5675, %v5671
        %v5812 = vpack.c.b16 %v5676, %v5672
        %v5813 = vpack.c.b16 %v5681, %v5677
        %v5814 = vpack.c.b16 %v5682, %v5678
        %v5815 = vpack.c.b16 %v5683, %v5679
        %v5816 = vpack.c.b16 %v5684, %v5680
        %v5817 = vpack.c.b16 %v5689, %v5685
        %v5818 = vpack.c.b16 %v5690, %v5686
        %v5819 = vpack.c.b16 %v5691, %v5687
        %v5820 = vpack.c.b16 %v5692, %v5688
        %5949 = vmatprep.subr.bf16.mxu0 %v5694
        %5950 = vmatpush1.bf16.msra.mxu0 %v5693
        %5951 = vmatprep.subr.bf16.mxu0 %v5698
        %5952 = vmatpush1.bf16.msra.mxu0 %v5697
        %5953 = vmatprep.subr.bf16.mxu0 %v5702
        %5954 = vmatpush1.bf16.msra.mxu0 %v5701
        %5955 = vmatprep.subr.bf16.mxu0 %v5706
        %5956 = vmatpush1.bf16.msra.mxu0 %v5705
        %5957 = vmatprep.subr.bf16.mxu0 %v5710
        %5958 = vmatpush1.bf16.msra.mxu0 %v5709
        %5959 = vmatprep.subr.bf16.mxu0 %v5714
        %5960 = vmatpush1.bf16.msra.mxu0 %v5713
        %5961 = vmatprep.subr.bf16.mxu0 %v5718
        %5962 = vmatpush1.bf16.msra.mxu0 %v5717
        %5963 = vmatprep.subr.bf16.mxu0 %v5722
        %5964 = vmatpush1.bf16.msra.mxu0 %v5721
        %5965 = vmatprep.subr.bf16.mxu0 %v5726
        %5966 = vmatpush1.bf16.msra.mxu0 %v5725
        %5967 = vmatprep.subr.bf16.mxu0 %v5730
        %5968 = vmatpush1.bf16.msra.mxu0 %v5729
        %5969 = vmatprep.subr.bf16.mxu0 %v5734
        %5970 = vmatpush1.bf16.msra.mxu0 %v5733
        %5971 = vmatprep.subr.bf16.mxu0 %v5738
        %5972 = vmatpush1.bf16.msra.mxu0 %v5737
        %5973 = vmatprep.subr.bf16.mxu0 %v5742
        %5974 = vmatpush1.bf16.msra.mxu0 %v5741
        %5975 = vmatprep.subr.bf16.mxu0 %v5746
        %5976 = vmatpush1.bf16.msra.mxu0 %v5745
        %5977 = vmatprep.subr.bf16.mxu0 %v5750
        %5978 = vmatpush1.bf16.msra.mxu0 %v5749
        %5979 = vmatprep.subr.bf16.mxu0 %v5754
        %5980 = vmatpush1.bf16.msra.mxu0 %v5753
        %5981 = vmatprep.mubr.bf16.mxu0 %v5302
        %5982 = vmatmul.mubr.bf16.gmra.mrb[0].mxu0 %v5301
        %v5983 = vpop.f32.mrb[0].mxu0
        %v5984 = vadd.f32 0.0, %v5983
        %v5985 = vpop.f32.mrb[0].mxu0
        %v5986 = vadd.f32 0.0, %v5985
        %v5987 = vpop.f32.mrb[0].mxu0
        %v5988 = vpop.f32.mrb[0].mxu0
        %5989 = vdwg.mxu0
        %5990 = vmatprep.subr.bf16.mxu0 %v5758
        %5991 = vmatpush1.bf16.msra.mxu0 %v5757
        %5992 = vmatprep.subr.bf16.mxu0 %v5762
        %5993 = vmatpush1.bf16.msra.mxu0 %v5761
        %5994 = vmatprep.subr.bf16.mxu0 %v5766
        %5995 = vmatpush1.bf16.msra.mxu0 %v5765
        %5996 = vmatprep.subr.bf16.mxu0 %v5770
        %5997 = vmatpush1.bf16.msra.mxu0 %v5769
        %5998 = vmatprep.subr.bf16.mxu0 %v5774
        %5999 = vmatpush1.bf16.msra.mxu0 %v5773
        %6000 = vmatprep.subr.bf16.mxu0 %v5778
        %6001 = vmatpush1.bf16.msra.mxu0 %v5777
        %6002 = vmatprep.subr.bf16.mxu0 %v5782
        %6003 = vmatpush1.bf16.msra.mxu0 %v5781
        %6004 = vmatprep.subr.bf16.mxu0 %v5786
        %6005 = vmatpush1.bf16.msra.mxu0 %v5785
        %6006 = vmatprep.subr.bf16.mxu0 %v5790
        %6007 = vmatpush1.bf16.msra.mxu0 %v5789
        %6008 = vmatprep.subr.bf16.mxu0 %v5794
        %6009 = vmatpush1.bf16.msra.mxu0 %v5793
        %6010 = vmatprep.subr.bf16.mxu0 %v5798
        %6011 = vmatpush1.bf16.msra.mxu0 %v5797
        %6012 = vmatprep.subr.bf16.mxu0 %v5802
        %6013 = vmatpush1.bf16.msra.mxu0 %v5801
        %6014 = vmatprep.subr.bf16.mxu0 %v5806
        %6015 = vmatpush1.bf16.msra.mxu0 %v5805
        %6016 = vmatprep.subr.bf16.mxu0 %v5810
        %6017 = vmatpush1.bf16.msra.mxu0 %v5809
        %6018 = vmatprep.subr.bf16.mxu0 %v5814
        %6019 = vmatpush1.bf16.msra.mxu0 %v5813
        %6020 = vmatprep.subr.bf16.mxu0 %v5818
        %6021 = vmatpush1.bf16.msra.mxu0 %v5817
        %6022 = vmatprep.mubr.bf16.mxu0 %v5304
        %6023 = vmatmul.mubr.bf16.gmra.mrb[0].mxu0 %v5303
        %v6024 = vpop.f32.mrb[0].mxu0
        %v6025 = vadd.f32 %v5984, %v6024
        %v6026 = vpop.f32.mrb[0].mxu0
        %v6027 = vadd.f32 %v5986, %v6026
        %v6028 = vpop.f32.mrb[0].mxu0
        %v6029 = vpop.f32.mrb[0].mxu0
        %6030 = vdwg.mxu0
        %6031 = vmatprep.subr.bf16.mxu0 %v5696
        %6032 = vmatpush1.bf16.msra.mxu0 %v5695
        %6033 = vmatprep.subr.bf16.mxu0 %v5700
        %6034 = vmatpush1.bf16.msra.mxu0 %v5699
        %6035 = vmatprep.subr.bf16.mxu0 %v5704
        %6036 = vmatpush1.bf16.msra.mxu0 %v5703
        %6037 = vmatprep.subr.bf16.mxu0 %v5708
        %6038 = vmatpush1.bf16.msra.mxu0 %v5707
        %6039 = vmatprep.subr.bf16.mxu0 %v5712
        %6040 = vmatpush1.bf16.msra.mxu0 %v5711
        %6041 = vmatprep.subr.bf16.mxu0 %v5716
        %6042 = vmatpush1.bf16.msra.mxu0 %v5715
        %6043 = vmatprep.subr.bf16.mxu0 %v5720
        %6044 = vmatpush1.bf16.msra.mxu0 %v5719
        %6045 = vmatprep.subr.bf16.mxu0 %v5724
        %6046 = vmatpush1.bf16.msra.mxu0 %v5723
        %6047 = vmatprep.subr.bf16.mxu0 %v5728
        %6048 = vmatpush1.bf16.msra.mxu0 %v5727
        %6049 = vmatprep.subr.bf16.mxu0 %v5732
        %6050 = vmatpush1.bf16.msra.mxu0 %v5731
        %6051 = vmatprep.subr.bf16.mxu0 %v5736
        %6052 = vmatpush1.bf16.msra.mxu0 %v5735
        %6053 = vmatprep.subr.bf16.mxu0 %v5740
        %6054 = vmatpush1.bf16.msra.mxu0 %v5739
        %6055 = vmatprep.subr.bf16.mxu0 %v5744
        %6056 = vmatpush1.bf16.msra.mxu0 %v5743
        %6057 = vmatprep.subr.bf16.mxu0 %v5748
        %6058 = vmatpush1.bf16.msra.mxu0 %v5747
        %6059 = vmatprep.subr.bf16.mxu0 %v5752
        %6060 = vmatpush1.bf16.msra.mxu0 %v5751
        %6061 = vmatprep.subr.bf16.mxu0 %v5756
        %6062 = vmatpush1.bf16.msra.mxu0 %v5755
        %6063 = vmatprep.mubr.bf16.mxu0 %v5302
        %6064 = vmatmul.mubr.bf16.gmra.mrb[0].mxu0 %v5301
        %v6065 = vpop.f32.mrb[0].mxu0
        %v6066 = vadd.f32 0.0, %v6065
        %v6067 = vpop.f32.mrb[0].mxu0
        %v6068 = vadd.f32 0.0, %v6067
        %v6069 = vpop.f32.mrb[0].mxu0
        %v6070 = vpop.f32.mrb[0].mxu0
        %6071 = vdwg.mxu0
        %6072 = vmatprep.subr.bf16.mxu0 %v5760
        %6073 = vmatpush1.bf16.msra.mxu0 %v5759
        %6074 = vmatprep.subr.bf16.mxu0 %v5764
        %6075 = vmatpush1.bf16.msra.mxu0 %v5763
        %6076 = vmatprep.subr.bf16.mxu0 %v5768
        %6077 = vmatpush1.bf16.msra.mxu0 %v5767
        %6078 = vmatprep.subr.bf16.mxu0 %v5772
        %6079 = vmatpush1.bf16.msra.mxu0 %v5771
        %6080 = vmatprep.subr.bf16.mxu0 %v5776
        %6081 = vmatpush1.bf16.msra.mxu0 %v5775
        %6082 = vmatprep.subr.bf16.mxu0 %v5780
        %6083 = vmatpush1.bf16.msra.mxu0 %v5779
        %6084 = vmatprep.subr.bf16.mxu0 %v5784
        %6085 = vmatpush1.bf16.msra.mxu0 %v5783
        %6086 = vmatprep.subr.bf16.mxu0 %v5788
        %6087 = vmatpush1.bf16.msra.mxu0 %v5787
        %6088 = vmatprep.subr.bf16.mxu0 %v5792
        %6089 = vmatpush1.bf16.msra.mxu0 %v5791
        %6090 = vmatprep.subr.bf16.mxu0 %v5796
        %6091 = vmatpush1.bf16.msra.mxu0 %v5795
        %6092 = vmatprep.subr.bf16.mxu0 %v5800
        %6093 = vmatpush1.bf16.msra.mxu0 %v5799
        %6094 = vmatprep.subr.bf16.mxu0 %v5804
        %6095 = vmatpush1.bf16.msra.mxu0 %v5803
        %6096 = vmatprep.subr.bf16.mxu0 %v5808
        %6097 = vmatpush1.bf16.msra.mxu0 %v5807
        %6098 = vmatprep.subr.bf16.mxu0 %v5812
        %6099 = vmatpush1.bf16.msra.mxu0 %v5811
        %6100 = vmatprep.subr.bf16.mxu0 %v5816
        %6101 = vmatpush1.bf16.msra.mxu0 %v5815
        %6102 = vmatprep.subr.bf16.mxu0 %v5820
        %6103 = vmatpush1.bf16.msra.mxu0 %v5819
        %6104 = vmatprep.mubr.bf16.mxu0 %v5304
        %6105 = vmatmul.mubr.bf16.gmra.mrb[0].mxu0 %v5303
        %v6106 = vpop.f32.mrb[0].mxu0
        %v6107 = vadd.f32 %v6066, %v6106
        %v6108 = vpop.f32.mrb[0].mxu0
        %v6109 = vadd.f32 %v6068, %v6108
        %v6110 = vpop.f32.mrb[0].mxu0
        %v6111 = vpop.f32.mrb[0].mxu0
        %6112 = vdwg.mxu0
        %v6113 = vadd.f32 %v5169, %v6025
        %v6114 = vadd.f32 %v5170, %v6027
        %v6115 = vadd.f32 %v5171, %v6107
        %v6116 = vadd.f32 %v5172, %v6109
        %v6117 = vld [vmem:[%s367 + $0x1400] sm:$0xff]
        %v6118 = vld [vmem:[%s367 + $0x1408] sm:$0xff]
        %v6119 = vld [vmem:[%s367 + $0x1410] sm:$0xff]
        %v6120 = vld [vmem:[%s367 + $0x1418] sm:$0xff]
        %v6121 = vld [vmem:[%s367 + $0x1420] sm:$0xff]
        %v6122 = vld [vmem:[%s367 + $0x1428] sm:$0xff]
        %v6123 = vld [vmem:[%s367 + $0x1430] sm:$0xff]
        %v6124 = vld [vmem:[%s367 + $0x1438] sm:$0xff]
        %v6125 = vld [vmem:[%s367 + $0x1440] sm:$0xff]
        %v6126 = vld [vmem:[%s367 + $0x1448] sm:$0xff]
        %v6127 = vld [vmem:[%s367 + $0x1450] sm:$0xff]
        %v6128 = vld [vmem:[%s367 + $0x1458] sm:$0xff]
        %v6129 = vld [vmem:[%s367 + $0x1460] sm:$0xff]
        %v6130 = vld [vmem:[%s367 + $0x1468] sm:$0xff]
        %v6131 = vld [vmem:[%s367 + $0x1470] sm:$0xff]
        %v6132 = vld [vmem:[%s367 + $0x1478] sm:$0xff]
        %v6133 = vld [vmem:[%s367 + $0x1480] sm:$0xff]
        %v6134 = vld [vmem:[%s367 + $0x1488] sm:$0xff]
        %v6135 = vld [vmem:[%s367 + $0x1490] sm:$0xff]
        %v6136 = vld [vmem:[%s367 + $0x1498] sm:$0xff]
        %v6137 = vld [vmem:[%s367 + $0x14a0] sm:$0xff]
        %v6138 = vld [vmem:[%s367 + $0x14a8] sm:$0xff]
        %v6139 = vld [vmem:[%s367 + $0x14b0] sm:$0xff]
        %v6140 = vld [vmem:[%s367 + $0x14b8] sm:$0xff]
        %v6141 = vld [vmem:[%s367 + $0x14c0] sm:$0xff]
        %v6142 = vld [vmem:[%s367 + $0x14c8] sm:$0xff]
        %v6143 = vld [vmem:[%s367 + $0x14d0] sm:$0xff]
        %v6144 = vld [vmem:[%s367 + $0x14d8] sm:$0xff]
        %v6145 = vld [vmem:[%s367 + $0x14e0] sm:$0xff]
        %v6146 = vld [vmem:[%s367 + $0x14e8] sm:$0xff]
        %v6147 = vld [vmem:[%s367 + $0x14f0] sm:$0xff]
        %v6148 = vld [vmem:[%s367 + $0x14f8] sm:$0xff]
        %v6149 = vld [vmem:[%s367 + $0x1500] sm:$0xff]
        %v6150 = vld [vmem:[%s367 + $0x1508] sm:$0xff]
        %v6151 = vld [vmem:[%s367 + $0x1510] sm:$0xff]
        %v6152 = vld [vmem:[%s367 + $0x1518] sm:$0xff]
        %v6153 = vld [vmem:[%s367 + $0x1520] sm:$0xff]
        %v6154 = vld [vmem:[%s367 + $0x1528] sm:$0xff]
        %v6155 = vld [vmem:[%s367 + $0x1530] sm:$0xff]
        %v6156 = vld [vmem:[%s367 + $0x1538] sm:$0xff]
        %v6157 = vld [vmem:[%s367 + $0x1540] sm:$0xff]
        %v6158 = vld [vmem:[%s367 + $0x1548] sm:$0xff]
        %v6159 = vld [vmem:[%s367 + $0x1550] sm:$0xff]
        %v6160 = vld [vmem:[%s367 + $0x1558] sm:$0xff]
        %v6161 = vld [vmem:[%s367 + $0x1560] sm:$0xff]
        %v6162 = vld [vmem:[%s367 + $0x1568] sm:$0xff]
        %v6163 = vld [vmem:[%s367 + $0x1570] sm:$0xff]
        %v6164 = vld [vmem:[%s367 + $0x1578] sm:$0xff]
        %v6165 = vld [vmem:[%s367 + $0x1580] sm:$0xff]
        %v6166 = vld [vmem:[%s367 + $0x1588] sm:$0xff]
        %v6167 = vld [vmem:[%s367 + $0x1590] sm:$0xff]
        %v6168 = vld [vmem:[%s367 + $0x1598] sm:$0xff]
        %v6169 = vld [vmem:[%s367 + $0x15a0] sm:$0xff]
        %v6170 = vld [vmem:[%s367 + $0x15a8] sm:$0xff]
        %v6171 = vld [vmem:[%s367 + $0x15b0] sm:$0xff]
        %v6172 = vld [vmem:[%s367 + $0x15b8] sm:$0xff]
        %v6173 = vld [vmem:[%s367 + $0x15c0] sm:$0xff]
        %v6174 = vld [vmem:[%s367 + $0x15c8] sm:$0xff]
        %v6175 = vld [vmem:[%s367 + $0x15d0] sm:$0xff]
        %v6176 = vld [vmem:[%s367 + $0x15d8] sm:$0xff]
        %v6177 = vld [vmem:[%s367 + $0x15e0] sm:$0xff]
        %v6178 = vld [vmem:[%s367 + $0x15e8] sm:$0xff]
        %v6179 = vld [vmem:[%s367 + $0x15f0] sm:$0xff]
        %v6180 = vld [vmem:[%s367 + $0x15f8] sm:$0xff]
        %v6181 = vld [vmem:[%s367 + $0x1600] sm:$0xff]
        %v6182 = vld [vmem:[%s367 + $0x1608] sm:$0xff]
        %v6183 = vld [vmem:[%s367 + $0x1610] sm:$0xff]
        %v6184 = vld [vmem:[%s367 + $0x1618] sm:$0xff]
        %v6185 = vld [vmem:[%s367 + $0x1620] sm:$0xff]
        %v6186 = vld [vmem:[%s367 + $0x1628] sm:$0xff]
        %v6187 = vld [vmem:[%s367 + $0x1630] sm:$0xff]
        %v6188 = vld [vmem:[%s367 + $0x1638] sm:$0xff]
        %v6189 = vld [vmem:[%s367 + $0x1640] sm:$0xff]
        %v6190 = vld [vmem:[%s367 + $0x1648] sm:$0xff]
        %v6191 = vld [vmem:[%s367 + $0x1650] sm:$0xff]
        %v6192 = vld [vmem:[%s367 + $0x1658] sm:$0xff]
        %v6193 = vld [vmem:[%s367 + $0x1660] sm:$0xff]
        %v6194 = vld [vmem:[%s367 + $0x1668] sm:$0xff]
        %v6195 = vld [vmem:[%s367 + $0x1670] sm:$0xff]
        %v6196 = vld [vmem:[%s367 + $0x1678] sm:$0xff]
        %v6197 = vld [vmem:[%s367 + $0x1680] sm:$0xff]
        %v6198 = vld [vmem:[%s367 + $0x1688] sm:$0xff]
        %v6199 = vld [vmem:[%s367 + $0x1690] sm:$0xff]
        %v6200 = vld [vmem:[%s367 + $0x1698] sm:$0xff]
        %v6201 = vld [vmem:[%s367 + $0x16a0] sm:$0xff]
        %v6202 = vld [vmem:[%s367 + $0x16a8] sm:$0xff]
        %v6203 = vld [vmem:[%s367 + $0x16b0] sm:$0xff]
        %v6204 = vld [vmem:[%s367 + $0x16b8] sm:$0xff]
        %v6205 = vld [vmem:[%s367 + $0x16c0] sm:$0xff]
        %v6206 = vld [vmem:[%s367 + $0x16c8] sm:$0xff]
        %v6207 = vld [vmem:[%s367 + $0x16d0] sm:$0xff]
        %v6208 = vld [vmem:[%s367 + $0x16d8] sm:$0xff]
        %v6209 = vld [vmem:[%s367 + $0x16e0] sm:$0xff]
        %v6210 = vld [vmem:[%s367 + $0x16e8] sm:$0xff]
        %v6211 = vld [vmem:[%s367 + $0x16f0] sm:$0xff]
        %v6212 = vld [vmem:[%s367 + $0x16f8] sm:$0xff]
        %v6213 = vld [vmem:[%s367 + $0x1700] sm:$0xff]
        %v6214 = vld [vmem:[%s367 + $0x1708] sm:$0xff]
        %v6215 = vld [vmem:[%s367 + $0x1710] sm:$0xff]
        %v6216 = vld [vmem:[%s367 + $0x1718] sm:$0xff]
        %v6217 = vld [vmem:[%s367 + $0x1720] sm:$0xff]
        %v6218 = vld [vmem:[%s367 + $0x1728] sm:$0xff]
        %v6219 = vld [vmem:[%s367 + $0x1730] sm:$0xff]
        %v6220 = vld [vmem:[%s367 + $0x1738] sm:$0xff]
        %v6221 = vld [vmem:[%s367 + $0x1740] sm:$0xff]
        %v6222 = vld [vmem:[%s367 + $0x1748] sm:$0xff]
        %v6223 = vld [vmem:[%s367 + $0x1750] sm:$0xff]
        %v6224 = vld [vmem:[%s367 + $0x1758] sm:$0xff]
        %v6225 = vld [vmem:[%s367 + $0x1760] sm:$0xff]
        %v6226 = vld [vmem:[%s367 + $0x1768] sm:$0xff]
        %v6227 = vld [vmem:[%s367 + $0x1770] sm:$0xff]
        %v6228 = vld [vmem:[%s367 + $0x1778] sm:$0xff]
        %v6229 = vld [vmem:[%s367 + $0x1780] sm:$0xff]
        %v6230 = vld [vmem:[%s367 + $0x1788] sm:$0xff]
        %v6231 = vld [vmem:[%s367 + $0x1790] sm:$0xff]
        %v6232 = vld [vmem:[%s367 + $0x1798] sm:$0xff]
        %v6233 = vld [vmem:[%s367 + $0x17a0] sm:$0xff]
        %v6234 = vld [vmem:[%s367 + $0x17a8] sm:$0xff]
        %v6235 = vld [vmem:[%s367 + $0x17b0] sm:$0xff]
        %v6236 = vld [vmem:[%s367 + $0x17b8] sm:$0xff]
        %v6237 = vld [vmem:[%s367 + $0x17c0] sm:$0xff]
        %v6238 = vld [vmem:[%s367 + $0x17c8] sm:$0xff]
        %v6239 = vld [vmem:[%s367 + $0x17d0] sm:$0xff]
        %v6240 = vld [vmem:[%s367 + $0x17d8] sm:$0xff]
        %v6241 = vld [vmem:[%s367 + $0x17e0] sm:$0xff]
        %v6242 = vld [vmem:[%s367 + $0x17e8] sm:$0xff]
        %v6243 = vld [vmem:[%s367 + $0x17f0] sm:$0xff]
        %v6244 = vld [vmem:[%s367 + $0x17f8] sm:$0xff]
        %v6245 = vrot.slane %v1658, 2
        %v6246 = vrot.slane %v1661, 2
        %v6247 = vrot.slane %v1664, 2
        %v6248 = vrot.slane %v1667, 2
        %v6381 = vunpack.c.l.b16 %v6117
        %v6382 = vunpack.c.h.b16 %v6117
        %v6383 = vunpack.c.l.b16 %v6118
        %v6384 = vunpack.c.h.b16 %v6118
        %v6385 = vunpack.c.l.b16 %v6119
        %v6386 = vunpack.c.h.b16 %v6119
        %v6387 = vunpack.c.l.b16 %v6120
        %v6388 = vunpack.c.h.b16 %v6120
        %v6389 = vunpack.c.l.b16 %v6121
        %v6390 = vunpack.c.h.b16 %v6121
        %v6391 = vunpack.c.l.b16 %v6122
        %v6392 = vunpack.c.h.b16 %v6122
        %v6393 = vunpack.c.l.b16 %v6123
        %v6394 = vunpack.c.h.b16 %v6123
        %v6395 = vunpack.c.l.b16 %v6124
        %v6396 = vunpack.c.h.b16 %v6124
        %v6397 = vunpack.c.l.b16 %v6125
        %v6398 = vunpack.c.h.b16 %v6125
        %v6399 = vunpack.c.l.b16 %v6126
        %v6400 = vunpack.c.h.b16 %v6126
        %v6401 = vunpack.c.l.b16 %v6127
        %v6402 = vunpack.c.h.b16 %v6127
        %v6403 = vunpack.c.l.b16 %v6128
        %v6404 = vunpack.c.h.b16 %v6128
        %v6405 = vunpack.c.l.b16 %v6129
        %v6406 = vunpack.c.h.b16 %v6129
        %v6407 = vunpack.c.l.b16 %v6130
        %v6408 = vunpack.c.h.b16 %v6130
        %v6409 = vunpack.c.l.b16 %v6131
        %v6410 = vunpack.c.h.b16 %v6131
        %v6411 = vunpack.c.l.b16 %v6132
        %v6412 = vunpack.c.h.b16 %v6132
        %v6413 = vunpack.c.l.b16 %v6133
        %v6414 = vunpack.c.h.b16 %v6133
        %v6415 = vunpack.c.l.b16 %v6134
        %v6416 = vunpack.c.h.b16 %v6134
        %v6417 = vunpack.c.l.b16 %v6135
        %v6418 = vunpack.c.h.b16 %v6135
        %v6419 = vunpack.c.l.b16 %v6136
        %v6420 = vunpack.c.h.b16 %v6136
        %v6421 = vunpack.c.l.b16 %v6137
        %v6422 = vunpack.c.h.b16 %v6137
        %v6423 = vunpack.c.l.b16 %v6138
        %v6424 = vunpack.c.h.b16 %v6138
        %v6425 = vunpack.c.l.b16 %v6139
        %v6426 = vunpack.c.h.b16 %v6139
        %v6427 = vunpack.c.l.b16 %v6140
        %v6428 = vunpack.c.h.b16 %v6140
        %v6429 = vunpack.c.l.b16 %v6141
        %v6430 = vunpack.c.h.b16 %v6141
        %v6431 = vunpack.c.l.b16 %v6142
        %v6432 = vunpack.c.h.b16 %v6142
        %v6433 = vunpack.c.l.b16 %v6143
        %v6434 = vunpack.c.h.b16 %v6143
        %v6435 = vunpack.c.l.b16 %v6144
        %v6436 = vunpack.c.h.b16 %v6144
        %v6437 = vunpack.c.l.b16 %v6145
        %v6438 = vunpack.c.h.b16 %v6145
        %v6439 = vunpack.c.l.b16 %v6146
        %v6440 = vunpack.c.h.b16 %v6146
        %v6441 = vunpack.c.l.b16 %v6147
        %v6442 = vunpack.c.h.b16 %v6147
        %v6443 = vunpack.c.l.b16 %v6148
        %v6444 = vunpack.c.h.b16 %v6148
        %v6445 = vunpack.c.l.b16 %v6149
        %v6446 = vunpack.c.h.b16 %v6149
        %v6447 = vunpack.c.l.b16 %v6150
        %v6448 = vunpack.c.h.b16 %v6150
        %v6449 = vunpack.c.l.b16 %v6151
        %v6450 = vunpack.c.h.b16 %v6151
        %v6451 = vunpack.c.l.b16 %v6152
        %v6452 = vunpack.c.h.b16 %v6152
        %v6453 = vunpack.c.l.b16 %v6153
        %v6454 = vunpack.c.h.b16 %v6153
        %v6455 = vunpack.c.l.b16 %v6154
        %v6456 = vunpack.c.h.b16 %v6154
        %v6457 = vunpack.c.l.b16 %v6155
        %v6458 = vunpack.c.h.b16 %v6155
        %v6459 = vunpack.c.l.b16 %v6156
        %v6460 = vunpack.c.h.b16 %v6156
        %v6461 = vunpack.c.l.b16 %v6157
        %v6462 = vunpack.c.h.b16 %v6157
        %v6463 = vunpack.c.l.b16 %v6158
        %v6464 = vunpack.c.h.b16 %v6158
        %v6465 = vunpack.c.l.b16 %v6159
        %v6466 = vunpack.c.h.b16 %v6159
        %v6467 = vunpack.c.l.b16 %v6160
        %v6468 = vunpack.c.h.b16 %v6160
        %v6469 = vunpack.c.l.b16 %v6161
        %v6470 = vunpack.c.h.b16 %v6161
        %v6471 = vunpack.c.l.b16 %v6162
        %v6472 = vunpack.c.h.b16 %v6162
        %v6473 = vunpack.c.l.b16 %v6163
        %v6474 = vunpack.c.h.b16 %v6163
        %v6475 = vunpack.c.l.b16 %v6164
        %v6476 = vunpack.c.h.b16 %v6164
        %v6477 = vunpack.c.l.b16 %v6165
        %v6478 = vunpack.c.h.b16 %v6165
        %v6479 = vunpack.c.l.b16 %v6166
        %v6480 = vunpack.c.h.b16 %v6166
        %v6481 = vunpack.c.l.b16 %v6167
        %v6482 = vunpack.c.h.b16 %v6167
        %v6483 = vunpack.c.l.b16 %v6168
        %v6484 = vunpack.c.h.b16 %v6168
        %v6485 = vunpack.c.l.b16 %v6169
        %v6486 = vunpack.c.h.b16 %v6169
        %v6487 = vunpack.c.l.b16 %v6170
        %v6488 = vunpack.c.h.b16 %v6170
        %v6489 = vunpack.c.l.b16 %v6171
        %v6490 = vunpack.c.h.b16 %v6171
        %v6491 = vunpack.c.l.b16 %v6172
        %v6492 = vunpack.c.h.b16 %v6172
        %v6493 = vunpack.c.l.b16 %v6173
        %v6494 = vunpack.c.h.b16 %v6173
        %v6495 = vunpack.c.l.b16 %v6174
        %v6496 = vunpack.c.h.b16 %v6174
        %v6497 = vunpack.c.l.b16 %v6175
        %v6498 = vunpack.c.h.b16 %v6175
        %v6499 = vunpack.c.l.b16 %v6176
        %v6500 = vunpack.c.h.b16 %v6176
        %v6501 = vunpack.c.l.b16 %v6177
        %v6502 = vunpack.c.h.b16 %v6177
        %v6503 = vunpack.c.l.b16 %v6178
        %v6504 = vunpack.c.h.b16 %v6178
        %v6505 = vunpack.c.l.b16 %v6179
        %v6506 = vunpack.c.h.b16 %v6179
        %v6507 = vunpack.c.l.b16 %v6180
        %v6508 = vunpack.c.h.b16 %v6180
        %v6509 = vunpack.c.l.b16 %v6181
        %v6510 = vunpack.c.h.b16 %v6181
        %v6511 = vunpack.c.l.b16 %v6182
        %v6512 = vunpack.c.h.b16 %v6182
        %v6513 = vunpack.c.l.b16 %v6183
        %v6514 = vunpack.c.h.b16 %v6183
        %v6515 = vunpack.c.l.b16 %v6184
        %v6516 = vunpack.c.h.b16 %v6184
        %v6517 = vunpack.c.l.b16 %v6185
        %v6518 = vunpack.c.h.b16 %v6185
        %v6519 = vunpack.c.l.b16 %v6186
        %v6520 = vunpack.c.h.b16 %v6186
        %v6521 = vunpack.c.l.b16 %v6187
        %v6522 = vunpack.c.h.b16 %v6187
        %v6523 = vunpack.c.l.b16 %v6188
        %v6524 = vunpack.c.h.b16 %v6188
        %v6525 = vunpack.c.l.b16 %v6189
        %v6526 = vunpack.c.h.b16 %v6189
        %v6527 = vunpack.c.l.b16 %v6190
        %v6528 = vunpack.c.h.b16 %v6190
        %v6529 = vunpack.c.l.b16 %v6191
        %v6530 = vunpack.c.h.b16 %v6191
        %v6531 = vunpack.c.l.b16 %v6192
        %v6532 = vunpack.c.h.b16 %v6192
        %v6533 = vunpack.c.l.b16 %v6193
        %v6534 = vunpack.c.h.b16 %v6193
        %v6535 = vunpack.c.l.b16 %v6194
        %v6536 = vunpack.c.h.b16 %v6194
        %v6537 = vunpack.c.l.b16 %v6195
        %v6538 = vunpack.c.h.b16 %v6195
        %v6539 = vunpack.c.l.b16 %v6196
        %v6540 = vunpack.c.h.b16 %v6196
        %v6541 = vunpack.c.l.b16 %v6197
        %v6542 = vunpack.c.h.b16 %v6197
        %v6543 = vunpack.c.l.b16 %v6198
        %v6544 = vunpack.c.h.b16 %v6198
        %v6545 = vunpack.c.l.b16 %v6199
        %v6546 = vunpack.c.h.b16 %v6199
        %v6547 = vunpack.c.l.b16 %v6200
        %v6548 = vunpack.c.h.b16 %v6200
        %v6549 = vunpack.c.l.b16 %v6201
        %v6550 = vunpack.c.h.b16 %v6201
        %v6551 = vunpack.c.l.b16 %v6202
        %v6552 = vunpack.c.h.b16 %v6202
        %v6553 = vunpack.c.l.b16 %v6203
        %v6554 = vunpack.c.h.b16 %v6203
        %v6555 = vunpack.c.l.b16 %v6204
        %v6556 = vunpack.c.h.b16 %v6204
        %v6557 = vunpack.c.l.b16 %v6205
        %v6558 = vunpack.c.h.b16 %v6205
        %v6559 = vunpack.c.l.b16 %v6206
        %v6560 = vunpack.c.h.b16 %v6206
        %v6561 = vunpack.c.l.b16 %v6207
        %v6562 = vunpack.c.h.b16 %v6207
        %v6563 = vunpack.c.l.b16 %v6208
        %v6564 = vunpack.c.h.b16 %v6208
        %v6565 = vunpack.c.l.b16 %v6209
        %v6566 = vunpack.c.h.b16 %v6209
        %v6567 = vunpack.c.l.b16 %v6210
        %v6568 = vunpack.c.h.b16 %v6210
        %v6569 = vunpack.c.l.b16 %v6211
        %v6570 = vunpack.c.h.b16 %v6211
        %v6571 = vunpack.c.l.b16 %v6212
        %v6572 = vunpack.c.h.b16 %v6212
        %v6573 = vunpack.c.l.b16 %v6213
        %v6574 = vunpack.c.h.b16 %v6213
        %v6575 = vunpack.c.l.b16 %v6214
        %v6576 = vunpack.c.h.b16 %v6214
        %v6577 = vunpack.c.l.b16 %v6215
        %v6578 = vunpack.c.h.b16 %v6215
        %v6579 = vunpack.c.l.b16 %v6216
        %v6580 = vunpack.c.h.b16 %v6216
        %v6581 = vunpack.c.l.b16 %v6217
        %v6582 = vunpack.c.h.b16 %v6217
        %v6583 = vunpack.c.l.b16 %v6218
        %v6584 = vunpack.c.h.b16 %v6218
        %v6585 = vunpack.c.l.b16 %v6219
        %v6586 = vunpack.c.h.b16 %v6219
        %v6587 = vunpack.c.l.b16 %v6220
        %v6588 = vunpack.c.h.b16 %v6220
        %v6589 = vunpack.c.l.b16 %v6221
        %v6590 = vunpack.c.h.b16 %v6221
        %v6591 = vunpack.c.l.b16 %v6222
        %v6592 = vunpack.c.h.b16 %v6222
        %v6593 = vunpack.c.l.b16 %v6223
        %v6594 = vunpack.c.h.b16 %v6223
        %v6595 = vunpack.c.l.b16 %v6224
        %v6596 = vunpack.c.h.b16 %v6224
        %v6597 = vunpack.c.l.b16 %v6225
        %v6598 = vunpack.c.h.b16 %v6225
        %v6599 = vunpack.c.l.b16 %v6226
        %v6600 = vunpack.c.h.b16 %v6226
        %v6601 = vunpack.c.l.b16 %v6227
        %v6602 = vunpack.c.h.b16 %v6227
        %v6603 = vunpack.c.l.b16 %v6228
        %v6604 = vunpack.c.h.b16 %v6228
        %v6605 = vunpack.c.l.b16 %v6229
        %v6606 = vunpack.c.h.b16 %v6229
        %v6607 = vunpack.c.l.b16 %v6230
        %v6608 = vunpack.c.h.b16 %v6230
        %v6609 = vunpack.c.l.b16 %v6231
        %v6610 = vunpack.c.h.b16 %v6231
        %v6611 = vunpack.c.l.b16 %v6232
        %v6612 = vunpack.c.h.b16 %v6232
        %v6613 = vunpack.c.l.b16 %v6233
        %v6614 = vunpack.c.h.b16 %v6233
        %v6615 = vunpack.c.l.b16 %v6234
        %v6616 = vunpack.c.h.b16 %v6234
        %v6617 = vunpack.c.l.b16 %v6235
        %v6618 = vunpack.c.h.b16 %v6235
        %v6619 = vunpack.c.l.b16 %v6236
        %v6620 = vunpack.c.h.b16 %v6236
        %v6621 = vunpack.c.l.b16 %v6237
        %v6622 = vunpack.c.h.b16 %v6237
        %v6623 = vunpack.c.l.b16 %v6238
        %v6624 = vunpack.c.h.b16 %v6238
        %v6625 = vunpack.c.l.b16 %v6239
        %v6626 = vunpack.c.h.b16 %v6239
        %v6627 = vunpack.c.l.b16 %v6240
        %v6628 = vunpack.c.h.b16 %v6240
        %v6629 = vunpack.c.l.b16 %v6241
        %v6630 = vunpack.c.h.b16 %v6241
        %v6631 = vunpack.c.l.b16 %v6242
        %v6632 = vunpack.c.h.b16 %v6242
        %v6633 = vunpack.c.l.b16 %v6243
        %v6634 = vunpack.c.h.b16 %v6243
        %v6635 = vunpack.c.l.b16 %v6244
        %v6636 = vunpack.c.h.b16 %v6244
        %v6637 = vpack.c.b16 %v6385, %v6381
        %v6638 = vpack.c.b16 %v6386, %v6382
        %v6639 = vpack.c.b16 %v6387, %v6383
        %v6640 = vpack.c.b16 %v6388, %v6384
        %v6641 = vpack.c.b16 %v6393, %v6389
        %v6642 = vpack.c.b16 %v6394, %v6390
        %v6643 = vpack.c.b16 %v6395, %v6391
        %v6644 = vpack.c.b16 %v6396, %v6392
        %v6645 = vpack.c.b16 %v6401, %v6397
        %v6646 = vpack.c.b16 %v6402, %v6398
        %v6647 = vpack.c.b16 %v6403, %v6399
        %v6648 = vpack.c.b16 %v6404, %v6400
        %v6649 = vpack.c.b16 %v6409, %v6405
        %v6650 = vpack.c.b16 %v6410, %v6406
        %v6651 = vpack.c.b16 %v6411, %v6407
        %v6652 = vpack.c.b16 %v6412, %v6408
        %v6653 = vpack.c.b16 %v6417, %v6413
        %v6654 = vpack.c.b16 %v6418, %v6414
        %v6655 = vpack.c.b16 %v6419, %v6415
        %v6656 = vpack.c.b16 %v6420, %v6416
        %v6657 = vpack.c.b16 %v6425, %v6421
        %v6658 = vpack.c.b16 %v6426, %v6422
        %v6659 = vpack.c.b16 %v6427, %v6423
        %v6660 = vpack.c.b16 %v6428, %v6424
        %v6661 = vpack.c.b16 %v6433, %v6429
        %v6662 = vpack.c.b16 %v6434, %v6430
        %v6663 = vpack.c.b16 %v6435, %v6431
        %v6664 = vpack.c.b16 %v6436, %v6432
        %v6665 = vpack.c.b16 %v6441, %v6437
        %v6666 = vpack.c.b16 %v6442, %v6438
        %v6667 = vpack.c.b16 %v6443, %v6439
        %v6668 = vpack.c.b16 %v6444, %v6440
        %v6669 = vpack.c.b16 %v6449, %v6445
        %v6670 = vpack.c.b16 %v6450, %v6446
        %v6671 = vpack.c.b16 %v6451, %v6447
        %v6672 = vpack.c.b16 %v6452, %v6448
        %v6673 = vpack.c.b16 %v6457, %v6453
        %v6674 = vpack.c.b16 %v6458, %v6454
        %v6675 = vpack.c.b16 %v6459, %v6455
        %v6676 = vpack.c.b16 %v6460, %v6456
        %v6677 = vpack.c.b16 %v6465, %v6461
        %v6678 = vpack.c.b16 %v6466, %v6462
        %v6679 = vpack.c.b16 %v6467, %v6463
        %v6680 = vpack.c.b16 %v6468, %v6464
        %v6681 = vpack.c.b16 %v6473, %v6469
        %v6682 = vpack.c.b16 %v6474, %v6470
        %v6683 = vpack.c.b16 %v6475, %v6471
        %v6684 = vpack.c.b16 %v6476, %v6472
        %v6685 = vpack.c.b16 %v6481, %v6477
        %v6686 = vpack.c.b16 %v6482, %v6478
        %v6687 = vpack.c.b16 %v6483, %v6479
        %v6688 = vpack.c.b16 %v6484, %v6480
        %v6689 = vpack.c.b16 %v6489, %v6485
        %v6690 = vpack.c.b16 %v6490, %v6486
        %v6691 = vpack.c.b16 %v6491, %v6487
        %v6692 = vpack.c.b16 %v6492, %v6488
        %v6693 = vpack.c.b16 %v6497, %v6493
        %v6694 = vpack.c.b16 %v6498, %v6494
        %v6695 = vpack.c.b16 %v6499, %v6495
        %v6696 = vpack.c.b16 %v6500, %v6496
        %v6697 = vpack.c.b16 %v6505, %v6501
        %v6698 = vpack.c.b16 %v6506, %v6502
        %v6699 = vpack.c.b16 %v6507, %v6503
        %v6700 = vpack.c.b16 %v6508, %v6504
        %v6701 = vpack.c.b16 %v6513, %v6509
        %v6702 = vpack.c.b16 %v6514, %v6510
        %v6703 = vpack.c.b16 %v6515, %v6511
        %v6704 = vpack.c.b16 %v6516, %v6512
        %v6705 = vpack.c.b16 %v6521, %v6517
        %v6706 = vpack.c.b16 %v6522, %v6518
        %v6707 = vpack.c.b16 %v6523, %v6519
        %v6708 = vpack.c.b16 %v6524, %v6520
        %v6709 = vpack.c.b16 %v6529, %v6525
        %v6710 = vpack.c.b16 %v6530, %v6526
        %v6711 = vpack.c.b16 %v6531, %v6527
        %v6712 = vpack.c.b16 %v6532, %v6528
        %v6713 = vpack.c.b16 %v6537, %v6533
        %v6714 = vpack.c.b16 %v6538, %v6534
        %v6715 = vpack.c.b16 %v6539, %v6535
        %v6716 = vpack.c.b16 %v6540, %v6536
        %v6717 = vpack.c.b16 %v6545, %v6541
        %v6718 = vpack.c.b16 %v6546, %v6542
        %v6719 = vpack.c.b16 %v6547, %v6543
        %v6720 = vpack.c.b16 %v6548, %v6544
        %v6721 = vpack.c.b16 %v6553, %v6549
        %v6722 = vpack.c.b16 %v6554, %v6550
        %v6723 = vpack.c.b16 %v6555, %v6551
        %v6724 = vpack.c.b16 %v6556, %v6552
        %v6725 = vpack.c.b16 %v6561, %v6557
        %v6726 = vpack.c.b16 %v6562, %v6558
        %v6727 = vpack.c.b16 %v6563, %v6559
        %v6728 = vpack.c.b16 %v6564, %v6560
        %v6729 = vpack.c.b16 %v6569, %v6565
        %v6730 = vpack.c.b16 %v6570, %v6566
        %v6731 = vpack.c.b16 %v6571, %v6567
        %v6732 = vpack.c.b16 %v6572, %v6568
        %v6733 = vpack.c.b16 %v6577, %v6573
        %v6734 = vpack.c.b16 %v6578, %v6574
        %v6735 = vpack.c.b16 %v6579, %v6575
        %v6736 = vpack.c.b16 %v6580, %v6576
        %v6737 = vpack.c.b16 %v6585, %v6581
        %v6738 = vpack.c.b16 %v6586, %v6582
        %v6739 = vpack.c.b16 %v6587, %v6583
        %v6740 = vpack.c.b16 %v6588, %v6584
        %v6741 = vpack.c.b16 %v6593, %v6589
        %v6742 = vpack.c.b16 %v6594, %v6590
        %v6743 = vpack.c.b16 %v6595, %v6591
        %v6744 = vpack.c.b16 %v6596, %v6592
        %v6745 = vpack.c.b16 %v6601, %v6597
        %v6746 = vpack.c.b16 %v6602, %v6598
        %v6747 = vpack.c.b16 %v6603, %v6599
        %v6748 = vpack.c.b16 %v6604, %v6600
        %v6749 = vpack.c.b16 %v6609, %v6605
        %v6750 = vpack.c.b16 %v6610, %v6606
        %v6751 = vpack.c.b16 %v6611, %v6607
        %v6752 = vpack.c.b16 %v6612, %v6608
        %v6753 = vpack.c.b16 %v6617, %v6613
        %v6754 = vpack.c.b16 %v6618, %v6614
        %v6755 = vpack.c.b16 %v6619, %v6615
        %v6756 = vpack.c.b16 %v6620, %v6616
        %v6757 = vpack.c.b16 %v6625, %v6621
        %v6758 = vpack.c.b16 %v6626, %v6622
        %v6759 = vpack.c.b16 %v6627, %v6623
        %v6760 = vpack.c.b16 %v6628, %v6624
        %v6761 = vpack.c.b16 %v6633, %v6629
        %v6762 = vpack.c.b16 %v6634, %v6630
        %v6763 = vpack.c.b16 %v6635, %v6631
        %v6764 = vpack.c.b16 %v6636, %v6632
        %6893 = vmatprep.subr.bf16.mxu0 %v6638
        %6894 = vmatpush1.bf16.msra.mxu0 %v6637
        %6895 = vmatprep.subr.bf16.mxu0 %v6642
        %6896 = vmatpush1.bf16.msra.mxu0 %v6641
        %6897 = vmatprep.subr.bf16.mxu0 %v6646
        %6898 = vmatpush1.bf16.msra.mxu0 %v6645
        %6899 = vmatprep.subr.bf16.mxu0 %v6650
        %6900 = vmatpush1.bf16.msra.mxu0 %v6649
        %6901 = vmatprep.subr.bf16.mxu0 %v6654
        %6902 = vmatpush1.bf16.msra.mxu0 %v6653
        %6903 = vmatprep.subr.bf16.mxu0 %v6658
        %6904 = vmatpush1.bf16.msra.mxu0 %v6657
        %6905 = vmatprep.subr.bf16.mxu0 %v6662
        %6906 = vmatpush1.bf16.msra.mxu0 %v6661
        %6907 = vmatprep.subr.bf16.mxu0 %v6666
        %6908 = vmatpush1.bf16.msra.mxu0 %v6665
        %6909 = vmatprep.subr.bf16.mxu0 %v6670
        %6910 = vmatpush1.bf16.msra.mxu0 %v6669
        %6911 = vmatprep.subr.bf16.mxu0 %v6674
        %6912 = vmatpush1.bf16.msra.mxu0 %v6673
        %6913 = vmatprep.subr.bf16.mxu0 %v6678
        %6914 = vmatpush1.bf16.msra.mxu0 %v6677
        %6915 = vmatprep.subr.bf16.mxu0 %v6682
        %6916 = vmatpush1.bf16.msra.mxu0 %v6681
        %6917 = vmatprep.subr.bf16.mxu0 %v6686
        %6918 = vmatpush1.bf16.msra.mxu0 %v6685
        %6919 = vmatprep.subr.bf16.mxu0 %v6690
        %6920 = vmatpush1.bf16.msra.mxu0 %v6689
        %6921 = vmatprep.subr.bf16.mxu0 %v6694
        %6922 = vmatpush1.bf16.msra.mxu0 %v6693
        %6923 = vmatprep.subr.bf16.mxu0 %v6698
        %6924 = vmatpush1.bf16.msra.mxu0 %v6697
        %6925 = vmatprep.mubr.bf16.mxu0 %v6246
        %6926 = vmatmul.mubr.bf16.gmra.mrb[0].mxu0 %v6245
        %v6927 = vpop.f32.mrb[0].mxu0
        %v6928 = vadd.f32 0.0, %v6927
        %v6929 = vpop.f32.mrb[0].mxu0
        %v6930 = vadd.f32 0.0, %v6929
        %v6931 = vpop.f32.mrb[0].mxu0
        %v6932 = vpop.f32.mrb[0].mxu0
        %6933 = vdwg.mxu0
        %6934 = vmatprep.subr.bf16.mxu0 %v6702
        %6935 = vmatpush1.bf16.msra.mxu0 %v6701
        %6936 = vmatprep.subr.bf16.mxu0 %v6706
        %6937 = vmatpush1.bf16.msra.mxu0 %v6705
        %6938 = vmatprep.subr.bf16.mxu0 %v6710
        %6939 = vmatpush1.bf16.msra.mxu0 %v6709
        %6940 = vmatprep.subr.bf16.mxu0 %v6714
        %6941 = vmatpush1.bf16.msra.mxu0 %v6713
        %6942 = vmatprep.subr.bf16.mxu0 %v6718
        %6943 = vmatpush1.bf16.msra.mxu0 %v6717
        %6944 = vmatprep.subr.bf16.mxu0 %v6722
        %6945 = vmatpush1.bf16.msra.mxu0 %v6721
        %6946 = vmatprep.subr.bf16.mxu0 %v6726
        %6947 = vmatpush1.bf16.msra.mxu0 %v6725
        %6948 = vmatprep.subr.bf16.mxu0 %v6730
        %6949 = vmatpush1.bf16.msra.mxu0 %v6729
        %6950 = vmatprep.subr.bf16.mxu0 %v6734
        %6951 = vmatpush1.bf16.msra.mxu0 %v6733
        %6952 = vmatprep.subr.bf16.mxu0 %v6738
        %6953 = vmatpush1.bf16.msra.mxu0 %v6737
        %6954 = vmatprep.subr.bf16.mxu0 %v6742
        %6955 = vmatpush1.bf16.msra.mxu0 %v6741
        %6956 = vmatprep.subr.bf16.mxu0 %v6746
        %6957 = vmatpush1.bf16.msra.mxu0 %v6745
        %6958 = vmatprep.subr.bf16.mxu0 %v6750
        %6959 = vmatpush1.bf16.msra.mxu0 %v6749
        %6960 = vmatprep.subr.bf16.mxu0 %v6754
        %6961 = vmatpush1.bf16.msra.mxu0 %v6753
        %6962 = vmatprep.subr.bf16.mxu0 %v6758
        %6963 = vmatpush1.bf16.msra.mxu0 %v6757
        %6964 = vmatprep.subr.bf16.mxu0 %v6762
        %6965 = vmatpush1.bf16.msra.mxu0 %v6761
        %6966 = vmatprep.mubr.bf16.mxu0 %v6248
        %6967 = vmatmul.mubr.bf16.gmra.mrb[0].mxu0 %v6247
        %v6968 = vpop.f32.mrb[0].mxu0
        %v6969 = vadd.f32 %v6928, %v6968
        %v6970 = vpop.f32.mrb[0].mxu0
        %v6971 = vadd.f32 %v6930, %v6970
        %v6972 = vpop.f32.mrb[0].mxu0
        %v6973 = vpop.f32.mrb[0].mxu0
        %6974 = vdwg.mxu0
        %6975 = vmatprep.subr.bf16.mxu0 %v6640
        %6976 = vmatpush1.bf16.msra.mxu0 %v6639
        %6977 = vmatprep.subr.bf16.mxu0 %v6644
        %6978 = vmatpush1.bf16.msra.mxu0 %v6643
        %6979 = vmatprep.subr.bf16.mxu0 %v6648
        %6980 = vmatpush1.bf16.msra.mxu0 %v6647
        %6981 = vmatprep.subr.bf16.mxu0 %v6652
        %6982 = vmatpush1.bf16.msra.mxu0 %v6651
        %6983 = vmatprep.subr.bf16.mxu0 %v6656
        %6984 = vmatpush1.bf16.msra.mxu0 %v6655
        %6985 = vmatprep.subr.bf16.mxu0 %v6660
        %6986 = vmatpush1.bf16.msra.mxu0 %v6659
        %6987 = vmatprep.subr.bf16.mxu0 %v6664
        %6988 = vmatpush1.bf16.msra.mxu0 %v6663
        %6989 = vmatprep.subr.bf16.mxu0 %v6668
        %6990 = vmatpush1.bf16.msra.mxu0 %v6667
        %6991 = vmatprep.subr.bf16.mxu0 %v6672
        %6992 = vmatpush1.bf16.msra.mxu0 %v6671
        %6993 = vmatprep.subr.bf16.mxu0 %v6676
        %6994 = vmatpush1.bf16.msra.mxu0 %v6675
        %6995 = vmatprep.subr.bf16.mxu0 %v6680
        %6996 = vmatpush1.bf16.msra.mxu0 %v6679
        %6997 = vmatprep.subr.bf16.mxu0 %v6684
        %6998 = vmatpush1.bf16.msra.mxu0 %v6683
        %6999 = vmatprep.subr.bf16.mxu0 %v6688
        %7000 = vmatpush1.bf16.msra.mxu0 %v6687
        %7001 = vmatprep.subr.bf16.mxu0 %v6692
        %7002 = vmatpush1.bf16.msra.mxu0 %v6691
        %7003 = vmatprep.subr.bf16.mxu0 %v6696
        %7004 = vmatpush1.bf16.msra.mxu0 %v6695
        %7005 = vmatprep.subr.bf16.mxu0 %v6700
        %7006 = vmatpush1.bf16.msra.mxu0 %v6699
        %7007 = vmatprep.mubr.bf16.mxu0 %v6246
        %7008 = vmatmul.mubr.bf16.gmra.mrb[0].mxu0 %v6245
        %v7009 = vpop.f32.mrb[0].mxu0
        %v7010 = vadd.f32 0.0, %v7009
        %v7011 = vpop.f32.mrb[0].mxu0
        %v7012 = vadd.f32 0.0, %v7011
        %v7013 = vpop.f32.mrb[0].mxu0
        %v7014 = vpop.f32.mrb[0].mxu0
        %7015 = vdwg.mxu0
        %7016 = vmatprep.subr.bf16.mxu0 %v6704
        %7017 = vmatpush1.bf16.msra.mxu0 %v6703
        %7018 = vmatprep.subr.bf16.mxu0 %v6708
        %7019 = vmatpush1.bf16.msra.mxu0 %v6707
        %7020 = vmatprep.subr.bf16.mxu0 %v6712
        %7021 = vmatpush1.bf16.msra.mxu0 %v6711
        %7022 = vmatprep.subr.bf16.mxu0 %v6716
        %7023 = vmatpush1.bf16.msra.mxu0 %v6715
        %7024 = vmatprep.subr.bf16.mxu0 %v6720
        %7025 = vmatpush1.bf16.msra.mxu0 %v6719
        %7026 = vmatprep.subr.bf16.mxu0 %v6724
        %7027 = vmatpush1.bf16.msra.mxu0 %v6723
        %7028 = vmatprep.subr.bf16.mxu0 %v6728
        %7029 = vmatpush1.bf16.msra.mxu0 %v6727
        %7030 = vmatprep.subr.bf16.mxu0 %v6732
        %7031 = vmatpush1.bf16.msra.mxu0 %v6731
        %7032 = vmatprep.subr.bf16.mxu0 %v6736
        %7033 = vmatpush1.bf16.msra.mxu0 %v6735
        %7034 = vmatprep.subr.bf16.mxu0 %v6740
        %7035 = vmatpush1.bf16.msra.mxu0 %v6739
        %7036 = vmatprep.subr.bf16.mxu0 %v6744
        %7037 = vmatpush1.bf16.msra.mxu0 %v6743
        %7038 = vmatprep.subr.bf16.mxu0 %v6748
        %7039 = vmatpush1.bf16.msra.mxu0 %v6747
        %7040 = vmatprep.subr.bf16.mxu0 %v6752
        %7041 = vmatpush1.bf16.msra.mxu0 %v6751
        %7042 = vmatprep.subr.bf16.mxu0 %v6756
        %7043 = vmatpush1.bf16.msra.mxu0 %v6755
        %7044 = vmatprep.subr.bf16.mxu0 %v6760
        %7045 = vmatpush1.bf16.msra.mxu0 %v6759
        %7046 = vmatprep.subr.bf16.mxu0 %v6764
        %7047 = vmatpush1.bf16.msra.mxu0 %v6763
        %7048 = vmatprep.mubr.bf16.mxu0 %v6248
        %7049 = vmatmul.mubr.bf16.gmra.mrb[0].mxu0 %v6247
        %v7050 = vpop.f32.mrb[0].mxu0
        %v7051 = vadd.f32 %v7010, %v7050
        %v7052 = vpop.f32.mrb[0].mxu0
        %v7053 = vadd.f32 %v7012, %v7052
        %v7054 = vpop.f32.mrb[0].mxu0
        %v7055 = vpop.f32.mrb[0].mxu0
        %7056 = vdwg.mxu0
        %v7057 = vadd.f32 %v6113, %v6969
        %v7058 = vadd.f32 %v6114, %v6971
        %v7059 = vadd.f32 %v6115, %v7051
        %v7060 = vadd.f32 %v6116, %v7053
        %v7061 = vld [vmem:[%s367 + $0x1800] sm:$0xff]
        %v7062 = vld [vmem:[%s367 + $0x1808] sm:$0xff]
        %v7063 = vld [vmem:[%s367 + $0x1810] sm:$0xff]
        %v7064 = vld [vmem:[%s367 + $0x1818] sm:$0xff]
        %v7065 = vld [vmem:[%s367 + $0x1820] sm:$0xff]
        %v7066 = vld [vmem:[%s367 + $0x1828] sm:$0xff]
        %v7067 = vld [vmem:[%s367 + $0x1830] sm:$0xff]
        %v7068 = vld [vmem:[%s367 + $0x1838] sm:$0xff]
        %v7069 = vld [vmem:[%s367 + $0x1840] sm:$0xff]
        %v7070 = vld [vmem:[%s367 + $0x1848] sm:$0xff]
        %v7071 = vld [vmem:[%s367 + $0x1850] sm:$0xff]
        %v7072 = vld [vmem:[%s367 + $0x1858] sm:$0xff]
        %v7073 = vld [vmem:[%s367 + $0x1860] sm:$0xff]
        %v7074 = vld [vmem:[%s367 + $0x1868] sm:$0xff]
        %v7075 = vld [vmem:[%s367 + $0x1870] sm:$0xff]
        %v7076 = vld [vmem:[%s367 + $0x1878] sm:$0xff]
        %v7077 = vld [vmem:[%s367 + $0x1880] sm:$0xff]
        %v7078 = vld [vmem:[%s367 + $0x1888] sm:$0xff]
        %v7079 = vld [vmem:[%s367 + $0x1890] sm:$0xff]
        %v7080 = vld [vmem:[%s367 + $0x1898] sm:$0xff]
        %v7081 = vld [vmem:[%s367 + $0x18a0] sm:$0xff]
        %v7082 = vld [vmem:[%s367 + $0x18a8] sm:$0xff]
        %v7083 = vld [vmem:[%s367 + $0x18b0] sm:$0xff]
        %v7084 = vld [vmem:[%s367 + $0x18b8] sm:$0xff]
        %v7085 = vld [vmem:[%s367 + $0x18c0] sm:$0xff]
        %v7086 = vld [vmem:[%s367 + $0x18c8] sm:$0xff]
        %v7087 = vld [vmem:[%s367 + $0x18d0] sm:$0xff]
        %v7088 = vld [vmem:[%s367 + $0x18d8] sm:$0xff]
        %v7089 = vld [vmem:[%s367 + $0x18e0] sm:$0xff]
        %v7090 = vld [vmem:[%s367 + $0x18e8] sm:$0xff]
        %v7091 = vld [vmem:[%s367 + $0x18f0] sm:$0xff]
        %v7092 = vld [vmem:[%s367 + $0x18f8] sm:$0xff]
        %v7093 = vld [vmem:[%s367 + $0x1900] sm:$0xff]
        %v7094 = vld [vmem:[%s367 + $0x1908] sm:$0xff]
        %v7095 = vld [vmem:[%s367 + $0x1910] sm:$0xff]
        %v7096 = vld [vmem:[%s367 + $0x1918] sm:$0xff]
        %v7097 = vld [vmem:[%s367 + $0x1920] sm:$0xff]
        %v7098 = vld [vmem:[%s367 + $0x1928] sm:$0xff]
        %v7099 = vld [vmem:[%s367 + $0x1930] sm:$0xff]
        %v7100 = vld [vmem:[%s367 + $0x1938] sm:$0xff]
        %v7101 = vld [vmem:[%s367 + $0x1940] sm:$0xff]
        %v7102 = vld [vmem:[%s367 + $0x1948] sm:$0xff]
        %v7103 = vld [vmem:[%s367 + $0x1950] sm:$0xff]
        %v7104 = vld [vmem:[%s367 + $0x1958] sm:$0xff]
        %v7105 = vld [vmem:[%s367 + $0x1960] sm:$0xff]
        %v7106 = vld [vmem:[%s367 + $0x1968] sm:$0xff]
        %v7107 = vld [vmem:[%s367 + $0x1970] sm:$0xff]
        %v7108 = vld [vmem:[%s367 + $0x1978] sm:$0xff]
        %v7109 = vld [vmem:[%s367 + $0x1980] sm:$0xff]
        %v7110 = vld [vmem:[%s367 + $0x1988] sm:$0xff]
        %v7111 = vld [vmem:[%s367 + $0x1990] sm:$0xff]
        %v7112 = vld [vmem:[%s367 + $0x1998] sm:$0xff]
        %v7113 = vld [vmem:[%s367 + $0x19a0] sm:$0xff]
        %v7114 = vld [vmem:[%s367 + $0x19a8] sm:$0xff]
        %v7115 = vld [vmem:[%s367 + $0x19b0] sm:$0xff]
        %v7116 = vld [vmem:[%s367 + $0x19b8] sm:$0xff]
        %v7117 = vld [vmem:[%s367 + $0x19c0] sm:$0xff]
        %v7118 = vld [vmem:[%s367 + $0x19c8] sm:$0xff]
        %v7119 = vld [vmem:[%s367 + $0x19d0] sm:$0xff]
        %v7120 = vld [vmem:[%s367 + $0x19d8] sm:$0xff]
        %v7121 = vld [vmem:[%s367 + $0x19e0] sm:$0xff]
        %v7122 = vld [vmem:[%s367 + $0x19e8] sm:$0xff]
        %v7123 = vld [vmem:[%s367 + $0x19f0] sm:$0xff]
        %v7124 = vld [vmem:[%s367 + $0x19f8] sm:$0xff]
        %v7125 = vld [vmem:[%s367 + $0x1a00] sm:$0xff]
        %v7126 = vld [vmem:[%s367 + $0x1a08] sm:$0xff]
        %v7127 = vld [vmem:[%s367 + $0x1a10] sm:$0xff]
        %v7128 = vld [vmem:[%s367 + $0x1a18] sm:$0xff]
        %v7129 = vld [vmem:[%s367 + $0x1a20] sm:$0xff]
        %v7130 = vld [vmem:[%s367 + $0x1a28] sm:$0xff]
        %v7131 = vld [vmem:[%s367 + $0x1a30] sm:$0xff]
        %v7132 = vld [vmem:[%s367 + $0x1a38] sm:$0xff]
        %v7133 = vld [vmem:[%s367 + $0x1a40] sm:$0xff]
        %v7134 = vld [vmem:[%s367 + $0x1a48] sm:$0xff]
        %v7135 = vld [vmem:[%s367 + $0x1a50] sm:$0xff]
        %v7136 = vld [vmem:[%s367 + $0x1a58] sm:$0xff]
        %v7137 = vld [vmem:[%s367 + $0x1a60] sm:$0xff]
        %v7138 = vld [vmem:[%s367 + $0x1a68] sm:$0xff]
        %v7139 = vld [vmem:[%s367 + $0x1a70] sm:$0xff]
        %v7140 = vld [vmem:[%s367 + $0x1a78] sm:$0xff]
        %v7141 = vld [vmem:[%s367 + $0x1a80] sm:$0xff]
        %v7142 = vld [vmem:[%s367 + $0x1a88] sm:$0xff]
        %v7143 = vld [vmem:[%s367 + $0x1a90] sm:$0xff]
        %v7144 = vld [vmem:[%s367 + $0x1a98] sm:$0xff]
        %v7145 = vld [vmem:[%s367 + $0x1aa0] sm:$0xff]
        %v7146 = vld [vmem:[%s367 + $0x1aa8] sm:$0xff]
        %v7147 = vld [vmem:[%s367 + $0x1ab0] sm:$0xff]
        %v7148 = vld [vmem:[%s367 + $0x1ab8] sm:$0xff]
        %v7149 = vld [vmem:[%s367 + $0x1ac0] sm:$0xff]
        %v7150 = vld [vmem:[%s367 + $0x1ac8] sm:$0xff]
        %v7151 = vld [vmem:[%s367 + $0x1ad0] sm:$0xff]
        %v7152 = vld [vmem:[%s367 + $0x1ad8] sm:$0xff]
        %v7153 = vld [vmem:[%s367 + $0x1ae0] sm:$0xff]
        %v7154 = vld [vmem:[%s367 + $0x1ae8] sm:$0xff]
        %v7155 = vld [vmem:[%s367 + $0x1af0] sm:$0xff]
        %v7156 = vld [vmem:[%s367 + $0x1af8] sm:$0xff]
        %v7157 = vld [vmem:[%s367 + $0x1b00] sm:$0xff]
        %v7158 = vld [vmem:[%s367 + $0x1b08] sm:$0xff]
        %v7159 = vld [vmem:[%s367 + $0x1b10] sm:$0xff]
        %v7160 = vld [vmem:[%s367 + $0x1b18] sm:$0xff]
        %v7161 = vld [vmem:[%s367 + $0x1b20] sm:$0xff]
        %v7162 = vld [vmem:[%s367 + $0x1b28] sm:$0xff]
        %v7163 = vld [vmem:[%s367 + $0x1b30] sm:$0xff]
        %v7164 = vld [vmem:[%s367 + $0x1b38] sm:$0xff]
        %v7165 = vld [vmem:[%s367 + $0x1b40] sm:$0xff]
        %v7166 = vld [vmem:[%s367 + $0x1b48] sm:$0xff]
        %v7167 = vld [vmem:[%s367 + $0x1b50] sm:$0xff]
        %v7168 = vld [vmem:[%s367 + $0x1b58] sm:$0xff]
        %v7169 = vld [vmem:[%s367 + $0x1b60] sm:$0xff]
        %v7170 = vld [vmem:[%s367 + $0x1b68] sm:$0xff]
        %v7171 = vld [vmem:[%s367 + $0x1b70] sm:$0xff]
        %v7172 = vld [vmem:[%s367 + $0x1b78] sm:$0xff]
        %v7173 = vld [vmem:[%s367 + $0x1b80] sm:$0xff]
        %v7174 = vld [vmem:[%s367 + $0x1b88] sm:$0xff]
        %v7175 = vld [vmem:[%s367 + $0x1b90] sm:$0xff]
        %v7176 = vld [vmem:[%s367 + $0x1b98] sm:$0xff]
        %v7177 = vld [vmem:[%s367 + $0x1ba0] sm:$0xff]
        %v7178 = vld [vmem:[%s367 + $0x1ba8] sm:$0xff]
        %v7179 = vld [vmem:[%s367 + $0x1bb0] sm:$0xff]
        %v7180 = vld [vmem:[%s367 + $0x1bb8] sm:$0xff]
        %v7181 = vld [vmem:[%s367 + $0x1bc0] sm:$0xff]
        %v7182 = vld [vmem:[%s367 + $0x1bc8] sm:$0xff]
        %v7183 = vld [vmem:[%s367 + $0x1bd0] sm:$0xff]
        %v7184 = vld [vmem:[%s367 + $0x1bd8] sm:$0xff]
        %v7185 = vld [vmem:[%s367 + $0x1be0] sm:$0xff]
        %v7186 = vld [vmem:[%s367 + $0x1be8] sm:$0xff]
        %v7187 = vld [vmem:[%s367 + $0x1bf0] sm:$0xff]
        %v7188 = vld [vmem:[%s367 + $0x1bf8] sm:$0xff]
        %v7189 = vrot.slane %v1397, 3
        %v7190 = vrot.slane %v1398, 3
        %v7191 = vrot.slane %v1399, 3
        %v7192 = vrot.slane %v1400, 3
        %v7325 = vunpack.c.l.b16 %v7061
        %v7326 = vunpack.c.h.b16 %v7061
        %v7327 = vunpack.c.l.b16 %v7062
        %v7328 = vunpack.c.h.b16 %v7062
        %v7329 = vunpack.c.l.b16 %v7063
        %v7330 = vunpack.c.h.b16 %v7063
        %v7331 = vunpack.c.l.b16 %v7064
        %v7332 = vunpack.c.h.b16 %v7064
        %v7333 = vunpack.c.l.b16 %v7065
        %v7334 = vunpack.c.h.b16 %v7065
        %v7335 = vunpack.c.l.b16 %v7066
        %v7336 = vunpack.c.h.b16 %v7066
        %v7337 = vunpack.c.l.b16 %v7067
        %v7338 = vunpack.c.h.b16 %v7067
        %v7339 = vunpack.c.l.b16 %v7068
        %v7340 = vunpack.c.h.b16 %v7068
        %v7341 = vunpack.c.l.b16 %v7069
        %v7342 = vunpack.c.h.b16 %v7069
        %v7343 = vunpack.c.l.b16 %v7070
        %v7344 = vunpack.c.h.b16 %v7070
        %v7345 = vunpack.c.l.b16 %v7071
        %v7346 = vunpack.c.h.b16 %v7071
        %v7347 = vunpack.c.l.b16 %v7072
        %v7348 = vunpack.c.h.b16 %v7072
        %v7349 = vunpack.c.l.b16 %v7073
        %v7350 = vunpack.c.h.b16 %v7073
        %v7351 = vunpack.c.l.b16 %v7074
        %v7352 = vunpack.c.h.b16 %v7074
        %v7353 = vunpack.c.l.b16 %v7075
        %v7354 = vunpack.c.h.b16 %v7075
        %v7355 = vunpack.c.l.b16 %v7076
        %v7356 = vunpack.c.h.b16 %v7076
        %v7357 = vunpack.c.l.b16 %v7077
        %v7358 = vunpack.c.h.b16 %v7077
        %v7359 = vunpack.c.l.b16 %v7078
        %v7360 = vunpack.c.h.b16 %v7078
        %v7361 = vunpack.c.l.b16 %v7079
        %v7362 = vunpack.c.h.b16 %v7079
        %v7363 = vunpack.c.l.b16 %v7080
        %v7364 = vunpack.c.h.b16 %v7080
        %v7365 = vunpack.c.l.b16 %v7081
        %v7366 = vunpack.c.h.b16 %v7081
        %v7367 = vunpack.c.l.b16 %v7082
        %v7368 = vunpack.c.h.b16 %v7082
        %v7369 = vunpack.c.l.b16 %v7083
        %v7370 = vunpack.c.h.b16 %v7083
        %v7371 = vunpack.c.l.b16 %v7084
        %v7372 = vunpack.c.h.b16 %v7084
        %v7373 = vunpack.c.l.b16 %v7085
        %v7374 = vunpack.c.h.b16 %v7085
        %v7375 = vunpack.c.l.b16 %v7086
        %v7376 = vunpack.c.h.b16 %v7086
        %v7377 = vunpack.c.l.b16 %v7087
        %v7378 = vunpack.c.h.b16 %v7087
        %v7379 = vunpack.c.l.b16 %v7088
        %v7380 = vunpack.c.h.b16 %v7088
        %v7381 = vunpack.c.l.b16 %v7089
        %v7382 = vunpack.c.h.b16 %v7089
        %v7383 = vunpack.c.l.b16 %v7090
        %v7384 = vunpack.c.h.b16 %v7090
        %v7385 = vunpack.c.l.b16 %v7091
        %v7386 = vunpack.c.h.b16 %v7091
        %v7387 = vunpack.c.l.b16 %v7092
        %v7388 = vunpack.c.h.b16 %v7092
        %v7389 = vunpack.c.l.b16 %v7093
        %v7390 = vunpack.c.h.b16 %v7093
        %v7391 = vunpack.c.l.b16 %v7094
        %v7392 = vunpack.c.h.b16 %v7094
        %v7393 = vunpack.c.l.b16 %v7095
        %v7394 = vunpack.c.h.b16 %v7095
        %v7395 = vunpack.c.l.b16 %v7096
        %v7396 = vunpack.c.h.b16 %v7096
        %v7397 = vunpack.c.l.b16 %v7097
        %v7398 = vunpack.c.h.b16 %v7097
        %v7399 = vunpack.c.l.b16 %v7098
        %v7400 = vunpack.c.h.b16 %v7098
        %v7401 = vunpack.c.l.b16 %v7099
        %v7402 = vunpack.c.h.b16 %v7099
        %v7403 = vunpack.c.l.b16 %v7100
        %v7404 = vunpack.c.h.b16 %v7100
        %v7405 = vunpack.c.l.b16 %v7101
        %v7406 = vunpack.c.h.b16 %v7101
        %v7407 = vunpack.c.l.b16 %v7102
        %v7408 = vunpack.c.h.b16 %v7102
        %v7409 = vunpack.c.l.b16 %v7103
        %v7410 = vunpack.c.h.b16 %v7103
        %v7411 = vunpack.c.l.b16 %v7104
        %v7412 = vunpack.c.h.b16 %v7104
        %v7413 = vunpack.c.l.b16 %v7105
        %v7414 = vunpack.c.h.b16 %v7105
        %v7415 = vunpack.c.l.b16 %v7106
        %v7416 = vunpack.c.h.b16 %v7106
        %v7417 = vunpack.c.l.b16 %v7107
        %v7418 = vunpack.c.h.b16 %v7107
        %v7419 = vunpack.c.l.b16 %v7108
        %v7420 = vunpack.c.h.b16 %v7108
        %v7421 = vunpack.c.l.b16 %v7109
        %v7422 = vunpack.c.h.b16 %v7109
        %v7423 = vunpack.c.l.b16 %v7110
        %v7424 = vunpack.c.h.b16 %v7110
        %v7425 = vunpack.c.l.b16 %v7111
        %v7426 = vunpack.c.h.b16 %v7111
        %v7427 = vunpack.c.l.b16 %v7112
        %v7428 = vunpack.c.h.b16 %v7112
        %v7429 = vunpack.c.l.b16 %v7113
        %v7430 = vunpack.c.h.b16 %v7113
        %v7431 = vunpack.c.l.b16 %v7114
        %v7432 = vunpack.c.h.b16 %v7114
        %v7433 = vunpack.c.l.b16 %v7115
        %v7434 = vunpack.c.h.b16 %v7115
        %v7435 = vunpack.c.l.b16 %v7116
        %v7436 = vunpack.c.h.b16 %v7116
        %v7437 = vunpack.c.l.b16 %v7117
        %v7438 = vunpack.c.h.b16 %v7117
        %v7439 = vunpack.c.l.b16 %v7118
        %v7440 = vunpack.c.h.b16 %v7118
        %v7441 = vunpack.c.l.b16 %v7119
        %v7442 = vunpack.c.h.b16 %v7119
        %v7443 = vunpack.c.l.b16 %v7120
        %v7444 = vunpack.c.h.b16 %v7120
        %v7445 = vunpack.c.l.b16 %v7121
        %v7446 = vunpack.c.h.b16 %v7121
        %v7447 = vunpack.c.l.b16 %v7122
        %v7448 = vunpack.c.h.b16 %v7122
        %v7449 = vunpack.c.l.b16 %v7123
        %v7450 = vunpack.c.h.b16 %v7123
        %v7451 = vunpack.c.l.b16 %v7124
        %v7452 = vunpack.c.h.b16 %v7124
        %v7453 = vunpack.c.l.b16 %v7125
        %v7454 = vunpack.c.h.b16 %v7125
        %v7455 = vunpack.c.l.b16 %v7126
        %v7456 = vunpack.c.h.b16 %v7126
        %v7457 = vunpack.c.l.b16 %v7127
        %v7458 = vunpack.c.h.b16 %v7127
        %v7459 = vunpack.c.l.b16 %v7128
        %v7460 = vunpack.c.h.b16 %v7128
        %v7461 = vunpack.c.l.b16 %v7129
        %v7462 = vunpack.c.h.b16 %v7129
        %v7463 = vunpack.c.l.b16 %v7130
        %v7464 = vunpack.c.h.b16 %v7130
        %v7465 = vunpack.c.l.b16 %v7131
        %v7466 = vunpack.c.h.b16 %v7131
        %v7467 = vunpack.c.l.b16 %v7132
        %v7468 = vunpack.c.h.b16 %v7132
        %v7469 = vunpack.c.l.b16 %v7133
        %v7470 = vunpack.c.h.b16 %v7133
        %v7471 = vunpack.c.l.b16 %v7134
        %v7472 = vunpack.c.h.b16 %v7134
        %v7473 = vunpack.c.l.b16 %v7135
        %v7474 = vunpack.c.h.b16 %v7135
        %v7475 = vunpack.c.l.b16 %v7136
        %v7476 = vunpack.c.h.b16 %v7136
        %v7477 = vunpack.c.l.b16 %v7137
        %v7478 = vunpack.c.h.b16 %v7137
        %v7479 = vunpack.c.l.b16 %v7138
        %v7480 = vunpack.c.h.b16 %v7138
        %v7481 = vunpack.c.l.b16 %v7139
        %v7482 = vunpack.c.h.b16 %v7139
        %v7483 = vunpack.c.l.b16 %v7140
        %v7484 = vunpack.c.h.b16 %v7140
        %v7485 = vunpack.c.l.b16 %v7141
        %v7486 = vunpack.c.h.b16 %v7141
        %v7487 = vunpack.c.l.b16 %v7142
        %v7488 = vunpack.c.h.b16 %v7142
        %v7489 = vunpack.c.l.b16 %v7143
        %v7490 = vunpack.c.h.b16 %v7143
        %v7491 = vunpack.c.l.b16 %v7144
        %v7492 = vunpack.c.h.b16 %v7144
        %v7493 = vunpack.c.l.b16 %v7145
        %v7494 = vunpack.c.h.b16 %v7145
        %v7495 = vunpack.c.l.b16 %v7146
        %v7496 = vunpack.c.h.b16 %v7146
        %v7497 = vunpack.c.l.b16 %v7147
        %v7498 = vunpack.c.h.b16 %v7147
        %v7499 = vunpack.c.l.b16 %v7148
        %v7500 = vunpack.c.h.b16 %v7148
        %v7501 = vunpack.c.l.b16 %v7149
        %v7502 = vunpack.c.h.b16 %v7149
        %v7503 = vunpack.c.l.b16 %v7150
        %v7504 = vunpack.c.h.b16 %v7150
        %v7505 = vunpack.c.l.b16 %v7151
        %v7506 = vunpack.c.h.b16 %v7151
        %v7507 = vunpack.c.l.b16 %v7152
        %v7508 = vunpack.c.h.b16 %v7152
        %v7509 = vunpack.c.l.b16 %v7153
        %v7510 = vunpack.c.h.b16 %v7153
        %v7511 = vunpack.c.l.b16 %v7154
        %v7512 = vunpack.c.h.b16 %v7154
        %v7513 = vunpack.c.l.b16 %v7155
        %v7514 = vunpack.c.h.b16 %v7155
        %v7515 = vunpack.c.l.b16 %v7156
        %v7516 = vunpack.c.h.b16 %v7156
        %v7517 = vunpack.c.l.b16 %v7157
        %v7518 = vunpack.c.h.b16 %v7157
        %v7519 = vunpack.c.l.b16 %v7158
        %v7520 = vunpack.c.h.b16 %v7158
        %v7521 = vunpack.c.l.b16 %v7159
        %v7522 = vunpack.c.h.b16 %v7159
        %v7523 = vunpack.c.l.b16 %v7160
        %v7524 = vunpack.c.h.b16 %v7160
        %v7525 = vunpack.c.l.b16 %v7161
        %v7526 = vunpack.c.h.b16 %v7161
        %v7527 = vunpack.c.l.b16 %v7162
        %v7528 = vunpack.c.h.b16 %v7162
        %v7529 = vunpack.c.l.b16 %v7163
        %v7530 = vunpack.c.h.b16 %v7163
        %v7531 = vunpack.c.l.b16 %v7164
        %v7532 = vunpack.c.h.b16 %v7164
        %v7533 = vunpack.c.l.b16 %v7165
        %v7534 = vunpack.c.h.b16 %v7165
        %v7535 = vunpack.c.l.b16 %v7166
        %v7536 = vunpack.c.h.b16 %v7166
        %v7537 = vunpack.c.l.b16 %v7167
        %v7538 = vunpack.c.h.b16 %v7167
        %v7539 = vunpack.c.l.b16 %v7168
        %v7540 = vunpack.c.h.b16 %v7168
        %v7541 = vunpack.c.l.b16 %v7169
        %v7542 = vunpack.c.h.b16 %v7169
        %v7543 = vunpack.c.l.b16 %v7170
        %v7544 = vunpack.c.h.b16 %v7170
        %v7545 = vunpack.c.l.b16 %v7171
        %v7546 = vunpack.c.h.b16 %v7171
        %v7547 = vunpack.c.l.b16 %v7172
        %v7548 = vunpack.c.h.b16 %v7172
        %v7549 = vunpack.c.l.b16 %v7173
        %v7550 = vunpack.c.h.b16 %v7173
        %v7551 = vunpack.c.l.b16 %v7174
        %v7552 = vunpack.c.h.b16 %v7174
        %v7553 = vunpack.c.l.b16 %v7175
        %v7554 = vunpack.c.h.b16 %v7175
        %v7555 = vunpack.c.l.b16 %v7176
        %v7556 = vunpack.c.h.b16 %v7176
        %v7557 = vunpack.c.l.b16 %v7177
        %v7558 = vunpack.c.h.b16 %v7177
        %v7559 = vunpack.c.l.b16 %v7178
        %v7560 = vunpack.c.h.b16 %v7178
        %v7561 = vunpack.c.l.b16 %v7179
        %v7562 = vunpack.c.h.b16 %v7179
        %v7563 = vunpack.c.l.b16 %v7180
        %v7564 = vunpack.c.h.b16 %v7180
        %v7565 = vunpack.c.l.b16 %v7181
        %v7566 = vunpack.c.h.b16 %v7181
        %v7567 = vunpack.c.l.b16 %v7182
        %v7568 = vunpack.c.h.b16 %v7182
        %v7569 = vunpack.c.l.b16 %v7183
        %v7570 = vunpack.c.h.b16 %v7183
        %v7571 = vunpack.c.l.b16 %v7184
        %v7572 = vunpack.c.h.b16 %v7184
        %v7573 = vunpack.c.l.b16 %v7185
        %v7574 = vunpack.c.h.b16 %v7185
        %v7575 = vunpack.c.l.b16 %v7186
        %v7576 = vunpack.c.h.b16 %v7186
        %v7577 = vunpack.c.l.b16 %v7187
        %v7578 = vunpack.c.h.b16 %v7187
        %v7579 = vunpack.c.l.b16 %v7188
        %v7580 = vunpack.c.h.b16 %v7188
        %v7581 = vpack.c.b16 %v7329, %v7325
        %v7582 = vpack.c.b16 %v7330, %v7326
        %v7583 = vpack.c.b16 %v7331, %v7327
        %v7584 = vpack.c.b16 %v7332, %v7328
        %v7585 = vpack.c.b16 %v7337, %v7333
        %v7586 = vpack.c.b16 %v7338, %v7334
        %v7587 = vpack.c.b16 %v7339, %v7335
        %v7588 = vpack.c.b16 %v7340, %v7336
        %v7589 = vpack.c.b16 %v7345, %v7341
        %v7590 = vpack.c.b16 %v7346, %v7342
        %v7591 = vpack.c.b16 %v7347, %v7343
        %v7592 = vpack.c.b16 %v7348, %v7344
        %v7593 = vpack.c.b16 %v7353, %v7349
        %v7594 = vpack.c.b16 %v7354, %v7350
        %v7595 = vpack.c.b16 %v7355, %v7351
        %v7596 = vpack.c.b16 %v7356, %v7352
        %v7597 = vpack.c.b16 %v7361, %v7357
        %v7598 = vpack.c.b16 %v7362, %v7358
        %v7599 = vpack.c.b16 %v7363, %v7359
        %v7600 = vpack.c.b16 %v7364, %v7360
        %v7601 = vpack.c.b16 %v7369, %v7365
        %v7602 = vpack.c.b16 %v7370, %v7366
        %v7603 = vpack.c.b16 %v7371, %v7367
        %v7604 = vpack.c.b16 %v7372, %v7368
        %v7605 = vpack.c.b16 %v7377, %v7373
        %v7606 = vpack.c.b16 %v7378, %v7374
        %v7607 = vpack.c.b16 %v7379, %v7375
        %v7608 = vpack.c.b16 %v7380, %v7376
        %v7609 = vpack.c.b16 %v7385, %v7381
        %v7610 = vpack.c.b16 %v7386, %v7382
        %v7611 = vpack.c.b16 %v7387, %v7383
        %v7612 = vpack.c.b16 %v7388, %v7384
        %v7613 = vpack.c.b16 %v7393, %v7389
        %v7614 = vpack.c.b16 %v7394, %v7390
        %v7615 = vpack.c.b16 %v7395, %v7391
        %v7616 = vpack.c.b16 %v7396, %v7392
        %v7617 = vpack.c.b16 %v7401, %v7397
        %v7618 = vpack.c.b16 %v7402, %v7398
        %v7619 = vpack.c.b16 %v7403, %v7399
        %v7620 = vpack.c.b16 %v7404, %v7400
        %v7621 = vpack.c.b16 %v7409, %v7405
        %v7622 = vpack.c.b16 %v7410, %v7406
        %v7623 = vpack.c.b16 %v7411, %v7407
        %v7624 = vpack.c.b16 %v7412, %v7408
        %v7625 = vpack.c.b16 %v7417, %v7413
        %v7626 = vpack.c.b16 %v7418, %v7414
        %v7627 = vpack.c.b16 %v7419, %v7415
        %v7628 = vpack.c.b16 %v7420, %v7416
        %v7629 = vpack.c.b16 %v7425, %v7421
        %v7630 = vpack.c.b16 %v7426, %v7422
        %v7631 = vpack.c.b16 %v7427, %v7423
        %v7632 = vpack.c.b16 %v7428, %v7424
        %v7633 = vpack.c.b16 %v7433, %v7429
        %v7634 = vpack.c.b16 %v7434, %v7430
        %v7635 = vpack.c.b16 %v7435, %v7431
        %v7636 = vpack.c.b16 %v7436, %v7432
        %v7637 = vpack.c.b16 %v7441, %v7437
        %v7638 = vpack.c.b16 %v7442, %v7438
        %v7639 = vpack.c.b16 %v7443, %v7439
        %v7640 = vpack.c.b16 %v7444, %v7440
        %v7641 = vpack.c.b16 %v7449, %v7445
        %v7642 = vpack.c.b16 %v7450, %v7446
        %v7643 = vpack.c.b16 %v7451, %v7447
        %v7644 = vpack.c.b16 %v7452, %v7448
        %v7645 = vpack.c.b16 %v7457, %v7453
        %v7646 = vpack.c.b16 %v7458, %v7454
        %v7647 = vpack.c.b16 %v7459, %v7455
        %v7648 = vpack.c.b16 %v7460, %v7456
        %v7649 = vpack.c.b16 %v7465, %v7461
        %v7650 = vpack.c.b16 %v7466, %v7462
        %v7651 = vpack.c.b16 %v7467, %v7463
        %v7652 = vpack.c.b16 %v7468, %v7464
        %v7653 = vpack.c.b16 %v7473, %v7469
        %v7654 = vpack.c.b16 %v7474, %v7470
        %v7655 = vpack.c.b16 %v7475, %v7471
        %v7656 = vpack.c.b16 %v7476, %v7472
        %v7657 = vpack.c.b16 %v7481, %v7477
        %v7658 = vpack.c.b16 %v7482, %v7478
        %v7659 = vpack.c.b16 %v7483, %v7479
        %v7660 = vpack.c.b16 %v7484, %v7480
        %v7661 = vpack.c.b16 %v7489, %v7485
        %v7662 = vpack.c.b16 %v7490, %v7486
        %v7663 = vpack.c.b16 %v7491, %v7487
        %v7664 = vpack.c.b16 %v7492, %v7488
        %v7665 = vpack.c.b16 %v7497, %v7493
        %v7666 = vpack.c.b16 %v7498, %v7494
        %v7667 = vpack.c.b16 %v7499, %v7495
        %v7668 = vpack.c.b16 %v7500, %v7496
        %v7669 = vpack.c.b16 %v7505, %v7501
        %v7670 = vpack.c.b16 %v7506, %v7502
        %v7671 = vpack.c.b16 %v7507, %v7503
        %v7672 = vpack.c.b16 %v7508, %v7504
        %v7673 = vpack.c.b16 %v7513, %v7509
        %v7674 = vpack.c.b16 %v7514, %v7510
        %v7675 = vpack.c.b16 %v7515, %v7511
        %v7676 = vpack.c.b16 %v7516, %v7512
        %v7677 = vpack.c.b16 %v7521, %v7517
        %v7678 = vpack.c.b16 %v7522, %v7518
        %v7679 = vpack.c.b16 %v7523, %v7519
        %v7680 = vpack.c.b16 %v7524, %v7520
        %v7681 = vpack.c.b16 %v7529, %v7525
        %v7682 = vpack.c.b16 %v7530, %v7526
        %v7683 = vpack.c.b16 %v7531, %v7527
        %v7684 = vpack.c.b16 %v7532, %v7528
        %v7685 = vpack.c.b16 %v7537, %v7533
        %v7686 = vpack.c.b16 %v7538, %v7534
        %v7687 = vpack.c.b16 %v7539, %v7535
        %v7688 = vpack.c.b16 %v7540, %v7536
        %v7689 = vpack.c.b16 %v7545, %v7541
        %v7690 = vpack.c.b16 %v7546, %v7542
        %v7691 = vpack.c.b16 %v7547, %v7543
        %v7692 = vpack.c.b16 %v7548, %v7544
        %v7693 = vpack.c.b16 %v7553, %v7549
        %v7694 = vpack.c.b16 %v7554, %v7550
        %v7695 = vpack.c.b16 %v7555, %v7551
        %v7696 = vpack.c.b16 %v7556, %v7552
        %v7697 = vpack.c.b16 %v7561, %v7557
        %v7698 = vpack.c.b16 %v7562, %v7558
        %v7699 = vpack.c.b16 %v7563, %v7559
        %v7700 = vpack.c.b16 %v7564, %v7560
        %v7701 = vpack.c.b16 %v7569, %v7565
        %v7702 = vpack.c.b16 %v7570, %v7566
        %v7703 = vpack.c.b16 %v7571, %v7567
        %v7704 = vpack.c.b16 %v7572, %v7568
        %v7705 = vpack.c.b16 %v7577, %v7573
        %v7706 = vpack.c.b16 %v7578, %v7574
        %v7707 = vpack.c.b16 %v7579, %v7575
        %v7708 = vpack.c.b16 %v7580, %v7576
        %7837 = vmatprep.subr.bf16.mxu0 %v7582
        %7838 = vmatpush1.bf16.msra.mxu0 %v7581
        %7839 = vmatprep.subr.bf16.mxu0 %v7586
        %7840 = vmatpush1.bf16.msra.mxu0 %v7585
        %7841 = vmatprep.subr.bf16.mxu0 %v7590
        %7842 = vmatpush1.bf16.msra.mxu0 %v7589
        %7843 = vmatprep.subr.bf16.mxu0 %v7594
        %7844 = vmatpush1.bf16.msra.mxu0 %v7593
        %7845 = vmatprep.subr.bf16.mxu0 %v7598
        %7846 = vmatpush1.bf16.msra.mxu0 %v7597
        %7847 = vmatprep.subr.bf16.mxu0 %v7602
        %7848 = vmatpush1.bf16.msra.mxu0 %v7601
        %7849 = vmatprep.subr.bf16.mxu0 %v7606
        %7850 = vmatpush1.bf16.msra.mxu0 %v7605
        %7851 = vmatprep.subr.bf16.mxu0 %v7610
        %7852 = vmatpush1.bf16.msra.mxu0 %v7609
        %7853 = vmatprep.subr.bf16.mxu0 %v7614
        %7854 = vmatpush1.bf16.msra.mxu0 %v7613
        %7855 = vmatprep.subr.bf16.mxu0 %v7618
        %7856 = vmatpush1.bf16.msra.mxu0 %v7617
        %7857 = vmatprep.subr.bf16.mxu0 %v7622
        %7858 = vmatpush1.bf16.msra.mxu0 %v7621
        %7859 = vmatprep.subr.bf16.mxu0 %v7626
        %7860 = vmatpush1.bf16.msra.mxu0 %v7625
        %7861 = vmatprep.subr.bf16.mxu0 %v7630
        %7862 = vmatpush1.bf16.msra.mxu0 %v7629
        %7863 = vmatprep.subr.bf16.mxu0 %v7634
        %7864 = vmatpush1.bf16.msra.mxu0 %v7633
        %7865 = vmatprep.subr.bf16.mxu0 %v7638
        %7866 = vmatpush1.bf16.msra.mxu0 %v7637
        %7867 = vmatprep.subr.bf16.mxu0 %v7642
        %7868 = vmatpush1.bf16.msra.mxu0 %v7641
        %7869 = vmatprep.mubr.bf16.mxu0 %v7190
        %7870 = vmatmul.mubr.bf16.gmra.mrb[0].mxu0 %v7189
        %v7871 = vpop.f32.mrb[0].mxu0
        %v7872 = vadd.f32 0.0, %v7871
        %v7873 = vpop.f32.mrb[0].mxu0
        %v7874 = vadd.f32 0.0, %v7873
        %v7875 = vpop.f32.mrb[0].mxu0
        %v7876 = vpop.f32.mrb[0].mxu0
        %7877 = vdwg.mxu0
        %7878 = vmatprep.subr.bf16.mxu0 %v7646
        %7879 = vmatpush1.bf16.msra.mxu0 %v7645
        %7880 = vmatprep.subr.bf16.mxu0 %v7650
        %7881 = vmatpush1.bf16.msra.mxu0 %v7649
        %7882 = vmatprep.subr.bf16.mxu0 %v7654
        %7883 = vmatpush1.bf16.msra.mxu0 %v7653
        %7884 = vmatprep.subr.bf16.mxu0 %v7658
        %7885 = vmatpush1.bf16.msra.mxu0 %v7657
        %7886 = vmatprep.subr.bf16.mxu0 %v7662
        %7887 = vmatpush1.bf16.msra.mxu0 %v7661
        %7888 = vmatprep.subr.bf16.mxu0 %v7666
        %7889 = vmatpush1.bf16.msra.mxu0 %v7665
        %7890 = vmatprep.subr.bf16.mxu0 %v7670
        %7891 = vmatpush1.bf16.msra.mxu0 %v7669
        %7892 = vmatprep.subr.bf16.mxu0 %v7674
        %7893 = vmatpush1.bf16.msra.mxu0 %v7673
        %7894 = vmatprep.subr.bf16.mxu0 %v7678
        %7895 = vmatpush1.bf16.msra.mxu0 %v7677
        %7896 = vmatprep.subr.bf16.mxu0 %v7682
        %7897 = vmatpush1.bf16.msra.mxu0 %v7681
        %7898 = vmatprep.subr.bf16.mxu0 %v7686
        %7899 = vmatpush1.bf16.msra.mxu0 %v7685
        %7900 = vmatprep.subr.bf16.mxu0 %v7690
        %7901 = vmatpush1.bf16.msra.mxu0 %v7689
        %7902 = vmatprep.subr.bf16.mxu0 %v7694
        %7903 = vmatpush1.bf16.msra.mxu0 %v7693
        %7904 = vmatprep.subr.bf16.mxu0 %v7698
        %7905 = vmatpush1.bf16.msra.mxu0 %v7697
        %7906 = vmatprep.subr.bf16.mxu0 %v7702
        %7907 = vmatpush1.bf16.msra.mxu0 %v7701
        %7908 = vmatprep.subr.bf16.mxu0 %v7706
        %7909 = vmatpush1.bf16.msra.mxu0 %v7705
        %7910 = vmatprep.mubr.bf16.mxu0 %v7192
        %7911 = vmatmul.mubr.bf16.gmra.mrb[0].mxu0 %v7191
        %v7912 = vpop.f32.mrb[0].mxu0
        %v7913 = vadd.f32 %v7872, %v7912
        %v7914 = vpop.f32.mrb[0].mxu0
        %v7915 = vadd.f32 %v7874, %v7914
        %v7916 = vpop.f32.mrb[0].mxu0
        %v7917 = vpop.f32.mrb[0].mxu0
        %7918 = vdwg.mxu0
        %7919 = vmatprep.subr.bf16.mxu0 %v7584
        %7920 = vmatpush1.bf16.msra.mxu0 %v7583
        %7921 = vmatprep.subr.bf16.mxu0 %v7588
        %7922 = vmatpush1.bf16.msra.mxu0 %v7587
        %7923 = vmatprep.subr.bf16.mxu0 %v7592
        %7924 = vmatpush1.bf16.msra.mxu0 %v7591
        %7925 = vmatprep.subr.bf16.mxu0 %v7596
        %7926 = vmatpush1.bf16.msra.mxu0 %v7595
        %7927 = vmatprep.subr.bf16.mxu0 %v7600
        %7928 = vmatpush1.bf16.msra.mxu0 %v7599
        %7929 = vmatprep.subr.bf16.mxu0 %v7604
        %7930 = vmatpush1.bf16.msra.mxu0 %v7603
        %7931 = vmatprep.subr.bf16.mxu0 %v7608
        %7932 = vmatpush1.bf16.msra.mxu0 %v7607
        %7933 = vmatprep.subr.bf16.mxu0 %v7612
        %7934 = vmatpush1.bf16.msra.mxu0 %v7611
        %7935 = vmatprep.subr.bf16.mxu0 %v7616
        %7936 = vmatpush1.bf16.msra.mxu0 %v7615
        %7937 = vmatprep.subr.bf16.mxu0 %v7620
        %7938 = vmatpush1.bf16.msra.mxu0 %v7619
        %7939 = vmatprep.subr.bf16.mxu0 %v7624
        %7940 = vmatpush1.bf16.msra.mxu0 %v7623
        %7941 = vmatprep.subr.bf16.mxu0 %v7628
        %7942 = vmatpush1.bf16.msra.mxu0 %v7627
        %7943 = vmatprep.subr.bf16.mxu0 %v7632
        %7944 = vmatpush1.bf16.msra.mxu0 %v7631
        %7945 = vmatprep.subr.bf16.mxu0 %v7636
        %7946 = vmatpush1.bf16.msra.mxu0 %v7635
        %7947 = vmatprep.subr.bf16.mxu0 %v7640
        %7948 = vmatpush1.bf16.msra.mxu0 %v7639
        %7949 = vmatprep.subr.bf16.mxu0 %v7644
        %7950 = vmatpush1.bf16.msra.mxu0 %v7643
        %7951 = vmatprep.mubr.bf16.mxu0 %v7190
        %7952 = vmatmul.mubr.bf16.gmra.mrb[0].mxu0 %v7189
        %v7953 = vpop.f32.mrb[0].mxu0
        %v7954 = vadd.f32 0.0, %v7953
        %v7955 = vpop.f32.mrb[0].mxu0
        %v7956 = vadd.f32 0.0, %v7955
        %v7957 = vpop.f32.mrb[0].mxu0
        %v7958 = vpop.f32.mrb[0].mxu0
        %7959 = vdwg.mxu0
        %7960 = vmatprep.subr.bf16.mxu0 %v7648
        %7961 = vmatpush1.bf16.msra.mxu0 %v7647
        %7962 = vmatprep.subr.bf16.mxu0 %v7652
        %7963 = vmatpush1.bf16.msra.mxu0 %v7651
        %7964 = vmatprep.subr.bf16.mxu0 %v7656
        %7965 = vmatpush1.bf16.msra.mxu0 %v7655
        %7966 = vmatprep.subr.bf16.mxu0 %v7660
        %7967 = vmatpush1.bf16.msra.mxu0 %v7659
        %7968 = vmatprep.subr.bf16.mxu0 %v7664
        %7969 = vmatpush1.bf16.msra.mxu0 %v7663
        %7970 = vmatprep.subr.bf16.mxu0 %v7668
        %7971 = vmatpush1.bf16.msra.mxu0 %v7667
        %7972 = vmatprep.subr.bf16.mxu0 %v7672
        %7973 = vmatpush1.bf16.msra.mxu0 %v7671
        %7974 = vmatprep.subr.bf16.mxu0 %v7676
        %7975 = vmatpush1.bf16.msra.mxu0 %v7675
        %7976 = vmatprep.subr.bf16.mxu0 %v7680
        %7977 = vmatpush1.bf16.msra.mxu0 %v7679
        %7978 = vmatprep.subr.bf16.mxu0 %v7684
        %7979 = vmatpush1.bf16.msra.mxu0 %v7683
        %7980 = vmatprep.subr.bf16.mxu0 %v7688
        %7981 = vmatpush1.bf16.msra.mxu0 %v7687
        %7982 = vmatprep.subr.bf16.mxu0 %v7692
        %7983 = vmatpush1.bf16.msra.mxu0 %v7691
        %7984 = vmatprep.subr.bf16.mxu0 %v7696
        %7985 = vmatpush1.bf16.msra.mxu0 %v7695
        %7986 = vmatprep.subr.bf16.mxu0 %v7700
        %7987 = vmatpush1.bf16.msra.mxu0 %v7699
        %7988 = vmatprep.subr.bf16.mxu0 %v7704
        %7989 = vmatpush1.bf16.msra.mxu0 %v7703
        %7990 = vmatprep.subr.bf16.mxu0 %v7708
        %7991 = vmatpush1.bf16.msra.mxu0 %v7707
        %7992 = vmatprep.mubr.bf16.mxu0 %v7192
        %7993 = vmatmul.mubr.bf16.gmra.mrb[0].mxu0 %v7191
        %v7994 = vpop.f32.mrb[0].mxu0
        %v7995 = vadd.f32 %v7954, %v7994
        %v7996 = vpop.f32.mrb[0].mxu0
        %v7997 = vadd.f32 %v7956, %v7996
        %v7998 = vpop.f32.mrb[0].mxu0
        %v7999 = vpop.f32.mrb[0].mxu0
        %8000 = vdwg.mxu0
        %v8001 = vadd.f32 %v7057, %v7913
        %v8002 = vadd.f32 %v7058, %v7915
        %v8003 = vadd.f32 %v7059, %v7995
        %v8004 = vadd.f32 %v7060, %v7997
        %v8005 = vld [vmem:[%s367 + $0x1c00] sm:$0xff]
        %v8006 = vld [vmem:[%s367 + $0x1c08] sm:$0xff]
        %v8007 = vld [vmem:[%s367 + $0x1c10] sm:$0xff]
        %v8008 = vld [vmem:[%s367 + $0x1c18] sm:$0xff]
        %v8009 = vld [vmem:[%s367 + $0x1c20] sm:$0xff]
        %v8010 = vld [vmem:[%s367 + $0x1c28] sm:$0xff]
        %v8011 = vld [vmem:[%s367 + $0x1c30] sm:$0xff]
        %v8012 = vld [vmem:[%s367 + $0x1c38] sm:$0xff]
        %v8013 = vld [vmem:[%s367 + $0x1c40] sm:$0xff]
        %v8014 = vld [vmem:[%s367 + $0x1c48] sm:$0xff]
        %v8015 = vld [vmem:[%s367 + $0x1c50] sm:$0xff]
        %v8016 = vld [vmem:[%s367 + $0x1c58] sm:$0xff]
        %v8017 = vld [vmem:[%s367 + $0x1c60] sm:$0xff]
        %v8018 = vld [vmem:[%s367 + $0x1c68] sm:$0xff]
        %v8019 = vld [vmem:[%s367 + $0x1c70] sm:$0xff]
        %v8020 = vld [vmem:[%s367 + $0x1c78] sm:$0xff]
        %v8021 = vld [vmem:[%s367 + $0x1c80] sm:$0xff]
        %v8022 = vld [vmem:[%s367 + $0x1c88] sm:$0xff]
        %v8023 = vld [vmem:[%s367 + $0x1c90] sm:$0xff]
        %v8024 = vld [vmem:[%s367 + $0x1c98] sm:$0xff]
        %v8025 = vld [vmem:[%s367 + $0x1ca0] sm:$0xff]
        %v8026 = vld [vmem:[%s367 + $0x1ca8] sm:$0xff]
        %v8027 = vld [vmem:[%s367 + $0x1cb0] sm:$0xff]
        %v8028 = vld [vmem:[%s367 + $0x1cb8] sm:$0xff]
        %v8029 = vld [vmem:[%s367 + $0x1cc0] sm:$0xff]
        %v8030 = vld [vmem:[%s367 + $0x1cc8] sm:$0xff]
        %v8031 = vld [vmem:[%s367 + $0x1cd0] sm:$0xff]
        %v8032 = vld [vmem:[%s367 + $0x1cd8] sm:$0xff]
        %v8033 = vld [vmem:[%s367 + $0x1ce0] sm:$0xff]
        %v8034 = vld [vmem:[%s367 + $0x1ce8] sm:$0xff]
        %v8035 = vld [vmem:[%s367 + $0x1cf0] sm:$0xff]
        %v8036 = vld [vmem:[%s367 + $0x1cf8] sm:$0xff]
        %v8037 = vld [vmem:[%s367 + $0x1d00] sm:$0xff]
        %v8038 = vld [vmem:[%s367 + $0x1d08] sm:$0xff]
        %v8039 = vld [vmem:[%s367 + $0x1d10] sm:$0xff]
        %v8040 = vld [vmem:[%s367 + $0x1d18] sm:$0xff]
        %v8041 = vld [vmem:[%s367 + $0x1d20] sm:$0xff]
        %v8042 = vld [vmem:[%s367 + $0x1d28] sm:$0xff]
        %v8043 = vld [vmem:[%s367 + $0x1d30] sm:$0xff]
        %v8044 = vld [vmem:[%s367 + $0x1d38] sm:$0xff]
        %v8045 = vld [vmem:[%s367 + $0x1d40] sm:$0xff]
        %v8046 = vld [vmem:[%s367 + $0x1d48] sm:$0xff]
        %v8047 = vld [vmem:[%s367 + $0x1d50] sm:$0xff]
        %v8048 = vld [vmem:[%s367 + $0x1d58] sm:$0xff]
        %v8049 = vld [vmem:[%s367 + $0x1d60] sm:$0xff]
        %v8050 = vld [vmem:[%s367 + $0x1d68] sm:$0xff]
        %v8051 = vld [vmem:[%s367 + $0x1d70] sm:$0xff]
        %v8052 = vld [vmem:[%s367 + $0x1d78] sm:$0xff]
        %v8053 = vld [vmem:[%s367 + $0x1d80] sm:$0xff]
        %v8054 = vld [vmem:[%s367 + $0x1d88] sm:$0xff]
        %v8055 = vld [vmem:[%s367 + $0x1d90] sm:$0xff]
        %v8056 = vld [vmem:[%s367 + $0x1d98] sm:$0xff]
        %v8057 = vld [vmem:[%s367 + $0x1da0] sm:$0xff]
        %v8058 = vld [vmem:[%s367 + $0x1da8] sm:$0xff]
        %v8059 = vld [vmem:[%s367 + $0x1db0] sm:$0xff]
        %v8060 = vld [vmem:[%s367 + $0x1db8] sm:$0xff]
        %v8061 = vld [vmem:[%s367 + $0x1dc0] sm:$0xff]
        %v8062 = vld [vmem:[%s367 + $0x1dc8] sm:$0xff]
        %v8063 = vld [vmem:[%s367 + $0x1dd0] sm:$0xff]
        %v8064 = vld [vmem:[%s367 + $0x1dd8] sm:$0xff]
        %v8065 = vld [vmem:[%s367 + $0x1de0] sm:$0xff]
        %v8066 = vld [vmem:[%s367 + $0x1de8] sm:$0xff]
        %v8067 = vld [vmem:[%s367 + $0x1df0] sm:$0xff]
        %v8068 = vld [vmem:[%s367 + $0x1df8] sm:$0xff]
        %v8069 = vld [vmem:[%s367 + $0x1e00] sm:$0xff]
        %v8070 = vld [vmem:[%s367 + $0x1e08] sm:$0xff]
        %v8071 = vld [vmem:[%s367 + $0x1e10] sm:$0xff]
        %v8072 = vld [vmem:[%s367 + $0x1e18] sm:$0xff]
        %v8073 = vld [vmem:[%s367 + $0x1e20] sm:$0xff]
        %v8074 = vld [vmem:[%s367 + $0x1e28] sm:$0xff]
        %v8075 = vld [vmem:[%s367 + $0x1e30] sm:$0xff]
        %v8076 = vld [vmem:[%s367 + $0x1e38] sm:$0xff]
        %v8077 = vld [vmem:[%s367 + $0x1e40] sm:$0xff]
        %v8078 = vld [vmem:[%s367 + $0x1e48] sm:$0xff]
        %v8079 = vld [vmem:[%s367 + $0x1e50] sm:$0xff]
        %v8080 = vld [vmem:[%s367 + $0x1e58] sm:$0xff]
        %v8081 = vld [vmem:[%s367 + $0x1e60] sm:$0xff]
        %v8082 = vld [vmem:[%s367 + $0x1e68] sm:$0xff]
        %v8083 = vld [vmem:[%s367 + $0x1e70] sm:$0xff]
        %v8084 = vld [vmem:[%s367 + $0x1e78] sm:$0xff]
        %v8085 = vld [vmem:[%s367 + $0x1e80] sm:$0xff]
        %v8086 = vld [vmem:[%s367 + $0x1e88] sm:$0xff]
        %v8087 = vld [vmem:[%s367 + $0x1e90] sm:$0xff]
        %v8088 = vld [vmem:[%s367 + $0x1e98] sm:$0xff]
        %v8089 = vld [vmem:[%s367 + $0x1ea0] sm:$0xff]
        %v8090 = vld [vmem:[%s367 + $0x1ea8] sm:$0xff]
        %v8091 = vld [vmem:[%s367 + $0x1eb0] sm:$0xff]
        %v8092 = vld [vmem:[%s367 + $0x1eb8] sm:$0xff]
        %v8093 = vld [vmem:[%s367 + $0x1ec0] sm:$0xff]
        %v8094 = vld [vmem:[%s367 + $0x1ec8] sm:$0xff]
        %v8095 = vld [vmem:[%s367 + $0x1ed0] sm:$0xff]
        %v8096 = vld [vmem:[%s367 + $0x1ed8] sm:$0xff]
        %v8097 = vld [vmem:[%s367 + $0x1ee0] sm:$0xff]
        %v8098 = vld [vmem:[%s367 + $0x1ee8] sm:$0xff]
        %v8099 = vld [vmem:[%s367 + $0x1ef0] sm:$0xff]
        %v8100 = vld [vmem:[%s367 + $0x1ef8] sm:$0xff]
        %v8101 = vld [vmem:[%s367 + $0x1f00] sm:$0xff]
        %v8102 = vld [vmem:[%s367 + $0x1f08] sm:$0xff]
        %v8103 = vld [vmem:[%s367 + $0x1f10] sm:$0xff]
        %v8104 = vld [vmem:[%s367 + $0x1f18] sm:$0xff]
        %v8105 = vld [vmem:[%s367 + $0x1f20] sm:$0xff]
        %v8106 = vld [vmem:[%s367 + $0x1f28] sm:$0xff]
        %v8107 = vld [vmem:[%s367 + $0x1f30] sm:$0xff]
        %v8108 = vld [vmem:[%s367 + $0x1f38] sm:$0xff]
        %v8109 = vld [vmem:[%s367 + $0x1f40] sm:$0xff]
        %v8110 = vld [vmem:[%s367 + $0x1f48] sm:$0xff]
        %v8111 = vld [vmem:[%s367 + $0x1f50] sm:$0xff]
        %v8112 = vld [vmem:[%s367 + $0x1f58] sm:$0xff]
        %v8113 = vld [vmem:[%s367 + $0x1f60] sm:$0xff]
        %v8114 = vld [vmem:[%s367 + $0x1f68] sm:$0xff]
        %v8115 = vld [vmem:[%s367 + $0x1f70] sm:$0xff]
        %v8116 = vld [vmem:[%s367 + $0x1f78] sm:$0xff]
        %v8117 = vld [vmem:[%s367 + $0x1f80] sm:$0xff]
        %v8118 = vld [vmem:[%s367 + $0x1f88] sm:$0xff]
        %v8119 = vld [vmem:[%s367 + $0x1f90] sm:$0xff]
        %v8120 = vld [vmem:[%s367 + $0x1f98] sm:$0xff]
        %v8121 = vld [vmem:[%s367 + $0x1fa0] sm:$0xff]
        %v8122 = vld [vmem:[%s367 + $0x1fa8] sm:$0xff]
        %v8123 = vld [vmem:[%s367 + $0x1fb0] sm:$0xff]
        %v8124 = vld [vmem:[%s367 + $0x1fb8] sm:$0xff]
        %v8125 = vld [vmem:[%s367 + $0x1fc0] sm:$0xff]
        %v8126 = vld [vmem:[%s367 + $0x1fc8] sm:$0xff]
        %v8127 = vld [vmem:[%s367 + $0x1fd0] sm:$0xff]
        %v8128 = vld [vmem:[%s367 + $0x1fd8] sm:$0xff]
        %v8129 = vld [vmem:[%s367 + $0x1fe0] sm:$0xff]
        %v8130 = vld [vmem:[%s367 + $0x1fe8] sm:$0xff]
        %v8131 = vld [vmem:[%s367 + $0x1ff0] sm:$0xff]
        %v8132 = vld [vmem:[%s367 + $0x1ff8] sm:$0xff]
        %v8133 = vrot.slane %v1658, 3
        %v8134 = vrot.slane %v1661, 3
        %v8135 = vrot.slane %v1664, 3
        %v8136 = vrot.slane %v1667, 3
        %v8269 = vunpack.c.l.b16 %v8005
        %v8270 = vunpack.c.h.b16 %v8005
        %v8271 = vunpack.c.l.b16 %v8006
        %v8272 = vunpack.c.h.b16 %v8006
        %v8273 = vunpack.c.l.b16 %v8007
        %v8274 = vunpack.c.h.b16 %v8007
        %v8275 = vunpack.c.l.b16 %v8008
        %v8276 = vunpack.c.h.b16 %v8008
        %v8277 = vunpack.c.l.b16 %v8009
        %v8278 = vunpack.c.h.b16 %v8009
        %v8279 = vunpack.c.l.b16 %v8010
        %v8280 = vunpack.c.h.b16 %v8010
        %v8281 = vunpack.c.l.b16 %v8011
        %v8282 = vunpack.c.h.b16 %v8011
        %v8283 = vunpack.c.l.b16 %v8012
        %v8284 = vunpack.c.h.b16 %v8012
        %v8285 = vunpack.c.l.b16 %v8013
        %v8286 = vunpack.c.h.b16 %v8013
        %v8287 = vunpack.c.l.b16 %v8014
        %v8288 = vunpack.c.h.b16 %v8014
        %v8289 = vunpack.c.l.b16 %v8015
        %v8290 = vunpack.c.h.b16 %v8015
        %v8291 = vunpack.c.l.b16 %v8016
        %v8292 = vunpack.c.h.b16 %v8016
        %v8293 = vunpack.c.l.b16 %v8017
        %v8294 = vunpack.c.h.b16 %v8017
        %v8295 = vunpack.c.l.b16 %v8018
        %v8296 = vunpack.c.h.b16 %v8018
        %v8297 = vunpack.c.l.b16 %v8019
        %v8298 = vunpack.c.h.b16 %v8019
        %v8299 = vunpack.c.l.b16 %v8020
        %v8300 = vunpack.c.h.b16 %v8020
        %v8301 = vunpack.c.l.b16 %v8021
        %v8302 = vunpack.c.h.b16 %v8021
        %v8303 = vunpack.c.l.b16 %v8022
        %v8304 = vunpack.c.h.b16 %v8022
        %v8305 = vunpack.c.l.b16 %v8023
        %v8306 = vunpack.c.h.b16 %v8023
        %v8307 = vunpack.c.l.b16 %v8024
        %v8308 = vunpack.c.h.b16 %v8024
        %v8309 = vunpack.c.l.b16 %v8025
        %v8310 = vunpack.c.h.b16 %v8025
        %v8311 = vunpack.c.l.b16 %v8026
        %v8312 = vunpack.c.h.b16 %v8026
        %v8313 = vunpack.c.l.b16 %v8027
        %v8314 = vunpack.c.h.b16 %v8027
        %v8315 = vunpack.c.l.b16 %v8028
        %v8316 = vunpack.c.h.b16 %v8028
        %v8317 = vunpack.c.l.b16 %v8029
        %v8318 = vunpack.c.h.b16 %v8029
        %v8319 = vunpack.c.l.b16 %v8030
        %v8320 = vunpack.c.h.b16 %v8030
        %v8321 = vunpack.c.l.b16 %v8031
        %v8322 = vunpack.c.h.b16 %v8031
        %v8323 = vunpack.c.l.b16 %v8032
        %v8324 = vunpack.c.h.b16 %v8032
        %v8325 = vunpack.c.l.b16 %v8033
        %v8326 = vunpack.c.h.b16 %v8033
        %v8327 = vunpack.c.l.b16 %v8034
        %v8328 = vunpack.c.h.b16 %v8034
        %v8329 = vunpack.c.l.b16 %v8035
        %v8330 = vunpack.c.h.b16 %v8035
        %v8331 = vunpack.c.l.b16 %v8036
        %v8332 = vunpack.c.h.b16 %v8036
        %v8333 = vunpack.c.l.b16 %v8037
        %v8334 = vunpack.c.h.b16 %v8037
        %v8335 = vunpack.c.l.b16 %v8038
        %v8336 = vunpack.c.h.b16 %v8038
        %v8337 = vunpack.c.l.b16 %v8039
        %v8338 = vunpack.c.h.b16 %v8039
        %v8339 = vunpack.c.l.b16 %v8040
        %v8340 = vunpack.c.h.b16 %v8040
        %v8341 = vunpack.c.l.b16 %v8041
        %v8342 = vunpack.c.h.b16 %v8041
        %v8343 = vunpack.c.l.b16 %v8042
        %v8344 = vunpack.c.h.b16 %v8042
        %v8345 = vunpack.c.l.b16 %v8043
        %v8346 = vunpack.c.h.b16 %v8043
        %v8347 = vunpack.c.l.b16 %v8044
        %v8348 = vunpack.c.h.b16 %v8044
        %v8349 = vunpack.c.l.b16 %v8045
        %v8350 = vunpack.c.h.b16 %v8045
        %v8351 = vunpack.c.l.b16 %v8046
        %v8352 = vunpack.c.h.b16 %v8046
        %v8353 = vunpack.c.l.b16 %v8047
        %v8354 = vunpack.c.h.b16 %v8047
        %v8355 = vunpack.c.l.b16 %v8048
        %v8356 = vunpack.c.h.b16 %v8048
        %v8357 = vunpack.c.l.b16 %v8049
        %v8358 = vunpack.c.h.b16 %v8049
        %v8359 = vunpack.c.l.b16 %v8050
        %v8360 = vunpack.c.h.b16 %v8050
        %v8361 = vunpack.c.l.b16 %v8051
        %v8362 = vunpack.c.h.b16 %v8051
        %v8363 = vunpack.c.l.b16 %v8052
        %v8364 = vunpack.c.h.b16 %v8052
        %v8365 = vunpack.c.l.b16 %v8053
        %v8366 = vunpack.c.h.b16 %v8053
        %v8367 = vunpack.c.l.b16 %v8054
        %v8368 = vunpack.c.h.b16 %v8054
        %v8369 = vunpack.c.l.b16 %v8055
        %v8370 = vunpack.c.h.b16 %v8055
        %v8371 = vunpack.c.l.b16 %v8056
        %v8372 = vunpack.c.h.b16 %v8056
        %v8373 = vunpack.c.l.b16 %v8057
        %v8374 = vunpack.c.h.b16 %v8057
        %v8375 = vunpack.c.l.b16 %v8058
        %v8376 = vunpack.c.h.b16 %v8058
        %v8377 = vunpack.c.l.b16 %v8059
        %v8378 = vunpack.c.h.b16 %v8059
        %v8379 = vunpack.c.l.b16 %v8060
        %v8380 = vunpack.c.h.b16 %v8060
        %v8381 = vunpack.c.l.b16 %v8061
        %v8382 = vunpack.c.h.b16 %v8061
        %v8383 = vunpack.c.l.b16 %v8062
        %v8384 = vunpack.c.h.b16 %v8062
        %v8385 = vunpack.c.l.b16 %v8063
        %v8386 = vunpack.c.h.b16 %v8063
        %v8387 = vunpack.c.l.b16 %v8064
        %v8388 = vunpack.c.h.b16 %v8064
        %v8389 = vunpack.c.l.b16 %v8065
        %v8390 = vunpack.c.h.b16 %v8065
        %v8391 = vunpack.c.l.b16 %v8066
        %v8392 = vunpack.c.h.b16 %v8066
        %v8393 = vunpack.c.l.b16 %v8067
        %v8394 = vunpack.c.h.b16 %v8067
        %v8395 = vunpack.c.l.b16 %v8068
        %v8396 = vunpack.c.h.b16 %v8068
        %v8397 = vunpack.c.l.b16 %v8069
        %v8398 = vunpack.c.h.b16 %v8069
        %v8399 = vunpack.c.l.b16 %v8070
        %v8400 = vunpack.c.h.b16 %v8070
        %v8401 = vunpack.c.l.b16 %v8071
        %v8402 = vunpack.c.h.b16 %v8071
        %v8403 = vunpack.c.l.b16 %v8072
        %v8404 = vunpack.c.h.b16 %v8072
        %v8405 = vunpack.c.l.b16 %v8073
        %v8406 = vunpack.c.h.b16 %v8073
        %v8407 = vunpack.c.l.b16 %v8074
        %v8408 = vunpack.c.h.b16 %v8074
        %v8409 = vunpack.c.l.b16 %v8075
        %v8410 = vunpack.c.h.b16 %v8075
        %v8411 = vunpack.c.l.b16 %v8076
        %v8412 = vunpack.c.h.b16 %v8076
        %v8413 = vunpack.c.l.b16 %v8077
        %v8414 = vunpack.c.h.b16 %v8077
        %v8415 = vunpack.c.l.b16 %v8078
        %v8416 = vunpack.c.h.b16 %v8078
        %v8417 = vunpack.c.l.b16 %v8079
        %v8418 = vunpack.c.h.b16 %v8079
        %v8419 = vunpack.c.l.b16 %v8080
        %v8420 = vunpack.c.h.b16 %v8080
        %v8421 = vunpack.c.l.b16 %v8081
        %v8422 = vunpack.c.h.b16 %v8081
        %v8423 = vunpack.c.l.b16 %v8082
        %v8424 = vunpack.c.h.b16 %v8082
        %v8425 = vunpack.c.l.b16 %v8083
        %v8426 = vunpack.c.h.b16 %v8083
        %v8427 = vunpack.c.l.b16 %v8084
        %v8428 = vunpack.c.h.b16 %v8084
        %v8429 = vunpack.c.l.b16 %v8085
        %v8430 = vunpack.c.h.b16 %v8085
        %v8431 = vunpack.c.l.b16 %v8086
        %v8432 = vunpack.c.h.b16 %v8086
        %v8433 = vunpack.c.l.b16 %v8087
        %v8434 = vunpack.c.h.b16 %v8087
        %v8435 = vunpack.c.l.b16 %v8088
        %v8436 = vunpack.c.h.b16 %v8088
        %v8437 = vunpack.c.l.b16 %v8089
        %v8438 = vunpack.c.h.b16 %v8089
        %v8439 = vunpack.c.l.b16 %v8090
        %v8440 = vunpack.c.h.b16 %v8090
        %v8441 = vunpack.c.l.b16 %v8091
        %v8442 = vunpack.c.h.b16 %v8091
        %v8443 = vunpack.c.l.b16 %v8092
        %v8444 = vunpack.c.h.b16 %v8092
        %v8445 = vunpack.c.l.b16 %v8093
        %v8446 = vunpack.c.h.b16 %v8093
        %v8447 = vunpack.c.l.b16 %v8094
        %v8448 = vunpack.c.h.b16 %v8094
        %v8449 = vunpack.c.l.b16 %v8095
        %v8450 = vunpack.c.h.b16 %v8095
        %v8451 = vunpack.c.l.b16 %v8096
        %v8452 = vunpack.c.h.b16 %v8096
        %v8453 = vunpack.c.l.b16 %v8097
        %v8454 = vunpack.c.h.b16 %v8097
        %v8455 = vunpack.c.l.b16 %v8098
        %v8456 = vunpack.c.h.b16 %v8098
        %v8457 = vunpack.c.l.b16 %v8099
        %v8458 = vunpack.c.h.b16 %v8099
        %v8459 = vunpack.c.l.b16 %v8100
        %v8460 = vunpack.c.h.b16 %v8100
        %v8461 = vunpack.c.l.b16 %v8101
        %v8462 = vunpack.c.h.b16 %v8101
        %v8463 = vunpack.c.l.b16 %v8102
        %v8464 = vunpack.c.h.b16 %v8102
        %v8465 = vunpack.c.l.b16 %v8103
        %v8466 = vunpack.c.h.b16 %v8103
        %v8467 = vunpack.c.l.b16 %v8104
        %v8468 = vunpack.c.h.b16 %v8104
        %v8469 = vunpack.c.l.b16 %v8105
        %v8470 = vunpack.c.h.b16 %v8105
        %v8471 = vunpack.c.l.b16 %v8106
        %v8472 = vunpack.c.h.b16 %v8106
        %v8473 = vunpack.c.l.b16 %v8107
        %v8474 = vunpack.c.h.b16 %v8107
        %v8475 = vunpack.c.l.b16 %v8108
        %v8476 = vunpack.c.h.b16 %v8108
        %v8477 = vunpack.c.l.b16 %v8109
        %v8478 = vunpack.c.h.b16 %v8109
        %v8479 = vunpack.c.l.b16 %v8110
        %v8480 = vunpack.c.h.b16 %v8110
        %v8481 = vunpack.c.l.b16 %v8111
        %v8482 = vunpack.c.h.b16 %v8111
        %v8483 = vunpack.c.l.b16 %v8112
        %v8484 = vunpack.c.h.b16 %v8112
        %v8485 = vunpack.c.l.b16 %v8113
        %v8486 = vunpack.c.h.b16 %v8113
        %v8487 = vunpack.c.l.b16 %v8114
        %v8488 = vunpack.c.h.b16 %v8114
        %v8489 = vunpack.c.l.b16 %v8115
        %v8490 = vunpack.c.h.b16 %v8115
        %v8491 = vunpack.c.l.b16 %v8116
        %v8492 = vunpack.c.h.b16 %v8116
        %v8493 = vunpack.c.l.b16 %v8117
        %v8494 = vunpack.c.h.b16 %v8117
        %v8495 = vunpack.c.l.b16 %v8118
        %v8496 = vunpack.c.h.b16 %v8118
        %v8497 = vunpack.c.l.b16 %v8119
        %v8498 = vunpack.c.h.b16 %v8119
        %v8499 = vunpack.c.l.b16 %v8120
        %v8500 = vunpack.c.h.b16 %v8120
        %v8501 = vunpack.c.l.b16 %v8121
        %v8502 = vunpack.c.h.b16 %v8121
        %v8503 = vunpack.c.l.b16 %v8122
        %v8504 = vunpack.c.h.b16 %v8122
        %v8505 = vunpack.c.l.b16 %v8123
        %v8506 = vunpack.c.h.b16 %v8123
        %v8507 = vunpack.c.l.b16 %v8124
        %v8508 = vunpack.c.h.b16 %v8124
        %v8509 = vunpack.c.l.b16 %v8125
        %v8510 = vunpack.c.h.b16 %v8125
        %v8511 = vunpack.c.l.b16 %v8126
        %v8512 = vunpack.c.h.b16 %v8126
        %v8513 = vunpack.c.l.b16 %v8127
        %v8514 = vunpack.c.h.b16 %v8127
        %v8515 = vunpack.c.l.b16 %v8128
        %v8516 = vunpack.c.h.b16 %v8128
        %v8517 = vunpack.c.l.b16 %v8129
        %v8518 = vunpack.c.h.b16 %v8129
        %v8519 = vunpack.c.l.b16 %v8130
        %v8520 = vunpack.c.h.b16 %v8130
        %v8521 = vunpack.c.l.b16 %v8131
        %v8522 = vunpack.c.h.b16 %v8131
        %v8523 = vunpack.c.l.b16 %v8132
        %v8524 = vunpack.c.h.b16 %v8132
        %v8525 = vpack.c.b16 %v8273, %v8269
        %v8526 = vpack.c.b16 %v8274, %v8270
        %v8527 = vpack.c.b16 %v8275, %v8271
        %v8528 = vpack.c.b16 %v8276, %v8272
        %v8529 = vpack.c.b16 %v8281, %v8277
        %v8530 = vpack.c.b16 %v8282, %v8278
        %v8531 = vpack.c.b16 %v8283, %v8279
        %v8532 = vpack.c.b16 %v8284, %v8280
        %v8533 = vpack.c.b16 %v8289, %v8285
        %v8534 = vpack.c.b16 %v8290, %v8286
        %v8535 = vpack.c.b16 %v8291, %v8287
        %v8536 = vpack.c.b16 %v8292, %v8288
        %v8537 = vpack.c.b16 %v8297, %v8293
        %v8538 = vpack.c.b16 %v8298, %v8294
        %v8539 = vpack.c.b16 %v8299, %v8295
        %v8540 = vpack.c.b16 %v8300, %v8296
        %v8541 = vpack.c.b16 %v8305, %v8301
        %v8542 = vpack.c.b16 %v8306, %v8302
        %v8543 = vpack.c.b16 %v8307, %v8303
        %v8544 = vpack.c.b16 %v8308, %v8304
        %v8545 = vpack.c.b16 %v8313, %v8309
        %v8546 = vpack.c.b16 %v8314, %v8310
        %v8547 = vpack.c.b16 %v8315, %v8311
        %v8548 = vpack.c.b16 %v8316, %v8312
        %v8549 = vpack.c.b16 %v8321, %v8317
        %v8550 = vpack.c.b16 %v8322, %v8318
        %v8551 = vpack.c.b16 %v8323, %v8319
        %v8552 = vpack.c.b16 %v8324, %v8320
        %v8553 = vpack.c.b16 %v8329, %v8325
        %v8554 = vpack.c.b16 %v8330, %v8326
        %v8555 = vpack.c.b16 %v8331, %v8327
        %v8556 = vpack.c.b16 %v8332, %v8328
        %v8557 = vpack.c.b16 %v8337, %v8333
        %v8558 = vpack.c.b16 %v8338, %v8334
        %v8559 = vpack.c.b16 %v8339, %v8335
        %v8560 = vpack.c.b16 %v8340, %v8336
        %v8561 = vpack.c.b16 %v8345, %v8341
        %v8562 = vpack.c.b16 %v8346, %v8342
        %v8563 = vpack.c.b16 %v8347, %v8343
        %v8564 = vpack.c.b16 %v8348, %v8344
        %v8565 = vpack.c.b16 %v8353, %v8349
        %v8566 = vpack.c.b16 %v8354, %v8350
        %v8567 = vpack.c.b16 %v8355, %v8351
        %v8568 = vpack.c.b16 %v8356, %v8352
        %v8569 = vpack.c.b16 %v8361, %v8357
        %v8570 = vpack.c.b16 %v8362, %v8358
        %v8571 = vpack.c.b16 %v8363, %v8359
        %v8572 = vpack.c.b16 %v8364, %v8360
        %v8573 = vpack.c.b16 %v8369, %v8365
        %v8574 = vpack.c.b16 %v8370, %v8366
        %v8575 = vpack.c.b16 %v8371, %v8367
        %v8576 = vpack.c.b16 %v8372, %v8368
        %v8577 = vpack.c.b16 %v8377, %v8373
        %v8578 = vpack.c.b16 %v8378, %v8374
        %v8579 = vpack.c.b16 %v8379, %v8375
        %v8580 = vpack.c.b16 %v8380, %v8376
        %v8581 = vpack.c.b16 %v8385, %v8381
        %v8582 = vpack.c.b16 %v8386, %v8382
        %v8583 = vpack.c.b16 %v8387, %v8383
        %v8584 = vpack.c.b16 %v8388, %v8384
        %v8585 = vpack.c.b16 %v8393, %v8389
        %v8586 = vpack.c.b16 %v8394, %v8390
        %v8587 = vpack.c.b16 %v8395, %v8391
        %v8588 = vpack.c.b16 %v8396, %v8392
        %v8589 = vpack.c.b16 %v8401, %v8397
        %v8590 = vpack.c.b16 %v8402, %v8398
        %v8591 = vpack.c.b16 %v8403, %v8399
        %v8592 = vpack.c.b16 %v8404, %v8400
        %v8593 = vpack.c.b16 %v8409, %v8405
        %v8594 = vpack.c.b16 %v8410, %v8406
        %v8595 = vpack.c.b16 %v8411, %v8407
        %v8596 = vpack.c.b16 %v8412, %v8408
        %v8597 = vpack.c.b16 %v8417, %v8413
        %v8598 = vpack.c.b16 %v8418, %v8414
        %v8599 = vpack.c.b16 %v8419, %v8415
        %v8600 = vpack.c.b16 %v8420, %v8416
        %v8601 = vpack.c.b16 %v8425, %v8421
        %v8602 = vpack.c.b16 %v8426, %v8422
        %v8603 = vpack.c.b16 %v8427, %v8423
        %v8604 = vpack.c.b16 %v8428, %v8424
        %v8605 = vpack.c.b16 %v8433, %v8429
        %v8606 = vpack.c.b16 %v8434, %v8430
        %v8607 = vpack.c.b16 %v8435, %v8431
        %v8608 = vpack.c.b16 %v8436, %v8432
        %v8609 = vpack.c.b16 %v8441, %v8437
        %v8610 = vpack.c.b16 %v8442, %v8438
        %v8611 = vpack.c.b16 %v8443, %v8439
        %v8612 = vpack.c.b16 %v8444, %v8440
        %v8613 = vpack.c.b16 %v8449, %v8445
        %v8614 = vpack.c.b16 %v8450, %v8446
        %v8615 = vpack.c.b16 %v8451, %v8447
        %v8616 = vpack.c.b16 %v8452, %v8448
        %v8617 = vpack.c.b16 %v8457, %v8453
        %v8618 = vpack.c.b16 %v8458, %v8454
        %v8619 = vpack.c.b16 %v8459, %v8455
        %v8620 = vpack.c.b16 %v8460, %v8456
        %v8621 = vpack.c.b16 %v8465, %v8461
        %v8622 = vpack.c.b16 %v8466, %v8462
        %v8623 = vpack.c.b16 %v8467, %v8463
        %v8624 = vpack.c.b16 %v8468, %v8464
        %v8625 = vpack.c.b16 %v8473, %v8469
        %v8626 = vpack.c.b16 %v8474, %v8470
        %v8627 = vpack.c.b16 %v8475, %v8471
        %v8628 = vpack.c.b16 %v8476, %v8472
        %v8629 = vpack.c.b16 %v8481, %v8477
        %v8630 = vpack.c.b16 %v8482, %v8478
        %v8631 = vpack.c.b16 %v8483, %v8479
        %v8632 = vpack.c.b16 %v8484, %v8480
        %v8633 = vpack.c.b16 %v8489, %v8485
        %v8634 = vpack.c.b16 %v8490, %v8486
        %v8635 = vpack.c.b16 %v8491, %v8487
        %v8636 = vpack.c.b16 %v8492, %v8488
        %v8637 = vpack.c.b16 %v8497, %v8493
        %v8638 = vpack.c.b16 %v8498, %v8494
        %v8639 = vpack.c.b16 %v8499, %v8495
        %v8640 = vpack.c.b16 %v8500, %v8496
        %v8641 = vpack.c.b16 %v8505, %v8501
        %v8642 = vpack.c.b16 %v8506, %v8502
        %v8643 = vpack.c.b16 %v8507, %v8503
        %v8644 = vpack.c.b16 %v8508, %v8504
        %v8645 = vpack.c.b16 %v8513, %v8509
        %v8646 = vpack.c.b16 %v8514, %v8510
        %v8647 = vpack.c.b16 %v8515, %v8511
        %v8648 = vpack.c.b16 %v8516, %v8512
        %v8649 = vpack.c.b16 %v8521, %v8517
        %v8650 = vpack.c.b16 %v8522, %v8518
        %v8651 = vpack.c.b16 %v8523, %v8519
        %v8652 = vpack.c.b16 %v8524, %v8520
        %8781 = vmatprep.subr.bf16.mxu0 %v8526
        %8782 = vmatpush1.bf16.msra.mxu0 %v8525
        %8783 = vmatprep.subr.bf16.mxu0 %v8530
        %8784 = vmatpush1.bf16.msra.mxu0 %v8529
        %8785 = vmatprep.subr.bf16.mxu0 %v8534
        %8786 = vmatpush1.bf16.msra.mxu0 %v8533
        %8787 = vmatprep.subr.bf16.mxu0 %v8538
        %8788 = vmatpush1.bf16.msra.mxu0 %v8537
        %8789 = vmatprep.subr.bf16.mxu0 %v8542
        %8790 = vmatpush1.bf16.msra.mxu0 %v8541
        %8791 = vmatprep.subr.bf16.mxu0 %v8546
        %8792 = vmatpush1.bf16.msra.mxu0 %v8545
        %8793 = vmatprep.subr.bf16.mxu0 %v8550
        %8794 = vmatpush1.bf16.msra.mxu0 %v8549
        %8795 = vmatprep.subr.bf16.mxu0 %v8554
        %8796 = vmatpush1.bf16.msra.mxu0 %v8553
        %8797 = vmatprep.subr.bf16.mxu0 %v8558
        %8798 = vmatpush1.bf16.msra.mxu0 %v8557
        %8799 = vmatprep.subr.bf16.mxu0 %v8562
        %8800 = vmatpush1.bf16.msra.mxu0 %v8561
        %8801 = vmatprep.subr.bf16.mxu0 %v8566
        %8802 = vmatpush1.bf16.msra.mxu0 %v8565
        %8803 = vmatprep.subr.bf16.mxu0 %v8570
        %8804 = vmatpush1.bf16.msra.mxu0 %v8569
        %8805 = vmatprep.subr.bf16.mxu0 %v8574
        %8806 = vmatpush1.bf16.msra.mxu0 %v8573
        %8807 = vmatprep.subr.bf16.mxu0 %v8578
        %8808 = vmatpush1.bf16.msra.mxu0 %v8577
        %8809 = vmatprep.subr.bf16.mxu0 %v8582
        %8810 = vmatpush1.bf16.msra.mxu0 %v8581
        %8811 = vmatprep.subr.bf16.mxu0 %v8586
        %8812 = vmatpush1.bf16.msra.mxu0 %v8585
        %8813 = vmatprep.mubr.bf16.mxu0 %v8134
        %8814 = vmatmul.mubr.bf16.gmra.mrb[0].mxu0 %v8133
        %v8815 = vpop.f32.mrb[0].mxu0
        %v8816 = vadd.f32 0.0, %v8815
        %v8817 = vpop.f32.mrb[0].mxu0
        %v8818 = vadd.f32 0.0, %v8817
        %v8819 = vpop.f32.mrb[0].mxu0
        %v8820 = vpop.f32.mrb[0].mxu0
        %8821 = vdwg.mxu0
        %8822 = vmatprep.subr.bf16.mxu0 %v8590
        %8823 = vmatpush1.bf16.msra.mxu0 %v8589
        %8824 = vmatprep.subr.bf16.mxu0 %v8594
        %8825 = vmatpush1.bf16.msra.mxu0 %v8593
        %8826 = vmatprep.subr.bf16.mxu0 %v8598
        %8827 = vmatpush1.bf16.msra.mxu0 %v8597
        %8828 = vmatprep.subr.bf16.mxu0 %v8602
        %8829 = vmatpush1.bf16.msra.mxu0 %v8601
        %8830 = vmatprep.subr.bf16.mxu0 %v8606
        %8831 = vmatpush1.bf16.msra.mxu0 %v8605
        %8832 = vmatprep.subr.bf16.mxu0 %v8610
        %8833 = vmatpush1.bf16.msra.mxu0 %v8609
        %8834 = vmatprep.subr.bf16.mxu0 %v8614
        %8835 = vmatpush1.bf16.msra.mxu0 %v8613
        %8836 = vmatprep.subr.bf16.mxu0 %v8618
        %8837 = vmatpush1.bf16.msra.mxu0 %v8617
        %8838 = vmatprep.subr.bf16.mxu0 %v8622
        %8839 = vmatpush1.bf16.msra.mxu0 %v8621
        %8840 = vmatprep.subr.bf16.mxu0 %v8626
        %8841 = vmatpush1.bf16.msra.mxu0 %v8625
        %8842 = vmatprep.subr.bf16.mxu0 %v8630
        %8843 = vmatpush1.bf16.msra.mxu0 %v8629
        %8844 = vmatprep.subr.bf16.mxu0 %v8634
        %8845 = vmatpush1.bf16.msra.mxu0 %v8633
        %8846 = vmatprep.subr.bf16.mxu0 %v8638
        %8847 = vmatpush1.bf16.msra.mxu0 %v8637
        %8848 = vmatprep.subr.bf16.mxu0 %v8642
        %8849 = vmatpush1.bf16.msra.mxu0 %v8641
        %8850 = vmatprep.subr.bf16.mxu0 %v8646
        %8851 = vmatpush1.bf16.msra.mxu0 %v8645
        %8852 = vmatprep.subr.bf16.mxu0 %v8650
        %8853 = vmatpush1.bf16.msra.mxu0 %v8649
        %8854 = vmatprep.mubr.bf16.mxu0 %v8136
        %8855 = vmatmul.mubr.bf16.gmra.mrb[0].mxu0 %v8135
        %v8856 = vpop.f32.mrb[0].mxu0
        %v8857 = vadd.f32 %v8816, %v8856
        %v8858 = vpop.f32.mrb[0].mxu0
        %v8859 = vadd.f32 %v8818, %v8858
        %v8860 = vpop.f32.mrb[0].mxu0
        %v8861 = vpop.f32.mrb[0].mxu0
        %8862 = vdwg.mxu0
        %8863 = vmatprep.subr.bf16.mxu0 %v8528
        %8864 = vmatpush1.bf16.msra.mxu0 %v8527
        %8865 = vmatprep.subr.bf16.mxu0 %v8532
        %8866 = vmatpush1.bf16.msra.mxu0 %v8531
        %8867 = vmatprep.subr.bf16.mxu0 %v8536
        %8868 = vmatpush1.bf16.msra.mxu0 %v8535
        %8869 = vmatprep.subr.bf16.mxu0 %v8540
        %8870 = vmatpush1.bf16.msra.mxu0 %v8539
        %8871 = vmatprep.subr.bf16.mxu0 %v8544
        %8872 = vmatpush1.bf16.msra.mxu0 %v8543
        %8873 = vmatprep.subr.bf16.mxu0 %v8548
        %8874 = vmatpush1.bf16.msra.mxu0 %v8547
        %8875 = vmatprep.subr.bf16.mxu0 %v8552
        %8876 = vmatpush1.bf16.msra.mxu0 %v8551
        %8877 = vmatprep.subr.bf16.mxu0 %v8556
        %8878 = vmatpush1.bf16.msra.mxu0 %v8555
        %8879 = vmatprep.subr.bf16.mxu0 %v8560
        %8880 = vmatpush1.bf16.msra.mxu0 %v8559
        %8881 = vmatprep.subr.bf16.mxu0 %v8564
        %8882 = vmatpush1.bf16.msra.mxu0 %v8563
        %8883 = vmatprep.subr.bf16.mxu0 %v8568
        %8884 = vmatpush1.bf16.msra.mxu0 %v8567
        %8885 = vmatprep.subr.bf16.mxu0 %v8572
        %8886 = vmatpush1.bf16.msra.mxu0 %v8571
        %8887 = vmatprep.subr.bf16.mxu0 %v8576
        %8888 = vmatpush1.bf16.msra.mxu0 %v8575
        %8889 = vmatprep.subr.bf16.mxu0 %v8580
        %8890 = vmatpush1.bf16.msra.mxu0 %v8579
        %8891 = vmatprep.subr.bf16.mxu0 %v8584
        %8892 = vmatpush1.bf16.msra.mxu0 %v8583
        %8893 = vmatprep.subr.bf16.mxu0 %v8588
        %8894 = vmatpush1.bf16.msra.mxu0 %v8587
        %8895 = vmatprep.mubr.bf16.mxu0 %v8134
        %8896 = vmatmul.mubr.bf16.gmra.mrb[0].mxu0 %v8133
        %v8897 = vpop.f32.mrb[0].mxu0
        %v8898 = vadd.f32 0.0, %v8897
        %v8899 = vpop.f32.mrb[0].mxu0
        %v8900 = vadd.f32 0.0, %v8899
        %v8901 = vpop.f32.mrb[0].mxu0
        %v8902 = vpop.f32.mrb[0].mxu0
        %8903 = vdwg.mxu0
        %8904 = vmatprep.subr.bf16.mxu0 %v8592
        %8905 = vmatpush1.bf16.msra.mxu0 %v8591
        %8906 = vmatprep.subr.bf16.mxu0 %v8596
        %8907 = vmatpush1.bf16.msra.mxu0 %v8595
        %8908 = vmatprep.subr.bf16.mxu0 %v8600
        %8909 = vmatpush1.bf16.msra.mxu0 %v8599
        %8910 = vmatprep.subr.bf16.mxu0 %v8604
        %8911 = vmatpush1.bf16.msra.mxu0 %v8603
        %8912 = vmatprep.subr.bf16.mxu0 %v8608
        %8913 = vmatpush1.bf16.msra.mxu0 %v8607
        %8914 = vmatprep.subr.bf16.mxu0 %v8612
        %8915 = vmatpush1.bf16.msra.mxu0 %v8611
        %8916 = vmatprep.subr.bf16.mxu0 %v8616
        %8917 = vmatpush1.bf16.msra.mxu0 %v8615
        %8918 = vmatprep.subr.bf16.mxu0 %v8620
        %8919 = vmatpush1.bf16.msra.mxu0 %v8619
        %8920 = vmatprep.subr.bf16.mxu0 %v8624
        %8921 = vmatpush1.bf16.msra.mxu0 %v8623
        %8922 = vmatprep.subr.bf16.mxu0 %v8628
        %8923 = vmatpush1.bf16.msra.mxu0 %v8627
        %8924 = vmatprep.subr.bf16.mxu0 %v8632
        %8925 = vmatpush1.bf16.msra.mxu0 %v8631
        %8926 = vmatprep.subr.bf16.mxu0 %v8636
        %8927 = vmatpush1.bf16.msra.mxu0 %v8635
        %8928 = vmatprep.subr.bf16.mxu0 %v8640
        %8929 = vmatpush1.bf16.msra.mxu0 %v8639
        %8930 = vmatprep.subr.bf16.mxu0 %v8644
        %8931 = vmatpush1.bf16.msra.mxu0 %v8643
        %8932 = vmatprep.subr.bf16.mxu0 %v8648
        %8933 = vmatpush1.bf16.msra.mxu0 %v8647
        %8934 = vmatprep.subr.bf16.mxu0 %v8652
        %8935 = vmatpush1.bf16.msra.mxu0 %v8651
        %8936 = vmatprep.mubr.bf16.mxu0 %v8136
        %8937 = vmatmul.mubr.bf16.gmra.mrb[0].mxu0 %v8135
        %v8938 = vpop.f32.mrb[0].mxu0
        %v8939 = vadd.f32 %v8898, %v8938
        %v8940 = vpop.f32.mrb[0].mxu0
        %v8941 = vadd.f32 %v8900, %v8940
        %v8942 = vpop.f32.mrb[0].mxu0
        %v8943 = vpop.f32.mrb[0].mxu0
        %8944 = vdwg.mxu0
        %v8945 = vadd.f32 %v8001, %v8857
        %v8946 = vadd.f32 %v8002, %v8859
        %v8947 = vadd.f32 %v8003, %v8939
        %v8948 = vadd.f32 %v8004, %v8941
        %v8949 = vld [vmem:[#allocation2] sm:$0xf]
        %v8954 = vcombine.low %v8945, %v8946
        %v8955 = vcombine.low %v8947, %v8948
        %v8957 = vunpack.c.l.s4 1966171168
        %v8958 = vunpack.c.0.s8 %v8957
        %v8959 = vlaneseq
        %v8960 = vshrl.u32 %v8959, 7
        %v8961 = vsub.s32 %v8958, %v8960
        %v8962 = vrot.slane %v8954, %v8961
        %v8964 = vunpack.c.l.s4 1966171168
        %v8965 = vunpack.c.0.s8 %v8964
        %v8966 = vlaneseq
        %v8967 = vshrl.u32 %v8966, 7
        %v8968 = vsub.s32 %v8965, %v8967
        %v8969 = vrot.slane %v8955, %v8968
        %v8970 = vcombine.low %v8962, %v8969
        %v8972 = vunpack.c.l.s4 1966171168
        %v8973 = vunpack.c.0.s8 %v8972
        %v8974 = vlaneseq
        %v8975 = vshrl.u32 %v8974, 7
        %v8976 = vsub.s32 %v8973, %v8975
        %v8977 = vrot.slane %v8970, %v8976
        %v8979 = vadd.f32 %v8949, %v8977
        %v8980 = vlaneseq
        %vm8981 = vcmp.ge.s32.totalorder %v8980, 0
        %vm8982 = vcmp.lt.s32.totalorder %v8980, 512
        %vm8983 = vmand %vm8981, %vm8982
        %8984 = vst.msk [vmem:[#allocation2] sm:$0xf] %vm8983, %v8979
        %p8985 = scmp.eq.s32.totalorder %s26, 1
        // Predicated region
        $region81: #{tpu_custom_call.1} parent=47 // pred_check
          %p8986 = pneg %p8985
        $region82: #{tpu_custom_call.1} parent=47 // pred_check_branch
          %8988 = sbr.rel (%p8986) target = $region84
        $region83: #{tpu_custom_call.1} parent=47 // pred_region
          %v8989 = vld [vmem:[#allocation2] sm:$0xf]
          %s8990 = scalar_lea.vmem [#allocation9], 2
          %v8991 = vld [vmem:[%s8990] ss:$8 sm:$0xf]
          %v8992 = vadd.f32 %v8989, %v8991
          %s8993 = scalar_lea.vmem [#allocation16], 39
          %v8994 = vld [vmem:[%s8993] ss:$8 sm:$0xf]
          %v8995 = vld [vmem:[#allocation11] sm:$0xff]
          %v8996 = vld [vmem:[#allocation11 + $0x8] sm:$0xff]
          %v8997 = vld [vmem:[#allocation11 + $0x10] sm:$0xff]
          %v8998 = vld [vmem:[#allocation11 + $0x18] sm:$0xff]
          %v8999 = vld [vmem:[#allocation11 + $0x20] sm:$0xff]
          %v9000 = vld [vmem:[#allocation11 + $0x28] sm:$0xff]
          %v9001 = vld [vmem:[#allocation11 + $0x30] sm:$0xff]
          %v9002 = vld [vmem:[#allocation11 + $0x38] sm:$0xff]
          %v9003 = vld [vmem:[#allocation11 + $0x40] sm:$0xff]
          %v9004 = vld [vmem:[#allocation11 + $0x48] sm:$0xff]
          %v9005 = vld [vmem:[#allocation11 + $0x50] sm:$0xff]
          %v9006 = vld [vmem:[#allocation11 + $0x58] sm:$0xff]
          %v9007 = vld [vmem:[#allocation11 + $0x60] sm:$0xff]
          %v9008 = vld [vmem:[#allocation11 + $0x68] sm:$0xff]
          %v9009 = vld [vmem:[#allocation11 + $0x70] sm:$0xff]
          %v9010 = vld [vmem:[#allocation11 + $0x78] sm:$0xff]
          %v9011 = vld [vmem:[#allocation11 + $0x80] sm:$0xff]
          %v9012 = vld [vmem:[#allocation11 + $0x88] sm:$0xff]
          %v9013 = vld [vmem:[#allocation11 + $0x90] sm:$0xff]
          %v9014 = vld [vmem:[#allocation11 + $0x98] sm:$0xff]
          %v9015 = vld [vmem:[#allocation11 + $0xa0] sm:$0xff]
          %v9016 = vld [vmem:[#allocation11 + $0xa8] sm:$0xff]
          %v9017 = vld [vmem:[#allocation11 + $0xb0] sm:$0xff]
          %v9018 = vld [vmem:[#allocation11 + $0xb8] sm:$0xff]
          %v9019 = vld [vmem:[#allocation11 + $0xc0] sm:$0xff]
          %v9020 = vld [vmem:[#allocation11 + $0xc8] sm:$0xff]
          %v9021 = vld [vmem:[#allocation11 + $0xd0] sm:$0xff]
          %v9022 = vld [vmem:[#allocation11 + $0xd8] sm:$0xff]
          %v9023 = vld [vmem:[#allocation11 + $0xe0] sm:$0xff]
          %v9024 = vld [vmem:[#allocation11 + $0xe8] sm:$0xff]
          %v9025 = vld [vmem:[#allocation11 + $0xf0] sm:$0xff]
          %v9026 = vld [vmem:[#allocation11 + $0xf8] sm:$0xff]
          %v9027 = vld [vmem:[#allocation11 + $0x100] sm:$0xff]
          %v9028 = vld [vmem:[#allocation11 + $0x108] sm:$0xff]
          %v9029 = vld [vmem:[#allocation11 + $0x110] sm:$0xff]
          %v9030 = vld [vmem:[#allocation11 + $0x118] sm:$0xff]
          %v9031 = vld [vmem:[#allocation11 + $0x120] sm:$0xff]
          %v9032 = vld [vmem:[#allocation11 + $0x128] sm:$0xff]
          %v9033 = vld [vmem:[#allocation11 + $0x130] sm:$0xff]
          %v9034 = vld [vmem:[#allocation11 + $0x138] sm:$0xff]
          %v9035 = vld [vmem:[#allocation11 + $0x140] sm:$0xff]
          %v9036 = vld [vmem:[#allocation11 + $0x148] sm:$0xff]
          %v9037 = vld [vmem:[#allocation11 + $0x150] sm:$0xff]
          %v9038 = vld [vmem:[#allocation11 + $0x158] sm:$0xff]
          %v9039 = vld [vmem:[#allocation11 + $0x160] sm:$0xff]
          %v9040 = vld [vmem:[#allocation11 + $0x168] sm:$0xff]
          %v9041 = vld [vmem:[#allocation11 + $0x170] sm:$0xff]
          %v9042 = vld [vmem:[#allocation11 + $0x178] sm:$0xff]
          %v9043 = vld [vmem:[#allocation11 + $0x180] sm:$0xff]
          %v9044 = vld [vmem:[#allocation11 + $0x188] sm:$0xff]
          %v9045 = vld [vmem:[#allocation11 + $0x190] sm:$0xff]
          %v9046 = vld [vmem:[#allocation11 + $0x198] sm:$0xff]
          %v9047 = vld [vmem:[#allocation11 + $0x1a0] sm:$0xff]
          %v9048 = vld [vmem:[#allocation11 + $0x1a8] sm:$0xff]
          %v9049 = vld [vmem:[#allocation11 + $0x1b0] sm:$0xff]
          %v9050 = vld [vmem:[#allocation11 + $0x1b8] sm:$0xff]
          %v9051 = vld [vmem:[#allocation11 + $0x1c0] sm:$0xff]
          %v9052 = vld [vmem:[#allocation11 + $0x1c8] sm:$0xff]
          %v9053 = vld [vmem:[#allocation11 + $0x1d0] sm:$0xff]
          %v9054 = vld [vmem:[#allocation11 + $0x1d8] sm:$0xff]
          %v9055 = vld [vmem:[#allocation11 + $0x1e0] sm:$0xff]
          %v9056 = vld [vmem:[#allocation11 + $0x1e8] sm:$0xff]
          %v9057 = vld [vmem:[#allocation11 + $0x1f0] sm:$0xff]
          %v9058 = vld [vmem:[#allocation11 + $0x1f8] sm:$0xff]
          %v9059 = vld [vmem:[#allocation11 + $0x200] sm:$0xff]
          %v9060 = vld [vmem:[#allocation11 + $0x208] sm:$0xff]
          %v9061 = vld [vmem:[#allocation11 + $0x210] sm:$0xff]
          %v9062 = vld [vmem:[#allocation11 + $0x218] sm:$0xff]
          %v9063 = vld [vmem:[#allocation11 + $0x220] sm:$0xff]
          %v9064 = vld [vmem:[#allocation11 + $0x228] sm:$0xff]
          %v9065 = vld [vmem:[#allocation11 + $0x230] sm:$0xff]
          %v9066 = vld [vmem:[#allocation11 + $0x238] sm:$0xff]
          %v9067 = vld [vmem:[#allocation11 + $0x240] sm:$0xff]
          %v9068 = vld [vmem:[#allocation11 + $0x248] sm:$0xff]
          %v9069 = vld [vmem:[#allocation11 + $0x250] sm:$0xff]
          %v9070 = vld [vmem:[#allocation11 + $0x258] sm:$0xff]
          %v9071 = vld [vmem:[#allocation11 + $0x260] sm:$0xff]
          %v9072 = vld [vmem:[#allocation11 + $0x268] sm:$0xff]
          %v9073 = vld [vmem:[#allocation11 + $0x270] sm:$0xff]
          %v9074 = vld [vmem:[#allocation11 + $0x278] sm:$0xff]
          %v9075 = vld [vmem:[#allocation11 + $0x280] sm:$0xff]
          %v9076 = vld [vmem:[#allocation11 + $0x288] sm:$0xff]
          %v9077 = vld [vmem:[#allocation11 + $0x290] sm:$0xff]
          %v9078 = vld [vmem:[#allocation11 + $0x298] sm:$0xff]
          %v9079 = vld [vmem:[#allocation11 + $0x2a0] sm:$0xff]
          %v9080 = vld [vmem:[#allocation11 + $0x2a8] sm:$0xff]
          %v9081 = vld [vmem:[#allocation11 + $0x2b0] sm:$0xff]
          %v9082 = vld [vmem:[#allocation11 + $0x2b8] sm:$0xff]
          %v9083 = vld [vmem:[#allocation11 + $0x2c0] sm:$0xff]
          %v9084 = vld [vmem:[#allocation11 + $0x2c8] sm:$0xff]
          %v9085 = vld [vmem:[#allocation11 + $0x2d0] sm:$0xff]
          %v9086 = vld [vmem:[#allocation11 + $0x2d8] sm:$0xff]
          %v9087 = vld [vmem:[#allocation11 + $0x2e0] sm:$0xff]
          %v9088 = vld [vmem:[#allocation11 + $0x2e8] sm:$0xff]
          %v9089 = vld [vmem:[#allocation11 + $0x2f0] sm:$0xff]
          %v9090 = vld [vmem:[#allocation11 + $0x2f8] sm:$0xff]
          %v9091 = vld [vmem:[#allocation11 + $0x300] sm:$0xff]
          %v9092 = vld [vmem:[#allocation11 + $0x308] sm:$0xff]
          %v9093 = vld [vmem:[#allocation11 + $0x310] sm:$0xff]
          %v9094 = vld [vmem:[#allocation11 + $0x318] sm:$0xff]
          %v9095 = vld [vmem:[#allocation11 + $0x320] sm:$0xff]
          %v9096 = vld [vmem:[#allocation11 + $0x328] sm:$0xff]
          %v9097 = vld [vmem:[#allocation11 + $0x330] sm:$0xff]
          %v9098 = vld [vmem:[#allocation11 + $0x338] sm:$0xff]
          %v9099 = vld [vmem:[#allocation11 + $0x340] sm:$0xff]
          %v9100 = vld [vmem:[#allocation11 + $0x348] sm:$0xff]
          %v9101 = vld [vmem:[#allocation11 + $0x350] sm:$0xff]
          %v9102 = vld [vmem:[#allocation11 + $0x358] sm:$0xff]
          %v9103 = vld [vmem:[#allocation11 + $0x360] sm:$0xff]
          %v9104 = vld [vmem:[#allocation11 + $0x368] sm:$0xff]
          %v9105 = vld [vmem:[#allocation11 + $0x370] sm:$0xff]
          %v9106 = vld [vmem:[#allocation11 + $0x378] sm:$0xff]
          %v9107 = vld [vmem:[#allocation11 + $0x380] sm:$0xff]
          %v9108 = vld [vmem:[#allocation11 + $0x388] sm:$0xff]
          %v9109 = vld [vmem:[#allocation11 + $0x390] sm:$0xff]
          %v9110 = vld [vmem:[#allocation11 + $0x398] sm:$0xff]
          %v9111 = vld [vmem:[#allocation11 + $0x3a0] sm:$0xff]
          %v9112 = vld [vmem:[#allocation11 + $0x3a8] sm:$0xff]
          %v9113 = vld [vmem:[#allocation11 + $0x3b0] sm:$0xff]
          %v9114 = vld [vmem:[#allocation11 + $0x3b8] sm:$0xff]
          %v9115 = vld [vmem:[#allocation11 + $0x3c0] sm:$0xff]
          %v9116 = vld [vmem:[#allocation11 + $0x3c8] sm:$0xff]
          %v9117 = vld [vmem:[#allocation11 + $0x3d0] sm:$0xff]
          %v9118 = vld [vmem:[#allocation11 + $0x3d8] sm:$0xff]
          %v9119 = vld [vmem:[#allocation11 + $0x3e0] sm:$0xff]
          %v9120 = vld [vmem:[#allocation11 + $0x3e8] sm:$0xff]
          %v9121 = vld [vmem:[#allocation11 + $0x3f0] sm:$0xff]
          %v9122 = vld [vmem:[#allocation11 + $0x3f8] sm:$0xff]
          %v9124 = vlaneseq
          %v9125 = vshrl.u32 %v9124, 7
          %v9126 = vsub.s32 0, %v9125
          %v9127 = vrot.slane %v8994, %v9126
          %v9128 = vlaneseq
          %v9129 = vshrl.u32 %v9128, 7
          %v9130 = vsub.s32 1, %v9129
          %v9131 = vrot.slane %v8994, %v9130
          %v9132 = vlaneseq
          %v9133 = vshrl.u32 %v9132, 7
          %v9134 = vsub.s32 2, %v9133
          %v9135 = vrot.slane %v8994, %v9134
          %v9136 = vlaneseq
          %v9137 = vshrl.u32 %v9136, 7
          %v9138 = vsub.s32 3, %v9137
          %v9139 = vrot.slane %v8994, %v9138
          %9208 = vrot.lane.b32.xlu0 %v9059, 64
          %v9209 = vpop.permute.xlu0 %9208
          %9210 = vrot.lane.b32.xlu0 %v9060, 64
          %v9211 = vpop.permute.xlu0 %9210
          %9212 = vrot.lane.b32.xlu0 %v9061, 64
          %v9213 = vpop.permute.xlu0 %9212
          %9214 = vrot.lane.b32.xlu0 %v9062, 64
          %v9215 = vpop.permute.xlu0 %9214
          %9216 = vrot.lane.b32.xlu0 %v9063, 64
          %v9217 = vpop.permute.xlu0 %9216
          %9218 = vrot.lane.b32.xlu0 %v9064, 64
          %v9219 = vpop.permute.xlu0 %9218
          %9220 = vrot.lane.b32.xlu0 %v9065, 64
          %v9221 = vpop.permute.xlu0 %9220
          %9222 = vrot.lane.b32.xlu0 %v9066, 64
          %v9223 = vpop.permute.xlu0 %9222
          %9224 = vrot.lane.b32.xlu0 %v9067, 64
          %v9225 = vpop.permute.xlu0 %9224
          %9226 = vrot.lane.b32.xlu0 %v9068, 64
          %v9227 = vpop.permute.xlu0 %9226
          %9228 = vrot.lane.b32.xlu0 %v9069, 64
          %v9229 = vpop.permute.xlu0 %9228
          %9230 = vrot.lane.b32.xlu0 %v9070, 64
          %v9231 = vpop.permute.xlu0 %9230
          %9232 = vrot.lane.b32.xlu0 %v9071, 64
          %v9233 = vpop.permute.xlu0 %9232
          %9234 = vrot.lane.b32.xlu0 %v9072, 64
          %v9235 = vpop.permute.xlu0 %9234
          %9236 = vrot.lane.b32.xlu0 %v9073, 64
          %v9237 = vpop.permute.xlu0 %9236
          %9238 = vrot.lane.b32.xlu0 %v9074, 64
          %v9239 = vpop.permute.xlu0 %9238
          %9240 = vrot.lane.b32.xlu0 %v9075, 64
          %v9241 = vpop.permute.xlu0 %9240
          %9242 = vrot.lane.b32.xlu0 %v9076, 64
          %v9243 = vpop.permute.xlu0 %9242
          %9244 = vrot.lane.b32.xlu0 %v9077, 64
          %v9245 = vpop.permute.xlu0 %9244
          %9246 = vrot.lane.b32.xlu0 %v9078, 64
          %v9247 = vpop.permute.xlu0 %9246
          %9248 = vrot.lane.b32.xlu0 %v9079, 64
          %v9249 = vpop.permute.xlu0 %9248
          %9250 = vrot.lane.b32.xlu0 %v9080, 64
          %v9251 = vpop.permute.xlu0 %9250
          %9252 = vrot.lane.b32.xlu0 %v9081, 64
          %v9253 = vpop.permute.xlu0 %9252
          %9254 = vrot.lane.b32.xlu0 %v9082, 64
          %v9255 = vpop.permute.xlu0 %9254
          %9256 = vrot.lane.b32.xlu0 %v9083, 64
          %v9257 = vpop.permute.xlu0 %9256
          %9258 = vrot.lane.b32.xlu0 %v9084, 64
          %v9259 = vpop.permute.xlu0 %9258
          %9260 = vrot.lane.b32.xlu0 %v9085, 64
          %v9261 = vpop.permute.xlu0 %9260
          %9262 = vrot.lane.b32.xlu0 %v9086, 64
          %v9263 = vpop.permute.xlu0 %9262
          %9264 = vrot.lane.b32.xlu0 %v9087, 64
          %v9265 = vpop.permute.xlu0 %9264
          %9266 = vrot.lane.b32.xlu0 %v9088, 64
          %v9267 = vpop.permute.xlu0 %9266
          %9268 = vrot.lane.b32.xlu0 %v9089, 64
          %v9269 = vpop.permute.xlu0 %9268
          %9270 = vrot.lane.b32.xlu0 %v9090, 64
          %v9271 = vpop.permute.xlu0 %9270
          %9272 = vrot.lane.b32.xlu0 %v9091, 64
          %v9273 = vpop.permute.xlu0 %9272
          %9274 = vrot.lane.b32.xlu0 %v9092, 64
          %v9275 = vpop.permute.xlu0 %9274
          %9276 = vrot.lane.b32.xlu0 %v9093, 64
          %v9277 = vpop.permute.xlu0 %9276
          %9278 = vrot.lane.b32.xlu0 %v9094, 64
          %v9279 = vpop.permute.xlu0 %9278
          %9280 = vrot.lane.b32.xlu0 %v9095, 64
          %v9281 = vpop.permute.xlu0 %9280
          %9282 = vrot.lane.b32.xlu0 %v9096, 64
          %v9283 = vpop.permute.xlu0 %9282
          %9284 = vrot.lane.b32.xlu0 %v9097, 64
          %v9285 = vpop.permute.xlu0 %9284
          %9286 = vrot.lane.b32.xlu0 %v9098, 64
          %v9287 = vpop.permute.xlu0 %9286
          %9288 = vrot.lane.b32.xlu0 %v9099, 64
          %v9289 = vpop.permute.xlu0 %9288
          %9290 = vrot.lane.b32.xlu0 %v9100, 64
          %v9291 = vpop.permute.xlu0 %9290
          %9292 = vrot.lane.b32.xlu0 %v9101, 64
          %v9293 = vpop.permute.xlu0 %9292
          %9294 = vrot.lane.b32.xlu0 %v9102, 64
          %v9295 = vpop.permute.xlu0 %9294
          %9296 = vrot.lane.b32.xlu0 %v9103, 64
          %v9297 = vpop.permute.xlu0 %9296
          %9298 = vrot.lane.b32.xlu0 %v9104, 64
          %v9299 = vpop.permute.xlu0 %9298
          %9300 = vrot.lane.b32.xlu0 %v9105, 64
          %v9301 = vpop.permute.xlu0 %9300
          %9302 = vrot.lane.b32.xlu0 %v9106, 64
          %v9303 = vpop.permute.xlu0 %9302
          %9304 = vrot.lane.b32.xlu0 %v9107, 64
          %v9305 = vpop.permute.xlu0 %9304
          %9306 = vrot.lane.b32.xlu0 %v9108, 64
          %v9307 = vpop.permute.xlu0 %9306
          %9308 = vrot.lane.b32.xlu0 %v9109, 64
          %v9309 = vpop.permute.xlu0 %9308
          %9310 = vrot.lane.b32.xlu0 %v9110, 64
          %v9311 = vpop.permute.xlu0 %9310
          %9312 = vrot.lane.b32.xlu0 %v9111, 64
          %v9313 = vpop.permute.xlu0 %9312
          %9314 = vrot.lane.b32.xlu0 %v9112, 64
          %v9315 = vpop.permute.xlu0 %9314
          %9316 = vrot.lane.b32.xlu0 %v9113, 64
          %v9317 = vpop.permute.xlu0 %9316
          %9318 = vrot.lane.b32.xlu0 %v9114, 64
          %v9319 = vpop.permute.xlu0 %9318
          %9320 = vrot.lane.b32.xlu0 %v9115, 64
          %v9321 = vpop.permute.xlu0 %9320
          %9322 = vrot.lane.b32.xlu0 %v9116, 64
          %v9323 = vpop.permute.xlu0 %9322
          %9324 = vrot.lane.b32.xlu0 %v9117, 64
          %v9325 = vpop.permute.xlu0 %9324
          %9326 = vrot.lane.b32.xlu0 %v9118, 64
          %v9327 = vpop.permute.xlu0 %9326
          %9328 = vrot.lane.b32.xlu0 %v9119, 64
          %v9329 = vpop.permute.xlu0 %9328
          %9330 = vrot.lane.b32.xlu0 %v9120, 64
          %v9331 = vpop.permute.xlu0 %9330
          %9332 = vrot.lane.b32.xlu0 %v9121, 64
          %v9333 = vpop.permute.xlu0 %9332
          %9334 = vrot.lane.b32.xlu0 %v9122, 64
          %v9335 = vpop.permute.xlu0 %9334
          %9400 = vmatprep.subr.mxu0 0.0
          %9401 = vmatpush1.msra.mxu0 %v9209
          %9402 = vmatprep.subr.mxu0 0.0
          %9403 = vmatpush1.msra.mxu0 %v9211
          %9404 = vmatprep.subr.mxu0 0.0
          %9405 = vmatpush1.msra.mxu0 %v9213
          %9406 = vmatprep.subr.mxu0 0.0
          %9407 = vmatpush1.msra.mxu0 %v9215
          %9408 = vmatprep.subr.mxu0 0.0
          %9409 = vmatpush1.msra.mxu0 %v9217
          %9410 = vmatprep.subr.mxu0 0.0
          %9411 = vmatpush1.msra.mxu0 %v9219
          %9412 = vmatprep.subr.mxu0 0.0
          %9413 = vmatpush1.msra.mxu0 %v9221
          %9414 = vmatprep.subr.mxu0 0.0
          %9415 = vmatpush1.msra.mxu0 %v9223
          %9416 = vmatprep.subr.mxu0 0.0
          %9417 = vmatpush1.msra.mxu0 %v9225
          %9418 = vmatprep.subr.mxu0 0.0
          %9419 = vmatpush1.msra.mxu0 %v9227
          %9420 = vmatprep.subr.mxu0 0.0
          %9421 = vmatpush1.msra.mxu0 %v9229
          %9422 = vmatprep.subr.mxu0 0.0
          %9423 = vmatpush1.msra.mxu0 %v9231
          %9424 = vmatprep.subr.mxu0 0.0
          %9425 = vmatpush1.msra.mxu0 %v9233
          %9426 = vmatprep.subr.mxu0 0.0
          %9427 = vmatpush1.msra.mxu0 %v9235
          %9428 = vmatprep.subr.mxu0 0.0
          %9429 = vmatpush1.msra.mxu0 %v9237
          %9430 = vmatprep.subr.mxu0 0.0
          %9431 = vmatpush1.msra.mxu0 %v9239
          %9432 = vmatprep.subr.mxu0 0.0
          %9433 = vmatpush1.msra.mxu0 %v9241
          %9434 = vmatprep.subr.mxu0 0.0
          %9435 = vmatpush1.msra.mxu0 %v9243
          %9436 = vmatprep.subr.mxu0 0.0
          %9437 = vmatpush1.msra.mxu0 %v9245
          %9438 = vmatprep.subr.mxu0 0.0
          %9439 = vmatpush1.msra.mxu0 %v9247
          %9440 = vmatprep.subr.mxu0 0.0
          %9441 = vmatpush1.msra.mxu0 %v9249
          %9442 = vmatprep.subr.mxu0 0.0
          %9443 = vmatpush1.msra.mxu0 %v9251
          %9444 = vmatprep.subr.mxu0 0.0
          %9445 = vmatpush1.msra.mxu0 %v9253
          %9446 = vmatprep.subr.mxu0 0.0
          %9447 = vmatpush1.msra.mxu0 %v9255
          %9448 = vmatprep.subr.mxu0 0.0
          %9449 = vmatpush1.msra.mxu0 %v9257
          %9450 = vmatprep.subr.mxu0 0.0
          %9451 = vmatpush1.msra.mxu0 %v9259
          %9452 = vmatprep.subr.mxu0 0.0
          %9453 = vmatpush1.msra.mxu0 %v9261
          %9454 = vmatprep.subr.mxu0 0.0
          %9455 = vmatpush1.msra.mxu0 %v9263
          %9456 = vmatprep.subr.mxu0 0.0
          %9457 = vmatpush1.msra.mxu0 %v9265
          %9458 = vmatprep.subr.mxu0 0.0
          %9459 = vmatpush1.msra.mxu0 %v9267
          %9460 = vmatprep.subr.mxu0 0.0
          %9461 = vmatpush1.msra.mxu0 %v9269
          %9462 = vmatprep.subr.mxu0 0.0
          %9463 = vmatpush1.msra.mxu0 %v9271
          %9464 = vmatprep.mubr.f32.mxu0 %v9131
          %9465 = vmatmul.mubr.f32.gmra.mrb[0].mxu0 %v9127
          %v9466 = vpop.f32.mrb[0].mxu0
          %v9467 = vadd.f32 0.0, %v9466
          %v9468 = vpop.f32.mrb[0].mxu0
          %9469 = vdwg.mxu0
          %9470 = vmatprep.subr.mxu0 0.0
          %9471 = vmatpush1.msra.mxu0 %v9273
          %9472 = vmatprep.subr.mxu0 0.0
          %9473 = vmatpush1.msra.mxu0 %v9275
          %9474 = vmatprep.subr.mxu0 0.0
          %9475 = vmatpush1.msra.mxu0 %v9277
          %9476 = vmatprep.subr.mxu0 0.0
          %9477 = vmatpush1.msra.mxu0 %v9279
          %9478 = vmatprep.subr.mxu0 0.0
          %9479 = vmatpush1.msra.mxu0 %v9281
          %9480 = vmatprep.subr.mxu0 0.0
          %9481 = vmatpush1.msra.mxu0 %v9283
          %9482 = vmatprep.subr.mxu0 0.0
          %9483 = vmatpush1.msra.mxu0 %v9285
          %9484 = vmatprep.subr.mxu0 0.0
          %9485 = vmatpush1.msra.mxu0 %v9287
          %9486 = vmatprep.subr.mxu0 0.0
          %9487 = vmatpush1.msra.mxu0 %v9289
          %9488 = vmatprep.subr.mxu0 0.0
          %9489 = vmatpush1.msra.mxu0 %v9291
          %9490 = vmatprep.subr.mxu0 0.0
          %9491 = vmatpush1.msra.mxu0 %v9293
          %9492 = vmatprep.subr.mxu0 0.0
          %9493 = vmatpush1.msra.mxu0 %v9295
          %9494 = vmatprep.subr.mxu0 0.0
          %9495 = vmatpush1.msra.mxu0 %v9297
          %9496 = vmatprep.subr.mxu0 0.0
          %9497 = vmatpush1.msra.mxu0 %v9299
          %9498 = vmatprep.subr.mxu0 0.0
          %9499 = vmatpush1.msra.mxu0 %v9301
          %9500 = vmatprep.subr.mxu0 0.0
          %9501 = vmatpush1.msra.mxu0 %v9303
          %9502 = vmatprep.subr.mxu0 0.0
          %9503 = vmatpush1.msra.mxu0 %v9305
          %9504 = vmatprep.subr.mxu0 0.0
          %9505 = vmatpush1.msra.mxu0 %v9307
          %9506 = vmatprep.subr.mxu0 0.0
          %9507 = vmatpush1.msra.mxu0 %v9309
          %9508 = vmatprep.subr.mxu0 0.0
          %9509 = vmatpush1.msra.mxu0 %v9311
          %9510 = vmatprep.subr.mxu0 0.0
          %9511 = vmatpush1.msra.mxu0 %v9313
          %9512 = vmatprep.subr.mxu0 0.0
          %9513 = vmatpush1.msra.mxu0 %v9315
          %9514 = vmatprep.subr.mxu0 0.0
          %9515 = vmatpush1.msra.mxu0 %v9317
          %9516 = vmatprep.subr.mxu0 0.0
          %9517 = vmatpush1.msra.mxu0 %v9319
          %9518 = vmatprep.subr.mxu0 0.0
          %9519 = vmatpush1.msra.mxu0 %v9321
          %9520 = vmatprep.subr.mxu0 0.0
          %9521 = vmatpush1.msra.mxu0 %v9323
          %9522 = vmatprep.subr.mxu0 0.0
          %9523 = vmatpush1.msra.mxu0 %v9325
          %9524 = vmatprep.subr.mxu0 0.0
          %9525 = vmatpush1.msra.mxu0 %v9327
          %9526 = vmatprep.subr.mxu0 0.0
          %9527 = vmatpush1.msra.mxu0 %v9329
          %9528 = vmatprep.subr.mxu0 0.0
          %9529 = vmatpush1.msra.mxu0 %v9331
          %9530 = vmatprep.subr.mxu0 0.0
          %9531 = vmatpush1.msra.mxu0 %v9333
          %9532 = vmatprep.subr.mxu0 0.0
          %9533 = vmatpush1.msra.mxu0 %v9335
          %9534 = vmatprep.mubr.f32.mxu0 %v9139
          %9535 = vmatmul.mubr.f32.gmra.mrb[0].mxu0 %v9135
          %v9536 = vpop.f32.mrb[0].mxu0
          %v9537 = vadd.f32 %v9467, %v9536
          %v9538 = vpop.f32.mrb[0].mxu0
          %9539 = vdwg.mxu0
          %v9541 = vlaneseq
          %v9542 = vshrl.u32 %v9541, 7
          %v9543 = vsub.s32 0, %v9542
          %v9544 = vrot.slane %v8992, %v9543
          %v9545 = vlaneseq
          %v9546 = vshrl.u32 %v9545, 7
          %v9547 = vsub.s32 1, %v9546
          %v9548 = vrot.slane %v8992, %v9547
          %v9549 = vlaneseq
          %v9550 = vshrl.u32 %v9549, 7
          %v9551 = vsub.s32 2, %v9550
          %v9552 = vrot.slane %v8992, %v9551
          %v9553 = vlaneseq
          %v9554 = vshrl.u32 %v9553, 7
          %v9555 = vsub.s32 3, %v9554
          %v9556 = vrot.slane %v8992, %v9555
          %9625 = vrot.lane.b32.xlu0 %v8995, 64
          %v9626 = vpop.permute.xlu0 %9625
          %9627 = vrot.lane.b32.xlu0 %v8996, 64
          %v9628 = vpop.permute.xlu0 %9627
          %9629 = vrot.lane.b32.xlu0 %v8997, 64
          %v9630 = vpop.permute.xlu0 %9629
          %9631 = vrot.lane.b32.xlu0 %v8998, 64
          %v9632 = vpop.permute.xlu0 %9631
          %9633 = vrot.lane.b32.xlu0 %v8999, 64
          %v9634 = vpop.permute.xlu0 %9633
          %9635 = vrot.lane.b32.xlu0 %v9000, 64
          %v9636 = vpop.permute.xlu0 %9635
          %9637 = vrot.lane.b32.xlu0 %v9001, 64
          %v9638 = vpop.permute.xlu0 %9637
          %9639 = vrot.lane.b32.xlu0 %v9002, 64
          %v9640 = vpop.permute.xlu0 %9639
          %9641 = vrot.lane.b32.xlu0 %v9003, 64
          %v9642 = vpop.permute.xlu0 %9641
          %9643 = vrot.lane.b32.xlu0 %v9004, 64
          %v9644 = vpop.permute.xlu0 %9643
          %9645 = vrot.lane.b32.xlu0 %v9005, 64
          %v9646 = vpop.permute.xlu0 %9645
          %9647 = vrot.lane.b32.xlu0 %v9006, 64
          %v9648 = vpop.permute.xlu0 %9647
          %9649 = vrot.lane.b32.xlu0 %v9007, 64
          %v9650 = vpop.permute.xlu0 %9649
          %9651 = vrot.lane.b32.xlu0 %v9008, 64
          %v9652 = vpop.permute.xlu0 %9651
          %9653 = vrot.lane.b32.xlu0 %v9009, 64
          %v9654 = vpop.permute.xlu0 %9653
          %9655 = vrot.lane.b32.xlu0 %v9010, 64
          %v9656 = vpop.permute.xlu0 %9655
          %9657 = vrot.lane.b32.xlu0 %v9011, 64
          %v9658 = vpop.permute.xlu0 %9657
          %9659 = vrot.lane.b32.xlu0 %v9012, 64
          %v9660 = vpop.permute.xlu0 %9659
          %9661 = vrot.lane.b32.xlu0 %v9013, 64
          %v9662 = vpop.permute.xlu0 %9661
          %9663 = vrot.lane.b32.xlu0 %v9014, 64
          %v9664 = vpop.permute.xlu0 %9663
          %9665 = vrot.lane.b32.xlu0 %v9015, 64
          %v9666 = vpop.permute.xlu0 %9665
          %9667 = vrot.lane.b32.xlu0 %v9016, 64
          %v9668 = vpop.permute.xlu0 %9667
          %9669 = vrot.lane.b32.xlu0 %v9017, 64
          %v9670 = vpop.permute.xlu0 %9669
          %9671 = vrot.lane.b32.xlu0 %v9018, 64
          %v9672 = vpop.permute.xlu0 %9671
          %9673 = vrot.lane.b32.xlu0 %v9019, 64
          %v9674 = vpop.permute.xlu0 %9673
          %9675 = vrot.lane.b32.xlu0 %v9020, 64
          %v9676 = vpop.permute.xlu0 %9675
          %9677 = vrot.lane.b32.xlu0 %v9021, 64
          %v9678 = vpop.permute.xlu0 %9677
          %9679 = vrot.lane.b32.xlu0 %v9022, 64
          %v9680 = vpop.permute.xlu0 %9679
          %9681 = vrot.lane.b32.xlu0 %v9023, 64
          %v9682 = vpop.permute.xlu0 %9681
          %9683 = vrot.lane.b32.xlu0 %v9024, 64
          %v9684 = vpop.permute.xlu0 %9683
          %9685 = vrot.lane.b32.xlu0 %v9025, 64
          %v9686 = vpop.permute.xlu0 %9685
          %9687 = vrot.lane.b32.xlu0 %v9026, 64
          %v9688 = vpop.permute.xlu0 %9687
          %9689 = vrot.lane.b32.xlu0 %v9027, 64
          %v9690 = vpop.permute.xlu0 %9689
          %9691 = vrot.lane.b32.xlu0 %v9028, 64
          %v9692 = vpop.permute.xlu0 %9691
          %9693 = vrot.lane.b32.xlu0 %v9029, 64
          %v9694 = vpop.permute.xlu0 %9693
          %9695 = vrot.lane.b32.xlu0 %v9030, 64
          %v9696 = vpop.permute.xlu0 %9695
          %9697 = vrot.lane.b32.xlu0 %v9031, 64
          %v9698 = vpop.permute.xlu0 %9697
          %9699 = vrot.lane.b32.xlu0 %v9032, 64
          %v9700 = vpop.permute.xlu0 %9699
          %9701 = vrot.lane.b32.xlu0 %v9033, 64
          %v9702 = vpop.permute.xlu0 %9701
          %9703 = vrot.lane.b32.xlu0 %v9034, 64
          %v9704 = vpop.permute.xlu0 %9703
          %9705 = vrot.lane.b32.xlu0 %v9035, 64
          %v9706 = vpop.permute.xlu0 %9705
          %9707 = vrot.lane.b32.xlu0 %v9036, 64
          %v9708 = vpop.permute.xlu0 %9707
          %9709 = vrot.lane.b32.xlu0 %v9037, 64
          %v9710 = vpop.permute.xlu0 %9709
          %9711 = vrot.lane.b32.xlu0 %v9038, 64
          %v9712 = vpop.permute.xlu0 %9711
          %9713 = vrot.lane.b32.xlu0 %v9039, 64
          %v9714 = vpop.permute.xlu0 %9713
          %9715 = vrot.lane.b32.xlu0 %v9040, 64
          %v9716 = vpop.permute.xlu0 %9715
          %9717 = vrot.lane.b32.xlu0 %v9041, 64
          %v9718 = vpop.permute.xlu0 %9717
          %9719 = vrot.lane.b32.xlu0 %v9042, 64
          %v9720 = vpop.permute.xlu0 %9719
          %9721 = vrot.lane.b32.xlu0 %v9043, 64
          %v9722 = vpop.permute.xlu0 %9721
          %9723 = vrot.lane.b32.xlu0 %v9044, 64
          %v9724 = vpop.permute.xlu0 %9723
          %9725 = vrot.lane.b32.xlu0 %v9045, 64
          %v9726 = vpop.permute.xlu0 %9725
          %9727 = vrot.lane.b32.xlu0 %v9046, 64
          %v9728 = vpop.permute.xlu0 %9727
          %9729 = vrot.lane.b32.xlu0 %v9047, 64
          %v9730 = vpop.permute.xlu0 %9729
          %9731 = vrot.lane.b32.xlu0 %v9048, 64
          %v9732 = vpop.permute.xlu0 %9731
          %9733 = vrot.lane.b32.xlu0 %v9049, 64
          %v9734 = vpop.permute.xlu0 %9733
          %9735 = vrot.lane.b32.xlu0 %v9050, 64
          %v9736 = vpop.permute.xlu0 %9735
          %9737 = vrot.lane.b32.xlu0 %v9051, 64
          %v9738 = vpop.permute.xlu0 %9737
          %9739 = vrot.lane.b32.xlu0 %v9052, 64
          %v9740 = vpop.permute.xlu0 %9739
          %9741 = vrot.lane.b32.xlu0 %v9053, 64
          %v9742 = vpop.permute.xlu0 %9741
          %9743 = vrot.lane.b32.xlu0 %v9054, 64
          %v9744 = vpop.permute.xlu0 %9743
          %9745 = vrot.lane.b32.xlu0 %v9055, 64
          %v9746 = vpop.permute.xlu0 %9745
          %9747 = vrot.lane.b32.xlu0 %v9056, 64
          %v9748 = vpop.permute.xlu0 %9747
          %9749 = vrot.lane.b32.xlu0 %v9057, 64
          %v9750 = vpop.permute.xlu0 %9749
          %9751 = vrot.lane.b32.xlu0 %v9058, 64
          %v9752 = vpop.permute.xlu0 %9751
          %9817 = vmatprep.subr.mxu0 0.0
          %9818 = vmatpush1.msra.mxu0 %v9626
          %9819 = vmatprep.subr.mxu0 0.0
          %9820 = vmatpush1.msra.mxu0 %v9628
          %9821 = vmatprep.subr.mxu0 0.0
          %9822 = vmatpush1.msra.mxu0 %v9630
          %9823 = vmatprep.subr.mxu0 0.0
          %9824 = vmatpush1.msra.mxu0 %v9632
          %9825 = vmatprep.subr.mxu0 0.0
          %9826 = vmatpush1.msra.mxu0 %v9634
          %9827 = vmatprep.subr.mxu0 0.0
          %9828 = vmatpush1.msra.mxu0 %v9636
          %9829 = vmatprep.subr.mxu0 0.0
          %9830 = vmatpush1.msra.mxu0 %v9638
          %9831 = vmatprep.subr.mxu0 0.0
          %9832 = vmatpush1.msra.mxu0 %v9640
          %9833 = vmatprep.subr.mxu0 0.0
          %9834 = vmatpush1.msra.mxu0 %v9642
          %9835 = vmatprep.subr.mxu0 0.0
          %9836 = vmatpush1.msra.mxu0 %v9644
          %9837 = vmatprep.subr.mxu0 0.0
          %9838 = vmatpush1.msra.mxu0 %v9646
          %9839 = vmatprep.subr.mxu0 0.0
          %9840 = vmatpush1.msra.mxu0 %v9648
          %9841 = vmatprep.subr.mxu0 0.0
          %9842 = vmatpush1.msra.mxu0 %v9650
          %9843 = vmatprep.subr.mxu0 0.0
          %9844 = vmatpush1.msra.mxu0 %v9652
          %9845 = vmatprep.subr.mxu0 0.0
          %9846 = vmatpush1.msra.mxu0 %v9654
          %9847 = vmatprep.subr.mxu0 0.0
          %9848 = vmatpush1.msra.mxu0 %v9656
          %9849 = vmatprep.subr.mxu0 0.0
          %9850 = vmatpush1.msra.mxu0 %v9658
          %9851 = vmatprep.subr.mxu0 0.0
          %9852 = vmatpush1.msra.mxu0 %v9660
          %9853 = vmatprep.subr.mxu0 0.0
          %9854 = vmatpush1.msra.mxu0 %v9662
          %9855 = vmatprep.subr.mxu0 0.0
          %9856 = vmatpush1.msra.mxu0 %v9664
          %9857 = vmatprep.subr.mxu0 0.0
          %9858 = vmatpush1.msra.mxu0 %v9666
          %9859 = vmatprep.subr.mxu0 0.0
          %9860 = vmatpush1.msra.mxu0 %v9668
          %9861 = vmatprep.subr.mxu0 0.0
          %9862 = vmatpush1.msra.mxu0 %v9670
          %9863 = vmatprep.subr.mxu0 0.0
          %9864 = vmatpush1.msra.mxu0 %v9672
          %9865 = vmatprep.subr.mxu0 0.0
          %9866 = vmatpush1.msra.mxu0 %v9674
          %9867 = vmatprep.subr.mxu0 0.0
          %9868 = vmatpush1.msra.mxu0 %v9676
          %9869 = vmatprep.subr.mxu0 0.0
          %9870 = vmatpush1.msra.mxu0 %v9678
          %9871 = vmatprep.subr.mxu0 0.0
          %9872 = vmatpush1.msra.mxu0 %v9680
          %9873 = vmatprep.subr.mxu0 0.0
          %9874 = vmatpush1.msra.mxu0 %v9682
          %9875 = vmatprep.subr.mxu0 0.0
          %9876 = vmatpush1.msra.mxu0 %v9684
          %9877 = vmatprep.subr.mxu0 0.0
          %9878 = vmatpush1.msra.mxu0 %v9686
          %9879 = vmatprep.subr.mxu0 0.0
          %9880 = vmatpush1.msra.mxu0 %v9688
          %9881 = vmatprep.mubr.f32.mxu0 %v9548
          %9882 = vmatmul.mubr.f32.gmra.mrb[0].mxu0 %v9544
          %v9883 = vpop.f32.mrb[0].mxu0
          %v9884 = vadd.f32 %v9537, %v9883
          %v9885 = vpop.f32.mrb[0].mxu0
          %9886 = vdwg.mxu0
          %9887 = vmatprep.subr.mxu0 0.0
          %9888 = vmatpush1.msra.mxu0 %v9690
          %9889 = vmatprep.subr.mxu0 0.0
          %9890 = vmatpush1.msra.mxu0 %v9692
          %9891 = vmatprep.subr.mxu0 0.0
          %9892 = vmatpush1.msra.mxu0 %v9694
          %9893 = vmatprep.subr.mxu0 0.0
          %9894 = vmatpush1.msra.mxu0 %v9696
          %9895 = vmatprep.subr.mxu0 0.0
          %9896 = vmatpush1.msra.mxu0 %v9698
          %9897 = vmatprep.subr.mxu0 0.0
          %9898 = vmatpush1.msra.mxu0 %v9700
          %9899 = vmatprep.subr.mxu0 0.0
          %9900 = vmatpush1.msra.mxu0 %v9702
          %9901 = vmatprep.subr.mxu0 0.0
          %9902 = vmatpush1.msra.mxu0 %v9704
          %9903 = vmatprep.subr.mxu0 0.0
          %9904 = vmatpush1.msra.mxu0 %v9706
          %9905 = vmatprep.subr.mxu0 0.0
          %9906 = vmatpush1.msra.mxu0 %v9708
          %9907 = vmatprep.subr.mxu0 0.0
          %9908 = vmatpush1.msra.mxu0 %v9710
          %9909 = vmatprep.subr.mxu0 0.0
          %9910 = vmatpush1.msra.mxu0 %v9712
          %9911 = vmatprep.subr.mxu0 0.0
          %9912 = vmatpush1.msra.mxu0 %v9714
          %9913 = vmatprep.subr.mxu0 0.0
          %9914 = vmatpush1.msra.mxu0 %v9716
          %9915 = vmatprep.subr.mxu0 0.0
          %9916 = vmatpush1.msra.mxu0 %v9718
          %9917 = vmatprep.subr.mxu0 0.0
          %9918 = vmatpush1.msra.mxu0 %v9720
          %9919 = vmatprep.subr.mxu0 0.0
          %9920 = vmatpush1.msra.mxu0 %v9722
          %9921 = vmatprep.subr.mxu0 0.0
          %9922 = vmatpush1.msra.mxu0 %v9724
          %9923 = vmatprep.subr.mxu0 0.0
          %9924 = vmatpush1.msra.mxu0 %v9726
          %9925 = vmatprep.subr.mxu0 0.0
          %9926 = vmatpush1.msra.mxu0 %v9728
          %9927 = vmatprep.subr.mxu0 0.0
          %9928 = vmatpush1.msra.mxu0 %v9730
          %9929 = vmatprep.subr.mxu0 0.0
          %9930 = vmatpush1.msra.mxu0 %v9732
          %9931 = vmatprep.subr.mxu0 0.0
          %9932 = vmatpush1.msra.mxu0 %v9734
          %9933 = vmatprep.subr.mxu0 0.0
          %9934 = vmatpush1.msra.mxu0 %v9736
          %9935 = vmatprep.subr.mxu0 0.0
          %9936 = vmatpush1.msra.mxu0 %v9738
          %9937 = vmatprep.subr.mxu0 0.0
          %9938 = vmatpush1.msra.mxu0 %v9740
          %9939 = vmatprep.subr.mxu0 0.0
          %9940 = vmatpush1.msra.mxu0 %v9742
          %9941 = vmatprep.subr.mxu0 0.0
          %9942 = vmatpush1.msra.mxu0 %v9744
          %9943 = vmatprep.subr.mxu0 0.0
          %9944 = vmatpush1.msra.mxu0 %v9746
          %9945 = vmatprep.subr.mxu0 0.0
          %9946 = vmatpush1.msra.mxu0 %v9748
          %9947 = vmatprep.subr.mxu0 0.0
          %9948 = vmatpush1.msra.mxu0 %v9750
          %9949 = vmatprep.subr.mxu0 0.0
          %9950 = vmatpush1.msra.mxu0 %v9752
          %9951 = vmatprep.mubr.f32.mxu0 %v9556
          %9952 = vmatmul.mubr.f32.gmra.mrb[0].mxu0 %v9552
          %v9953 = vpop.f32.mrb[0].mxu0
          %v9954 = vadd.f32 %v9884, %v9953
          %v9955 = vpop.f32.mrb[0].mxu0
          %9956 = vdwg.mxu0
          %v9957 = vld [vmem:[#allocation12 + $0x42] sm:$0x1]
          %v9958 = vadd.f32 %v9954, %v9957
          %v9959 = vld [vmem:[#allocation16] sm:$0xff]
          %v9960 = vld [vmem:[#allocation16 + $0x8] sm:$0xff]
          %v9961 = vld [vmem:[#allocation16 + $0x10] sm:$0xff]
          %v9962 = vld [vmem:[#allocation16 + $0x18] sm:$0xff]
          %v9963 = vld [vmem:[#allocation16 + $0x20] sm:$0xff]
          %v9964 = vld [vmem:[#allocation16 + $0x28] sm:$0xff]
          %v9965 = vld [vmem:[#allocation16 + $0x30] sm:$0xff]
          %v9966 = vld [vmem:[#allocation16 + $0x38] sm:$0xff]
          %vm9967 = vcmask 130048
          %v9969 = vsel %vm9967, %v9958, 0
          %9971 = vmatprep.subr.mxu0 %v9960
          %9972 = vmatpush1.msra.mxu0 %v9959
          %9973 = vmatprep.subr.mxu0 %v9964
          %9974 = vmatpush1.msra.mxu0 %v9963
          %9975 = vmatprep.subr.mxu0 0.0
          %9976 = vmatpush1.msra.mxu0 0.0
          %9977 = vmatprep.subr.mxu0 0.0
          %9978 = vmatpush1.msra.mxu0 0.0
          %9979 = vmatprep.subr.mxu0 0.0
          %9980 = vmatpush1.msra.mxu0 0.0
          %9981 = vmatprep.subr.mxu0 0.0
          %9982 = vmatpush1.msra.mxu0 0.0
          %9983 = vmatprep.subr.mxu0 0.0
          %9984 = vmatpush1.msra.mxu0 0.0
          %9985 = vmatprep.subr.mxu0 0.0
          %9986 = vmatpush1.msra.mxu0 0.0
          %9987 = vmatprep.subr.mxu0 0.0
          %9988 = vmatpush1.msra.mxu0 0.0
          %9989 = vmatprep.subr.mxu0 0.0
          %9990 = vmatpush1.msra.mxu0 0.0
          %9991 = vmatprep.subr.mxu0 0.0
          %9992 = vmatpush1.msra.mxu0 0.0
          %9993 = vmatprep.subr.mxu0 0.0
          %9994 = vmatpush1.msra.mxu0 0.0
          %9995 = vmatprep.subr.mxu0 0.0
          %9996 = vmatpush1.msra.mxu0 0.0
          %9997 = vmatprep.subr.mxu0 0.0
          %9998 = vmatpush1.msra.mxu0 0.0
          %9999 = vmatprep.subr.mxu0 0.0
          %10000 = vmatpush1.msra.mxu0 0.0
          %10001 = vmatprep.subr.mxu0 0.0
          %10002 = vmatpush1.msra.mxu0 0.0
          %10003 = vmatprep.subr.mxu0 0.0
          %10004 = vmatpush1.msra.mxu0 0.0
          %10005 = vmatprep.subr.mxu0 0.0
          %10006 = vmatpush1.msra.mxu0 0.0
          %10007 = vmatprep.subr.mxu0 0.0
          %10008 = vmatpush1.msra.mxu0 0.0
          %10009 = vmatprep.subr.mxu0 0.0
          %10010 = vmatpush1.msra.mxu0 0.0
          %10011 = vmatprep.subr.mxu0 0.0
          %10012 = vmatpush1.msra.mxu0 0.0
          %10013 = vmatprep.subr.mxu0 0.0
          %10014 = vmatpush1.msra.mxu0 0.0
          %10015 = vmatprep.subr.mxu0 0.0
          %10016 = vmatpush1.msra.mxu0 0.0
          %10017 = vmatprep.subr.mxu0 0.0
          %10018 = vmatpush1.msra.mxu0 0.0
          %10019 = vmatprep.subr.mxu0 0.0
          %10020 = vmatpush1.msra.mxu0 0.0
          %10021 = vmatprep.subr.mxu0 0.0
          %10022 = vmatpush1.msra.mxu0 0.0
          %10023 = vmatprep.subr.mxu0 0.0
          %10024 = vmatpush1.msra.mxu0 0.0
          %10025 = vmatprep.subr.mxu0 0.0
          %10026 = vmatpush1.msra.mxu0 0.0
          %10027 = vmatprep.subr.mxu0 0.0
          %10028 = vmatpush1.msra.mxu0 0.0
          %10029 = vmatprep.subr.mxu0 0.0
          %10030 = vmatpush1.msra.mxu0 0.0
          %10031 = vmatprep.subr.mxu0 0.0
          %10032 = vmatpush1.msra.mxu0 0.0
          %10033 = vmatprep.subr.mxu0 0.0
          %10034 = vmatpush1.msra.mxu0 0.0
          %10035 = vmatprep.mubr.f32.mxu0 0.0
          %10036 = vmatmul.mubr.f32.gmra.mrb[0].mxu0 %v9969
          %v10037 = vpop.f32.mrb[0].mxu0
          %v10038 = vadd.f32 0.0, %v10037
          %v10039 = vpop.f32.mrb[0].mxu0
          %v10040 = vadd.f32 0.0, %v10039
          %10041 = vdwg.mxu0
          %10042 = vmatprep.subr.mxu0 %v9962
          %10043 = vmatpush1.msra.mxu0 %v9961
          %10044 = vmatprep.subr.mxu0 %v9966
          %10045 = vmatpush1.msra.mxu0 %v9965
          %10046 = vmatprep.subr.mxu0 0.0
          %10047 = vmatpush1.msra.mxu0 0.0
          %10048 = vmatprep.subr.mxu0 0.0
          %10049 = vmatpush1.msra.mxu0 0.0
          %10050 = vmatprep.subr.mxu0 0.0
          %10051 = vmatpush1.msra.mxu0 0.0
          %10052 = vmatprep.subr.mxu0 0.0
          %10053 = vmatpush1.msra.mxu0 0.0
          %10054 = vmatprep.subr.mxu0 0.0
          %10055 = vmatpush1.msra.mxu0 0.0
          %10056 = vmatprep.subr.mxu0 0.0
          %10057 = vmatpush1.msra.mxu0 0.0
          %10058 = vmatprep.subr.mxu0 0.0
          %10059 = vmatpush1.msra.mxu0 0.0
          %10060 = vmatprep.subr.mxu0 0.0
          %10061 = vmatpush1.msra.mxu0 0.0
          %10062 = vmatprep.subr.mxu0 0.0
          %10063 = vmatpush1.msra.mxu0 0.0
          %10064 = vmatprep.subr.mxu0 0.0
          %10065 = vmatpush1.msra.mxu0 0.0
          %10066 = vmatprep.subr.mxu0 0.0
          %10067 = vmatpush1.msra.mxu0 0.0
          %10068 = vmatprep.subr.mxu0 0.0
          %10069 = vmatpush1.msra.mxu0 0.0
          %10070 = vmatprep.subr.mxu0 0.0
          %10071 = vmatpush1.msra.mxu0 0.0
          %10072 = vmatprep.subr.mxu0 0.0
          %10073 = vmatpush1.msra.mxu0 0.0
          %10074 = vmatprep.subr.mxu0 0.0
          %10075 = vmatpush1.msra.mxu0 0.0
          %10076 = vmatprep.subr.mxu0 0.0
          %10077 = vmatpush1.msra.mxu0 0.0
          %10078 = vmatprep.subr.mxu0 0.0
          %10079 = vmatpush1.msra.mxu0 0.0
          %10080 = vmatprep.subr.mxu0 0.0
          %10081 = vmatpush1.msra.mxu0 0.0
          %10082 = vmatprep.subr.mxu0 0.0
          %10083 = vmatpush1.msra.mxu0 0.0
          %10084 = vmatprep.subr.mxu0 0.0
          %10085 = vmatpush1.msra.mxu0 0.0
          %10086 = vmatprep.subr.mxu0 0.0
          %10087 = vmatpush1.msra.mxu0 0.0
          %10088 = vmatprep.subr.mxu0 0.0
          %10089 = vmatpush1.msra.mxu0 0.0
          %10090 = vmatprep.subr.mxu0 0.0
          %10091 = vmatpush1.msra.mxu0 0.0
          %10092 = vmatprep.subr.mxu0 0.0
          %10093 = vmatpush1.msra.mxu0 0.0
          %10094 = vmatprep.subr.mxu0 0.0
          %10095 = vmatpush1.msra.mxu0 0.0
          %10096 = vmatprep.subr.mxu0 0.0
          %10097 = vmatpush1.msra.mxu0 0.0
          %10098 = vmatprep.subr.mxu0 0.0
          %10099 = vmatpush1.msra.mxu0 0.0
          %10100 = vmatprep.subr.mxu0 0.0
          %10101 = vmatpush1.msra.mxu0 0.0
          %10102 = vmatprep.subr.mxu0 0.0
          %10103 = vmatpush1.msra.mxu0 0.0
          %10104 = vmatprep.subr.mxu0 0.0
          %10105 = vmatpush1.msra.mxu0 0.0
          %10106 = vmatprep.mubr.f32.mxu0 0.0
          %10107 = vmatmul.mubr.f32.gmra.mrb[0].mxu0 %v9969
          %v10108 = vpop.f32.mrb[0].mxu0
          %v10109 = vadd.f32 0.0, %v10108
          %v10110 = vpop.f32.mrb[0].mxu0
          %v10111 = vadd.f32 0.0, %v10110
          %10112 = vdwg.mxu0
          %10113 = vrot.lane.b32.xlu0 %v9059, 48
          %v10114 = vpop.permute.xlu0 %10113
          %10115 = vrot.lane.b32.xlu0 %v9060, 48
          %v10116 = vpop.permute.xlu0 %10115
          %10117 = vrot.lane.b32.xlu0 %v9061, 48
          %v10118 = vpop.permute.xlu0 %10117
          %10119 = vrot.lane.b32.xlu0 %v9062, 48
          %v10120 = vpop.permute.xlu0 %10119
          %10121 = vrot.lane.b32.xlu0 %v9063, 48
          %v10122 = vpop.permute.xlu0 %10121
          %10123 = vrot.lane.b32.xlu0 %v9064, 48
          %v10124 = vpop.permute.xlu0 %10123
          %10125 = vrot.lane.b32.xlu0 %v9065, 48
          %v10126 = vpop.permute.xlu0 %10125
          %10127 = vrot.lane.b32.xlu0 %v9066, 48
          %v10128 = vpop.permute.xlu0 %10127
          %10129 = vrot.lane.b32.xlu0 %v9067, 48
          %v10130 = vpop.permute.xlu0 %10129
          %10131 = vrot.lane.b32.xlu0 %v9068, 48
          %v10132 = vpop.permute.xlu0 %10131
          %10133 = vrot.lane.b32.xlu0 %v9069, 48
          %v10134 = vpop.permute.xlu0 %10133
          %10135 = vrot.lane.b32.xlu0 %v9070, 48
          %v10136 = vpop.permute.xlu0 %10135
          %10137 = vrot.lane.b32.xlu0 %v9071, 48
          %v10138 = vpop.permute.xlu0 %10137
          %10139 = vrot.lane.b32.xlu0 %v9072, 48
          %v10140 = vpop.permute.xlu0 %10139
          %10141 = vrot.lane.b32.xlu0 %v9073, 48
          %v10142 = vpop.permute.xlu0 %10141
          %10143 = vrot.lane.b32.xlu0 %v9074, 48
          %v10144 = vpop.permute.xlu0 %10143
          %10145 = vrot.lane.b32.xlu0 %v9075, 48
          %v10146 = vpop.permute.xlu0 %10145
          %10147 = vrot.lane.b32.xlu0 %v9076, 48
          %v10148 = vpop.permute.xlu0 %10147
          %10149 = vrot.lane.b32.xlu0 %v9077, 48
          %v10150 = vpop.permute.xlu0 %10149
          %10151 = vrot.lane.b32.xlu0 %v9078, 48
          %v10152 = vpop.permute.xlu0 %10151
          %10153 = vrot.lane.b32.xlu0 %v9079, 48
          %v10154 = vpop.permute.xlu0 %10153
          %10155 = vrot.lane.b32.xlu0 %v9080, 48
          %v10156 = vpop.permute.xlu0 %10155
          %10157 = vrot.lane.b32.xlu0 %v9081, 48
          %v10158 = vpop.permute.xlu0 %10157
          %10159 = vrot.lane.b32.xlu0 %v9082, 48
          %v10160 = vpop.permute.xlu0 %10159
          %10161 = vrot.lane.b32.xlu0 %v9083, 48
          %v10162 = vpop.permute.xlu0 %10161
          %10163 = vrot.lane.b32.xlu0 %v9084, 48
          %v10164 = vpop.permute.xlu0 %10163
          %10165 = vrot.lane.b32.xlu0 %v9085, 48
          %v10166 = vpop.permute.xlu0 %10165
          %10167 = vrot.lane.b32.xlu0 %v9086, 48
          %v10168 = vpop.permute.xlu0 %10167
          %10169 = vrot.lane.b32.xlu0 %v9087, 48
          %v10170 = vpop.permute.xlu0 %10169
          %10171 = vrot.lane.b32.xlu0 %v9088, 48
          %v10172 = vpop.permute.xlu0 %10171
          %10173 = vrot.lane.b32.xlu0 %v9089, 48
          %v10174 = vpop.permute.xlu0 %10173
          %10175 = vrot.lane.b32.xlu0 %v9090, 48
          %v10176 = vpop.permute.xlu0 %10175
          %10177 = vrot.lane.b32.xlu0 %v9091, 48
          %v10178 = vpop.permute.xlu0 %10177
          %10179 = vrot.lane.b32.xlu0 %v9092, 48
          %v10180 = vpop.permute.xlu0 %10179
          %10181 = vrot.lane.b32.xlu0 %v9093, 48
          %v10182 = vpop.permute.xlu0 %10181
          %10183 = vrot.lane.b32.xlu0 %v9094, 48
          %v10184 = vpop.permute.xlu0 %10183
          %10185 = vrot.lane.b32.xlu0 %v9095, 48
          %v10186 = vpop.permute.xlu0 %10185
          %10187 = vrot.lane.b32.xlu0 %v9096, 48
          %v10188 = vpop.permute.xlu0 %10187
          %10189 = vrot.lane.b32.xlu0 %v9097, 48
          %v10190 = vpop.permute.xlu0 %10189
          %10191 = vrot.lane.b32.xlu0 %v9098, 48
          %v10192 = vpop.permute.xlu0 %10191
          %10193 = vrot.lane.b32.xlu0 %v9099, 48
          %v10194 = vpop.permute.xlu0 %10193
          %10195 = vrot.lane.b32.xlu0 %v9100, 48
          %v10196 = vpop.permute.xlu0 %10195
          %10197 = vrot.lane.b32.xlu0 %v9101, 48
          %v10198 = vpop.permute.xlu0 %10197
          %10199 = vrot.lane.b32.xlu0 %v9102, 48
          %v10200 = vpop.permute.xlu0 %10199
          %10201 = vrot.lane.b32.xlu0 %v9103, 48
          %v10202 = vpop.permute.xlu0 %10201
          %10203 = vrot.lane.b32.xlu0 %v9104, 48
          %v10204 = vpop.permute.xlu0 %10203
          %10205 = vrot.lane.b32.xlu0 %v9105, 48
          %v10206 = vpop.permute.xlu0 %10205
          %10207 = vrot.lane.b32.xlu0 %v9106, 48
          %v10208 = vpop.permute.xlu0 %10207
          %10209 = vrot.lane.b32.xlu0 %v9107, 48
          %v10210 = vpop.permute.xlu0 %10209
          %10211 = vrot.lane.b32.xlu0 %v9108, 48
          %v10212 = vpop.permute.xlu0 %10211
          %10213 = vrot.lane.b32.xlu0 %v9109, 48
          %v10214 = vpop.permute.xlu0 %10213
          %10215 = vrot.lane.b32.xlu0 %v9110, 48
          %v10216 = vpop.permute.xlu0 %10215
          %10217 = vrot.lane.b32.xlu0 %v9111, 48
          %v10218 = vpop.permute.xlu0 %10217
          %10219 = vrot.lane.b32.xlu0 %v9112, 48
          %v10220 = vpop.permute.xlu0 %10219
          %10221 = vrot.lane.b32.xlu0 %v9113, 48
          %v10222 = vpop.permute.xlu0 %10221
          %10223 = vrot.lane.b32.xlu0 %v9114, 48
          %v10224 = vpop.permute.xlu0 %10223
          %10225 = vrot.lane.b32.xlu0 %v9115, 48
          %v10226 = vpop.permute.xlu0 %10225
          %10227 = vrot.lane.b32.xlu0 %v9116, 48
          %v10228 = vpop.permute.xlu0 %10227
          %10229 = vrot.lane.b32.xlu0 %v9117, 48
          %v10230 = vpop.permute.xlu0 %10229
          %10231 = vrot.lane.b32.xlu0 %v9118, 48
          %v10232 = vpop.permute.xlu0 %10231
          %10233 = vrot.lane.b32.xlu0 %v9119, 48
          %v10234 = vpop.permute.xlu0 %10233
          %10235 = vrot.lane.b32.xlu0 %v9120, 48
          %v10236 = vpop.permute.xlu0 %10235
          %10237 = vrot.lane.b32.xlu0 %v9121, 48
          %v10238 = vpop.permute.xlu0 %10237
          %10239 = vrot.lane.b32.xlu0 %v9122, 48
          %v10240 = vpop.permute.xlu0 %10239
          %10305 = vmatprep.subr.mxu0 0.0
          %10306 = vmatpush1.msra.mxu0 %v10114
          %10307 = vmatprep.subr.mxu0 0.0
          %10308 = vmatpush1.msra.mxu0 %v10116
          %10309 = vmatprep.subr.mxu0 0.0
          %10310 = vmatpush1.msra.mxu0 %v10118
          %10311 = vmatprep.subr.mxu0 0.0
          %10312 = vmatpush1.msra.mxu0 %v10120
          %10313 = vmatprep.subr.mxu0 0.0
          %10314 = vmatpush1.msra.mxu0 %v10122
          %10315 = vmatprep.subr.mxu0 0.0
          %10316 = vmatpush1.msra.mxu0 %v10124
          %10317 = vmatprep.subr.mxu0 0.0
          %10318 = vmatpush1.msra.mxu0 %v10126
          %10319 = vmatprep.subr.mxu0 0.0
          %10320 = vmatpush1.msra.mxu0 %v10128
          %10321 = vmatprep.subr.mxu0 0.0
          %10322 = vmatpush1.msra.mxu0 %v10130
          %10323 = vmatprep.subr.mxu0 0.0
          %10324 = vmatpush1.msra.mxu0 %v10132
          %10325 = vmatprep.subr.mxu0 0.0
          %10326 = vmatpush1.msra.mxu0 %v10134
          %10327 = vmatprep.subr.mxu0 0.0
          %10328 = vmatpush1.msra.mxu0 %v10136
          %10329 = vmatprep.subr.mxu0 0.0
          %10330 = vmatpush1.msra.mxu0 %v10138
          %10331 = vmatprep.subr.mxu0 0.0
          %10332 = vmatpush1.msra.mxu0 %v10140
          %10333 = vmatprep.subr.mxu0 0.0
          %10334 = vmatpush1.msra.mxu0 %v10142
          %10335 = vmatprep.subr.mxu0 0.0
          %10336 = vmatpush1.msra.mxu0 %v10144
          %10337 = vmatprep.subr.mxu0 0.0
          %10338 = vmatpush1.msra.mxu0 %v10146
          %10339 = vmatprep.subr.mxu0 0.0
          %10340 = vmatpush1.msra.mxu0 %v10148
          %10341 = vmatprep.subr.mxu0 0.0
          %10342 = vmatpush1.msra.mxu0 %v10150
          %10343 = vmatprep.subr.mxu0 0.0
          %10344 = vmatpush1.msra.mxu0 %v10152
          %10345 = vmatprep.subr.mxu0 0.0
          %10346 = vmatpush1.msra.mxu0 %v10154
          %10347 = vmatprep.subr.mxu0 0.0
          %10348 = vmatpush1.msra.mxu0 %v10156
          %10349 = vmatprep.subr.mxu0 0.0
          %10350 = vmatpush1.msra.mxu0 %v10158
          %10351 = vmatprep.subr.mxu0 0.0
          %10352 = vmatpush1.msra.mxu0 %v10160
          %10353 = vmatprep.subr.mxu0 0.0
          %10354 = vmatpush1.msra.mxu0 %v10162
          %10355 = vmatprep.subr.mxu0 0.0
          %10356 = vmatpush1.msra.mxu0 %v10164
          %10357 = vmatprep.subr.mxu0 0.0
          %10358 = vmatpush1.msra.mxu0 %v10166
          %10359 = vmatprep.subr.mxu0 0.0
          %10360 = vmatpush1.msra.mxu0 %v10168
          %10361 = vmatprep.subr.mxu0 0.0
          %10362 = vmatpush1.msra.mxu0 %v10170
          %10363 = vmatprep.subr.mxu0 0.0
          %10364 = vmatpush1.msra.mxu0 %v10172
          %10365 = vmatprep.subr.mxu0 0.0
          %10366 = vmatpush1.msra.mxu0 %v10174
          %10367 = vmatprep.subr.mxu0 0.0
          %10368 = vmatpush1.msra.mxu0 %v10176
          %10369 = vmatprep.mubr.f32.mxu0 %v9131
          %10370 = vmatmul.mubr.f32.gmra.mrb[0].mxu0 %v9127
          %v10371 = vpop.f32.mrb[0].mxu0
          %v10372 = vadd.f32 0.0, %v10371
          %v10373 = vpop.f32.mrb[0].mxu0
          %10374 = vdwg.mxu0
          %10375 = vmatprep.subr.mxu0 0.0
          %10376 = vmatpush1.msra.mxu0 %v10178
          %10377 = vmatprep.subr.mxu0 0.0
          %10378 = vmatpush1.msra.mxu0 %v10180
          %10379 = vmatprep.subr.mxu0 0.0
          %10380 = vmatpush1.msra.mxu0 %v10182
          %10381 = vmatprep.subr.mxu0 0.0
          %10382 = vmatpush1.msra.mxu0 %v10184
          %10383 = vmatprep.subr.mxu0 0.0
          %10384 = vmatpush1.msra.mxu0 %v10186
          %10385 = vmatprep.subr.mxu0 0.0
          %10386 = vmatpush1.msra.mxu0 %v10188
          %10387 = vmatprep.subr.mxu0 0.0
          %10388 = vmatpush1.msra.mxu0 %v10190
          %10389 = vmatprep.subr.mxu0 0.0
          %10390 = vmatpush1.msra.mxu0 %v10192
          %10391 = vmatprep.subr.mxu0 0.0
          %10392 = vmatpush1.msra.mxu0 %v10194
          %10393 = vmatprep.subr.mxu0 0.0
          %10394 = vmatpush1.msra.mxu0 %v10196
          %10395 = vmatprep.subr.mxu0 0.0
          %10396 = vmatpush1.msra.mxu0 %v10198
          %10397 = vmatprep.subr.mxu0 0.0
          %10398 = vmatpush1.msra.mxu0 %v10200
          %10399 = vmatprep.subr.mxu0 0.0
          %10400 = vmatpush1.msra.mxu0 %v10202
          %10401 = vmatprep.subr.mxu0 0.0
          %10402 = vmatpush1.msra.mxu0 %v10204
          %10403 = vmatprep.subr.mxu0 0.0
          %10404 = vmatpush1.msra.mxu0 %v10206
          %10405 = vmatprep.subr.mxu0 0.0
          %10406 = vmatpush1.msra.mxu0 %v10208
          %10407 = vmatprep.subr.mxu0 0.0
          %10408 = vmatpush1.msra.mxu0 %v10210
          %10409 = vmatprep.subr.mxu0 0.0
          %10410 = vmatpush1.msra.mxu0 %v10212
          %10411 = vmatprep.subr.mxu0 0.0
          %10412 = vmatpush1.msra.mxu0 %v10214
          %10413 = vmatprep.subr.mxu0 0.0
          %10414 = vmatpush1.msra.mxu0 %v10216
          %10415 = vmatprep.subr.mxu0 0.0
          %10416 = vmatpush1.msra.mxu0 %v10218
          %10417 = vmatprep.subr.mxu0 0.0
          %10418 = vmatpush1.msra.mxu0 %v10220
          %10419 = vmatprep.subr.mxu0 0.0
          %10420 = vmatpush1.msra.mxu0 %v10222
          %10421 = vmatprep.subr.mxu0 0.0
          %10422 = vmatpush1.msra.mxu0 %v10224
          %10423 = vmatprep.subr.mxu0 0.0
          %10424 = vmatpush1.msra.mxu0 %v10226
          %10425 = vmatprep.subr.mxu0 0.0
          %10426 = vmatpush1.msra.mxu0 %v10228
          %10427 = vmatprep.subr.mxu0 0.0
          %10428 = vmatpush1.msra.mxu0 %v10230
          %10429 = vmatprep.subr.mxu0 0.0
          %10430 = vmatpush1.msra.mxu0 %v10232
          %10431 = vmatprep.subr.mxu0 0.0
          %10432 = vmatpush1.msra.mxu0 %v10234
          %10433 = vmatprep.subr.mxu0 0.0
          %10434 = vmatpush1.msra.mxu0 %v10236
          %10435 = vmatprep.subr.mxu0 0.0
          %10436 = vmatpush1.msra.mxu0 %v10238
          %10437 = vmatprep.subr.mxu0 0.0
          %10438 = vmatpush1.msra.mxu0 %v10240
          %10439 = vmatprep.mubr.f32.mxu0 %v9139
          %10440 = vmatmul.mubr.f32.gmra.mrb[0].mxu0 %v9135
          %v10441 = vpop.f32.mrb[0].mxu0
          %v10442 = vadd.f32 %v10372, %v10441
          %v10443 = vpop.f32.mrb[0].mxu0
          %10444 = vdwg.mxu0
          %10445 = vrot.lane.b32.xlu0 %v8995, 48
          %v10446 = vpop.permute.xlu0 %10445
          %10447 = vrot.lane.b32.xlu0 %v8996, 48
          %v10448 = vpop.permute.xlu0 %10447
          %10449 = vrot.lane.b32.xlu0 %v8997, 48
          %v10450 = vpop.permute.xlu0 %10449
          %10451 = vrot.lane.b32.xlu0 %v8998, 48
          %v10452 = vpop.permute.xlu0 %10451
          %10453 = vrot.lane.b32.xlu0 %v8999, 48
          %v10454 = vpop.permute.xlu0 %10453
          %10455 = vrot.lane.b32.xlu0 %v9000, 48
          %v10456 = vpop.permute.xlu0 %10455
          %10457 = vrot.lane.b32.xlu0 %v9001, 48
          %v10458 = vpop.permute.xlu0 %10457
          %10459 = vrot.lane.b32.xlu0 %v9002, 48
          %v10460 = vpop.permute.xlu0 %10459
          %10461 = vrot.lane.b32.xlu0 %v9003, 48
          %v10462 = vpop.permute.xlu0 %10461
          %10463 = vrot.lane.b32.xlu0 %v9004, 48
          %v10464 = vpop.permute.xlu0 %10463
          %10465 = vrot.lane.b32.xlu0 %v9005, 48
          %v10466 = vpop.permute.xlu0 %10465
          %10467 = vrot.lane.b32.xlu0 %v9006, 48
          %v10468 = vpop.permute.xlu0 %10467
          %10469 = vrot.lane.b32.xlu0 %v9007, 48
          %v10470 = vpop.permute.xlu0 %10469
          %10471 = vrot.lane.b32.xlu0 %v9008, 48
          %v10472 = vpop.permute.xlu0 %10471
          %10473 = vrot.lane.b32.xlu0 %v9009, 48
          %v10474 = vpop.permute.xlu0 %10473
          %10475 = vrot.lane.b32.xlu0 %v9010, 48
          %v10476 = vpop.permute.xlu0 %10475
          %10477 = vrot.lane.b32.xlu0 %v9011, 48
          %v10478 = vpop.permute.xlu0 %10477
          %10479 = vrot.lane.b32.xlu0 %v9012, 48
          %v10480 = vpop.permute.xlu0 %10479
          %10481 = vrot.lane.b32.xlu0 %v9013, 48
          %v10482 = vpop.permute.xlu0 %10481
          %10483 = vrot.lane.b32.xlu0 %v9014, 48
          %v10484 = vpop.permute.xlu0 %10483
          %10485 = vrot.lane.b32.xlu0 %v9015, 48
          %v10486 = vpop.permute.xlu0 %10485
          %10487 = vrot.lane.b32.xlu0 %v9016, 48
          %v10488 = vpop.permute.xlu0 %10487
          %10489 = vrot.lane.b32.xlu0 %v9017, 48
          %v10490 = vpop.permute.xlu0 %10489
          %10491 = vrot.lane.b32.xlu0 %v9018, 48
          %v10492 = vpop.permute.xlu0 %10491
          %10493 = vrot.lane.b32.xlu0 %v9019, 48
          %v10494 = vpop.permute.xlu0 %10493
          %10495 = vrot.lane.b32.xlu0 %v9020, 48
          %v10496 = vpop.permute.xlu0 %10495
          %10497 = vrot.lane.b32.xlu0 %v9021, 48
          %v10498 = vpop.permute.xlu0 %10497
          %10499 = vrot.lane.b32.xlu0 %v9022, 48
          %v10500 = vpop.permute.xlu0 %10499
          %10501 = vrot.lane.b32.xlu0 %v9023, 48
          %v10502 = vpop.permute.xlu0 %10501
          %10503 = vrot.lane.b32.xlu0 %v9024, 48
          %v10504 = vpop.permute.xlu0 %10503
          %10505 = vrot.lane.b32.xlu0 %v9025, 48
          %v10506 = vpop.permute.xlu0 %10505
          %10507 = vrot.lane.b32.xlu0 %v9026, 48
          %v10508 = vpop.permute.xlu0 %10507
          %10509 = vrot.lane.b32.xlu0 %v9027, 48
          %v10510 = vpop.permute.xlu0 %10509
          %10511 = vrot.lane.b32.xlu0 %v9028, 48
          %v10512 = vpop.permute.xlu0 %10511
          %10513 = vrot.lane.b32.xlu0 %v9029, 48
          %v10514 = vpop.permute.xlu0 %10513
          %10515 = vrot.lane.b32.xlu0 %v9030, 48
          %v10516 = vpop.permute.xlu0 %10515
          %10517 = vrot.lane.b32.xlu0 %v9031, 48
          %v10518 = vpop.permute.xlu0 %10517
          %10519 = vrot.lane.b32.xlu0 %v9032, 48
          %v10520 = vpop.permute.xlu0 %10519
          %10521 = vrot.lane.b32.xlu0 %v9033, 48
          %v10522 = vpop.permute.xlu0 %10521
          %10523 = vrot.lane.b32.xlu0 %v9034, 48
          %v10524 = vpop.permute.xlu0 %10523
          %10525 = vrot.lane.b32.xlu0 %v9035, 48
          %v10526 = vpop.permute.xlu0 %10525
          %10527 = vrot.lane.b32.xlu0 %v9036, 48
          %v10528 = vpop.permute.xlu0 %10527
          %10529 = vrot.lane.b32.xlu0 %v9037, 48
          %v10530 = vpop.permute.xlu0 %10529
          %10531 = vrot.lane.b32.xlu0 %v9038, 48
          %v10532 = vpop.permute.xlu0 %10531
          %10533 = vrot.lane.b32.xlu0 %v9039, 48
          %v10534 = vpop.permute.xlu0 %10533
          %10535 = vrot.lane.b32.xlu0 %v9040, 48
          %v10536 = vpop.permute.xlu0 %10535
          %10537 = vrot.lane.b32.xlu0 %v9041, 48
          %v10538 = vpop.permute.xlu0 %10537
          %10539 = vrot.lane.b32.xlu0 %v9042, 48
          %v10540 = vpop.permute.xlu0 %10539
          %10541 = vrot.lane.b32.xlu0 %v9043, 48
          %v10542 = vpop.permute.xlu0 %10541
          %10543 = vrot.lane.b32.xlu0 %v9044, 48
          %v10544 = vpop.permute.xlu0 %10543
          %10545 = vrot.lane.b32.xlu0 %v9045, 48
          %v10546 = vpop.permute.xlu0 %10545
          %10547 = vrot.lane.b32.xlu0 %v9046, 48
          %v10548 = vpop.permute.xlu0 %10547
          %10549 = vrot.lane.b32.xlu0 %v9047, 48
          %v10550 = vpop.permute.xlu0 %10549
          %10551 = vrot.lane.b32.xlu0 %v9048, 48
          %v10552 = vpop.permute.xlu0 %10551
          %10553 = vrot.lane.b32.xlu0 %v9049, 48
          %v10554 = vpop.permute.xlu0 %10553
          %10555 = vrot.lane.b32.xlu0 %v9050, 48
          %v10556 = vpop.permute.xlu0 %10555
          %10557 = vrot.lane.b32.xlu0 %v9051, 48
          %v10558 = vpop.permute.xlu0 %10557
          %10559 = vrot.lane.b32.xlu0 %v9052, 48
          %v10560 = vpop.permute.xlu0 %10559
          %10561 = vrot.lane.b32.xlu0 %v9053, 48
          %v10562 = vpop.permute.xlu0 %10561
          %10563 = vrot.lane.b32.xlu0 %v9054, 48
          %v10564 = vpop.permute.xlu0 %10563
          %10565 = vrot.lane.b32.xlu0 %v9055, 48
          %v10566 = vpop.permute.xlu0 %10565
          %10567 = vrot.lane.b32.xlu0 %v9056, 48
          %v10568 = vpop.permute.xlu0 %10567
          %10569 = vrot.lane.b32.xlu0 %v9057, 48
          %v10570 = vpop.permute.xlu0 %10569
          %10571 = vrot.lane.b32.xlu0 %v9058, 48
          %v10572 = vpop.permute.xlu0 %10571
          %10637 = vmatprep.subr.mxu0 0.0
          %10638 = vmatpush1.msra.mxu0 %v10446
          %10639 = vmatprep.subr.mxu0 0.0
          %10640 = vmatpush1.msra.mxu0 %v10448
          %10641 = vmatprep.subr.mxu0 0.0
          %10642 = vmatpush1.msra.mxu0 %v10450
          %10643 = vmatprep.subr.mxu0 0.0
          %10644 = vmatpush1.msra.mxu0 %v10452
          %10645 = vmatprep.subr.mxu0 0.0
          %10646 = vmatpush1.msra.mxu0 %v10454
          %10647 = vmatprep.subr.mxu0 0.0
          %10648 = vmatpush1.msra.mxu0 %v10456
          %10649 = vmatprep.subr.mxu0 0.0
          %10650 = vmatpush1.msra.mxu0 %v10458
          %10651 = vmatprep.subr.mxu0 0.0
          %10652 = vmatpush1.msra.mxu0 %v10460
          %10653 = vmatprep.subr.mxu0 0.0
          %10654 = vmatpush1.msra.mxu0 %v10462
          %10655 = vmatprep.subr.mxu0 0.0
          %10656 = vmatpush1.msra.mxu0 %v10464
          %10657 = vmatprep.subr.mxu0 0.0
          %10658 = vmatpush1.msra.mxu0 %v10466
          %10659 = vmatprep.subr.mxu0 0.0
          %10660 = vmatpush1.msra.mxu0 %v10468
          %10661 = vmatprep.subr.mxu0 0.0
          %10662 = vmatpush1.msra.mxu0 %v10470
          %10663 = vmatprep.subr.mxu0 0.0
          %10664 = vmatpush1.msra.mxu0 %v10472
          %10665 = vmatprep.subr.mxu0 0.0
          %10666 = vmatpush1.msra.mxu0 %v10474
          %10667 = vmatprep.subr.mxu0 0.0
          %10668 = vmatpush1.msra.mxu0 %v10476
          %10669 = vmatprep.subr.mxu0 0.0
          %10670 = vmatpush1.msra.mxu0 %v10478
          %10671 = vmatprep.subr.mxu0 0.0
          %10672 = vmatpush1.msra.mxu0 %v10480
          %10673 = vmatprep.subr.mxu0 0.0
          %10674 = vmatpush1.msra.mxu0 %v10482
          %10675 = vmatprep.subr.mxu0 0.0
          %10676 = vmatpush1.msra.mxu0 %v10484
          %10677 = vmatprep.subr.mxu0 0.0
          %10678 = vmatpush1.msra.mxu0 %v10486
          %10679 = vmatprep.subr.mxu0 0.0
          %10680 = vmatpush1.msra.mxu0 %v10488
          %10681 = vmatprep.subr.mxu0 0.0
          %10682 = vmatpush1.msra.mxu0 %v10490
          %10683 = vmatprep.subr.mxu0 0.0
          %10684 = vmatpush1.msra.mxu0 %v10492
          %10685 = vmatprep.subr.mxu0 0.0
          %10686 = vmatpush1.msra.mxu0 %v10494
          %10687 = vmatprep.subr.mxu0 0.0
          %10688 = vmatpush1.msra.mxu0 %v10496
          %10689 = vmatprep.subr.mxu0 0.0
          %10690 = vmatpush1.msra.mxu0 %v10498
          %10691 = vmatprep.subr.mxu0 0.0
          %10692 = vmatpush1.msra.mxu0 %v10500
          %10693 = vmatprep.subr.mxu0 0.0
          %10694 = vmatpush1.msra.mxu0 %v10502
          %10695 = vmatprep.subr.mxu0 0.0
          %10696 = vmatpush1.msra.mxu0 %v10504
          %10697 = vmatprep.subr.mxu0 0.0
          %10698 = vmatpush1.msra.mxu0 %v10506
          %10699 = vmatprep.subr.mxu0 0.0
          %10700 = vmatpush1.msra.mxu0 %v10508
          %10701 = vmatprep.mubr.f32.mxu0 %v10040
          %10702 = vmatmul.mubr.f32.gmra.mrb[0].mxu0 %v10038
          %v10703 = vpop.f32.mrb[0].mxu0
          %v10704 = vadd.f32 %v10442, %v10703
          %v10705 = vpop.f32.mrb[0].mxu0
          %10706 = vdwg.mxu0
          %10707 = vmatprep.subr.mxu0 0.0
          %10708 = vmatpush1.msra.mxu0 %v10510
          %10709 = vmatprep.subr.mxu0 0.0
          %10710 = vmatpush1.msra.mxu0 %v10512
          %10711 = vmatprep.subr.mxu0 0.0
          %10712 = vmatpush1.msra.mxu0 %v10514
          %10713 = vmatprep.subr.mxu0 0.0
          %10714 = vmatpush1.msra.mxu0 %v10516
          %10715 = vmatprep.subr.mxu0 0.0
          %10716 = vmatpush1.msra.mxu0 %v10518
          %10717 = vmatprep.subr.mxu0 0.0
          %10718 = vmatpush1.msra.mxu0 %v10520
          %10719 = vmatprep.subr.mxu0 0.0
          %10720 = vmatpush1.msra.mxu0 %v10522
          %10721 = vmatprep.subr.mxu0 0.0
          %10722 = vmatpush1.msra.mxu0 %v10524
          %10723 = vmatprep.subr.mxu0 0.0
          %10724 = vmatpush1.msra.mxu0 %v10526
          %10725 = vmatprep.subr.mxu0 0.0
          %10726 = vmatpush1.msra.mxu0 %v10528
          %10727 = vmatprep.subr.mxu0 0.0
          %10728 = vmatpush1.msra.mxu0 %v10530
          %10729 = vmatprep.subr.mxu0 0.0
          %10730 = vmatpush1.msra.mxu0 %v10532
          %10731 = vmatprep.subr.mxu0 0.0
          %10732 = vmatpush1.msra.mxu0 %v10534
          %10733 = vmatprep.subr.mxu0 0.0
          %10734 = vmatpush1.msra.mxu0 %v10536
          %10735 = vmatprep.subr.mxu0 0.0
          %10736 = vmatpush1.msra.mxu0 %v10538
          %10737 = vmatprep.subr.mxu0 0.0
          %10738 = vmatpush1.msra.mxu0 %v10540
          %10739 = vmatprep.subr.mxu0 0.0
          %10740 = vmatpush1.msra.mxu0 %v10542
          %10741 = vmatprep.subr.mxu0 0.0
          %10742 = vmatpush1.msra.mxu0 %v10544
          %10743 = vmatprep.subr.mxu0 0.0
          %10744 = vmatpush1.msra.mxu0 %v10546
          %10745 = vmatprep.subr.mxu0 0.0
          %10746 = vmatpush1.msra.mxu0 %v10548
          %10747 = vmatprep.subr.mxu0 0.0
          %10748 = vmatpush1.msra.mxu0 %v10550
          %10749 = vmatprep.subr.mxu0 0.0
          %10750 = vmatpush1.msra.mxu0 %v10552
          %10751 = vmatprep.subr.mxu0 0.0
          %10752 = vmatpush1.msra.mxu0 %v10554
          %10753 = vmatprep.subr.mxu0 0.0
          %10754 = vmatpush1.msra.mxu0 %v10556
          %10755 = vmatprep.subr.mxu0 0.0
          %10756 = vmatpush1.msra.mxu0 %v10558
          %10757 = vmatprep.subr.mxu0 0.0
          %10758 = vmatpush1.msra.mxu0 %v10560
          %10759 = vmatprep.subr.mxu0 0.0
          %10760 = vmatpush1.msra.mxu0 %v10562
          %10761 = vmatprep.subr.mxu0 0.0
          %10762 = vmatpush1.msra.mxu0 %v10564
          %10763 = vmatprep.subr.mxu0 0.0
          %10764 = vmatpush1.msra.mxu0 %v10566
          %10765 = vmatprep.subr.mxu0 0.0
          %10766 = vmatpush1.msra.mxu0 %v10568
          %10767 = vmatprep.subr.mxu0 0.0
          %10768 = vmatpush1.msra.mxu0 %v10570
          %10769 = vmatprep.subr.mxu0 0.0
          %10770 = vmatpush1.msra.mxu0 %v10572
          %10771 = vmatprep.mubr.f32.mxu0 %v10111
          %10772 = vmatmul.mubr.f32.gmra.mrb[0].mxu0 %v10109
          %v10773 = vpop.f32.mrb[0].mxu0
          %v10774 = vadd.f32 %v10704, %v10773
          %v10775 = vpop.f32.mrb[0].mxu0
          %10776 = vdwg.mxu0
          %v10777 = vld [vmem:[#allocation12 + $0x43] sm:$0x1]
          %v10778 = vadd.f32 %v10774, %v10777
          %vm10779 = vcmask 49152
          %10780 = vst.msk [vmem:[#allocation15] sm:$0x1] %vm10779, %v10778
        $region84: #{tpu_custom_call.1} parent=47 // pred_fallthru
          _
        // Predicated region
        $region85: #{tpu_custom_call.1} parent=47 // pred_check
          %p10781 = pneg %p191
        $region86: #{tpu_custom_call.1} parent=47 // pred_check_branch
          %10783 = sbr.rel (%p10781) target = $region88
        $region87: #{tpu_custom_call.1} parent=47 // pred_region
          %s10785 = ssub.s32 16, 16
          %10786 = vsyncadd [#allocation5], %s10785
          %s10788 = sshll.u32 [#allocation15], 4
          %s10789 = int_to_ptr.vmem [resolvable:$true] %s10788
          %10791 = dma.vmem_to_hbm [thread:$0]  %s10789, 16, %s7, [#allocation5]
        $region88: #{tpu_custom_call.1} parent=47 // pred_fallthru
          _
        // Predicated region
        $region89: #{tpu_custom_call.1} parent=47 // pred_check
          %p10792 = pneg %p212
        $region90: #{tpu_custom_call.1} parent=47 // pred_check_branch
          %10794 = sbr.rel (%p10792) target = $region92
        $region91: #{tpu_custom_call.1} parent=47 // pred_region
          %s10796 = ssub.s32 1024, 1024
          %10797 = vsyncadd [#allocation17], %s10796
          %s10798 = sshll.u32 [#allocation16], 4
          %s10799 = int_to_ptr.vmem [resolvable:$true] %s10798
          %10804 = dma.vmem_to_hbm [thread:$0]  %s10799, 1024, %s8, [#allocation17], 512, 512, 32
        $region92: #{tpu_custom_call.1} parent=47 // pred_fallthru
          _
        // Predicated region
        $region93: #{tpu_custom_call.1} parent=47 // pred_check
          %p10805 = pneg %p191
        $region94: #{tpu_custom_call.1} parent=47 // pred_check_branch
          %10807 = sbr.rel (%p10805) target = $region96
        $region95: #{tpu_custom_call.1} parent=47 // pred_region
          %10808 = dma.done [#allocation5], 16
        $region96: #{tpu_custom_call.1} parent=47 // pred_fallthru
          _
        // Predicated region
        $region97: #{tpu_custom_call.1} parent=47 // pred_check
          %p10809 = pneg %p212
        $region98: #{tpu_custom_call.1} parent=47 // pred_check_branch
          %10811 = sbr.rel (%p10809) target = $region100
        $region99: #{tpu_custom_call.1} parent=47 // pred_region
          %10812 = dma.done [#allocation17], 1024
        $region100: #{tpu_custom_call.1} parent=47 // pred_fallthru
          _
      $region48: #{tpu_custom_call.1} parent=5 // pred_fallthru
        _
      %p10813 = scmp.le.s32.totalorder 2, %s21
      // Predicated region
      $region101: #{tpu_custom_call.1} parent=5 // pred_check
        %p10814 = pneg %p10813
      $region102: #{tpu_custom_call.1} parent=5 // pred_check_branch
        %10816 = sbr.rel (%p10814) target = $region104
      $region103: #{tpu_custom_call.1} parent=5 // pred_region
        %s10817 = ssub.s32 %s21, 2
      $region104: #{tpu_custom_call.1} parent=5 // pred_fallthru
        _
    $region6: #{tpu_custom_call.1} parent=1 // loop_footer
      %s25 = sadd.s32 1, %s21
    $region7: #{tpu_custom_call.1} parent=1 // loop_footer_branch
      %20 = sbr.rel target = $region3
    $region8: #{tpu_custom_call.1} parent=1 // loop_exit
      _
    %10818 = vsyncpa [#allocation4], 1
    %s10819 = scalar_lea.sflag [#allocation4], 1
    %10820 = vsyncpa %s10819, 1
    %10821 = vsyncpa [#allocation7], 1
    %10822 = vsyncpa [#allocation10], 1
    %10823 = vsyncpa [#allocation13], 1
    %10824 = vsyncpa [#allocation5], 1
    %s10825 = scalar_lea.sflag [#allocation5], 1
    %10826 = vsyncpa %s10825, 1
    %10827 = vsyncpa [#allocation17], 1

</llo_original>
